<compile_context>
chip_gen: v6e
topology: v6e:2x2x1
jax: 0.10.0
libtpu: 0.0.40
codegen_flags: <defaults>
</compile_context>

<pallas_src>
import math

import jax
import jax.numpy as jnp
from jax import lax
from jax.experimental import pallas as pl
from jax.experimental.pallas import tpu as pltpu

# ---------------- model dimensions -------------------------------------------
D_MODEL = 32
NHEAD = 4
HEAD_DIM = D_MODEL // NHEAD
FAN_DIM = 2 * D_MODEL            # fan_dim default: d_model * 2
P_DIM = FAN_DIM // 4             # FAN periodic branch width (p_ratio = 0.25)
G_DIM = FAN_DIM - 2 * P_DIM      # FAN gelu branch width
PG_DIM = P_DIM + G_DIM           # fused periodic+gate projection width
PROJ_W = 2 * D_MODEL + NHEAD * D_MODEL   # fused Q | K | (V@Wo per head) width = 192
LN_EPS = 1e-5
NEG_INF = -1e30


def _layer_norm(x, gamma, beta):
    mu = jnp.mean(x, axis=-1, keepdims=True)
    var = jnp.mean((x - mu) ** 2, axis=-1, keepdims=True)
    return (x - mu) * lax.rsqrt(var + LN_EPS) * gamma + beta


# ------------------------------- Pallas kernel --------------------------------
def _encoder_layer_kernel(x_ref,           # (N, D) f32 token tile
                          wproj_ref,       # (D, PROJ_W) bf16 : [Wq*s | Wk | Wv_h@Wo_h]
                          wpg_ref,         # (D, PG_DIM) bf16 : [Wp | Wg]
                          wfo_ref,         # (FAN_DIM, D) bf16
                          bias_ref,        # (8, PROJ_W) f32 packed bias/LN vectors
                          mask_ref,        # (N, N) f32 additive block-diag mask
                          out_ref):        # (N, D)
    x = x_ref[...]                                    # f32, kept for residual
    xb = x.astype(jnp.bfloat16)

    # Packed bias rows (all slices start at lane 0 -> cheap).
    b_proj = bias_ref[0:1, :]                         # (1, PROJ_W)  Q/K/Vfold biases
    b_o    = bias_ref[1:2, :D_MODEL]
    ln1_g  = bias_ref[2:3, :D_MODEL]
    ln1_b  = bias_ref[3:4, :D_MODEL]
    b_pg   = bias_ref[4:5, :PG_DIM]                   # phase | gelu-branch bias
    b_fo   = bias_ref[5:6, :D_MODEL]
    ln2_g  = bias_ref[6:7, :D_MODEL]
    ln2_b  = bias_ref[7:8, :D_MODEL]

    # ----- fused Q | K | (V @ Wo) projection, one MXU matmul -----
    proj = jnp.dot(xb, wproj_ref[...], preferred_element_type=jnp.float32) + b_proj
    mask = mask_ref[...]                              # f32 additive block-diag mask

    # ----- per-head attention; softmax stats stay in f32 -----
    attn = None
    for h in range(NHEAD):                            # static loop over heads
        lo = h * HEAD_DIM
        qh = proj[:, lo:lo + HEAD_DIM].astype(jnp.bfloat16)            # scale folded
        kh = proj[:, D_MODEL + lo:D_MODEL + lo + HEAD_DIM].astype(jnp.bfloat16)
        s = lax.dot_general(qh, kh, (((1,), (1,)), ((), ())),
                            preferred_element_type=jnp.float32)        # (N, N) f32
        s = s + mask
        m = jnp.max(s, axis=-1, keepdims=True)
        p = jnp.exp(s - m)
        denom = jnp.sum(p, axis=-1, keepdims=True)
        p = p * pl.reciprocal(denom, approx=True)     # EUP reciprocal, no VPU divide
        vh = proj[:, 2 * D_MODEL + h * D_MODEL:
                     2 * D_MODEL + (h + 1) * D_MODEL].astype(jnp.bfloat16)  # (N, D)
        oh = jnp.dot(p.astype(jnp.bfloat16), vh,
                     preferred_element_type=jnp.float32)                # K=N matmul
        attn = oh if attn is None else attn + oh
    attn = attn + b_o

    # ----- residual + LayerNorm1 (dropout = identity in eval) -----
    h1 = _layer_norm(x + attn, ln1_g, ln1_b)

    # ----- HybridPhaseFANLayer: single fused projection, split lanes -----
    pg = jnp.dot(h1.astype(jnp.bfloat16), wpg_ref[...],
                 preferred_element_type=jnp.float32) + b_pg
    pp = pg[:, :P_DIM]
    # TODO(synk): PyTorch nn.GELU default is exact (erf); tanh approximation used here.
    gg = jax.nn.gelu(pg[:, P_DIM:], approximate=True)
    wfo = wfo_ref[...]
    # concat(cos, sin, gelu) @ W_out == sum of three dots against W_out row blocks
    fan = (jnp.dot(jnp.cos(pp).astype(jnp.bfloat16), wfo[:P_DIM, :],
                   preferred_element_type=jnp.float32)
           + jnp.dot(jnp.sin(pp).astype(jnp.bfloat16), wfo[P_DIM:2 * P_DIM, :],
                     preferred_element_type=jnp.float32)
           + jnp.dot(gg.astype(jnp.bfloat16), wfo[2 * P_DIM:, :],
                     preferred_element_type=jnp.float32)
           + b_fo)

    # ----- residual + LayerNorm2 -----
    h2 = _layer_norm(h1 + fan, ln2_g, ln2_b)
    out_ref[...] = h2.astype(out_ref.dtype)


# ------------------------------- wrapper --------------------------------------
def _default_batch_tile(B, S):
    # Prefer N = TB*S == 128 (lane-dense scores/p, fills the MXU); with B >= 2*TB
    # this also keeps grid >= 2 for v7x's two TensorCores.  Fallback: largest
    # divisor of B with N a multiple of 8.
    if S <= 128 and 128 % S == 0 and B % (128 // S) == 0:
        return 128 // S
    for tb in range(B, 0, -1):
        if B % tb == 0 and (tb * S) % 8 == 0:
            return tb
    return B


def hybrid_phase_encoder_layer(src, params, *, batch_tile=None):
    B, S, D = src.shape
    assert D == D_MODEL
    if batch_tile is None:
        batch_tile = _default_batch_tile(B, S)
    assert B % batch_tile == 0, "batch must be divisible by batch_tile"
    N = batch_tile * S
    assert N % 8 == 0, "batch_tile * seq_len must be a multiple of 8 (sublane tile)"

    f32 = jnp.float32

    # --- wrapper-time weight folding (plain XLA ops, run once per call) ---
    scale = 1.0 / math.sqrt(HEAD_DIM)
    wq = params["wqkv"][:, :D_MODEL] * scale            # 1/sqrt(head_dim) into Q
    bq = params["bqkv"][:, :D_MODEL] * scale
    wk = params["wqkv"][:, D_MODEL:2 * D_MODEL]
    bk = params["bqkv"][:, D_MODEL:2 * D_MODEL]
    wv = params["wqkv"][:, 2 * D_MODEL:]
    bv = params["bqkv"][:, 2 * D_MODEL:]
    wo, bo = params["wo"], params["bo"]

    # Fold W_o / b_v into the V projection per head: vproj_h = x@(Wv_h@Wo_h) + bv_h@Wo_h
    # so attn = sum_h p_h @ vproj_h + bo, exactly (no reliance on softmax row sums).
    wv_fold, bv_fold = [], []
    for h in range(NHEAD):
        lo = h * HEAD_DIM
        wo_h = wo[lo:lo + HEAD_DIM, :]                   # (HEAD_DIM, D)
        wv_fold.append(wv[:, lo:lo + HEAD_DIM] @ wo_h)   # (D, D)
        bv_fold.append(bv[:, lo:lo + HEAD_DIM] @ wo_h)   # (1, D)
    w_proj = jnp.concatenate([wq, wk] + wv_fold, axis=1)            # (D, PROJ_W) f32
    b_proj = jnp.concatenate([bq, bk] + bv_fold, axis=1)            # (1, PROJ_W) f32

    w_pg = jnp.concatenate([params["wp"], params["wg"]], axis=1)    # (D, PG_DIM)
    b_pg = jnp.concatenate([params["phase"][0] * jnp.ones((1, P_DIM), f32),
                            params["bg"]], axis=1)                  # phase folded in

    # Pack the eight (1,.) bias / LayerNorm vectors into one (8, PROJ_W) array.
    def pad_row(v):
        return jnp.pad(v.astype(f32), ((0, 0), (0, PROJ_W - v.shape[1])))
    biases = jnp.concatenate(
        [pad_row(b_proj), pad_row(bo), pad_row(params["ln1_g"]), pad_row(params["ln1_b"]),
         pad_row(b_pg), pad_row(params["bfo"]), pad_row(params["ln2_g"]),
         pad_row(params["ln2_b"])], axis=0)                         # (8, PROJ_W)

    # bf16 MXU operands (accumulation stays f32 via preferred_element_type).
    w_proj_bf = w_proj.astype(jnp.bfloat16)
    w_pg_bf = w_pg.astype(jnp.bfloat16)
    w_fo_bf = params["wfo"].astype(jnp.bfloat16)

    # Block-diagonal additive mask, precomputed once (hoisted out of the kernel).
    tok_seq = jnp.arange(N, dtype=jnp.int32) // S
    neg_bias = jnp.where(tok_seq[:, None] == tok_seq[None, :], 0.0, NEG_INF).astype(f32)

    x_flat = src.reshape(B * S, D)                      # contiguous token slab

    def wspec(shape):
        # whole-array block with a constant index map: fetched once, not re-DMA'd
        return pl.BlockSpec(shape, lambda b: (0,) * len(shape))

    in_specs = [
        pl.BlockSpec((N, D), lambda b: (b, 0)),         # token tile for this grid step
        wspec((D_MODEL, PROJ_W)),                       # fused Q|K|V@Wo weights
        wspec((D_MODEL, PG_DIM)),                       # fused Wp|Wg
        wspec((FAN_DIM, D_MODEL)),                      # W_fan_out
        wspec((8, PROJ_W)),                             # packed biases / LN params
        wspec((N, N)),                                  # block-diagonal mask
    ]

    out_flat = pl.pallas_call(
        _encoder_layer_kernel,
        out_shape=jax.ShapeDtypeStruct((B * S, D), src.dtype),
        grid=(B // batch_tile,),
        in_specs=in_specs,
        # Contiguous (N, D) slab per grid step -> dense, contiguous HBM writeback.
        out_specs=pl.BlockSpec((N, D), lambda b: (b, 0)),
        compiler_params=pltpu.CompilerParams(
            dimension_semantics=("parallel",)),         # shards steps across v7x TCs
    )(x_flat, w_proj_bf, w_pg_bf, w_fo_bf, biases, neg_bias)

    return out_flat.reshape(B, S, D)


# --------------------------- deterministic init --------------------------------
def init_params(key):
    ks = jax.random.split(key, 12)

    def lin(k, fan_in, fan_out):
        lim = 1.0 / math.sqrt(fan_in)
        return jax.random.uniform(k, (fan_in, fan_out), jnp.float32, -lim, lim)

    def bias(k, n, lim=0.1):
        return jax.random.uniform(k, (1, n), jnp.float32, -lim, lim)

    return dict(
        wqkv=lin(ks[0], D_MODEL, 3 * D_MODEL),
        bqkv=bias(ks[1], 3 * D_MODEL),
        wo=lin(ks[2], D_MODEL, D_MODEL),
        bo=bias(ks[3], D_MODEL),
        ln1_g=1.0 + 0.1 * jax.random.normal(ks[4], (1, D_MODEL), jnp.float32),
        ln1_b=0.1 * jax.random.normal(ks[5], (1, D_MODEL), jnp.float32),
        wp=lin(ks[6], D_MODEL, P_DIM),
        wg=lin(ks[7], D_MODEL, G_DIM),
        bg=bias(ks[8], G_DIM),
        wfo=lin(ks[9], FAN_DIM, D_MODEL),
        bfo=bias(ks[10], D_MODEL),
        ln2_g=1.0 + 0.1 * jax.random.normal(ks[11], (1, D_MODEL), jnp.float32),
        ln2_b=jnp.zeros((1, D_MODEL), jnp.float32),
        # phase_coefficient (1.0) * init_phase (pi/4)
        phase=jnp.array([1.0 * math.pi / 4.0], jnp.float32),
    )


# --------------------------- plain-JAX reference (f32) -------------------------
def reference_forward(src, params):
    B, S, D = src.shape
    qkv = src @ params["wqkv"] + params["bqkv"]
    q, k, v = jnp.split(qkv, 3, axis=-1)

    def split_heads(t):
        return t.reshape(B, S, NHEAD, HEAD_DIM).transpose(0, 2, 1, 3)

    qh, kh, vh = map(split_heads, (q, k, v))
    s = jnp.einsum("bhqd,bhkd->bhqk", qh, kh) / math.sqrt(HEAD_DIM)
    p = jax.nn.softmax(s, axis=-1)
    a = jnp.einsum("bhqk,bhkd->bhqd", p, vh).transpose(0, 2, 1, 3).reshape(B, S, D)
    a = a @ params["wo"] + params["bo"]
    h1 = _layer_norm(src + a, params["ln1_g"], params["ln1_b"])

    pp = h1 @ params["wp"] + params["phase"][0]
    gg = jax.nn.gelu(h1 @ params["wg"] + params["bg"], approximate=True)
    fan = jnp.concatenate([jnp.cos(pp), jnp.sin(pp), gg], axis=-1)
    fan = fan @ params["wfo"] + params["bfo"]
    h2 = _layer_norm(h1 + fan, params["ln2_g"], params["ln2_b"])
    return h2


if __name__ == "__main__":
    key = jax.random.PRNGKey(0)
    k_src, k_par = jax.random.split(key)

    B, S = 32, 8                                  # TB=16 -> N=128 (lane-dense), grid=2
    src = jax.random.normal(k_src, (B, S, D_MODEL), dtype=jnp.float32)
    params = init_params(k_par)

    out = hybrid_phase_encoder_layer(src, params)
    out = jax.block_until_ready(out)

    ref = reference_forward(src, params)
    assert out.shape == (B, S, D_MODEL)
    max_err = float(jnp.max(jnp.abs(out - ref)))
    mean_err = float(jnp.mean(jnp.abs(out - ref)))
    # Tolerances cover bf16 MXU operands (f32 accumulation) and the approximate
    # EUP reciprocal in the softmax; the reference runs entirely in f32.
    assert max_err < 1e-1, f"kernel/reference mismatch: max abs err = {max_err}"
    assert mean_err < 2e-2, f"kernel/reference mismatch: mean abs err = {mean_err}"

    print("KERNEL_OK")
</pallas_src>

<mosaic_0001>
module attributes {stable_mosaic.version = 11 : i64} {
  func.func @_encoder_layer_kernel(%arg0: i32, %arg1: memref<128x32xf32, #tpu.memory_space<vmem>>, %arg2: memref<32x192xbf16, #tpu.memory_space<vmem>>, %arg3: memref<32x48xbf16, #tpu.memory_space<vmem>>, %arg4: memref<64x32xbf16, #tpu.memory_space<vmem>>, %arg5: memref<8x192xf32, #tpu.memory_space<vmem>>, %arg6: memref<128x128xf32, #tpu.memory_space<vmem>>, %arg7: memref<128x32xf32, #tpu.memory_space<vmem>>) attributes {dimension_semantics = [#tpu.dimension_semantics<parallel>], iteration_bounds = array<i64: 2>, scalar_prefetch = 0 : i64, scratch_operands = 0 : i64, tpu.core_type = #tpu.core_type<tc>, window_params = [{transform_indices = @transform_0, window_bounds = array<i64: 128, 32>}, {pipeline_mode = #tpu.pipeline_mode<synchronous>, transform_indices = @transform_1, window_bounds = array<i64: 32, 192>}, {pipeline_mode = #tpu.pipeline_mode<synchronous>, transform_indices = @transform_2, window_bounds = array<i64: 32, 48>}, {pipeline_mode = #tpu.pipeline_mode<synchronous>, transform_indices = @transform_3, window_bounds = array<i64: 64, 32>}, {pipeline_mode = #tpu.pipeline_mode<synchronous>, transform_indices = @transform_4, window_bounds = array<i64: 8, 192>}, {pipeline_mode = #tpu.pipeline_mode<synchronous>, transform_indices = @transform_5, window_bounds = array<i64: 128, 128>}, {transform_indices = @transform_6, window_bounds = array<i64: 128, 32>}]} {
    %c0 = arith.constant 0 : index
    %c0_0 = arith.constant 0 : index
    %0 = vector.load %arg1[%c0, %c0_0] : memref<128x32xf32, #tpu.memory_space<vmem>>, vector<128x32xf32>
    %1 = arith.truncf %0 : vector<128x32xf32> to vector<128x32xbf16>
    %c0_1 = arith.constant 0 : index
    %c0_2 = arith.constant 0 : index
    %2 = vector.load %arg5[%c0_1, %c0_2] : memref<8x192xf32, #tpu.memory_space<vmem>>, vector<1x192xf32>
    %c1 = arith.constant 1 : index
    %c0_3 = arith.constant 0 : index
    %3 = vector.load %arg5[%c1, %c0_3] : memref<8x192xf32, #tpu.memory_space<vmem>>, vector<1x32xf32>
    %c2 = arith.constant 2 : index
    %c0_4 = arith.constant 0 : index
    %4 = vector.load %arg5[%c2, %c0_4] : memref<8x192xf32, #tpu.memory_space<vmem>>, vector<1x32xf32>
    %c3 = arith.constant 3 : index
    %c0_5 = arith.constant 0 : index
    %5 = vector.load %arg5[%c3, %c0_5] : memref<8x192xf32, #tpu.memory_space<vmem>>, vector<1x32xf32>
    %c4 = arith.constant 4 : index
    %c0_6 = arith.constant 0 : index
    %6 = vector.load %arg5[%c4, %c0_6] : memref<8x192xf32, #tpu.memory_space<vmem>>, vector<1x48xf32>
    %c5 = arith.constant 5 : index
    %c0_7 = arith.constant 0 : index
    %7 = vector.load %arg5[%c5, %c0_7] : memref<8x192xf32, #tpu.memory_space<vmem>>, vector<1x32xf32>
    %c6 = arith.constant 6 : index
    %c0_8 = arith.constant 0 : index
    %8 = vector.load %arg5[%c6, %c0_8] : memref<8x192xf32, #tpu.memory_space<vmem>>, vector<1x32xf32>
    %c7 = arith.constant 7 : index
    %c0_9 = arith.constant 0 : index
    %9 = vector.load %arg5[%c7, %c0_9] : memref<8x192xf32, #tpu.memory_space<vmem>>, vector<1x32xf32>
    %c0_10 = arith.constant 0 : index
    %c0_11 = arith.constant 0 : index
    %10 = vector.load %arg2[%c0_10, %c0_11] : memref<32x192xbf16, #tpu.memory_space<vmem>>, vector<32x192xbf16>
    %cst = arith.constant dense<0.000000e+00> : vector<128x192xf32>
    %11 = tpu.matmul %1, %10, %cst {dimension_numbers = #tpu.dot_dimension_numbers<[1], [0], [0], [1], [0, 0, 1, 1], [], []>} : vector<128x32xbf16>, vector<32x192xbf16>, vector<128x192xf32> -> vector<128x192xf32>
    %12 = vector.broadcast %2 : vector<1x192xf32> to vector<128x192xf32>
    %13 = arith.addf %11, %12 : vector<128x192xf32>
    %c0_12 = arith.constant 0 : index
    %c0_13 = arith.constant 0 : index
    %14 = vector.load %arg6[%c0_12, %c0_13] : memref<128x128xf32, #tpu.memory_space<vmem>>, vector<128x128xf32>
    %15 = vector.extract_strided_slice %13 {offsets = [0, 0], sizes = [128, 8], strides = [1, 1]} : vector<128x192xf32> to vector<128x8xf32>
    %16 = arith.truncf %15 : vector<128x8xf32> to vector<128x8xbf16>
    %17 = vector.extract_strided_slice %13 {offsets = [0, 32], sizes = [128, 8], strides = [1, 1]} : vector<128x192xf32> to vector<128x8xf32>
    %18 = arith.truncf %17 : vector<128x8xf32> to vector<128x8xbf16>
    %cst_14 = arith.constant dense<0.000000e+00> : vector<128x128xf32>
    %19 = tpu.matmul %16, %18, %cst_14 {dimension_numbers = #tpu.dot_dimension_numbers<[1], [1], [0], [0], [0, 0, 1, 0], [], []>} : vector<128x8xbf16>, vector<128x8xbf16>, vector<128x128xf32> -> vector<128x128xf32>
    %20 = arith.addf %19, %14 : vector<128x128xf32>
    %cst_15 = arith.constant dense<0xFF800000> : vector<128xf32>
    %21 = vector.multi_reduction <maximumf>, %20, %cst_15 [1] : vector<128x128xf32> to vector<128xf32>
    %22 = vector.shape_cast %21 : vector<128xf32> to vector<128x1xf32>
    %23 = vector.broadcast %22 : vector<128x1xf32> to vector<128x128xf32>
    %24 = arith.subf %20, %23 : vector<128x128xf32>
    %25 = math.exp %24 : vector<128x128xf32>
    %cst_16 = arith.constant dense<0.000000e+00> : vector<128xf32>
    %26 = vector.multi_reduction <add>, %25, %cst_16 [1] : vector<128x128xf32> to vector<128xf32>
    %27 = vector.shape_cast %26 : vector<128xf32> to vector<128x1xf32>
    %28 = tpu.reciprocal %27 {approx = true} : vector<128x1xf32> -> vector<128x1xf32>
    %29 = vector.broadcast %28 : vector<128x1xf32> to vector<128x128xf32>
    %30 = arith.mulf %25, %29 : vector<128x128xf32>
    %31 = vector.extract_strided_slice %13 {offsets = [0, 64], sizes = [128, 32], strides = [1, 1]} : vector<128x192xf32> to vector<128x32xf32>
    %32 = arith.truncf %31 : vector<128x32xf32> to vector<128x32xbf16>
    %33 = arith.truncf %30 : vector<128x128xf32> to vector<128x128xbf16>
    %cst_17 = arith.constant dense<0.000000e+00> : vector<128x32xf32>
    %34 = tpu.matmul %33, %32, %cst_17 {dimension_numbers = #tpu.dot_dimension_numbers<[1], [0], [0], [1], [0, 0, 1, 1], [], []>} : vector<128x128xbf16>, vector<128x32xbf16>, vector<128x32xf32> -> vector<128x32xf32>
    %35 = vector.extract_strided_slice %13 {offsets = [0, 8], sizes = [128, 8], strides = [1, 1]} : vector<128x192xf32> to vector<128x8xf32>
    %36 = arith.truncf %35 : vector<128x8xf32> to vector<128x8xbf16>
    %37 = vector.extract_strided_slice %13 {offsets = [0, 40], sizes = [128, 8], strides = [1, 1]} : vector<128x192xf32> to vector<128x8xf32>
    %38 = arith.truncf %37 : vector<128x8xf32> to vector<128x8xbf16>
    %cst_18 = arith.constant dense<0.000000e+00> : vector<128x128xf32>
    %39 = tpu.matmul %36, %38, %cst_18 {dimension_numbers = #tpu.dot_dimension_numbers<[1], [1], [0], [0], [0, 0, 1, 0], [], []>} : vector<128x8xbf16>, vector<128x8xbf16>, vector<128x128xf32> -> vector<128x128xf32>
    %40 = arith.addf %39, %14 : vector<128x128xf32>
    %cst_19 = arith.constant dense<0xFF800000> : vector<128xf32>
    %41 = vector.multi_reduction <maximumf>, %40, %cst_19 [1] : vector<128x128xf32> to vector<128xf32>
    %42 = vector.shape_cast %41 : vector<128xf32> to vector<128x1xf32>
    %43 = vector.broadcast %42 : vector<128x1xf32> to vector<128x128xf32>
    %44 = arith.subf %40, %43 : vector<128x128xf32>
    %45 = math.exp %44 : vector<128x128xf32>
    %cst_20 = arith.constant dense<0.000000e+00> : vector<128xf32>
    %46 = vector.multi_reduction <add>, %45, %cst_20 [1] : vector<128x128xf32> to vector<128xf32>
    %47 = vector.shape_cast %46 : vector<128xf32> to vector<128x1xf32>
    %48 = tpu.reciprocal %47 {approx = true} : vector<128x1xf32> -> vector<128x1xf32>
    %49 = vector.broadcast %48 : vector<128x1xf32> to vector<128x128xf32>
    %50 = arith.mulf %45, %49 : vector<128x128xf32>
    %51 = vector.extract_strided_slice %13 {offsets = [0, 96], sizes = [128, 32], strides = [1, 1]} : vector<128x192xf32> to vector<128x32xf32>
    %52 = arith.truncf %51 : vector<128x32xf32> to vector<128x32xbf16>
    %53 = arith.truncf %50 : vector<128x128xf32> to vector<128x128xbf16>
    %cst_21 = arith.constant dense<0.000000e+00> : vector<128x32xf32>
    %54 = tpu.matmul %53, %52, %cst_21 {dimension_numbers = #tpu.dot_dimension_numbers<[1], [0], [0], [1], [0, 0, 1, 1], [], []>} : vector<128x128xbf16>, vector<128x32xbf16>, vector<128x32xf32> -> vector<128x32xf32>
    %55 = arith.addf %34, %54 : vector<128x32xf32>
    %56 = vector.extract_strided_slice %13 {offsets = [0, 16], sizes = [128, 8], strides = [1, 1]} : vector<128x192xf32> to vector<128x8xf32>
    %57 = arith.truncf %56 : vector<128x8xf32> to vector<128x8xbf16>
    %58 = vector.extract_strided_slice %13 {offsets = [0, 48], sizes = [128, 8], strides = [1, 1]} : vector<128x192xf32> to vector<128x8xf32>
    %59 = arith.truncf %58 : vector<128x8xf32> to vector<128x8xbf16>
    %cst_22 = arith.constant dense<0.000000e+00> : vector<128x128xf32>
    %60 = tpu.matmul %57, %59, %cst_22 {dimension_numbers = #tpu.dot_dimension_numbers<[1], [1], [0], [0], [0, 0, 1, 0], [], []>} : vector<128x8xbf16>, vector<128x8xbf16>, vector<128x128xf32> -> vector<128x128xf32>
    %61 = arith.addf %60, %14 : vector<128x128xf32>
    %cst_23 = arith.constant dense<0xFF800000> : vector<128xf32>
    %62 = vector.multi_reduction <maximumf>, %61, %cst_23 [1] : vector<128x128xf32> to vector<128xf32>
    %63 = vector.shape_cast %62 : vector<128xf32> to vector<128x1xf32>
    %64 = vector.broadcast %63 : vector<128x1xf32> to vector<128x128xf32>
    %65 = arith.subf %61, %64 : vector<128x128xf32>
    %66 = math.exp %65 : vector<128x128xf32>
    %cst_24 = arith.constant dense<0.000000e+00> : vector<128xf32>
    %67 = vector.multi_reduction <add>, %66, %cst_24 [1] : vector<128x128xf32> to vector<128xf32>
    %68 = vector.shape_cast %67 : vector<128xf32> to vector<128x1xf32>
    %69 = tpu.reciprocal %68 {approx = true} : vector<128x1xf32> -> vector<128x1xf32>
    %70 = vector.broadcast %69 : vector<128x1xf32> to vector<128x128xf32>
    %71 = arith.mulf %66, %70 : vector<128x128xf32>
    %72 = vector.extract_strided_slice %13 {offsets = [0, 128], sizes = [128, 32], strides = [1, 1]} : vector<128x192xf32> to vector<128x32xf32>
    %73 = arith.truncf %72 : vector<128x32xf32> to vector<128x32xbf16>
    %74 = arith.truncf %71 : vector<128x128xf32> to vector<128x128xbf16>
    %cst_25 = arith.constant dense<0.000000e+00> : vector<128x32xf32>
    %75 = tpu.matmul %74, %73, %cst_25 {dimension_numbers = #tpu.dot_dimension_numbers<[1], [0], [0], [1], [0, 0, 1, 1], [], []>} : vector<128x128xbf16>, vector<128x32xbf16>, vector<128x32xf32> -> vector<128x32xf32>
    %76 = arith.addf %55, %75 : vector<128x32xf32>
    %77 = vector.extract_strided_slice %13 {offsets = [0, 24], sizes = [128, 8], strides = [1, 1]} : vector<128x192xf32> to vector<128x8xf32>
    %78 = arith.truncf %77 : vector<128x8xf32> to vector<128x8xbf16>
    %79 = vector.extract_strided_slice %13 {offsets = [0, 56], sizes = [128, 8], strides = [1, 1]} : vector<128x192xf32> to vector<128x8xf32>
    %80 = arith.truncf %79 : vector<128x8xf32> to vector<128x8xbf16>
    %cst_26 = arith.constant dense<0.000000e+00> : vector<128x128xf32>
    %81 = tpu.matmul %78, %80, %cst_26 {dimension_numbers = #tpu.dot_dimension_numbers<[1], [1], [0], [0], [0, 0, 1, 0], [], []>} : vector<128x8xbf16>, vector<128x8xbf16>, vector<128x128xf32> -> vector<128x128xf32>
    %82 = arith.addf %81, %14 : vector<128x128xf32>
    %cst_27 = arith.constant dense<0xFF800000> : vector<128xf32>
    %83 = vector.multi_reduction <maximumf>, %82, %cst_27 [1] : vector<128x128xf32> to vector<128xf32>
    %84 = vector.shape_cast %83 : vector<128xf32> to vector<128x1xf32>
    %85 = vector.broadcast %84 : vector<128x1xf32> to vector<128x128xf32>
    %86 = arith.subf %82, %85 : vector<128x128xf32>
    %87 = math.exp %86 : vector<128x128xf32>
    %cst_28 = arith.constant dense<0.000000e+00> : vector<128xf32>
    %88 = vector.multi_reduction <add>, %87, %cst_28 [1] : vector<128x128xf32> to vector<128xf32>
    %89 = vector.shape_cast %88 : vector<128xf32> to vector<128x1xf32>
    %90 = tpu.reciprocal %89 {approx = true} : vector<128x1xf32> -> vector<128x1xf32>
    %91 = vector.broadcast %90 : vector<128x1xf32> to vector<128x128xf32>
    %92 = arith.mulf %87, %91 : vector<128x128xf32>
    %93 = vector.extract_strided_slice %13 {offsets = [0, 160], sizes = [128, 32], strides = [1, 1]} : vector<128x192xf32> to vector<128x32xf32>
    %94 = arith.truncf %93 : vector<128x32xf32> to vector<128x32xbf16>
    %95 = arith.truncf %92 : vector<128x128xf32> to vector<128x128xbf16>
    %cst_29 = arith.constant dense<0.000000e+00> : vector<128x32xf32>
    %96 = tpu.matmul %95, %94, %cst_29 {dimension_numbers = #tpu.dot_dimension_numbers<[1], [0], [0], [1], [0, 0, 1, 1], [], []>} : vector<128x128xbf16>, vector<128x32xbf16>, vector<128x32xf32> -> vector<128x32xf32>
    %97 = arith.addf %76, %96 : vector<128x32xf32>
    %98 = vector.broadcast %3 : vector<1x32xf32> to vector<128x32xf32>
    %99 = arith.addf %97, %98 : vector<128x32xf32>
    %100 = arith.addf %0, %99 : vector<128x32xf32>
    %cst_30 = arith.constant dense<0.000000e+00> : vector<128xf32>
    %101 = vector.multi_reduction <add>, %100, %cst_30 [1] : vector<128x32xf32> to vector<128xf32>
    %102 = vector.shape_cast %101 : vector<128xf32> to vector<128x1xf32>
    %cst_31 = arith.constant 3.200000e+01 : f32
    %103 = vector.broadcast %cst_31 : f32 to vector<128x1xf32>
    %104 = arith.divf %102, %103 : vector<128x1xf32>
    %105 = vector.broadcast %104 : vector<128x1xf32> to vector<128x32xf32>
    %106 = arith.subf %100, %105 : vector<128x32xf32>
    %107 = arith.mulf %106, %106 : vector<128x32xf32>
    %cst_32 = arith.constant dense<0.000000e+00> : vector<128xf32>
    %108 = vector.multi_reduction <add>, %107, %cst_32 [1] : vector<128x32xf32> to vector<128xf32>
    %109 = vector.shape_cast %108 : vector<128xf32> to vector<128x1xf32>
    %cst_33 = arith.constant 3.200000e+01 : f32
    %110 = vector.broadcast %cst_33 : f32 to vector<128x1xf32>
    %111 = arith.divf %109, %110 : vector<128x1xf32>
    %112 = vector.broadcast %104 : vector<128x1xf32> to vector<128x32xf32>
    %113 = arith.subf %100, %112 : vector<128x32xf32>
    %cst_34 = arith.constant 9.99999974E-6 : f32
    %114 = vector.broadcast %cst_34 : f32 to vector<128x1xf32>
    %115 = arith.addf %111, %114 : vector<128x1xf32>
    %116 = math.rsqrt %115 : vector<128x1xf32>
    %117 = vector.broadcast %116 : vector<128x1xf32> to vector<128x32xf32>
    %118 = arith.mulf %113, %117 : vector<128x32xf32>
    %119 = vector.broadcast %4 : vector<1x32xf32> to vector<128x32xf32>
    %120 = arith.mulf %118, %119 : vector<128x32xf32>
    %121 = vector.broadcast %5 : vector<1x32xf32> to vector<128x32xf32>
    %122 = arith.addf %120, %121 : vector<128x32xf32>
    %123 = arith.truncf %122 : vector<128x32xf32> to vector<128x32xbf16>
    %c0_35 = arith.constant 0 : index
    %c0_36 = arith.constant 0 : index
    %124 = vector.load %arg3[%c0_35, %c0_36] : memref<32x48xbf16, #tpu.memory_space<vmem>>, vector<32x48xbf16>
    %cst_37 = arith.constant dense<0.000000e+00> : vector<128x48xf32>
    %125 = tpu.matmul %123, %124, %cst_37 {dimension_numbers = #tpu.dot_dimension_numbers<[1], [0], [0], [1], [0, 0, 1, 1], [], []>} : vector<128x32xbf16>, vector<32x48xbf16>, vector<128x48xf32> -> vector<128x48xf32>
    %126 = vector.broadcast %6 : vector<1x48xf32> to vector<128x48xf32>
    %127 = arith.addf %125, %126 : vector<128x48xf32>
    %128 = vector.extract_strided_slice %127 {offsets = [0, 0], sizes = [128, 16], strides = [1, 1]} : vector<128x48xf32> to vector<128x16xf32>
    %129 = vector.extract_strided_slice %127 {offsets = [0, 16], sizes = [128, 32], strides = [1, 1]} : vector<128x48xf32> to vector<128x32xf32>
    %130 = arith.mulf %129, %129 : vector<128x32xf32>
    %131 = arith.mulf %129, %130 : vector<128x32xf32>
    %cst_38 = arith.constant 4.471500e-02 : f32
    %132 = vector.broadcast %cst_38 : f32 to vector<128x32xf32>
    %133 = arith.mulf %132, %131 : vector<128x32xf32>
    %134 = arith.addf %129, %133 : vector<128x32xf32>
    %cst_39 = arith.constant 0.797884583 : f32
    %135 = vector.broadcast %cst_39 : f32 to vector<128x32xf32>
    %136 = arith.mulf %135, %134 : vector<128x32xf32>
    %137 = math.tanh %136 : vector<128x32xf32>
    %cst_40 = arith.constant 1.000000e+00 : f32
    %138 = vector.broadcast %cst_40 : f32 to vector<128x32xf32>
    %139 = arith.addf %138, %137 : vector<128x32xf32>
    %cst_41 = arith.constant 5.000000e-01 : f32
    %140 = vector.broadcast %cst_41 : f32 to vector<128x32xf32>
    %141 = arith.mulf %140, %139 : vector<128x32xf32>
    %142 = arith.mulf %129, %141 : vector<128x32xf32>
    %c0_42 = arith.constant 0 : index
    %c0_43 = arith.constant 0 : index
    %143 = vector.load %arg4[%c0_42, %c0_43] : memref<64x32xbf16, #tpu.memory_space<vmem>>, vector<64x32xbf16>
    %144 = math.cos %128 : vector<128x16xf32>
    %145 = arith.truncf %144 : vector<128x16xf32> to vector<128x16xbf16>
    %146 = vector.extract_strided_slice %143 {offsets = [0, 0], sizes = [16, 32], strides = [1, 1]} : vector<64x32xbf16> to vector<16x32xbf16>
    %cst_44 = arith.constant dense<0.000000e+00> : vector<128x32xf32>
    %147 = tpu.matmul %145, %146, %cst_44 {dimension_numbers = #tpu.dot_dimension_numbers<[1], [0], [0], [1], [0, 0, 1, 1], [], []>} : vector<128x16xbf16>, vector<16x32xbf16>, vector<128x32xf32> -> vector<128x32xf32>
    %148 = math.sin %128 : vector<128x16xf32>
    %149 = arith.truncf %148 : vector<128x16xf32> to vector<128x16xbf16>
    %150 = vector.extract_strided_slice %143 {offsets = [16, 0], sizes = [16, 32], strides = [1, 1]} : vector<64x32xbf16> to vector<16x32xbf16>
    %cst_45 = arith.constant dense<0.000000e+00> : vector<128x32xf32>
    %151 = tpu.matmul %149, %150, %cst_45 {dimension_numbers = #tpu.dot_dimension_numbers<[1], [0], [0], [1], [0, 0, 1, 1], [], []>} : vector<128x16xbf16>, vector<16x32xbf16>, vector<128x32xf32> -> vector<128x32xf32>
    %152 = arith.addf %147, %151 : vector<128x32xf32>
    %153 = arith.truncf %142 : vector<128x32xf32> to vector<128x32xbf16>
    %154 = vector.extract_strided_slice %143 {offsets = [32, 0], sizes = [32, 32], strides = [1, 1]} : vector<64x32xbf16> to vector<32x32xbf16>
    %cst_46 = arith.constant dense<0.000000e+00> : vector<128x32xf32>
    %155 = tpu.matmul %153, %154, %cst_46 {dimension_numbers = #tpu.dot_dimension_numbers<[1], [0], [0], [1], [0, 0, 1, 1], [], []>} : vector<128x32xbf16>, vector<32x32xbf16>, vector<128x32xf32> -> vector<128x32xf32>
    %156 = arith.addf %152, %155 : vector<128x32xf32>
    %157 = vector.broadcast %7 : vector<1x32xf32> to vector<128x32xf32>
    %158 = arith.addf %156, %157 : vector<128x32xf32>
    %159 = arith.addf %122, %158 : vector<128x32xf32>
    %cst_47 = arith.constant dense<0.000000e+00> : vector<128xf32>
    %160 = vector.multi_reduction <add>, %159, %cst_47 [1] : vector<128x32xf32> to vector<128xf32>
    %161 = vector.shape_cast %160 : vector<128xf32> to vector<128x1xf32>
    %cst_48 = arith.constant 3.200000e+01 : f32
    %162 = vector.broadcast %cst_48 : f32 to vector<128x1xf32>
    %163 = arith.divf %161, %162 : vector<128x1xf32>
    %164 = vector.broadcast %163 : vector<128x1xf32> to vector<128x32xf32>
    %165 = arith.subf %159, %164 : vector<128x32xf32>
    %166 = arith.mulf %165, %165 : vector<128x32xf32>
    %cst_49 = arith.constant dense<0.000000e+00> : vector<128xf32>
    %167 = vector.multi_reduction <add>, %166, %cst_49 [1] : vector<128x32xf32> to vector<128xf32>
    %168 = vector.shape_cast %167 : vector<128xf32> to vector<128x1xf32>
    %cst_50 = arith.constant 3.200000e+01 : f32
    %169 = vector.broadcast %cst_50 : f32 to vector<128x1xf32>
    %170 = arith.divf %168, %169 : vector<128x1xf32>
    %171 = vector.broadcast %163 : vector<128x1xf32> to vector<128x32xf32>
    %172 = arith.subf %159, %171 : vector<128x32xf32>
    %cst_51 = arith.constant 9.99999974E-6 : f32
    %173 = vector.broadcast %cst_51 : f32 to vector<128x1xf32>
    %174 = arith.addf %170, %173 : vector<128x1xf32>
    %175 = math.rsqrt %174 : vector<128x1xf32>
    %176 = vector.broadcast %175 : vector<128x1xf32> to vector<128x32xf32>
    %177 = arith.mulf %172, %176 : vector<128x32xf32>
    %178 = vector.broadcast %8 : vector<1x32xf32> to vector<128x32xf32>
    %179 = arith.mulf %177, %178 : vector<128x32xf32>
    %180 = vector.broadcast %9 : vector<1x32xf32> to vector<128x32xf32>
    %181 = arith.addf %179, %180 : vector<128x32xf32>
    %c0_52 = arith.constant 0 : index
    %c0_53 = arith.constant 0 : index
    %182 = vector.load %arg7[%c0_52, %c0_53] : memref<128x32xf32, #tpu.memory_space<vmem>>, vector<128x32xf32>
    tpu.vector_store %arg7[%c0_52, %c0_53], %181 {strides = array<i32>} : memref<128x32xf32, #tpu.memory_space<vmem>>, vector<128x32xf32>,
    return
  }
  func.func @transform_0(%arg0: i32) -> (i32, i32) {
    %c0_i32 = arith.constant 0 : i32
    %c0_i32_0 = arith.constant 0 : i32
    return %arg0, %c0_i32 : i32, i32
  }
  func.func @transform_1(%arg0: i32) -> (i32, i32) {
    %c0_i32 = arith.constant 0 : i32
    %c0_i32_0 = arith.constant 0 : i32
    %c0_i32_1 = arith.constant 0 : i32
    return %c0_i32, %c0_i32_0 : i32, i32
  }
  func.func @transform_2(%arg0: i32) -> (i32, i32) {
    %c0_i32 = arith.constant 0 : i32
    %c0_i32_0 = arith.constant 0 : i32
    %c0_i32_1 = arith.constant 0 : i32
    return %c0_i32, %c0_i32_0 : i32, i32
  }
  func.func @transform_3(%arg0: i32) -> (i32, i32) {
    %c0_i32 = arith.constant 0 : i32
    %c0_i32_0 = arith.constant 0 : i32
    %c0_i32_1 = arith.constant 0 : i32
    return %c0_i32, %c0_i32_0 : i32, i32
  }
  func.func @transform_4(%arg0: i32) -> (i32, i32) {
    %c0_i32 = arith.constant 0 : i32
    %c0_i32_0 = arith.constant 0 : i32
    %c0_i32_1 = arith.constant 0 : i32
    return %c0_i32, %c0_i32_0 : i32, i32
  }
  func.func @transform_5(%arg0: i32) -> (i32, i32) {
    %c0_i32 = arith.constant 0 : i32
    %c0_i32_0 = arith.constant 0 : i32
    %c0_i32_1 = arith.constant 0 : i32
    return %c0_i32, %c0_i32_0 : i32, i32
  }
  func.func @transform_6(%arg0: i32) -> (i32, i32) {
    %c0_i32 = arith.constant 0 : i32
    %c0_i32_0 = arith.constant 0 : i32
    return %arg0, %c0_i32 : i32, i32
  }
}

</mosaic_0001>

<llo_original>
// kernel: tpu_custom_call.1
$region0: #{tpu_custom_call.1}
  #allocation0 [shape = 'u32[]', space=smem, size = 0x4, offset = 0x4, fixed_abs, tag = 'smem constant byte address 0x4 - core index']
  #allocation1 [shape = 'u32[144,128]{1,0:T(1,128)}', space=vmem, size = 0x12000, scoped, tag = 'internal scratch']
  %s0 = inlined_call_operand.vmem [shape: f32[256,32], index: 0, kind: input, shape index: {}]
  %s1 = inlined_call_operand.vmem [shape: bf16[32,192], index: 1, kind: input, shape index: {}]
  %s2 = inlined_call_operand.vmem [shape: bf16[32,48], index: 2, kind: input, shape index: {}]
  %s3 = inlined_call_operand.vmem [shape: bf16[64,32], index: 3, kind: input, shape index: {}]
  %s4 = inlined_call_operand.vmem [shape: f32[8,192], index: 4, kind: input, shape index: {}]
  %s5 = inlined_call_operand.vmem [shape: f32[128,128], index: 5, kind: input, shape index: {}]
  %s6 = inlined_call_operand.vmem [shape: f32[256,32], index: 6, kind: output, shape index: {}]
  %s7 = sld [smem:[#allocation0]]
  $region57: #{tpu_custom_call.1} parent=0
    _
  %s9 = ssub.s32 1, %s7
  %s10 = scalar_select 0, %s9, %s7
  loop: start=0, step=1, limit=4
  $region2: #{tpu_custom_call.1} parent=0 // loop_pre_header
    _
  $region3: #{tpu_custom_call.1} parent=0 // loop_header
    %s12 = sphi 0, %s16
    %p13 = scmp.ge.s32.totalorder %s12, 4
    %s22 = sphi 0, %s24
    %s25 = sphi 0, %s22
    %s26 = sphi 0, %s25
    %s42 = sphi 0, %s26
    %s46 = sphi 0, %s46
    %s48 = sphi 0, %s46
    %s49 = sphi 0, %s48
    %s63 = sphi 0, %s49
    %s67 = sphi 0, %s67
    %s69 = sphi 0, %s67
    %s70 = sphi 0, %s69
    %s84 = sphi 0, %s70
    %s88 = sphi 0, %s88
    %s90 = sphi 0, %s88
    %s91 = sphi 0, %s90
    %s105 = sphi 0, %s91
    %s109 = sphi 0, %s109
    %s111 = sphi 0, %s109
    %s112 = sphi 0, %s111
    %s126 = sphi 0, %s112
    %s130 = sphi 0, %s130
    %s132 = sphi 0, %s130
    %s133 = sphi 0, %s132
    %s147 = sphi 0, %s133
    %s153 = sphi 0, %s155
    %s156 = sphi 0, %s153
    %s157 = sphi 0, %s156
    %s173 = sphi 0, %s157
  $region4: #{tpu_custom_call.1} parent=0 // loop_header_branch
    %15 = sbr.rel (%p13) target = $region8
  $region5: #{tpu_custom_call.1} parent=0 // loop_body
    %s17 = ssub.s32 %s12, 1
    %s18 = ssub.s32 %s12, 2
    %s19 = sadd.s32 %s12, 1
    %s20 = ssub.s32 %s12, %s19
    %p21 = scmp.eq.s32.totalorder %s20, 0
    %s23 = sadd.s32 %s22, 1
    %s24 = scalar_select %p21, %s22, %s23
    %p27 = pneg %p21
    %p28 = scmp.eq.s32.totalorder %s12, 1
    %p29 = por %p27, %p28
    %p30 = scmp.ne.s32.totalorder %s22, %s25
    %p31 = scmp.eq.s32.totalorder %s12, 0
    %p32 = por %p30, %p31
    %p33 = scmp.ne.s32.totalorder %s22, %s25
    %p34 = scmp.eq.s32.totalorder %s17, 1
    %p35 = por %p33, %p34
    %p36 = scmp.ne.s32.totalorder %s25, %s26
    %p37 = scmp.eq.s32.totalorder %s17, 0
    %p38 = por %p36, %p37
    %p39 = scmp.ne.s32.totalorder %s25, %s26
    %p40 = scmp.eq.s32.totalorder %s18, 1
    %p41 = por %p39, %p40
    %p43 = scmp.ne.s32.totalorder %s26, %s42
    %p44 = scmp.eq.s32.totalorder %s18, 0
    %p45 = por %p43, %p44
    %s47 = sadd.s32 %s46, 1
    %p50 = scmp.eq.s32.totalorder %s12, 1
    %p51 = scmp.ne.s32.totalorder %s46, %s48
    %p52 = scmp.eq.s32.totalorder %s12, 0
    %p53 = por %p51, %p52
    %p54 = scmp.ne.s32.totalorder %s46, %s48
    %p55 = scmp.eq.s32.totalorder %s17, 1
    %p56 = por %p54, %p55
    %p57 = scmp.ne.s32.totalorder %s48, %s49
    %p58 = scmp.eq.s32.totalorder %s17, 0
    %p59 = por %p57, %p58
    %p60 = scmp.ne.s32.totalorder %s48, %s49
    %p61 = scmp.eq.s32.totalorder %s18, 1
    %p62 = por %p60, %p61
    %p64 = scmp.ne.s32.totalorder %s49, %s63
    %p65 = scmp.eq.s32.totalorder %s18, 0
    %p66 = por %p64, %p65
    %s68 = sadd.s32 %s67, 1
    %p71 = scmp.eq.s32.totalorder %s12, 1
    %p72 = scmp.ne.s32.totalorder %s67, %s69
    %p73 = scmp.eq.s32.totalorder %s12, 0
    %p74 = por %p72, %p73
    %p75 = scmp.ne.s32.totalorder %s67, %s69
    %p76 = scmp.eq.s32.totalorder %s17, 1
    %p77 = por %p75, %p76
    %p78 = scmp.ne.s32.totalorder %s69, %s70
    %p79 = scmp.eq.s32.totalorder %s17, 0
    %p80 = por %p78, %p79
    %p81 = scmp.ne.s32.totalorder %s69, %s70
    %p82 = scmp.eq.s32.totalorder %s18, 1
    %p83 = por %p81, %p82
    %p85 = scmp.ne.s32.totalorder %s70, %s84
    %p86 = scmp.eq.s32.totalorder %s18, 0
    %p87 = por %p85, %p86
    %s89 = sadd.s32 %s88, 1
    %p92 = scmp.eq.s32.totalorder %s12, 1
    %p93 = scmp.ne.s32.totalorder %s88, %s90
    %p94 = scmp.eq.s32.totalorder %s12, 0
    %p95 = por %p93, %p94
    %p96 = scmp.ne.s32.totalorder %s88, %s90
    %p97 = scmp.eq.s32.totalorder %s17, 1
    %p98 = por %p96, %p97
    %p99 = scmp.ne.s32.totalorder %s90, %s91
    %p100 = scmp.eq.s32.totalorder %s17, 0
    %p101 = por %p99, %p100
    %p102 = scmp.ne.s32.totalorder %s90, %s91
    %p103 = scmp.eq.s32.totalorder %s18, 1
    %p104 = por %p102, %p103
    %p106 = scmp.ne.s32.totalorder %s91, %s105
    %p107 = scmp.eq.s32.totalorder %s18, 0
    %p108 = por %p106, %p107
    %s110 = sadd.s32 %s109, 1
    %p113 = scmp.eq.s32.totalorder %s12, 1
    %p114 = scmp.ne.s32.totalorder %s109, %s111
    %p115 = scmp.eq.s32.totalorder %s12, 0
    %p116 = por %p114, %p115
    %p117 = scmp.ne.s32.totalorder %s109, %s111
    %p118 = scmp.eq.s32.totalorder %s17, 1
    %p119 = por %p117, %p118
    %p120 = scmp.ne.s32.totalorder %s111, %s112
    %p121 = scmp.eq.s32.totalorder %s17, 0
    %p122 = por %p120, %p121
    %p123 = scmp.ne.s32.totalorder %s111, %s112
    %p124 = scmp.eq.s32.totalorder %s18, 1
    %p125 = por %p123, %p124
    %p127 = scmp.ne.s32.totalorder %s112, %s126
    %p128 = scmp.eq.s32.totalorder %s18, 0
    %p129 = por %p127, %p128
    %s131 = sadd.s32 %s130, 1
    %p134 = scmp.eq.s32.totalorder %s12, 1
    %p135 = scmp.ne.s32.totalorder %s130, %s132
    %p136 = scmp.eq.s32.totalorder %s12, 0
    %p137 = por %p135, %p136
    %p138 = scmp.ne.s32.totalorder %s130, %s132
    %p139 = scmp.eq.s32.totalorder %s17, 1
    %p140 = por %p138, %p139
    %p141 = scmp.ne.s32.totalorder %s132, %s133
    %p142 = scmp.eq.s32.totalorder %s17, 0
    %p143 = por %p141, %p142
    %p144 = scmp.ne.s32.totalorder %s132, %s133
    %p145 = scmp.eq.s32.totalorder %s18, 1
    %p146 = por %p144, %p145
    %p148 = scmp.ne.s32.totalorder %s133, %s147
    %p149 = scmp.eq.s32.totalorder %s18, 0
    %p150 = por %p148, %p149
    %s151 = ssub.s32 %s12, %s19
    %p152 = scmp.eq.s32.totalorder %s151, 0
    %s154 = sadd.s32 %s153, 1
    %s155 = scalar_select %p152, %s153, %s154
    %p158 = pneg %p152
    %p159 = scmp.eq.s32.totalorder %s12, 1
    %p160 = por %p158, %p159
    %p161 = scmp.ne.s32.totalorder %s153, %s156
    %p162 = scmp.eq.s32.totalorder %s12, 0
    %p163 = por %p161, %p162
    %p164 = scmp.ne.s32.totalorder %s153, %s156
    %p165 = scmp.eq.s32.totalorder %s17, 1
    %p166 = por %p164, %p165
    %p167 = scmp.ne.s32.totalorder %s156, %s157
    %p168 = scmp.eq.s32.totalorder %s17, 0
    %p169 = por %p167, %p168
    %p170 = scmp.ne.s32.totalorder %s156, %s157
    %p171 = scmp.eq.s32.totalorder %s18, 1
    %p172 = por %p170, %p171
    %p174 = scmp.ne.s32.totalorder %s157, %s173
    %p175 = scmp.eq.s32.totalorder %s18, 0
    %p176 = por %p174, %p175
    %p177 = scmp.le.s32.totalorder 1, %s12
    %p178 = scmp.lt.s32.totalorder %s12, 3
    %p179 = pnand %p177, %p178
    %p180 = pneg %p179
    // Predicated region
    $region9: #{tpu_custom_call.1} parent=5 // pred_check
      _
    $region10: #{tpu_custom_call.1} parent=5 // pred_check_branch
      %182 = sbr.rel (%p179) target = $region12
    $region11: #{tpu_custom_call.1} parent=5 // pred_region
      %s183 = ssub.s32 %s12, 1
      // Predicated region
      $region13: #{tpu_custom_call.1} parent=11 // pred_check
        %p184 = pneg %p59
      $region14: #{tpu_custom_call.1} parent=11 // pred_check_branch
        %186 = sbr.rel (%p184) target = $region16
      $region15: #{tpu_custom_call.1} parent=11 // pred_region
        _
      $region16: #{tpu_custom_call.1} parent=11 // pred_fallthru
        _
      // Predicated region
      $region17: #{tpu_custom_call.1} parent=11 // pred_check
        %p187 = pneg %p80
      $region18: #{tpu_custom_call.1} parent=11 // pred_check_branch
        %189 = sbr.rel (%p187) target = $region20
      $region19: #{tpu_custom_call.1} parent=11 // pred_region
        _
      $region20: #{tpu_custom_call.1} parent=11 // pred_fallthru
        _
      // Predicated region
      $region21: #{tpu_custom_call.1} parent=11 // pred_check
        %p190 = pneg %p101
      $region22: #{tpu_custom_call.1} parent=11 // pred_check_branch
        %192 = sbr.rel (%p190) target = $region24
      $region23: #{tpu_custom_call.1} parent=11 // pred_region
        _
      $region24: #{tpu_custom_call.1} parent=11 // pred_fallthru
        _
      // Predicated region
      $region25: #{tpu_custom_call.1} parent=11 // pred_check
        %p193 = pneg %p122
      $region26: #{tpu_custom_call.1} parent=11 // pred_check_branch
        %195 = sbr.rel (%p193) target = $region28
      $region27: #{tpu_custom_call.1} parent=11 // pred_region
        _
      $region28: #{tpu_custom_call.1} parent=11 // pred_fallthru
        _
      // Predicated region
      $region29: #{tpu_custom_call.1} parent=11 // pred_check
        %p196 = pneg %p143
      $region30: #{tpu_custom_call.1} parent=11 // pred_check_branch
        %198 = sbr.rel (%p196) target = $region32
      $region31: #{tpu_custom_call.1} parent=11 // pred_region
        _
      $region32: #{tpu_custom_call.1} parent=11 // pred_fallthru
        _
    $region12: #{tpu_custom_call.1} parent=5 // pred_fallthru
      _
    %p199 = scmp.lt.s32.totalorder %s12, 2
    // Predicated region
    $region33: #{tpu_custom_call.1} parent=5 // pred_check
      %p200 = pneg %p199
    $region34: #{tpu_custom_call.1} parent=5 // pred_check_branch
      %202 = sbr.rel (%p200) target = $region36
    $region35: #{tpu_custom_call.1} parent=5 // pred_region
      // Predicated region
      $region37: #{tpu_custom_call.1} parent=35 // pred_check
        %p203 = pneg %p32
      $region38: #{tpu_custom_call.1} parent=35 // pred_check_branch
        %205 = sbr.rel (%p203) target = $region40
      $region39: #{tpu_custom_call.1} parent=35 // pred_region
        %s206 = smul.u32 16, %s12
        %p207 = scmp.lt.s32.totalorder %s206, 31
        %s208 = scalar_select %p207, %s206, 31
        %s209 = smul.addr %s208, 8
        %s210 = scalar_lea.vmem %s0, %s209
        %s211 = smul.u32 16, %s12
      $region40: #{tpu_custom_call.1} parent=35 // pred_fallthru
        _
    $region36: #{tpu_custom_call.1} parent=5 // pred_fallthru
      _
    %p212 = scmp.le.s32.totalorder 1, %s12
    %p213 = scmp.lt.s32.totalorder %s12, 3
    %p214 = pnand %p212, %p213
    %p215 = pneg %p214
    // Predicated region
    $region41: #{tpu_custom_call.1} parent=5 // pred_check
      _
    $region42: #{tpu_custom_call.1} parent=5 // pred_check_branch
      %217 = sbr.rel (%p214) target = $region44
    $region43: #{tpu_custom_call.1} parent=5 // pred_region
      %s218 = ssub.s32 %s12, 1
      %s219 = smul.u32 16, %s17
      %p220 = scmp.lt.s32.totalorder %s219, 31
      %s221 = scalar_select %p220, %s219, 31
      %s222 = smul.addr %s221, 8
      %s223 = scalar_lea.vmem %s0, %s222
      %p224 = pneg %p38
      %p225 = pneg %p35
      %p226 = pneg %p59
      %p227 = pneg %p56
      %p228 = pneg %p80
      %p229 = pneg %p77
      %p230 = pneg %p101
      %p231 = pneg %p98
      %p232 = pneg %p122
      %p233 = pneg %p119
      %p234 = pneg %p143
      %p235 = pneg %p140
      %p236 = pneg %p169
      %p237 = pneg %p166
      %s238 = smul.u32 16, %s17
      %p239 = scmp.lt.s32.totalorder %s238, 31
      %s240 = scalar_select %p239, %s238, 31
      %s241 = smul.addr %s240, 8
      %s242 = scalar_lea.vmem %s6, %s241
      %s243 = smul.u32 16, %s17
      %p244 = scmp.lt.s32.totalorder %s243, 31
      %s245 = scalar_select %p244, %s243, 31
      %s246 = smul.addr %s245, 8
      %s247 = scalar_lea.vmem %s0, %s246
      %s248 = smul.u32 16, %s17
      %s249 = smul.u32 16, %s17
      %p250 = scmp.lt.s32.totalorder %s249, 31
      %s251 = scalar_select %p250, %s249, 31
      %s252 = smul.addr %s251, 8
      %s253 = scalar_lea.vmem %s6, %s252
      %s254 = smul.u32 16, %s17
      %v256 = vld [vmem:[%s247] sm:$0xff]
      %v257 = vld [vmem:[%s247 + $0x8] sm:$0xff]
      %v258 = vld [vmem:[%s247 + $0x10] sm:$0xff]
      %v259 = vld [vmem:[%s247 + $0x18] sm:$0xff]
      %v260 = vld [vmem:[%s247 + $0x20] sm:$0xff]
      %v261 = vld [vmem:[%s247 + $0x28] sm:$0xff]
      %v262 = vld [vmem:[%s247 + $0x30] sm:$0xff]
      %v263 = vld [vmem:[%s247 + $0x38] sm:$0xff]
      %v264 = vld [vmem:[%s247 + $0x40] sm:$0xff]
      %v265 = vld [vmem:[%s247 + $0x48] sm:$0xff]
      %v266 = vld [vmem:[%s247 + $0x50] sm:$0xff]
      %v267 = vld [vmem:[%s247 + $0x58] sm:$0xff]
      %v268 = vld [vmem:[%s247 + $0x60] sm:$0xff]
      %v269 = vld [vmem:[%s247 + $0x68] sm:$0xff]
      %v270 = vld [vmem:[%s247 + $0x70] sm:$0xff]
      %v271 = vld [vmem:[%s247 + $0x78] sm:$0xff]
      %v272 = vpack.c.bf16 %v257, %v256
      %v273 = vpack.c.bf16 %v259, %v258
      %v274 = vpack.c.bf16 %v261, %v260
      %v275 = vpack.c.bf16 %v263, %v262
      %v276 = vpack.c.bf16 %v265, %v264
      %v277 = vpack.c.bf16 %v267, %v266
      %v278 = vpack.c.bf16 %v269, %v268
      %v279 = vpack.c.bf16 %v271, %v270
      %v280 = vld [vmem:[%s4] ss:$8 sm:$0x3]
      %v281 = vld [vmem:[%s4 + $0x1] ss:$0 sm:$0xff]
      %v282 = vld [vmem:[%s4 + $0x2] ss:$0 sm:$0xff]
      %v283 = vld [vmem:[%s4 + $0x3] ss:$0 sm:$0xff]
      %v284 = vld [vmem:[%s4 + $0x4] ss:$0 sm:$0xff]
      %v285 = vld [vmem:[%s4 + $0x5] ss:$0 sm:$0xff]
      %v286 = vld [vmem:[%s4 + $0x6] ss:$0 sm:$0xff]
      %v287 = vld [vmem:[%s4 + $0x7] ss:$0 sm:$0xff]
      %v288 = vld [vmem:[%s1] sm:$0xff]
      %v289 = vld [vmem:[%s1 + $0x8] sm:$0xff]
      %v290 = vld [vmem:[%s1 + $0x10] sm:$0xff]
      %v291 = vld [vmem:[%s1 + $0x18] sm:$0xff]
      %v293 = vlaneseq
      %v294 = vshrl.u32 %v293, 7
      %v295 = vsub.s32 0, %v294
      %v296 = vrot.slane %v280, %v295
      %v297 = vlaneseq
      %v298 = vshrl.u32 %v297, 7
      %v299 = vsub.s32 1, %v298
      %v300 = vrot.slane %v280, %v299
      %v307 = vunpack.c.l.b16 %v288
      %v308 = vunpack.c.h.b16 %v288
      %v309 = vunpack.c.l.b16 %v289
      %v310 = vunpack.c.h.b16 %v289
      %v311 = vunpack.c.l.b16 %v290
      %v312 = vunpack.c.h.b16 %v290
      %v313 = vunpack.c.l.b16 %v291
      %v314 = vunpack.c.h.b16 %v291
      %v315 = vpack.c.b16 %v309, %v307
      %v316 = vpack.c.b16 %v310, %v308
      %v317 = vpack.c.b16 %v313, %v311
      %v318 = vpack.c.b16 %v314, %v312
      %vm323 = vcmask 261120
      %v325 = vsel %vm323, %v272, 0
      %v328 = vsel %vm323, %v273, 0
      %v331 = vsel %vm323, %v274, 0
      %v334 = vsel %vm323, %v275, 0
      %v337 = vsel %vm323, %v276, 0
      %v340 = vsel %vm323, %v277, 0
      %v343 = vsel %vm323, %v278, 0
      %v346 = vsel %vm323, %v279, 0
      %348 = vmatprep.subr.bf16.mxu0 0
      %349 = vmatpush1.bf16.msra.mxu0 0
      %350 = vmatprep.subr.bf16.mxu0 0
      %351 = vmatpush1.bf16.msra.mxu0 0
      %352 = vmatprep.subr.bf16.mxu0 0
      %353 = vmatpush1.bf16.msra.mxu0 0
      %354 = vmatprep.subr.bf16.mxu0 0
      %355 = vmatpush1.bf16.msra.mxu0 0
      %356 = vmatprep.subr.bf16.mxu0 0
      %357 = vmatpush1.bf16.msra.mxu0 0
      %358 = vmatprep.subr.bf16.mxu0 0
      %359 = vmatpush1.bf16.msra.mxu0 0
      %360 = vmatprep.subr.bf16.mxu0 %v318
      %361 = vmatpush1.bf16.msra.mxu0 %v317
      %362 = vmatprep.subr.bf16.mxu0 %v316
      %363 = vmatpush1.bf16.msra.mxu0 %v315
      %364 = vmatprep.subr.bf16.mxu0 0
      %365 = vmatpush2.bf16.msra.mxu0 0
      %366 = vmatprep.subr.bf16.mxu0 0
      %367 = vmatpush2.bf16.msra.mxu0 0
      %368 = vmatprep.subr.bf16.mxu0 0
      %369 = vmatpush2.bf16.msra.mxu0 0
      %370 = vmatprep.subr.bf16.mxu0 0
      %371 = vmatpush2.bf16.msra.mxu0 0
      %372 = vmatprep.subr.bf16.mxu0 0
      %373 = vmatpush2.bf16.msra.mxu0 0
      %374 = vmatprep.subr.bf16.mxu0 0
      %375 = vmatpush2.bf16.msra.mxu0 0
      %376 = vmatprep.subr.bf16.mxu0 0
      %377 = vmatpush2.bf16.msra.mxu0 0
      %378 = vmatprep.subr.bf16.mxu0 0
      %379 = vmatpush2.bf16.msra.mxu0 0
      %380 = vmatprep.mubr.bf16.mxu0 0
      %381 = vmatmul.mubr.bf16.gmra.mxu0 %v325
      %v382 = vpop.f32.mrf.mxu0
      %v383 = vadd.f32 %v296, %v382
      %v384 = vpop.f32.mrf.mxu0
      %v385 = vadd.f32 %v300, %v384
      %v386 = vpop.f32.mrf.mxu0
      %v387 = vadd.f32 %v296, %v386
      %v388 = vpop.f32.mrf.mxu0
      %v389 = vadd.f32 %v300, %v388
      %390 = vmatprep.mubr.bf16.mxu0 0
      %391 = vmatmul.mubr.bf16.gmra.mxu0 %v328
      %v392 = vpop.f32.mrf.mxu0
      %v393 = vadd.f32 %v296, %v392
      %v394 = vpop.f32.mrf.mxu0
      %v395 = vadd.f32 %v300, %v394
      %v396 = vpop.f32.mrf.mxu0
      %v397 = vadd.f32 %v296, %v396
      %v398 = vpop.f32.mrf.mxu0
      %v399 = vadd.f32 %v300, %v398
      %400 = vmatprep.mubr.bf16.mxu0 0
      %401 = vmatmul.mubr.bf16.gmra.mxu0 %v331
      %v402 = vpop.f32.mrf.mxu0
      %v403 = vadd.f32 %v296, %v402
      %v404 = vpop.f32.mrf.mxu0
      %v405 = vadd.f32 %v300, %v404
      %v406 = vpop.f32.mrf.mxu0
      %v407 = vadd.f32 %v296, %v406
      %v408 = vpop.f32.mrf.mxu0
      %v409 = vadd.f32 %v300, %v408
      %410 = vmatprep.mubr.bf16.mxu0 0
      %411 = vmatmul.mubr.bf16.gmra.mxu0 %v334
      %v412 = vpop.f32.mrf.mxu0
      %v413 = vadd.f32 %v296, %v412
      %v414 = vpop.f32.mrf.mxu0
      %v415 = vadd.f32 %v300, %v414
      %v416 = vpop.f32.mrf.mxu0
      %v417 = vadd.f32 %v296, %v416
      %v418 = vpop.f32.mrf.mxu0
      %v419 = vadd.f32 %v300, %v418
      %420 = vmatprep.mubr.bf16.mxu0 0
      %421 = vmatmul.mubr.bf16.gmra.mxu0 %v337
      %v422 = vpop.f32.mrf.mxu0
      %v423 = vadd.f32 %v296, %v422
      %v424 = vpop.f32.mrf.mxu0
      %v425 = vadd.f32 %v300, %v424
      %v426 = vpop.f32.mrf.mxu0
      %v427 = vadd.f32 %v296, %v426
      %v428 = vpop.f32.mrf.mxu0
      %v429 = vadd.f32 %v300, %v428
      %430 = vmatprep.mubr.bf16.mxu0 0
      %431 = vmatmul.mubr.bf16.gmra.mxu0 %v340
      %v432 = vpop.f32.mrf.mxu0
      %v433 = vadd.f32 %v296, %v432
      %v434 = vpop.f32.mrf.mxu0
      %v435 = vadd.f32 %v300, %v434
      %v436 = vpop.f32.mrf.mxu0
      %v437 = vadd.f32 %v296, %v436
      %v438 = vpop.f32.mrf.mxu0
      %v439 = vadd.f32 %v300, %v438
      %440 = vmatprep.mubr.bf16.mxu0 0
      %441 = vmatmul.mubr.bf16.gmra.mxu0 %v343
      %v442 = vpop.f32.mrf.mxu0
      %v443 = vadd.f32 %v296, %v442
      %v444 = vpop.f32.mrf.mxu0
      %v445 = vadd.f32 %v300, %v444
      %v446 = vpop.f32.mrf.mxu0
      %v447 = vadd.f32 %v296, %v446
      %v448 = vpop.f32.mrf.mxu0
      %v449 = vadd.f32 %v300, %v448
      %450 = vmatprep.mubr.bf16.mxu0 0
      %451 = vmatmul.mubr.bf16.gmra.mxu0 %v346
      %v452 = vpop.f32.mrf.mxu0
      %v453 = vadd.f32 %v296, %v452
      %v454 = vpop.f32.mrf.mxu0
      %v455 = vadd.f32 %v300, %v454
      %v456 = vpop.f32.mrf.mxu0
      %v457 = vadd.f32 %v296, %v456
      %v458 = vpop.f32.mrf.mxu0
      %v459 = vadd.f32 %v300, %v458
      %460 = vdwg.mxu0
      %v461 = vld [vmem:[%s5] sm:$0xff]
      %v462 = vld [vmem:[%s5 + $0x8] sm:$0xff]
      %v463 = vld [vmem:[%s5 + $0x10] sm:$0xff]
      %v464 = vld [vmem:[%s5 + $0x18] sm:$0xff]
      %v465 = vld [vmem:[%s5 + $0x20] sm:$0xff]
      %v466 = vld [vmem:[%s5 + $0x28] sm:$0xff]
      %v467 = vld [vmem:[%s5 + $0x30] sm:$0xff]
      %v468 = vld [vmem:[%s5 + $0x38] sm:$0xff]
      %v469 = vld [vmem:[%s5 + $0x40] sm:$0xff]
      %v470 = vld [vmem:[%s5 + $0x48] sm:$0xff]
      %v471 = vld [vmem:[%s5 + $0x50] sm:$0xff]
      %v472 = vld [vmem:[%s5 + $0x58] sm:$0xff]
      %v473 = vld [vmem:[%s5 + $0x60] sm:$0xff]
      %v474 = vld [vmem:[%s5 + $0x68] sm:$0xff]
      %v475 = vld [vmem:[%s5 + $0x70] sm:$0xff]
      %v476 = vld [vmem:[%s5 + $0x78] sm:$0xff]
      %v477 = vpack.c.bf16 %v387, %v383
      %v478 = vpack.c.bf16 %v397, %v393
      %v479 = vpack.c.bf16 %v407, %v403
      %v480 = vpack.c.bf16 %v417, %v413
      %v481 = vpack.c.bf16 %v427, %v423
      %v482 = vpack.c.bf16 %v437, %v433
      %v483 = vpack.c.bf16 %v447, %v443
      %v484 = vpack.c.bf16 %v457, %v453
      %493 = vrot.lane.b32.xlu0 %v477, 96
      %v494 = vpop.permute.xlu0 %493
      %495 = vrot.lane.b32.xlu0 %v478, 96
      %v496 = vpop.permute.xlu0 %495
      %497 = vrot.lane.b32.xlu0 %v479, 96
      %v498 = vpop.permute.xlu0 %497
      %499 = vrot.lane.b32.xlu0 %v480, 96
      %v500 = vpop.permute.xlu0 %499
      %501 = vrot.lane.b32.xlu0 %v481, 96
      %v502 = vpop.permute.xlu0 %501
      %503 = vrot.lane.b32.xlu0 %v482, 96
      %v504 = vpop.permute.xlu0 %503
      %505 = vrot.lane.b32.xlu0 %v483, 96
      %v506 = vpop.permute.xlu0 %505
      %507 = vrot.lane.b32.xlu0 %v484, 96
      %v508 = vpop.permute.xlu0 %507
      %vm509 = vcmask 64512
      %v511 = vsel %vm509, %v477, 0
      %v514 = vsel %vm509, %v478, 0
      %v517 = vsel %vm509, %v479, 0
      %v520 = vsel %vm509, %v480, 0
      %v523 = vsel %vm509, %v481, 0
      %v526 = vsel %vm509, %v482, 0
      %v529 = vsel %vm509, %v483, 0
      %v532 = vsel %vm509, %v484, 0
      %v535 = vsel %vm509, %v494, 0
      %v538 = vsel %vm509, %v496, 0
      %v541 = vsel %vm509, %v498, 0
      %v544 = vsel %vm509, %v500, 0
      %v547 = vsel %vm509, %v502, 0
      %v550 = vsel %vm509, %v504, 0
      %v553 = vsel %vm509, %v506, 0
      %v556 = vsel %vm509, %v508, 0
      %558 = vmatprep.subr.bf16.mxu0 0
      %559 = vmatpush1.bf16.xpose.msra.mxu0 %v556
      %560 = vmatprep.subr.bf16.mxu0 0
      %561 = vmatpush1.bf16.xpose.msra.mxu0 %v553
      %562 = vmatprep.subr.bf16.mxu0 0
      %563 = vmatpush1.bf16.xpose.msra.mxu0 %v550
      %564 = vmatprep.subr.bf16.mxu0 0
      %565 = vmatpush1.bf16.xpose.msra.mxu0 %v547
      %566 = vmatprep.subr.bf16.mxu0 0
      %567 = vmatpush1.bf16.xpose.msra.mxu0 %v544
      %568 = vmatprep.subr.bf16.mxu0 0
      %569 = vmatpush1.bf16.xpose.msra.mxu0 %v541
      %570 = vmatprep.subr.bf16.mxu0 0
      %571 = vmatpush1.bf16.xpose.msra.mxu0 %v538
      %572 = vmatprep.subr.bf16.mxu0 0
      %573 = vmatpush1.bf16.xpose.msra.mxu0 %v535
      %574 = vmatprep.subr.bf16.mxu0 0
      %575 = vmatpush2.bf16.xpose.msra.mxu0 0
      %576 = vmatprep.subr.bf16.mxu0 0
      %577 = vmatpush2.bf16.xpose.msra.mxu0 0
      %578 = vmatprep.subr.bf16.mxu0 0
      %579 = vmatpush2.bf16.xpose.msra.mxu0 0
      %580 = vmatprep.subr.bf16.mxu0 0
      %581 = vmatpush2.bf16.xpose.msra.mxu0 0
      %582 = vmatprep.subr.bf16.mxu0 0
      %583 = vmatpush2.bf16.xpose.msra.mxu0 0
      %584 = vmatprep.subr.bf16.mxu0 0
      %585 = vmatpush2.bf16.xpose.msra.mxu0 0
      %586 = vmatprep.subr.bf16.mxu0 0
      %587 = vmatpush2.bf16.xpose.msra.mxu0 0
      %588 = vmatprep.subr.bf16.mxu0 0
      %589 = vmatpush2.bf16.xpose.msra.mxu0 0
      %590 = vmatprep.mubr.bf16.mxu0 0
      %591 = vmatmul.mubr.bf16.gmra.mxu0 %v511
      %v592 = vpop.f32.mrf.mxu0
      %v593 = vadd.f32 %v461, %v592
      %v594 = vpop.f32.mrf.mxu0
      %v595 = vpop.f32.mrf.mxu0
      %v596 = vadd.f32 %v462, %v595
      %v597 = vpop.f32.mrf.mxu0
      %598 = vmatprep.mubr.bf16.mxu0 0
      %599 = vmatmul.mubr.bf16.gmra.mxu0 %v514
      %v600 = vpop.f32.mrf.mxu0
      %v601 = vadd.f32 %v463, %v600
      %v602 = vpop.f32.mrf.mxu0
      %v603 = vpop.f32.mrf.mxu0
      %v604 = vadd.f32 %v464, %v603
      %v605 = vpop.f32.mrf.mxu0
      %606 = vmatprep.mubr.bf16.mxu0 0
      %607 = vmatmul.mubr.bf16.gmra.mxu0 %v517
      %v608 = vpop.f32.mrf.mxu0
      %v609 = vadd.f32 %v465, %v608
      %v610 = vpop.f32.mrf.mxu0
      %v611 = vpop.f32.mrf.mxu0
      %v612 = vadd.f32 %v466, %v611
      %v613 = vpop.f32.mrf.mxu0
      %614 = vmatprep.mubr.bf16.mxu0 0
      %615 = vmatmul.mubr.bf16.gmra.mxu0 %v520
      %v616 = vpop.f32.mrf.mxu0
      %v617 = vadd.f32 %v467, %v616
      %v618 = vpop.f32.mrf.mxu0
      %v619 = vpop.f32.mrf.mxu0
      %v620 = vadd.f32 %v468, %v619
      %v621 = vpop.f32.mrf.mxu0
      %622 = vmatprep.mubr.bf16.mxu0 0
      %623 = vmatmul.mubr.bf16.gmra.mxu0 %v523
      %v624 = vpop.f32.mrf.mxu0
      %v625 = vadd.f32 %v469, %v624
      %v626 = vpop.f32.mrf.mxu0
      %v627 = vpop.f32.mrf.mxu0
      %v628 = vadd.f32 %v470, %v627
      %v629 = vpop.f32.mrf.mxu0
      %630 = vmatprep.mubr.bf16.mxu0 0
      %631 = vmatmul.mubr.bf16.gmra.mxu0 %v526
      %v632 = vpop.f32.mrf.mxu0
      %v633 = vadd.f32 %v471, %v632
      %v634 = vpop.f32.mrf.mxu0
      %v635 = vpop.f32.mrf.mxu0
      %v636 = vadd.f32 %v472, %v635
      %v637 = vpop.f32.mrf.mxu0
      %638 = vmatprep.mubr.bf16.mxu0 0
      %639 = vmatmul.mubr.bf16.gmra.mxu0 %v529
      %v640 = vpop.f32.mrf.mxu0
      %v641 = vadd.f32 %v473, %v640
      %v642 = vpop.f32.mrf.mxu0
      %v643 = vpop.f32.mrf.mxu0
      %v644 = vadd.f32 %v474, %v643
      %v645 = vpop.f32.mrf.mxu0
      %646 = vmatprep.mubr.bf16.mxu0 0
      %647 = vmatmul.mubr.bf16.gmra.mxu0 %v532
      %v648 = vpop.f32.mrf.mxu0
      %v649 = vadd.f32 %v475, %v648
      %v650 = vpop.f32.mrf.mxu0
      %v651 = vpop.f32.mrf.mxu0
      %v652 = vadd.f32 %v476, %v651
      %v653 = vpop.f32.mrf.mxu0
      %654 = vdwg.mxu0
      %655 = vmax.xlane.f32.xlu0 %v593
      %v656 = vpop.xlane.xlu0 %655
      %657 = vmax.xlane.f32.xlu0 %v596
      %v658 = vpop.xlane.xlu0 %657
      %659 = vmax.xlane.f32.xlu0 %v601
      %v660 = vpop.xlane.xlu0 %659
      %661 = vmax.xlane.f32.xlu0 %v604
      %v662 = vpop.xlane.xlu0 %661
      %663 = vmax.xlane.f32.xlu0 %v609
      %v664 = vpop.xlane.xlu0 %663
      %665 = vmax.xlane.f32.xlu0 %v612
      %v666 = vpop.xlane.xlu0 %665
      %667 = vmax.xlane.f32.xlu0 %v617
      %v668 = vpop.xlane.xlu0 %667
      %669 = vmax.xlane.f32.xlu0 %v620
      %v670 = vpop.xlane.xlu0 %669
      %671 = vmax.xlane.f32.xlu0 %v625
      %v672 = vpop.xlane.xlu0 %671
      %673 = vmax.xlane.f32.xlu0 %v628
      %v674 = vpop.xlane.xlu0 %673
      %675 = vmax.xlane.f32.xlu0 %v633
      %v676 = vpop.xlane.xlu0 %675
      %677 = vmax.xlane.f32.xlu0 %v636
      %v678 = vpop.xlane.xlu0 %677
      %679 = vmax.xlane.f32.xlu0 %v641
      %v680 = vpop.xlane.xlu0 %679
      %681 = vmax.xlane.f32.xlu0 %v644
      %v682 = vpop.xlane.xlu0 %681
      %683 = vmax.xlane.f32.xlu0 %v649
      %v684 = vpop.xlane.xlu0 %683
      %685 = vmax.xlane.f32.xlu0 %v652
      %v686 = vpop.xlane.xlu0 %685
      %v687 = vsub.f32 %v593, %v656
      %v688 = vsub.f32 %v596, %v658
      %v689 = vsub.f32 %v601, %v660
      %v690 = vsub.f32 %v604, %v662
      %v691 = vsub.f32 %v609, %v664
      %v692 = vsub.f32 %v612, %v666
      %v693 = vsub.f32 %v617, %v668
      %v694 = vsub.f32 %v620, %v670
      %v695 = vsub.f32 %v625, %v672
      %v696 = vsub.f32 %v628, %v674
      %v697 = vsub.f32 %v633, %v676
      %v698 = vsub.f32 %v636, %v678
      %v699 = vsub.f32 %v641, %v680
      %v700 = vsub.f32 %v644, %v682
      %v701 = vsub.f32 %v649, %v684
      %v702 = vsub.f32 %v652, %v686
      %v703 = vmul.f32 %v687, 1.442695
      %v704 = vpow.pop %v703
      %v705 = vmul.f32 %v688, 1.442695
      %v706 = vpow.pop %v705
      %v707 = vmul.f32 %v689, 1.442695
      %v708 = vpow.pop %v707
      %v709 = vmul.f32 %v690, 1.442695
      %v710 = vpow.pop %v709
      %v711 = vmul.f32 %v691, 1.442695
      %v712 = vpow.pop %v711
      %v713 = vmul.f32 %v692, 1.442695
      %v714 = vpow.pop %v713
      %v715 = vmul.f32 %v693, 1.442695
      %v716 = vpow.pop %v715
      %v717 = vmul.f32 %v694, 1.442695
      %v718 = vpow.pop %v717
      %v719 = vmul.f32 %v695, 1.442695
      %v720 = vpow.pop %v719
      %v721 = vmul.f32 %v696, 1.442695
      %v722 = vpow.pop %v721
      %v723 = vmul.f32 %v697, 1.442695
      %v724 = vpow.pop %v723
      %v725 = vmul.f32 %v698, 1.442695
      %v726 = vpow.pop %v725
      %v727 = vmul.f32 %v699, 1.442695
      %v728 = vpow.pop %v727
      %v729 = vmul.f32 %v700, 1.442695
      %v730 = vpow.pop %v729
      %v731 = vmul.f32 %v701, 1.442695
      %v732 = vpow.pop %v731
      %v733 = vmul.f32 %v702, 1.442695
      %v734 = vpow.pop %v733
      %735 = vadd.xlane.f32.xlu0 %v704
      %v736 = vpop.xlane.xlu0 %735
      %737 = vadd.xlane.f32.xlu0 %v706
      %v738 = vpop.xlane.xlu0 %737
      %739 = vadd.xlane.f32.xlu0 %v708
      %v740 = vpop.xlane.xlu0 %739
      %741 = vadd.xlane.f32.xlu0 %v710
      %v742 = vpop.xlane.xlu0 %741
      %743 = vadd.xlane.f32.xlu0 %v712
      %v744 = vpop.xlane.xlu0 %743
      %745 = vadd.xlane.f32.xlu0 %v714
      %v746 = vpop.xlane.xlu0 %745
      %747 = vadd.xlane.f32.xlu0 %v716
      %v748 = vpop.xlane.xlu0 %747
      %749 = vadd.xlane.f32.xlu0 %v718
      %v750 = vpop.xlane.xlu0 %749
      %751 = vadd.xlane.f32.xlu0 %v720
      %v752 = vpop.xlane.xlu0 %751
      %753 = vadd.xlane.f32.xlu0 %v722
      %v754 = vpop.xlane.xlu0 %753
      %755 = vadd.xlane.f32.xlu0 %v724
      %v756 = vpop.xlane.xlu0 %755
      %757 = vadd.xlane.f32.xlu0 %v726
      %v758 = vpop.xlane.xlu0 %757
      %759 = vadd.xlane.f32.xlu0 %v728
      %v760 = vpop.xlane.xlu0 %759
      %761 = vadd.xlane.f32.xlu0 %v730
      %v762 = vpop.xlane.xlu0 %761
      %763 = vadd.xlane.f32.xlu0 %v732
      %v764 = vpop.xlane.xlu0 %763
      %765 = vadd.xlane.f32.xlu0 %v734
      %v766 = vpop.xlane.xlu0 %765
      %v767 = vrcp.pop %v736
      %v768 = vrcp.pop %v738
      %v769 = vrcp.pop %v740
      %v770 = vrcp.pop %v742
      %v771 = vrcp.pop %v744
      %v772 = vrcp.pop %v746
      %v773 = vrcp.pop %v748
      %v774 = vrcp.pop %v750
      %v775 = vrcp.pop %v752
      %v776 = vrcp.pop %v754
      %v777 = vrcp.pop %v756
      %v778 = vrcp.pop %v758
      %v779 = vrcp.pop %v760
      %v780 = vrcp.pop %v762
      %v781 = vrcp.pop %v764
      %v782 = vrcp.pop %v766
      %v783 = vmul.f32 %v704, %v767
      %v784 = vmul.f32 %v706, %v768
      %v785 = vmul.f32 %v708, %v769
      %v786 = vmul.f32 %v710, %v770
      %v787 = vmul.f32 %v712, %v771
      %v788 = vmul.f32 %v714, %v772
      %v789 = vmul.f32 %v716, %v773
      %v790 = vmul.f32 %v718, %v774
      %v791 = vmul.f32 %v720, %v775
      %v792 = vmul.f32 %v722, %v776
      %v793 = vmul.f32 %v724, %v777
      %v794 = vmul.f32 %v726, %v778
      %v795 = vmul.f32 %v728, %v779
      %v796 = vmul.f32 %v730, %v780
      %v797 = vmul.f32 %v732, %v781
      %v798 = vmul.f32 %v734, %v782
      %v799 = vpack.c.bf16 %v784, %v783
      %v800 = vpack.c.bf16 %v786, %v785
      %v801 = vpack.c.bf16 %v788, %v787
      %v802 = vpack.c.bf16 %v790, %v789
      %v803 = vpack.c.bf16 %v792, %v791
      %v804 = vpack.c.bf16 %v794, %v793
      %v805 = vpack.c.bf16 %v796, %v795
      %v806 = vpack.c.bf16 %v798, %v797
      %807 = vrot.lane.b32.xlu0 %v477, 120
      %v808 = vpop.permute.xlu0 %807
      %809 = vrot.lane.b32.xlu0 %v478, 120
      %v810 = vpop.permute.xlu0 %809
      %811 = vrot.lane.b32.xlu0 %v479, 120
      %v812 = vpop.permute.xlu0 %811
      %813 = vrot.lane.b32.xlu0 %v480, 120
      %v814 = vpop.permute.xlu0 %813
      %815 = vrot.lane.b32.xlu0 %v481, 120
      %v816 = vpop.permute.xlu0 %815
      %817 = vrot.lane.b32.xlu0 %v482, 120
      %v818 = vpop.permute.xlu0 %817
      %819 = vrot.lane.b32.xlu0 %v483, 120
      %v820 = vpop.permute.xlu0 %819
      %821 = vrot.lane.b32.xlu0 %v484, 120
      %v822 = vpop.permute.xlu0 %821
      %823 = vrot.lane.b32.xlu0 %v477, 88
      %v824 = vpop.permute.xlu0 %823
      %825 = vrot.lane.b32.xlu0 %v478, 88
      %v826 = vpop.permute.xlu0 %825
      %827 = vrot.lane.b32.xlu0 %v479, 88
      %v828 = vpop.permute.xlu0 %827
      %829 = vrot.lane.b32.xlu0 %v480, 88
      %v830 = vpop.permute.xlu0 %829
      %831 = vrot.lane.b32.xlu0 %v481, 88
      %v832 = vpop.permute.xlu0 %831
      %833 = vrot.lane.b32.xlu0 %v482, 88
      %v834 = vpop.permute.xlu0 %833
      %835 = vrot.lane.b32.xlu0 %v483, 88
      %v836 = vpop.permute.xlu0 %835
      %837 = vrot.lane.b32.xlu0 %v484, 88
      %v838 = vpop.permute.xlu0 %837
      %v840 = vsel %vm509, %v808, 0
      %v843 = vsel %vm509, %v810, 0
      %v846 = vsel %vm509, %v812, 0
      %v849 = vsel %vm509, %v814, 0
      %v852 = vsel %vm509, %v816, 0
      %v855 = vsel %vm509, %v818, 0
      %v858 = vsel %vm509, %v820, 0
      %v861 = vsel %vm509, %v822, 0
      %v864 = vsel %vm509, %v824, 0
      %v867 = vsel %vm509, %v826, 0
      %v870 = vsel %vm509, %v828, 0
      %v873 = vsel %vm509, %v830, 0
      %v876 = vsel %vm509, %v832, 0
      %v879 = vsel %vm509, %v834, 0
      %v882 = vsel %vm509, %v836, 0
      %v885 = vsel %vm509, %v838, 0
      %887 = vmatprep.subr.bf16.mxu0 0
      %888 = vmatpush1.bf16.xpose.msra.mxu0 %v885
      %889 = vmatprep.subr.bf16.mxu0 0
      %890 = vmatpush1.bf16.xpose.msra.mxu0 %v882
      %891 = vmatprep.subr.bf16.mxu0 0
      %892 = vmatpush1.bf16.xpose.msra.mxu0 %v879
      %893 = vmatprep.subr.bf16.mxu0 0
      %894 = vmatpush1.bf16.xpose.msra.mxu0 %v876
      %895 = vmatprep.subr.bf16.mxu0 0
      %896 = vmatpush1.bf16.xpose.msra.mxu0 %v873
      %897 = vmatprep.subr.bf16.mxu0 0
      %898 = vmatpush1.bf16.xpose.msra.mxu0 %v870
      %899 = vmatprep.subr.bf16.mxu0 0
      %900 = vmatpush1.bf16.xpose.msra.mxu0 %v867
      %901 = vmatprep.subr.bf16.mxu0 0
      %902 = vmatpush1.bf16.xpose.msra.mxu0 %v864
      %903 = vmatprep.subr.bf16.mxu0 0
      %904 = vmatpush2.bf16.xpose.msra.mxu0 0
      %905 = vmatprep.subr.bf16.mxu0 0
      %906 = vmatpush2.bf16.xpose.msra.mxu0 0
      %907 = vmatprep.subr.bf16.mxu0 0
      %908 = vmatpush2.bf16.xpose.msra.mxu0 0
      %909 = vmatprep.subr.bf16.mxu0 0
      %910 = vmatpush2.bf16.xpose.msra.mxu0 0
      %911 = vmatprep.subr.bf16.mxu0 0
      %912 = vmatpush2.bf16.xpose.msra.mxu0 0
      %913 = vmatprep.subr.bf16.mxu0 0
      %914 = vmatpush2.bf16.xpose.msra.mxu0 0
      %915 = vmatprep.subr.bf16.mxu0 0
      %916 = vmatpush2.bf16.xpose.msra.mxu0 0
      %917 = vmatprep.subr.bf16.mxu0 0
      %918 = vmatpush2.bf16.xpose.msra.mxu0 0
      %919 = vmatprep.mubr.bf16.mxu0 0
      %920 = vmatmul.mubr.bf16.gmra.mxu0 %v840
      %v921 = vpop.f32.mrf.mxu0
      %v922 = vadd.f32 %v461, %v921
      %v923 = vpop.f32.mrf.mxu0
      %v924 = vpop.f32.mrf.mxu0
      %v925 = vadd.f32 %v462, %v924
      %v926 = vpop.f32.mrf.mxu0
      %927 = vmatprep.mubr.bf16.mxu0 0
      %928 = vmatmul.mubr.bf16.gmra.mxu0 %v843
      %v929 = vpop.f32.mrf.mxu0
      %v930 = vadd.f32 %v463, %v929
      %v931 = vpop.f32.mrf.mxu0
      %v932 = vpop.f32.mrf.mxu0
      %v933 = vadd.f32 %v464, %v932
      %v934 = vpop.f32.mrf.mxu0
      %935 = vmatprep.mubr.bf16.mxu0 0
      %936 = vmatmul.mubr.bf16.gmra.mxu0 %v846
      %v937 = vpop.f32.mrf.mxu0
      %v938 = vadd.f32 %v465, %v937
      %v939 = vpop.f32.mrf.mxu0
      %v940 = vpop.f32.mrf.mxu0
      %v941 = vadd.f32 %v466, %v940
      %v942 = vpop.f32.mrf.mxu0
      %943 = vmatprep.mubr.bf16.mxu0 0
      %944 = vmatmul.mubr.bf16.gmra.mxu0 %v849
      %v945 = vpop.f32.mrf.mxu0
      %v946 = vadd.f32 %v467, %v945
      %v947 = vpop.f32.mrf.mxu0
      %v948 = vpop.f32.mrf.mxu0
      %v949 = vadd.f32 %v468, %v948
      %v950 = vpop.f32.mrf.mxu0
      %951 = vmatprep.mubr.bf16.mxu0 0
      %952 = vmatmul.mubr.bf16.gmra.mxu0 %v852
      %v953 = vpop.f32.mrf.mxu0
      %v954 = vadd.f32 %v469, %v953
      %v955 = vpop.f32.mrf.mxu0
      %v956 = vpop.f32.mrf.mxu0
      %v957 = vadd.f32 %v470, %v956
      %v958 = vpop.f32.mrf.mxu0
      %959 = vmatprep.mubr.bf16.mxu0 0
      %960 = vmatmul.mubr.bf16.gmra.mxu0 %v855
      %v961 = vpop.f32.mrf.mxu0
      %v962 = vadd.f32 %v471, %v961
      %v963 = vpop.f32.mrf.mxu0
      %v964 = vpop.f32.mrf.mxu0
      %v965 = vadd.f32 %v472, %v964
      %v966 = vpop.f32.mrf.mxu0
      %967 = vmatprep.mubr.bf16.mxu0 0
      %968 = vmatmul.mubr.bf16.gmra.mxu0 %v858
      %v969 = vpop.f32.mrf.mxu0
      %v970 = vadd.f32 %v473, %v969
      %v971 = vpop.f32.mrf.mxu0
      %v972 = vpop.f32.mrf.mxu0
      %v973 = vadd.f32 %v474, %v972
      %v974 = vpop.f32.mrf.mxu0
      %975 = vmatprep.mubr.bf16.mxu0 0
      %976 = vmatmul.mubr.bf16.gmra.mxu0 %v861
      %v977 = vpop.f32.mrf.mxu0
      %v978 = vadd.f32 %v475, %v977
      %v979 = vpop.f32.mrf.mxu0
      %v980 = vpop.f32.mrf.mxu0
      %v981 = vadd.f32 %v476, %v980
      %v982 = vpop.f32.mrf.mxu0
      %983 = vdwg.mxu0
      %984 = vmax.xlane.f32.xlu0 %v922
      %v985 = vpop.xlane.xlu0 %984
      %986 = vmax.xlane.f32.xlu0 %v925
      %v987 = vpop.xlane.xlu0 %986
      %988 = vmax.xlane.f32.xlu0 %v930
      %v989 = vpop.xlane.xlu0 %988
      %990 = vmax.xlane.f32.xlu0 %v933
      %v991 = vpop.xlane.xlu0 %990
      %992 = vmax.xlane.f32.xlu0 %v938
      %v993 = vpop.xlane.xlu0 %992
      %994 = vmax.xlane.f32.xlu0 %v941
      %v995 = vpop.xlane.xlu0 %994
      %996 = vmax.xlane.f32.xlu0 %v946
      %v997 = vpop.xlane.xlu0 %996
      %998 = vmax.xlane.f32.xlu0 %v949
      %v999 = vpop.xlane.xlu0 %998
      %1000 = vmax.xlane.f32.xlu0 %v954
      %v1001 = vpop.xlane.xlu0 %1000
      %1002 = vmax.xlane.f32.xlu0 %v957
      %v1003 = vpop.xlane.xlu0 %1002
      %1004 = vmax.xlane.f32.xlu0 %v962
      %v1005 = vpop.xlane.xlu0 %1004
      %1006 = vmax.xlane.f32.xlu0 %v965
      %v1007 = vpop.xlane.xlu0 %1006
      %1008 = vmax.xlane.f32.xlu0 %v970
      %v1009 = vpop.xlane.xlu0 %1008
      %1010 = vmax.xlane.f32.xlu0 %v973
      %v1011 = vpop.xlane.xlu0 %1010
      %1012 = vmax.xlane.f32.xlu0 %v978
      %v1013 = vpop.xlane.xlu0 %1012
      %1014 = vmax.xlane.f32.xlu0 %v981
      %v1015 = vpop.xlane.xlu0 %1014
      %v1016 = vsub.f32 %v922, %v985
      %v1017 = vsub.f32 %v925, %v987
      %v1018 = vsub.f32 %v930, %v989
      %v1019 = vsub.f32 %v933, %v991
      %v1020 = vsub.f32 %v938, %v993
      %v1021 = vsub.f32 %v941, %v995
      %v1022 = vsub.f32 %v946, %v997
      %v1023 = vsub.f32 %v949, %v999
      %v1024 = vsub.f32 %v954, %v1001
      %v1025 = vsub.f32 %v957, %v1003
      %v1026 = vsub.f32 %v962, %v1005
      %v1027 = vsub.f32 %v965, %v1007
      %v1028 = vsub.f32 %v970, %v1009
      %v1029 = vsub.f32 %v973, %v1011
      %v1030 = vsub.f32 %v978, %v1013
      %v1031 = vsub.f32 %v981, %v1015
      %v1032 = vmul.f32 %v1016, 1.442695
      %v1033 = vpow.pop %v1032
      %v1034 = vmul.f32 %v1017, 1.442695
      %v1035 = vpow.pop %v1034
      %v1036 = vmul.f32 %v1018, 1.442695
      %v1037 = vpow.pop %v1036
      %v1038 = vmul.f32 %v1019, 1.442695
      %v1039 = vpow.pop %v1038
      %v1040 = vmul.f32 %v1020, 1.442695
      %v1041 = vpow.pop %v1040
      %v1042 = vmul.f32 %v1021, 1.442695
      %v1043 = vpow.pop %v1042
      %v1044 = vmul.f32 %v1022, 1.442695
      %v1045 = vpow.pop %v1044
      %v1046 = vmul.f32 %v1023, 1.442695
      %v1047 = vpow.pop %v1046
      %v1048 = vmul.f32 %v1024, 1.442695
      %v1049 = vpow.pop %v1048
      %v1050 = vmul.f32 %v1025, 1.442695
      %v1051 = vpow.pop %v1050
      %v1052 = vmul.f32 %v1026, 1.442695
      %v1053 = vpow.pop %v1052
      %v1054 = vmul.f32 %v1027, 1.442695
      %v1055 = vpow.pop %v1054
      %v1056 = vmul.f32 %v1028, 1.442695
      %v1057 = vpow.pop %v1056
      %v1058 = vmul.f32 %v1029, 1.442695
      %v1059 = vpow.pop %v1058
      %v1060 = vmul.f32 %v1030, 1.442695
      %v1061 = vpow.pop %v1060
      %v1062 = vmul.f32 %v1031, 1.442695
      %v1063 = vpow.pop %v1062
      %1064 = vadd.xlane.f32.xlu0 %v1033
      %v1065 = vpop.xlane.xlu0 %1064
      %1066 = vadd.xlane.f32.xlu0 %v1035
      %v1067 = vpop.xlane.xlu0 %1066
      %1068 = vadd.xlane.f32.xlu0 %v1037
      %v1069 = vpop.xlane.xlu0 %1068
      %1070 = vadd.xlane.f32.xlu0 %v1039
      %v1071 = vpop.xlane.xlu0 %1070
      %1072 = vadd.xlane.f32.xlu0 %v1041
      %v1073 = vpop.xlane.xlu0 %1072
      %1074 = vadd.xlane.f32.xlu0 %v1043
      %v1075 = vpop.xlane.xlu0 %1074
      %1076 = vadd.xlane.f32.xlu0 %v1045
      %v1077 = vpop.xlane.xlu0 %1076
      %1078 = vadd.xlane.f32.xlu0 %v1047
      %v1079 = vpop.xlane.xlu0 %1078
      %1080 = vadd.xlane.f32.xlu0 %v1049
      %v1081 = vpop.xlane.xlu0 %1080
      %1082 = vadd.xlane.f32.xlu0 %v1051
      %v1083 = vpop.xlane.xlu0 %1082
      %1084 = vadd.xlane.f32.xlu0 %v1053
      %v1085 = vpop.xlane.xlu0 %1084
      %1086 = vadd.xlane.f32.xlu0 %v1055
      %v1087 = vpop.xlane.xlu0 %1086
      %1088 = vadd.xlane.f32.xlu0 %v1057
      %v1089 = vpop.xlane.xlu0 %1088
      %1090 = vadd.xlane.f32.xlu0 %v1059
      %v1091 = vpop.xlane.xlu0 %1090
      %1092 = vadd.xlane.f32.xlu0 %v1061
      %v1093 = vpop.xlane.xlu0 %1092
      %1094 = vadd.xlane.f32.xlu0 %v1063
      %v1095 = vpop.xlane.xlu0 %1094
      %v1096 = vrcp.pop %v1065
      %v1097 = vrcp.pop %v1067
      %v1098 = vrcp.pop %v1069
      %v1099 = vrcp.pop %v1071
      %v1100 = vrcp.pop %v1073
      %v1101 = vrcp.pop %v1075
      %v1102 = vrcp.pop %v1077
      %v1103 = vrcp.pop %v1079
      %v1104 = vrcp.pop %v1081
      %v1105 = vrcp.pop %v1083
      %v1106 = vrcp.pop %v1085
      %v1107 = vrcp.pop %v1087
      %v1108 = vrcp.pop %v1089
      %v1109 = vrcp.pop %v1091
      %v1110 = vrcp.pop %v1093
      %v1111 = vrcp.pop %v1095
      %v1112 = vmul.f32 %v1033, %v1096
      %v1113 = vmul.f32 %v1035, %v1097
      %v1114 = vmul.f32 %v1037, %v1098
      %v1115 = vmul.f32 %v1039, %v1099
      %v1116 = vmul.f32 %v1041, %v1100
      %v1117 = vmul.f32 %v1043, %v1101
      %v1118 = vmul.f32 %v1045, %v1102
      %v1119 = vmul.f32 %v1047, %v1103
      %v1120 = vmul.f32 %v1049, %v1104
      %v1121 = vmul.f32 %v1051, %v1105
      %v1122 = vmul.f32 %v1053, %v1106
      %v1123 = vmul.f32 %v1055, %v1107
      %v1124 = vmul.f32 %v1057, %v1108
      %v1125 = vmul.f32 %v1059, %v1109
      %v1126 = vmul.f32 %v1061, %v1110
      %v1127 = vmul.f32 %v1063, %v1111
      %v1128 = vpack.c.bf16 %v1113, %v1112
      %v1129 = vpack.c.bf16 %v1115, %v1114
      %v1130 = vpack.c.bf16 %v1117, %v1116
      %v1131 = vpack.c.bf16 %v1119, %v1118
      %v1132 = vpack.c.bf16 %v1121, %v1120
      %v1133 = vpack.c.bf16 %v1123, %v1122
      %v1134 = vpack.c.bf16 %v1125, %v1124
      %v1135 = vpack.c.bf16 %v1127, %v1126
      %1136 = vrot.lane.b32.xlu0 %v477, 32
      %v1137 = vpop.permute.xlu0 %1136
      %1138 = vrot.lane.b32.xlu0 %v478, 32
      %v1139 = vpop.permute.xlu0 %1138
      %1140 = vrot.lane.b32.xlu0 %v479, 32
      %v1141 = vpop.permute.xlu0 %1140
      %1142 = vrot.lane.b32.xlu0 %v480, 32
      %v1143 = vpop.permute.xlu0 %1142
      %1144 = vrot.lane.b32.xlu0 %v481, 32
      %v1145 = vpop.permute.xlu0 %1144
      %1146 = vrot.lane.b32.xlu0 %v482, 32
      %v1147 = vpop.permute.xlu0 %1146
      %1148 = vrot.lane.b32.xlu0 %v483, 32
      %v1149 = vpop.permute.xlu0 %1148
      %1150 = vrot.lane.b32.xlu0 %v484, 32
      %v1151 = vpop.permute.xlu0 %1150
      %1160 = vmatprep.subr.bf16.mxu0 0
      %1161 = vmatpush1.bf16.msra.mxu0 %v1151
      %1162 = vmatprep.subr.bf16.mxu0 0
      %1163 = vmatpush1.bf16.msra.mxu0 %v1149
      %1164 = vmatprep.subr.bf16.mxu0 0
      %1165 = vmatpush1.bf16.msra.mxu0 %v1147
      %1166 = vmatprep.subr.bf16.mxu0 0
      %1167 = vmatpush1.bf16.msra.mxu0 %v1145
      %1168 = vmatprep.subr.bf16.mxu0 0
      %1169 = vmatpush1.bf16.msra.mxu0 %v1143
      %1170 = vmatprep.subr.bf16.mxu0 0
      %1171 = vmatpush1.bf16.msra.mxu0 %v1141
      %1172 = vmatprep.subr.bf16.mxu0 0
      %1173 = vmatpush1.bf16.msra.mxu0 %v1139
      %1174 = vmatprep.subr.bf16.mxu0 0
      %1175 = vmatpush1.bf16.msra.mxu0 %v1137
      %1176 = vmatprep.subr.bf16.mxu0 0
      %1177 = vmatpush2.bf16.msra.mxu0 0
      %1178 = vmatprep.subr.bf16.mxu0 0
      %1179 = vmatpush2.bf16.msra.mxu0 0
      %1180 = vmatprep.subr.bf16.mxu0 0
      %1181 = vmatpush2.bf16.msra.mxu0 0
      %1182 = vmatprep.subr.bf16.mxu0 0
      %1183 = vmatpush2.bf16.msra.mxu0 0
      %1184 = vmatprep.subr.bf16.mxu0 0
      %1185 = vmatpush2.bf16.msra.mxu0 0
      %1186 = vmatprep.subr.bf16.mxu0 0
      %1187 = vmatpush2.bf16.msra.mxu0 0
      %1188 = vmatprep.subr.bf16.mxu0 0
      %1189 = vmatpush2.bf16.msra.mxu0 0
      %1190 = vmatprep.subr.bf16.mxu0 0
      %1191 = vmatpush2.bf16.msra.mxu0 0
      %1192 = vmatprep.mubr.bf16.mxu0 0
      %1193 = vmatmul.mubr.bf16.gmra.mxu0 %v1128
      %v1194 = vpop.f32.mrf.mxu0
      %v1195 = vadd.f32 0.0, %v1194
      %v1196 = vpop.f32.mrf.mxu0
      %v1197 = vpop.f32.mrf.mxu0
      %v1198 = vadd.f32 0.0, %v1197
      %v1199 = vpop.f32.mrf.mxu0
      %1200 = vmatprep.mubr.bf16.mxu0 0
      %1201 = vmatmul.mubr.bf16.gmra.mxu0 %v1129
      %v1202 = vpop.f32.mrf.mxu0
      %v1203 = vadd.f32 0.0, %v1202
      %v1204 = vpop.f32.mrf.mxu0
      %v1205 = vpop.f32.mrf.mxu0
      %v1206 = vadd.f32 0.0, %v1205
      %v1207 = vpop.f32.mrf.mxu0
      %1208 = vmatprep.mubr.bf16.mxu0 0
      %1209 = vmatmul.mubr.bf16.gmra.mxu0 %v1130
      %v1210 = vpop.f32.mrf.mxu0
      %v1211 = vadd.f32 0.0, %v1210
      %v1212 = vpop.f32.mrf.mxu0
      %v1213 = vpop.f32.mrf.mxu0
      %v1214 = vadd.f32 0.0, %v1213
      %v1215 = vpop.f32.mrf.mxu0
      %1216 = vmatprep.mubr.bf16.mxu0 0
      %1217 = vmatmul.mubr.bf16.gmra.mxu0 %v1131
      %v1218 = vpop.f32.mrf.mxu0
      %v1219 = vadd.f32 0.0, %v1218
      %v1220 = vpop.f32.mrf.mxu0
      %v1221 = vpop.f32.mrf.mxu0
      %v1222 = vadd.f32 0.0, %v1221
      %v1223 = vpop.f32.mrf.mxu0
      %1224 = vmatprep.mubr.bf16.mxu0 0
      %1225 = vmatmul.mubr.bf16.gmra.mxu0 %v1132
      %v1226 = vpop.f32.mrf.mxu0
      %v1227 = vadd.f32 0.0, %v1226
      %v1228 = vpop.f32.mrf.mxu0
      %v1229 = vpop.f32.mrf.mxu0
      %v1230 = vadd.f32 0.0, %v1229
      %v1231 = vpop.f32.mrf.mxu0
      %1232 = vmatprep.mubr.bf16.mxu0 0
      %1233 = vmatmul.mubr.bf16.gmra.mxu0 %v1133
      %v1234 = vpop.f32.mrf.mxu0
      %v1235 = vadd.f32 0.0, %v1234
      %v1236 = vpop.f32.mrf.mxu0
      %v1237 = vpop.f32.mrf.mxu0
      %v1238 = vadd.f32 0.0, %v1237
      %v1239 = vpop.f32.mrf.mxu0
      %1240 = vmatprep.mubr.bf16.mxu0 0
      %1241 = vmatmul.mubr.bf16.gmra.mxu0 %v1134
      %v1242 = vpop.f32.mrf.mxu0
      %v1243 = vadd.f32 0.0, %v1242
      %v1244 = vpop.f32.mrf.mxu0
      %v1245 = vpop.f32.mrf.mxu0
      %v1246 = vadd.f32 0.0, %v1245
      %v1247 = vpop.f32.mrf.mxu0
      %1248 = vmatprep.mubr.bf16.mxu0 0
      %1249 = vmatmul.mubr.bf16.gmra.mxu0 %v1135
      %v1250 = vpop.f32.mrf.mxu0
      %v1251 = vadd.f32 0.0, %v1250
      %v1252 = vpop.f32.mrf.mxu0
      %v1253 = vpop.f32.mrf.mxu0
      %v1254 = vadd.f32 0.0, %v1253
      %v1255 = vpop.f32.mrf.mxu0
      %1256 = vdwg.mxu0
      %1257 = vrot.lane.b32.xlu0 %v477, 64
      %v1258 = vpop.permute.xlu0 %1257
      %1259 = vrot.lane.b32.xlu0 %v478, 64
      %v1260 = vpop.permute.xlu0 %1259
      %1261 = vrot.lane.b32.xlu0 %v479, 64
      %v1262 = vpop.permute.xlu0 %1261
      %1263 = vrot.lane.b32.xlu0 %v480, 64
      %v1264 = vpop.permute.xlu0 %1263
      %1265 = vrot.lane.b32.xlu0 %v481, 64
      %v1266 = vpop.permute.xlu0 %1265
      %1267 = vrot.lane.b32.xlu0 %v482, 64
      %v1268 = vpop.permute.xlu0 %1267
      %1269 = vrot.lane.b32.xlu0 %v483, 64
      %v1270 = vpop.permute.xlu0 %1269
      %1271 = vrot.lane.b32.xlu0 %v484, 64
      %v1272 = vpop.permute.xlu0 %1271
      %1281 = vmatprep.subr.bf16.mxu0 0
      %1282 = vmatpush1.bf16.msra.mxu0 %v1272
      %1283 = vmatprep.subr.bf16.mxu0 0
      %1284 = vmatpush1.bf16.msra.mxu0 %v1270
      %1285 = vmatprep.subr.bf16.mxu0 0
      %1286 = vmatpush1.bf16.msra.mxu0 %v1268
      %1287 = vmatprep.subr.bf16.mxu0 0
      %1288 = vmatpush1.bf16.msra.mxu0 %v1266
      %1289 = vmatprep.subr.bf16.mxu0 0
      %1290 = vmatpush1.bf16.msra.mxu0 %v1264
      %1291 = vmatprep.subr.bf16.mxu0 0
      %1292 = vmatpush1.bf16.msra.mxu0 %v1262
      %1293 = vmatprep.subr.bf16.mxu0 0
      %1294 = vmatpush1.bf16.msra.mxu0 %v1260
      %1295 = vmatprep.subr.bf16.mxu0 0
      %1296 = vmatpush1.bf16.msra.mxu0 %v1258
      %1297 = vmatprep.subr.bf16.mxu0 0
      %1298 = vmatpush2.bf16.msra.mxu0 0
      %1299 = vmatprep.subr.bf16.mxu0 0
      %1300 = vmatpush2.bf16.msra.mxu0 0
      %1301 = vmatprep.subr.bf16.mxu0 0
      %1302 = vmatpush2.bf16.msra.mxu0 0
      %1303 = vmatprep.subr.bf16.mxu0 0
      %1304 = vmatpush2.bf16.msra.mxu0 0
      %1305 = vmatprep.subr.bf16.mxu0 0
      %1306 = vmatpush2.bf16.msra.mxu0 0
      %1307 = vmatprep.subr.bf16.mxu0 0
      %1308 = vmatpush2.bf16.msra.mxu0 0
      %1309 = vmatprep.subr.bf16.mxu0 0
      %1310 = vmatpush2.bf16.msra.mxu0 0
      %1311 = vmatprep.subr.bf16.mxu0 0
      %1312 = vmatpush2.bf16.msra.mxu0 0
      %1313 = vmatprep.mubr.bf16.mxu0 0
      %1314 = vmatmul.mubr.bf16.gmra.mxu0 %v799
      %v1315 = vpop.f32.mrf.mxu0
      %v1316 = vadd.f32 %v1195, %v1315
      %v1317 = vpop.f32.mrf.mxu0
      %v1318 = vpop.f32.mrf.mxu0
      %v1319 = vadd.f32 %v1198, %v1318
      %v1320 = vpop.f32.mrf.mxu0
      %1321 = vmatprep.mubr.bf16.mxu0 0
      %1322 = vmatmul.mubr.bf16.gmra.mxu0 %v800
      %v1323 = vpop.f32.mrf.mxu0
      %v1324 = vadd.f32 %v1203, %v1323
      %v1325 = vpop.f32.mrf.mxu0
      %v1326 = vpop.f32.mrf.mxu0
      %v1327 = vadd.f32 %v1206, %v1326
      %v1328 = vpop.f32.mrf.mxu0
      %1329 = vmatprep.mubr.bf16.mxu0 0
      %1330 = vmatmul.mubr.bf16.gmra.mxu0 %v801
      %v1331 = vpop.f32.mrf.mxu0
      %v1332 = vadd.f32 %v1211, %v1331
      %v1333 = vpop.f32.mrf.mxu0
      %v1334 = vpop.f32.mrf.mxu0
      %v1335 = vadd.f32 %v1214, %v1334
      %v1336 = vpop.f32.mrf.mxu0
      %1337 = vmatprep.mubr.bf16.mxu0 0
      %1338 = vmatmul.mubr.bf16.gmra.mxu0 %v802
      %v1339 = vpop.f32.mrf.mxu0
      %v1340 = vadd.f32 %v1219, %v1339
      %v1341 = vpop.f32.mrf.mxu0
      %v1342 = vpop.f32.mrf.mxu0
      %v1343 = vadd.f32 %v1222, %v1342
      %v1344 = vpop.f32.mrf.mxu0
      %1345 = vmatprep.mubr.bf16.mxu0 0
      %1346 = vmatmul.mubr.bf16.gmra.mxu0 %v803
      %v1347 = vpop.f32.mrf.mxu0
      %v1348 = vadd.f32 %v1227, %v1347
      %v1349 = vpop.f32.mrf.mxu0
      %v1350 = vpop.f32.mrf.mxu0
      %v1351 = vadd.f32 %v1230, %v1350
      %v1352 = vpop.f32.mrf.mxu0
      %1353 = vmatprep.mubr.bf16.mxu0 0
      %1354 = vmatmul.mubr.bf16.gmra.mxu0 %v804
      %v1355 = vpop.f32.mrf.mxu0
      %v1356 = vadd.f32 %v1235, %v1355
      %v1357 = vpop.f32.mrf.mxu0
      %v1358 = vpop.f32.mrf.mxu0
      %v1359 = vadd.f32 %v1238, %v1358
      %v1360 = vpop.f32.mrf.mxu0
      %1361 = vmatprep.mubr.bf16.mxu0 0
      %1362 = vmatmul.mubr.bf16.gmra.mxu0 %v805
      %v1363 = vpop.f32.mrf.mxu0
      %v1364 = vadd.f32 %v1243, %v1363
      %v1365 = vpop.f32.mrf.mxu0
      %v1366 = vpop.f32.mrf.mxu0
      %v1367 = vadd.f32 %v1246, %v1366
      %v1368 = vpop.f32.mrf.mxu0
      %1369 = vmatprep.mubr.bf16.mxu0 0
      %1370 = vmatmul.mubr.bf16.gmra.mxu0 %v806
      %v1371 = vpop.f32.mrf.mxu0
      %v1372 = vadd.f32 %v1251, %v1371
      %v1373 = vpop.f32.mrf.mxu0
      %v1374 = vpop.f32.mrf.mxu0
      %v1375 = vadd.f32 %v1254, %v1374
      %v1376 = vpop.f32.mrf.mxu0
      %1377 = vdwg.mxu0
      %1378 = vrot.lane.b32.xlu0 %v477, 112
      %v1379 = vpop.permute.xlu0 %1378
      %1380 = vrot.lane.b32.xlu0 %v478, 112
      %v1381 = vpop.permute.xlu0 %1380
      %1382 = vrot.lane.b32.xlu0 %v479, 112
      %v1383 = vpop.permute.xlu0 %1382
      %1384 = vrot.lane.b32.xlu0 %v480, 112
      %v1385 = vpop.permute.xlu0 %1384
      %1386 = vrot.lane.b32.xlu0 %v481, 112
      %v1387 = vpop.permute.xlu0 %1386
      %1388 = vrot.lane.b32.xlu0 %v482, 112
      %v1389 = vpop.permute.xlu0 %1388
      %1390 = vrot.lane.b32.xlu0 %v483, 112
      %v1391 = vpop.permute.xlu0 %1390
      %1392 = vrot.lane.b32.xlu0 %v484, 112
      %v1393 = vpop.permute.xlu0 %1392
      %1394 = vrot.lane.b32.xlu0 %v477, 80
      %v1395 = vpop.permute.xlu0 %1394
      %1396 = vrot.lane.b32.xlu0 %v478, 80
      %v1397 = vpop.permute.xlu0 %1396
      %1398 = vrot.lane.b32.xlu0 %v479, 80
      %v1399 = vpop.permute.xlu0 %1398
      %1400 = vrot.lane.b32.xlu0 %v480, 80
      %v1401 = vpop.permute.xlu0 %1400
      %1402 = vrot.lane.b32.xlu0 %v481, 80
      %v1403 = vpop.permute.xlu0 %1402
      %1404 = vrot.lane.b32.xlu0 %v482, 80
      %v1405 = vpop.permute.xlu0 %1404
      %1406 = vrot.lane.b32.xlu0 %v483, 80
      %v1407 = vpop.permute.xlu0 %1406
      %1408 = vrot.lane.b32.xlu0 %v484, 80
      %v1409 = vpop.permute.xlu0 %1408
      %v1411 = vsel %vm509, %v1379, 0
      %v1414 = vsel %vm509, %v1381, 0
      %v1417 = vsel %vm509, %v1383, 0
      %v1420 = vsel %vm509, %v1385, 0
      %v1423 = vsel %vm509, %v1387, 0
      %v1426 = vsel %vm509, %v1389, 0
      %v1429 = vsel %vm509, %v1391, 0
      %v1432 = vsel %vm509, %v1393, 0
      %v1435 = vsel %vm509, %v1395, 0
      %v1438 = vsel %vm509, %v1397, 0
      %v1441 = vsel %vm509, %v1399, 0
      %v1444 = vsel %vm509, %v1401, 0
      %v1447 = vsel %vm509, %v1403, 0
      %v1450 = vsel %vm509, %v1405, 0
      %v1453 = vsel %vm509, %v1407, 0
      %v1456 = vsel %vm509, %v1409, 0
      %1458 = vmatprep.subr.bf16.mxu0 0
      %1459 = vmatpush1.bf16.xpose.msra.mxu0 %v1456
      %1460 = vmatprep.subr.bf16.mxu0 0
      %1461 = vmatpush1.bf16.xpose.msra.mxu0 %v1453
      %1462 = vmatprep.subr.bf16.mxu0 0
      %1463 = vmatpush1.bf16.xpose.msra.mxu0 %v1450
      %1464 = vmatprep.subr.bf16.mxu0 0
      %1465 = vmatpush1.bf16.xpose.msra.mxu0 %v1447
      %1466 = vmatprep.subr.bf16.mxu0 0
      %1467 = vmatpush1.bf16.xpose.msra.mxu0 %v1444
      %1468 = vmatprep.subr.bf16.mxu0 0
      %1469 = vmatpush1.bf16.xpose.msra.mxu0 %v1441
      %1470 = vmatprep.subr.bf16.mxu0 0
      %1471 = vmatpush1.bf16.xpose.msra.mxu0 %v1438
      %1472 = vmatprep.subr.bf16.mxu0 0
      %1473 = vmatpush1.bf16.xpose.msra.mxu0 %v1435
      %1474 = vmatprep.subr.bf16.mxu0 0
      %1475 = vmatpush2.bf16.xpose.msra.mxu0 0
      %1476 = vmatprep.subr.bf16.mxu0 0
      %1477 = vmatpush2.bf16.xpose.msra.mxu0 0
      %1478 = vmatprep.subr.bf16.mxu0 0
      %1479 = vmatpush2.bf16.xpose.msra.mxu0 0
      %1480 = vmatprep.subr.bf16.mxu0 0
      %1481 = vmatpush2.bf16.xpose.msra.mxu0 0
      %1482 = vmatprep.subr.bf16.mxu0 0
      %1483 = vmatpush2.bf16.xpose.msra.mxu0 0
      %1484 = vmatprep.subr.bf16.mxu0 0
      %1485 = vmatpush2.bf16.xpose.msra.mxu0 0
      %1486 = vmatprep.subr.bf16.mxu0 0
      %1487 = vmatpush2.bf16.xpose.msra.mxu0 0
      %1488 = vmatprep.subr.bf16.mxu0 0
      %1489 = vmatpush2.bf16.xpose.msra.mxu0 0
      %1490 = vmatprep.mubr.bf16.mxu0 0
      %1491 = vmatmul.mubr.bf16.gmra.mxu0 %v1411
      %v1492 = vpop.f32.mrf.mxu0
      %v1493 = vadd.f32 %v461, %v1492
      %v1494 = vpop.f32.mrf.mxu0
      %v1495 = vpop.f32.mrf.mxu0
      %v1496 = vadd.f32 %v462, %v1495
      %v1497 = vpop.f32.mrf.mxu0
      %1498 = vmatprep.mubr.bf16.mxu0 0
      %1499 = vmatmul.mubr.bf16.gmra.mxu0 %v1414
      %v1500 = vpop.f32.mrf.mxu0
      %v1501 = vadd.f32 %v463, %v1500
      %v1502 = vpop.f32.mrf.mxu0
      %v1503 = vpop.f32.mrf.mxu0
      %v1504 = vadd.f32 %v464, %v1503
      %v1505 = vpop.f32.mrf.mxu0
      %1506 = vmatprep.mubr.bf16.mxu0 0
      %1507 = vmatmul.mubr.bf16.gmra.mxu0 %v1417
      %v1508 = vpop.f32.mrf.mxu0
      %v1509 = vadd.f32 %v465, %v1508
      %v1510 = vpop.f32.mrf.mxu0
      %v1511 = vpop.f32.mrf.mxu0
      %v1512 = vadd.f32 %v466, %v1511
      %v1513 = vpop.f32.mrf.mxu0
      %1514 = vmatprep.mubr.bf16.mxu0 0
      %1515 = vmatmul.mubr.bf16.gmra.mxu0 %v1420
      %v1516 = vpop.f32.mrf.mxu0
      %v1517 = vadd.f32 %v467, %v1516
      %v1518 = vpop.f32.mrf.mxu0
      %v1519 = vpop.f32.mrf.mxu0
      %v1520 = vadd.f32 %v468, %v1519
      %v1521 = vpop.f32.mrf.mxu0
      %1522 = vmatprep.mubr.bf16.mxu0 0
      %1523 = vmatmul.mubr.bf16.gmra.mxu0 %v1423
      %v1524 = vpop.f32.mrf.mxu0
      %v1525 = vadd.f32 %v469, %v1524
      %v1526 = vpop.f32.mrf.mxu0
      %v1527 = vpop.f32.mrf.mxu0
      %v1528 = vadd.f32 %v470, %v1527
      %v1529 = vpop.f32.mrf.mxu0
      %1530 = vmatprep.mubr.bf16.mxu0 0
      %1531 = vmatmul.mubr.bf16.gmra.mxu0 %v1426
      %v1532 = vpop.f32.mrf.mxu0
      %v1533 = vadd.f32 %v471, %v1532
      %v1534 = vpop.f32.mrf.mxu0
      %v1535 = vpop.f32.mrf.mxu0
      %v1536 = vadd.f32 %v472, %v1535
      %v1537 = vpop.f32.mrf.mxu0
      %1538 = vmatprep.mubr.bf16.mxu0 0
      %1539 = vmatmul.mubr.bf16.gmra.mxu0 %v1429
      %v1540 = vpop.f32.mrf.mxu0
      %v1541 = vadd.f32 %v473, %v1540
      %v1542 = vpop.f32.mrf.mxu0
      %v1543 = vpop.f32.mrf.mxu0
      %v1544 = vadd.f32 %v474, %v1543
      %v1545 = vpop.f32.mrf.mxu0
      %1546 = vmatprep.mubr.bf16.mxu0 0
      %1547 = vmatmul.mubr.bf16.gmra.mxu0 %v1432
      %v1548 = vpop.f32.mrf.mxu0
      %v1549 = vadd.f32 %v475, %v1548
      %v1550 = vpop.f32.mrf.mxu0
      %v1551 = vpop.f32.mrf.mxu0
      %v1552 = vadd.f32 %v476, %v1551
      %v1553 = vpop.f32.mrf.mxu0
      %1554 = vdwg.mxu0
      %1555 = vmax.xlane.f32.xlu0 %v1493
      %v1556 = vpop.xlane.xlu0 %1555
      %1557 = vmax.xlane.f32.xlu0 %v1496
      %v1558 = vpop.xlane.xlu0 %1557
      %1559 = vmax.xlane.f32.xlu0 %v1501
      %v1560 = vpop.xlane.xlu0 %1559
      %1561 = vmax.xlane.f32.xlu0 %v1504
      %v1562 = vpop.xlane.xlu0 %1561
      %1563 = vmax.xlane.f32.xlu0 %v1509
      %v1564 = vpop.xlane.xlu0 %1563
      %1565 = vmax.xlane.f32.xlu0 %v1512
      %v1566 = vpop.xlane.xlu0 %1565
      %1567 = vmax.xlane.f32.xlu0 %v1517
      %v1568 = vpop.xlane.xlu0 %1567
      %1569 = vmax.xlane.f32.xlu0 %v1520
      %v1570 = vpop.xlane.xlu0 %1569
      %1571 = vmax.xlane.f32.xlu0 %v1525
      %v1572 = vpop.xlane.xlu0 %1571
      %1573 = vmax.xlane.f32.xlu0 %v1528
      %v1574 = vpop.xlane.xlu0 %1573
      %1575 = vmax.xlane.f32.xlu0 %v1533
      %v1576 = vpop.xlane.xlu0 %1575
      %1577 = vmax.xlane.f32.xlu0 %v1536
      %v1578 = vpop.xlane.xlu0 %1577
      %1579 = vmax.xlane.f32.xlu0 %v1541
      %v1580 = vpop.xlane.xlu0 %1579
      %1581 = vmax.xlane.f32.xlu0 %v1544
      %v1582 = vpop.xlane.xlu0 %1581
      %1583 = vmax.xlane.f32.xlu0 %v1549
      %v1584 = vpop.xlane.xlu0 %1583
      %1585 = vmax.xlane.f32.xlu0 %v1552
      %v1586 = vpop.xlane.xlu0 %1585
      %v1587 = vsub.f32 %v1493, %v1556
      %v1588 = vsub.f32 %v1496, %v1558
      %v1589 = vsub.f32 %v1501, %v1560
      %v1590 = vsub.f32 %v1504, %v1562
      %v1591 = vsub.f32 %v1509, %v1564
      %v1592 = vsub.f32 %v1512, %v1566
      %v1593 = vsub.f32 %v1517, %v1568
      %v1594 = vsub.f32 %v1520, %v1570
      %v1595 = vsub.f32 %v1525, %v1572
      %v1596 = vsub.f32 %v1528, %v1574
      %v1597 = vsub.f32 %v1533, %v1576
      %v1598 = vsub.f32 %v1536, %v1578
      %v1599 = vsub.f32 %v1541, %v1580
      %v1600 = vsub.f32 %v1544, %v1582
      %v1601 = vsub.f32 %v1549, %v1584
      %v1602 = vsub.f32 %v1552, %v1586
      %v1603 = vmul.f32 %v1587, 1.442695
      %v1604 = vpow.pop %v1603
      %v1605 = vmul.f32 %v1588, 1.442695
      %v1606 = vpow.pop %v1605
      %v1607 = vmul.f32 %v1589, 1.442695
      %v1608 = vpow.pop %v1607
      %v1609 = vmul.f32 %v1590, 1.442695
      %v1610 = vpow.pop %v1609
      %v1611 = vmul.f32 %v1591, 1.442695
      %v1612 = vpow.pop %v1611
      %v1613 = vmul.f32 %v1592, 1.442695
      %v1614 = vpow.pop %v1613
      %v1615 = vmul.f32 %v1593, 1.442695
      %v1616 = vpow.pop %v1615
      %v1617 = vmul.f32 %v1594, 1.442695
      %v1618 = vpow.pop %v1617
      %v1619 = vmul.f32 %v1595, 1.442695
      %v1620 = vpow.pop %v1619
      %v1621 = vmul.f32 %v1596, 1.442695
      %v1622 = vpow.pop %v1621
      %v1623 = vmul.f32 %v1597, 1.442695
      %v1624 = vpow.pop %v1623
      %v1625 = vmul.f32 %v1598, 1.442695
      %v1626 = vpow.pop %v1625
      %v1627 = vmul.f32 %v1599, 1.442695
      %v1628 = vpow.pop %v1627
      %v1629 = vmul.f32 %v1600, 1.442695
      %v1630 = vpow.pop %v1629
      %v1631 = vmul.f32 %v1601, 1.442695
      %v1632 = vpow.pop %v1631
      %v1633 = vmul.f32 %v1602, 1.442695
      %v1634 = vpow.pop %v1633
      %1635 = vadd.xlane.f32.xlu0 %v1604
      %v1636 = vpop.xlane.xlu0 %1635
      %1637 = vadd.xlane.f32.xlu0 %v1606
      %v1638 = vpop.xlane.xlu0 %1637
      %1639 = vadd.xlane.f32.xlu0 %v1608
      %v1640 = vpop.xlane.xlu0 %1639
      %1641 = vadd.xlane.f32.xlu0 %v1610
      %v1642 = vpop.xlane.xlu0 %1641
      %1643 = vadd.xlane.f32.xlu0 %v1612
      %v1644 = vpop.xlane.xlu0 %1643
      %1645 = vadd.xlane.f32.xlu0 %v1614
      %v1646 = vpop.xlane.xlu0 %1645
      %1647 = vadd.xlane.f32.xlu0 %v1616
      %v1648 = vpop.xlane.xlu0 %1647
      %1649 = vadd.xlane.f32.xlu0 %v1618
      %v1650 = vpop.xlane.xlu0 %1649
      %1651 = vadd.xlane.f32.xlu0 %v1620
      %v1652 = vpop.xlane.xlu0 %1651
      %1653 = vadd.xlane.f32.xlu0 %v1622
      %v1654 = vpop.xlane.xlu0 %1653
      %1655 = vadd.xlane.f32.xlu0 %v1624
      %v1656 = vpop.xlane.xlu0 %1655
      %1657 = vadd.xlane.f32.xlu0 %v1626
      %v1658 = vpop.xlane.xlu0 %1657
      %1659 = vadd.xlane.f32.xlu0 %v1628
      %v1660 = vpop.xlane.xlu0 %1659
      %1661 = vadd.xlane.f32.xlu0 %v1630
      %v1662 = vpop.xlane.xlu0 %1661
      %1663 = vadd.xlane.f32.xlu0 %v1632
      %v1664 = vpop.xlane.xlu0 %1663
      %1665 = vadd.xlane.f32.xlu0 %v1634
      %v1666 = vpop.xlane.xlu0 %1665
      %v1667 = vrcp.pop %v1636
      %v1668 = vrcp.pop %v1638
      %v1669 = vrcp.pop %v1640
      %v1670 = vrcp.pop %v1642
      %v1671 = vrcp.pop %v1644
      %v1672 = vrcp.pop %v1646
      %v1673 = vrcp.pop %v1648
      %v1674 = vrcp.pop %v1650
      %v1675 = vrcp.pop %v1652
      %v1676 = vrcp.pop %v1654
      %v1677 = vrcp.pop %v1656
      %v1678 = vrcp.pop %v1658
      %v1679 = vrcp.pop %v1660
      %v1680 = vrcp.pop %v1662
      %v1681 = vrcp.pop %v1664
      %v1682 = vrcp.pop %v1666
      %v1683 = vmul.f32 %v1604, %v1667
      %v1684 = vmul.f32 %v1606, %v1668
      %v1685 = vmul.f32 %v1608, %v1669
      %v1686 = vmul.f32 %v1610, %v1670
      %v1687 = vmul.f32 %v1612, %v1671
      %v1688 = vmul.f32 %v1614, %v1672
      %v1689 = vmul.f32 %v1616, %v1673
      %v1690 = vmul.f32 %v1618, %v1674
      %v1691 = vmul.f32 %v1620, %v1675
      %v1692 = vmul.f32 %v1622, %v1676
      %v1693 = vmul.f32 %v1624, %v1677
      %v1694 = vmul.f32 %v1626, %v1678
      %v1695 = vmul.f32 %v1628, %v1679
      %v1696 = vmul.f32 %v1630, %v1680
      %v1697 = vmul.f32 %v1632, %v1681
      %v1698 = vmul.f32 %v1634, %v1682
      %v1699 = vpack.c.bf16 %v389, %v385
      %v1700 = vpack.c.bf16 %v399, %v395
      %v1701 = vpack.c.bf16 %v409, %v405
      %v1702 = vpack.c.bf16 %v419, %v415
      %v1703 = vpack.c.bf16 %v429, %v425
      %v1704 = vpack.c.bf16 %v439, %v435
      %v1705 = vpack.c.bf16 %v449, %v445
      %v1706 = vpack.c.bf16 %v459, %v455
      %v1707 = vpack.c.bf16 %v1684, %v1683
      %v1708 = vpack.c.bf16 %v1686, %v1685
      %v1709 = vpack.c.bf16 %v1688, %v1687
      %v1710 = vpack.c.bf16 %v1690, %v1689
      %v1711 = vpack.c.bf16 %v1692, %v1691
      %v1712 = vpack.c.bf16 %v1694, %v1693
      %v1713 = vpack.c.bf16 %v1696, %v1695
      %v1714 = vpack.c.bf16 %v1698, %v1697
      %1715 = vmatprep.subr.bf16.mxu0 0
      %1716 = vmatpush1.bf16.msra.mxu0 %v1706
      %1717 = vmatprep.subr.bf16.mxu0 0
      %1718 = vmatpush1.bf16.msra.mxu0 %v1705
      %1719 = vmatprep.subr.bf16.mxu0 0
      %1720 = vmatpush1.bf16.msra.mxu0 %v1704
      %1721 = vmatprep.subr.bf16.mxu0 0
      %1722 = vmatpush1.bf16.msra.mxu0 %v1703
      %1723 = vmatprep.subr.bf16.mxu0 0
      %1724 = vmatpush1.bf16.msra.mxu0 %v1702
      %1725 = vmatprep.subr.bf16.mxu0 0
      %1726 = vmatpush1.bf16.msra.mxu0 %v1701
      %1727 = vmatprep.subr.bf16.mxu0 0
      %1728 = vmatpush1.bf16.msra.mxu0 %v1700
      %1729 = vmatprep.subr.bf16.mxu0 0
      %1730 = vmatpush1.bf16.msra.mxu0 %v1699
      %1731 = vmatprep.subr.bf16.mxu0 0
      %1732 = vmatpush2.bf16.msra.mxu0 0
      %1733 = vmatprep.subr.bf16.mxu0 0
      %1734 = vmatpush2.bf16.msra.mxu0 0
      %1735 = vmatprep.subr.bf16.mxu0 0
      %1736 = vmatpush2.bf16.msra.mxu0 0
      %1737 = vmatprep.subr.bf16.mxu0 0
      %1738 = vmatpush2.bf16.msra.mxu0 0
      %1739 = vmatprep.subr.bf16.mxu0 0
      %1740 = vmatpush2.bf16.msra.mxu0 0
      %1741 = vmatprep.subr.bf16.mxu0 0
      %1742 = vmatpush2.bf16.msra.mxu0 0
      %1743 = vmatprep.subr.bf16.mxu0 0
      %1744 = vmatpush2.bf16.msra.mxu0 0
      %1745 = vmatprep.subr.bf16.mxu0 0
      %1746 = vmatpush2.bf16.msra.mxu0 0
      %1747 = vmatprep.mubr.bf16.mxu0 0
      %1748 = vmatmul.mubr.bf16.gmra.mxu0 %v1707
      %v1749 = vpop.f32.mrf.mxu0
      %v1750 = vadd.f32 0.0, %v1749
      %v1751 = vpop.f32.mrf.mxu0
      %v1752 = vpop.f32.mrf.mxu0
      %v1753 = vadd.f32 0.0, %v1752
      %v1754 = vpop.f32.mrf.mxu0
      %1755 = vmatprep.mubr.bf16.mxu0 0
      %1756 = vmatmul.mubr.bf16.gmra.mxu0 %v1708
      %v1757 = vpop.f32.mrf.mxu0
      %v1758 = vadd.f32 0.0, %v1757
      %v1759 = vpop.f32.mrf.mxu0
      %v1760 = vpop.f32.mrf.mxu0
      %v1761 = vadd.f32 0.0, %v1760
      %v1762 = vpop.f32.mrf.mxu0
      %1763 = vmatprep.mubr.bf16.mxu0 0
      %1764 = vmatmul.mubr.bf16.gmra.mxu0 %v1709
      %v1765 = vpop.f32.mrf.mxu0
      %v1766 = vadd.f32 0.0, %v1765
      %v1767 = vpop.f32.mrf.mxu0
      %v1768 = vpop.f32.mrf.mxu0
      %v1769 = vadd.f32 0.0, %v1768
      %v1770 = vpop.f32.mrf.mxu0
      %1771 = vmatprep.mubr.bf16.mxu0 0
      %1772 = vmatmul.mubr.bf16.gmra.mxu0 %v1710
      %v1773 = vpop.f32.mrf.mxu0
      %v1774 = vadd.f32 0.0, %v1773
      %v1775 = vpop.f32.mrf.mxu0
      %v1776 = vpop.f32.mrf.mxu0
      %v1777 = vadd.f32 0.0, %v1776
      %v1778 = vpop.f32.mrf.mxu0
      %1779 = vmatprep.mubr.bf16.mxu0 0
      %1780 = vmatmul.mubr.bf16.gmra.mxu0 %v1711
      %v1781 = vpop.f32.mrf.mxu0
      %v1782 = vadd.f32 0.0, %v1781
      %v1783 = vpop.f32.mrf.mxu0
      %v1784 = vpop.f32.mrf.mxu0
      %v1785 = vadd.f32 0.0, %v1784
      %v1786 = vpop.f32.mrf.mxu0
      %1787 = vmatprep.mubr.bf16.mxu0 0
      %1788 = vmatmul.mubr.bf16.gmra.mxu0 %v1712
      %v1789 = vpop.f32.mrf.mxu0
      %v1790 = vadd.f32 0.0, %v1789
      %v1791 = vpop.f32.mrf.mxu0
      %v1792 = vpop.f32.mrf.mxu0
      %v1793 = vadd.f32 0.0, %v1792
      %v1794 = vpop.f32.mrf.mxu0
      %1795 = vmatprep.mubr.bf16.mxu0 0
      %1796 = vmatmul.mubr.bf16.gmra.mxu0 %v1713
      %v1797 = vpop.f32.mrf.mxu0
      %v1798 = vadd.f32 0.0, %v1797
      %v1799 = vpop.f32.mrf.mxu0
      %v1800 = vpop.f32.mrf.mxu0
      %v1801 = vadd.f32 0.0, %v1800
      %v1802 = vpop.f32.mrf.mxu0
      %1803 = vmatprep.mubr.bf16.mxu0 0
      %1804 = vmatmul.mubr.bf16.gmra.mxu0 %v1714
      %v1805 = vpop.f32.mrf.mxu0
      %v1806 = vadd.f32 0.0, %v1805
      %v1807 = vpop.f32.mrf.mxu0
      %v1808 = vpop.f32.mrf.mxu0
      %v1809 = vadd.f32 0.0, %v1808
      %v1810 = vpop.f32.mrf.mxu0
      %1811 = vdwg.mxu0
      %v1812 = vadd.f32 %v1316, %v1750
      %v1813 = vadd.f32 %v1319, %v1753
      %v1814 = vadd.f32 %v1324, %v1758
      %v1815 = vadd.f32 %v1327, %v1761
      %v1816 = vadd.f32 %v1332, %v1766
      %v1817 = vadd.f32 %v1335, %v1769
      %v1818 = vadd.f32 %v1340, %v1774
      %v1819 = vadd.f32 %v1343, %v1777
      %v1820 = vadd.f32 %v1348, %v1782
      %v1821 = vadd.f32 %v1351, %v1785
      %v1822 = vadd.f32 %v1356, %v1790
      %v1823 = vadd.f32 %v1359, %v1793
      %v1824 = vadd.f32 %v1364, %v1798
      %v1825 = vadd.f32 %v1367, %v1801
      %v1826 = vadd.f32 %v1372, %v1806
      %v1827 = vadd.f32 %v1375, %v1809
      %1828 = vrot.lane.b32.xlu0 %v477, 104
      %v1829 = vpop.permute.xlu0 %1828
      %1830 = vrot.lane.b32.xlu0 %v478, 104
      %v1831 = vpop.permute.xlu0 %1830
      %1832 = vrot.lane.b32.xlu0 %v479, 104
      %v1833 = vpop.permute.xlu0 %1832
      %1834 = vrot.lane.b32.xlu0 %v480, 104
      %v1835 = vpop.permute.xlu0 %1834
      %1836 = vrot.lane.b32.xlu0 %v481, 104
      %v1837 = vpop.permute.xlu0 %1836
      %1838 = vrot.lane.b32.xlu0 %v482, 104
      %v1839 = vpop.permute.xlu0 %1838
      %1840 = vrot.lane.b32.xlu0 %v483, 104
      %v1841 = vpop.permute.xlu0 %1840
      %1842 = vrot.lane.b32.xlu0 %v484, 104
      %v1843 = vpop.permute.xlu0 %1842
      %1844 = vrot.lane.b32.xlu0 %v477, 72
      %v1845 = vpop.permute.xlu0 %1844
      %1846 = vrot.lane.b32.xlu0 %v478, 72
      %v1847 = vpop.permute.xlu0 %1846
      %1848 = vrot.lane.b32.xlu0 %v479, 72
      %v1849 = vpop.permute.xlu0 %1848
      %1850 = vrot.lane.b32.xlu0 %v480, 72
      %v1851 = vpop.permute.xlu0 %1850
      %1852 = vrot.lane.b32.xlu0 %v481, 72
      %v1853 = vpop.permute.xlu0 %1852
      %1854 = vrot.lane.b32.xlu0 %v482, 72
      %v1855 = vpop.permute.xlu0 %1854
      %1856 = vrot.lane.b32.xlu0 %v483, 72
      %v1857 = vpop.permute.xlu0 %1856
      %1858 = vrot.lane.b32.xlu0 %v484, 72
      %v1859 = vpop.permute.xlu0 %1858
      %v1861 = vsel %vm509, %v1829, 0
      %v1864 = vsel %vm509, %v1831, 0
      %v1867 = vsel %vm509, %v1833, 0
      %v1870 = vsel %vm509, %v1835, 0
      %v1873 = vsel %vm509, %v1837, 0
      %v1876 = vsel %vm509, %v1839, 0
      %v1879 = vsel %vm509, %v1841, 0
      %v1882 = vsel %vm509, %v1843, 0
      %v1885 = vsel %vm509, %v1845, 0
      %v1888 = vsel %vm509, %v1847, 0
      %v1891 = vsel %vm509, %v1849, 0
      %v1894 = vsel %vm509, %v1851, 0
      %v1897 = vsel %vm509, %v1853, 0
      %v1900 = vsel %vm509, %v1855, 0
      %v1903 = vsel %vm509, %v1857, 0
      %v1906 = vsel %vm509, %v1859, 0
      %1908 = vmatprep.subr.bf16.mxu0 0
      %1909 = vmatpush1.bf16.xpose.msra.mxu0 %v1906
      %1910 = vmatprep.subr.bf16.mxu0 0
      %1911 = vmatpush1.bf16.xpose.msra.mxu0 %v1903
      %1912 = vmatprep.subr.bf16.mxu0 0
      %1913 = vmatpush1.bf16.xpose.msra.mxu0 %v1900
      %1914 = vmatprep.subr.bf16.mxu0 0
      %1915 = vmatpush1.bf16.xpose.msra.mxu0 %v1897
      %1916 = vmatprep.subr.bf16.mxu0 0
      %1917 = vmatpush1.bf16.xpose.msra.mxu0 %v1894
      %1918 = vmatprep.subr.bf16.mxu0 0
      %1919 = vmatpush1.bf16.xpose.msra.mxu0 %v1891
      %1920 = vmatprep.subr.bf16.mxu0 0
      %1921 = vmatpush1.bf16.xpose.msra.mxu0 %v1888
      %1922 = vmatprep.subr.bf16.mxu0 0
      %1923 = vmatpush1.bf16.xpose.msra.mxu0 %v1885
      %1924 = vmatprep.subr.bf16.mxu0 0
      %1925 = vmatpush2.bf16.xpose.msra.mxu0 0
      %1926 = vmatprep.subr.bf16.mxu0 0
      %1927 = vmatpush2.bf16.xpose.msra.mxu0 0
      %1928 = vmatprep.subr.bf16.mxu0 0
      %1929 = vmatpush2.bf16.xpose.msra.mxu0 0
      %1930 = vmatprep.subr.bf16.mxu0 0
      %1931 = vmatpush2.bf16.xpose.msra.mxu0 0
      %1932 = vmatprep.subr.bf16.mxu0 0
      %1933 = vmatpush2.bf16.xpose.msra.mxu0 0
      %1934 = vmatprep.subr.bf16.mxu0 0
      %1935 = vmatpush2.bf16.xpose.msra.mxu0 0
      %1936 = vmatprep.subr.bf16.mxu0 0
      %1937 = vmatpush2.bf16.xpose.msra.mxu0 0
      %1938 = vmatprep.subr.bf16.mxu0 0
      %1939 = vmatpush2.bf16.xpose.msra.mxu0 0
      %1940 = vmatprep.mubr.bf16.mxu0 0
      %1941 = vmatmul.mubr.bf16.gmra.mxu0 %v1861
      %v1942 = vpop.f32.mrf.mxu0
      %v1943 = vadd.f32 %v461, %v1942
      %v1944 = vpop.f32.mrf.mxu0
      %v1945 = vpop.f32.mrf.mxu0
      %v1946 = vadd.f32 %v462, %v1945
      %v1947 = vpop.f32.mrf.mxu0
      %1948 = vmatprep.mubr.bf16.mxu0 0
      %1949 = vmatmul.mubr.bf16.gmra.mxu0 %v1864
      %v1950 = vpop.f32.mrf.mxu0
      %v1951 = vadd.f32 %v463, %v1950
      %v1952 = vpop.f32.mrf.mxu0
      %v1953 = vpop.f32.mrf.mxu0
      %v1954 = vadd.f32 %v464, %v1953
      %v1955 = vpop.f32.mrf.mxu0
      %1956 = vmatprep.mubr.bf16.mxu0 0
      %1957 = vmatmul.mubr.bf16.gmra.mxu0 %v1867
      %v1958 = vpop.f32.mrf.mxu0
      %v1959 = vadd.f32 %v465, %v1958
      %v1960 = vpop.f32.mrf.mxu0
      %v1961 = vpop.f32.mrf.mxu0
      %v1962 = vadd.f32 %v466, %v1961
      %v1963 = vpop.f32.mrf.mxu0
      %1964 = vmatprep.mubr.bf16.mxu0 0
      %1965 = vmatmul.mubr.bf16.gmra.mxu0 %v1870
      %v1966 = vpop.f32.mrf.mxu0
      %v1967 = vadd.f32 %v467, %v1966
      %v1968 = vpop.f32.mrf.mxu0
      %v1969 = vpop.f32.mrf.mxu0
      %v1970 = vadd.f32 %v468, %v1969
      %v1971 = vpop.f32.mrf.mxu0
      %1972 = vmatprep.mubr.bf16.mxu0 0
      %1973 = vmatmul.mubr.bf16.gmra.mxu0 %v1873
      %v1974 = vpop.f32.mrf.mxu0
      %v1975 = vadd.f32 %v469, %v1974
      %v1976 = vpop.f32.mrf.mxu0
      %v1977 = vpop.f32.mrf.mxu0
      %v1978 = vadd.f32 %v470, %v1977
      %v1979 = vpop.f32.mrf.mxu0
      %1980 = vmatprep.mubr.bf16.mxu0 0
      %1981 = vmatmul.mubr.bf16.gmra.mxu0 %v1876
      %v1982 = vpop.f32.mrf.mxu0
      %v1983 = vadd.f32 %v471, %v1982
      %v1984 = vpop.f32.mrf.mxu0
      %v1985 = vpop.f32.mrf.mxu0
      %v1986 = vadd.f32 %v472, %v1985
      %v1987 = vpop.f32.mrf.mxu0
      %1988 = vmatprep.mubr.bf16.mxu0 0
      %1989 = vmatmul.mubr.bf16.gmra.mxu0 %v1879
      %v1990 = vpop.f32.mrf.mxu0
      %v1991 = vadd.f32 %v473, %v1990
      %v1992 = vpop.f32.mrf.mxu0
      %v1993 = vpop.f32.mrf.mxu0
      %v1994 = vadd.f32 %v474, %v1993
      %v1995 = vpop.f32.mrf.mxu0
      %1996 = vmatprep.mubr.bf16.mxu0 0
      %1997 = vmatmul.mubr.bf16.gmra.mxu0 %v1882
      %v1998 = vpop.f32.mrf.mxu0
      %v1999 = vadd.f32 %v475, %v1998
      %v2000 = vpop.f32.mrf.mxu0
      %v2001 = vpop.f32.mrf.mxu0
      %v2002 = vadd.f32 %v476, %v2001
      %v2003 = vpop.f32.mrf.mxu0
      %2004 = vdwg.mxu0
      %2005 = vmax.xlane.f32.xlu0 %v1943
      %v2006 = vpop.xlane.xlu0 %2005
      %2007 = vmax.xlane.f32.xlu0 %v1946
      %v2008 = vpop.xlane.xlu0 %2007
      %2009 = vmax.xlane.f32.xlu0 %v1951
      %v2010 = vpop.xlane.xlu0 %2009
      %2011 = vmax.xlane.f32.xlu0 %v1954
      %v2012 = vpop.xlane.xlu0 %2011
      %2013 = vmax.xlane.f32.xlu0 %v1959
      %v2014 = vpop.xlane.xlu0 %2013
      %2015 = vmax.xlane.f32.xlu0 %v1962
      %v2016 = vpop.xlane.xlu0 %2015
      %2017 = vmax.xlane.f32.xlu0 %v1967
      %v2018 = vpop.xlane.xlu0 %2017
      %2019 = vmax.xlane.f32.xlu0 %v1970
      %v2020 = vpop.xlane.xlu0 %2019
      %2021 = vmax.xlane.f32.xlu0 %v1975
      %v2022 = vpop.xlane.xlu0 %2021
      %2023 = vmax.xlane.f32.xlu0 %v1978
      %v2024 = vpop.xlane.xlu0 %2023
      %2025 = vmax.xlane.f32.xlu0 %v1983
      %v2026 = vpop.xlane.xlu0 %2025
      %2027 = vmax.xlane.f32.xlu0 %v1986
      %v2028 = vpop.xlane.xlu0 %2027
      %2029 = vmax.xlane.f32.xlu0 %v1991
      %v2030 = vpop.xlane.xlu0 %2029
      %2031 = vmax.xlane.f32.xlu0 %v1994
      %v2032 = vpop.xlane.xlu0 %2031
      %2033 = vmax.xlane.f32.xlu0 %v1999
      %v2034 = vpop.xlane.xlu0 %2033
      %2035 = vmax.xlane.f32.xlu0 %v2002
      %v2036 = vpop.xlane.xlu0 %2035
      %v2037 = vsub.f32 %v1943, %v2006
      %v2038 = vsub.f32 %v1946, %v2008
      %v2039 = vsub.f32 %v1951, %v2010
      %v2040 = vsub.f32 %v1954, %v2012
      %v2041 = vsub.f32 %v1959, %v2014
      %v2042 = vsub.f32 %v1962, %v2016
      %v2043 = vsub.f32 %v1967, %v2018
      %v2044 = vsub.f32 %v1970, %v2020
      %v2045 = vsub.f32 %v1975, %v2022
      %v2046 = vsub.f32 %v1978, %v2024
      %v2047 = vsub.f32 %v1983, %v2026
      %v2048 = vsub.f32 %v1986, %v2028
      %v2049 = vsub.f32 %v1991, %v2030
      %v2050 = vsub.f32 %v1994, %v2032
      %v2051 = vsub.f32 %v1999, %v2034
      %v2052 = vsub.f32 %v2002, %v2036
      %v2053 = vmul.f32 %v2037, 1.442695
      %v2054 = vpow.pop %v2053
      %v2055 = vmul.f32 %v2038, 1.442695
      %v2056 = vpow.pop %v2055
      %v2057 = vmul.f32 %v2039, 1.442695
      %v2058 = vpow.pop %v2057
      %v2059 = vmul.f32 %v2040, 1.442695
      %v2060 = vpow.pop %v2059
      %v2061 = vmul.f32 %v2041, 1.442695
      %v2062 = vpow.pop %v2061
      %v2063 = vmul.f32 %v2042, 1.442695
      %v2064 = vpow.pop %v2063
      %v2065 = vmul.f32 %v2043, 1.442695
      %v2066 = vpow.pop %v2065
      %v2067 = vmul.f32 %v2044, 1.442695
      %v2068 = vpow.pop %v2067
      %v2069 = vmul.f32 %v2045, 1.442695
      %v2070 = vpow.pop %v2069
      %v2071 = vmul.f32 %v2046, 1.442695
      %v2072 = vpow.pop %v2071
      %v2073 = vmul.f32 %v2047, 1.442695
      %v2074 = vpow.pop %v2073
      %v2075 = vmul.f32 %v2048, 1.442695
      %v2076 = vpow.pop %v2075
      %v2077 = vmul.f32 %v2049, 1.442695
      %v2078 = vpow.pop %v2077
      %v2079 = vmul.f32 %v2050, 1.442695
      %v2080 = vpow.pop %v2079
      %v2081 = vmul.f32 %v2051, 1.442695
      %v2082 = vpow.pop %v2081
      %v2083 = vmul.f32 %v2052, 1.442695
      %v2084 = vpow.pop %v2083
      %2085 = vadd.xlane.f32.xlu0 %v2054
      %v2086 = vpop.xlane.xlu0 %2085
      %2087 = vadd.xlane.f32.xlu0 %v2056
      %v2088 = vpop.xlane.xlu0 %2087
      %2089 = vadd.xlane.f32.xlu0 %v2058
      %v2090 = vpop.xlane.xlu0 %2089
      %2091 = vadd.xlane.f32.xlu0 %v2060
      %v2092 = vpop.xlane.xlu0 %2091
      %2093 = vadd.xlane.f32.xlu0 %v2062
      %v2094 = vpop.xlane.xlu0 %2093
      %2095 = vadd.xlane.f32.xlu0 %v2064
      %v2096 = vpop.xlane.xlu0 %2095
      %2097 = vadd.xlane.f32.xlu0 %v2066
      %v2098 = vpop.xlane.xlu0 %2097
      %2099 = vadd.xlane.f32.xlu0 %v2068
      %v2100 = vpop.xlane.xlu0 %2099
      %2101 = vadd.xlane.f32.xlu0 %v2070
      %v2102 = vpop.xlane.xlu0 %2101
      %2103 = vadd.xlane.f32.xlu0 %v2072
      %v2104 = vpop.xlane.xlu0 %2103
      %2105 = vadd.xlane.f32.xlu0 %v2074
      %v2106 = vpop.xlane.xlu0 %2105
      %2107 = vadd.xlane.f32.xlu0 %v2076
      %v2108 = vpop.xlane.xlu0 %2107
      %2109 = vadd.xlane.f32.xlu0 %v2078
      %v2110 = vpop.xlane.xlu0 %2109
      %2111 = vadd.xlane.f32.xlu0 %v2080
      %v2112 = vpop.xlane.xlu0 %2111
      %2113 = vadd.xlane.f32.xlu0 %v2082
      %v2114 = vpop.xlane.xlu0 %2113
      %2115 = vadd.xlane.f32.xlu0 %v2084
      %v2116 = vpop.xlane.xlu0 %2115
      %v2117 = vrcp.pop %v2086
      %v2118 = vrcp.pop %v2088
      %v2119 = vrcp.pop %v2090
      %v2120 = vrcp.pop %v2092
      %v2121 = vrcp.pop %v2094
      %v2122 = vrcp.pop %v2096
      %v2123 = vrcp.pop %v2098
      %v2124 = vrcp.pop %v2100
      %v2125 = vrcp.pop %v2102
      %v2126 = vrcp.pop %v2104
      %v2127 = vrcp.pop %v2106
      %v2128 = vrcp.pop %v2108
      %v2129 = vrcp.pop %v2110
      %v2130 = vrcp.pop %v2112
      %v2131 = vrcp.pop %v2114
      %v2132 = vrcp.pop %v2116
      %v2133 = vmul.f32 %v2054, %v2117
      %v2134 = vmul.f32 %v2056, %v2118
      %v2135 = vmul.f32 %v2058, %v2119
      %v2136 = vmul.f32 %v2060, %v2120
      %v2137 = vmul.f32 %v2062, %v2121
      %v2138 = vmul.f32 %v2064, %v2122
      %v2139 = vmul.f32 %v2066, %v2123
      %v2140 = vmul.f32 %v2068, %v2124
      %v2141 = vmul.f32 %v2070, %v2125
      %v2142 = vmul.f32 %v2072, %v2126
      %v2143 = vmul.f32 %v2074, %v2127
      %v2144 = vmul.f32 %v2076, %v2128
      %v2145 = vmul.f32 %v2078, %v2129
      %v2146 = vmul.f32 %v2080, %v2130
      %v2147 = vmul.f32 %v2082, %v2131
      %v2148 = vmul.f32 %v2084, %v2132
      %v2149 = vpack.c.bf16 %v2134, %v2133
      %v2150 = vpack.c.bf16 %v2136, %v2135
      %v2151 = vpack.c.bf16 %v2138, %v2137
      %v2152 = vpack.c.bf16 %v2140, %v2139
      %v2153 = vpack.c.bf16 %v2142, %v2141
      %v2154 = vpack.c.bf16 %v2144, %v2143
      %v2155 = vpack.c.bf16 %v2146, %v2145
      %v2156 = vpack.c.bf16 %v2148, %v2147
      %2165 = vrot.lane.b32.xlu0 %v1699, 96
      %v2166 = vpop.permute.xlu0 %2165
      %2167 = vrot.lane.b32.xlu0 %v1700, 96
      %v2168 = vpop.permute.xlu0 %2167
      %2169 = vrot.lane.b32.xlu0 %v1701, 96
      %v2170 = vpop.permute.xlu0 %2169
      %2171 = vrot.lane.b32.xlu0 %v1702, 96
      %v2172 = vpop.permute.xlu0 %2171
      %2173 = vrot.lane.b32.xlu0 %v1703, 96
      %v2174 = vpop.permute.xlu0 %2173
      %2175 = vrot.lane.b32.xlu0 %v1704, 96
      %v2176 = vpop.permute.xlu0 %2175
      %2177 = vrot.lane.b32.xlu0 %v1705, 96
      %v2178 = vpop.permute.xlu0 %2177
      %2179 = vrot.lane.b32.xlu0 %v1706, 96
      %v2180 = vpop.permute.xlu0 %2179
      %2189 = vmatprep.subr.bf16.mxu0 0
      %2190 = vmatpush1.bf16.msra.mxu0 %v2180
      %2191 = vmatprep.subr.bf16.mxu0 0
      %2192 = vmatpush1.bf16.msra.mxu0 %v2178
      %2193 = vmatprep.subr.bf16.mxu0 0
      %2194 = vmatpush1.bf16.msra.mxu0 %v2176
      %2195 = vmatprep.subr.bf16.mxu0 0
      %2196 = vmatpush1.bf16.msra.mxu0 %v2174
      %2197 = vmatprep.subr.bf16.mxu0 0
      %2198 = vmatpush1.bf16.msra.mxu0 %v2172
      %2199 = vmatprep.subr.bf16.mxu0 0
      %2200 = vmatpush1.bf16.msra.mxu0 %v2170
      %2201 = vmatprep.subr.bf16.mxu0 0
      %2202 = vmatpush1.bf16.msra.mxu0 %v2168
      %2203 = vmatprep.subr.bf16.mxu0 0
      %2204 = vmatpush1.bf16.msra.mxu0 %v2166
      %2205 = vmatprep.subr.bf16.mxu0 0
      %2206 = vmatpush2.bf16.msra.mxu0 0
      %2207 = vmatprep.subr.bf16.mxu0 0
      %2208 = vmatpush2.bf16.msra.mxu0 0
      %2209 = vmatprep.subr.bf16.mxu0 0
      %2210 = vmatpush2.bf16.msra.mxu0 0
      %2211 = vmatprep.subr.bf16.mxu0 0
      %2212 = vmatpush2.bf16.msra.mxu0 0
      %2213 = vmatprep.subr.bf16.mxu0 0
      %2214 = vmatpush2.bf16.msra.mxu0 0
      %2215 = vmatprep.subr.bf16.mxu0 0
      %2216 = vmatpush2.bf16.msra.mxu0 0
      %2217 = vmatprep.subr.bf16.mxu0 0
      %2218 = vmatpush2.bf16.msra.mxu0 0
      %2219 = vmatprep.subr.bf16.mxu0 0
      %2220 = vmatpush2.bf16.msra.mxu0 0
      %2221 = vmatprep.mubr.bf16.mxu0 0
      %2222 = vmatmul.mubr.bf16.gmra.mxu0 %v2149
      %v2223 = vpop.f32.mrf.mxu0
      %v2224 = vadd.f32 0.0, %v2223
      %v2225 = vpop.f32.mrf.mxu0
      %v2226 = vpop.f32.mrf.mxu0
      %v2227 = vadd.f32 0.0, %v2226
      %v2228 = vpop.f32.mrf.mxu0
      %2229 = vmatprep.mubr.bf16.mxu0 0
      %2230 = vmatmul.mubr.bf16.gmra.mxu0 %v2150
      %v2231 = vpop.f32.mrf.mxu0
      %v2232 = vadd.f32 0.0, %v2231
      %v2233 = vpop.f32.mrf.mxu0
      %v2234 = vpop.f32.mrf.mxu0
      %v2235 = vadd.f32 0.0, %v2234
      %v2236 = vpop.f32.mrf.mxu0
      %2237 = vmatprep.mubr.bf16.mxu0 0
      %2238 = vmatmul.mubr.bf16.gmra.mxu0 %v2151
      %v2239 = vpop.f32.mrf.mxu0
      %v2240 = vadd.f32 0.0, %v2239
      %v2241 = vpop.f32.mrf.mxu0
      %v2242 = vpop.f32.mrf.mxu0
      %v2243 = vadd.f32 0.0, %v2242
      %v2244 = vpop.f32.mrf.mxu0
      %2245 = vmatprep.mubr.bf16.mxu0 0
      %2246 = vmatmul.mubr.bf16.gmra.mxu0 %v2152
      %v2247 = vpop.f32.mrf.mxu0
      %v2248 = vadd.f32 0.0, %v2247
      %v2249 = vpop.f32.mrf.mxu0
      %v2250 = vpop.f32.mrf.mxu0
      %v2251 = vadd.f32 0.0, %v2250
      %v2252 = vpop.f32.mrf.mxu0
      %2253 = vmatprep.mubr.bf16.mxu0 0
      %2254 = vmatmul.mubr.bf16.gmra.mxu0 %v2153
      %v2255 = vpop.f32.mrf.mxu0
      %v2256 = vadd.f32 0.0, %v2255
      %v2257 = vpop.f32.mrf.mxu0
      %v2258 = vpop.f32.mrf.mxu0
      %v2259 = vadd.f32 0.0, %v2258
      %v2260 = vpop.f32.mrf.mxu0
      %2261 = vmatprep.mubr.bf16.mxu0 0
      %2262 = vmatmul.mubr.bf16.gmra.mxu0 %v2154
      %v2263 = vpop.f32.mrf.mxu0
      %v2264 = vadd.f32 0.0, %v2263
      %v2265 = vpop.f32.mrf.mxu0
      %v2266 = vpop.f32.mrf.mxu0
      %v2267 = vadd.f32 0.0, %v2266
      %v2268 = vpop.f32.mrf.mxu0
      %2269 = vmatprep.mubr.bf16.mxu0 0
      %2270 = vmatmul.mubr.bf16.gmra.mxu0 %v2155
      %v2271 = vpop.f32.mrf.mxu0
      %v2272 = vadd.f32 0.0, %v2271
      %v2273 = vpop.f32.mrf.mxu0
      %v2274 = vpop.f32.mrf.mxu0
      %v2275 = vadd.f32 0.0, %v2274
      %v2276 = vpop.f32.mrf.mxu0
      %2277 = vmatprep.mubr.bf16.mxu0 0
      %2278 = vmatmul.mubr.bf16.gmra.mxu0 %v2156
      %v2279 = vpop.f32.mrf.mxu0
      %v2280 = vadd.f32 0.0, %v2279
      %v2281 = vpop.f32.mrf.mxu0
      %v2282 = vpop.f32.mrf.mxu0
      %v2283 = vadd.f32 0.0, %v2282
      %v2284 = vpop.f32.mrf.mxu0
      %2285 = vdwg.mxu0
      %v2286 = vadd.f32 %v1812, %v2224
      %v2287 = vadd.f32 %v1813, %v2227
      %v2288 = vadd.f32 %v1814, %v2232
      %v2289 = vadd.f32 %v1815, %v2235
      %v2290 = vadd.f32 %v1816, %v2240
      %v2291 = vadd.f32 %v1817, %v2243
      %v2292 = vadd.f32 %v1818, %v2248
      %v2293 = vadd.f32 %v1819, %v2251
      %v2294 = vadd.f32 %v1820, %v2256
      %v2295 = vadd.f32 %v1821, %v2259
      %v2296 = vadd.f32 %v1822, %v2264
      %v2297 = vadd.f32 %v1823, %v2267
      %v2298 = vadd.f32 %v1824, %v2272
      %v2299 = vadd.f32 %v1825, %v2275
      %v2300 = vadd.f32 %v1826, %v2280
      %v2301 = vadd.f32 %v1827, %v2283
      %v2302 = vadd.f32 %v2286, %v281
      %v2303 = vadd.f32 %v2287, %v281
      %v2304 = vadd.f32 %v2288, %v281
      %v2305 = vadd.f32 %v2289, %v281
      %v2306 = vadd.f32 %v2290, %v281
      %v2307 = vadd.f32 %v2291, %v281
      %v2308 = vadd.f32 %v2292, %v281
      %v2309 = vadd.f32 %v2293, %v281
      %v2310 = vadd.f32 %v2294, %v281
      %v2311 = vadd.f32 %v2295, %v281
      %v2312 = vadd.f32 %v2296, %v281
      %v2313 = vadd.f32 %v2297, %v281
      %v2314 = vadd.f32 %v2298, %v281
      %v2315 = vadd.f32 %v2299, %v281
      %v2316 = vadd.f32 %v2300, %v281
      %v2317 = vadd.f32 %v2301, %v281
      %v2318 = vadd.f32 %v256, %v2302
      %v2319 = vadd.f32 %v257, %v2303
      %v2320 = vadd.f32 %v258, %v2304
      %v2321 = vadd.f32 %v259, %v2305
      %v2322 = vadd.f32 %v260, %v2306
      %v2323 = vadd.f32 %v261, %v2307
      %v2324 = vadd.f32 %v262, %v2308
      %v2325 = vadd.f32 %v263, %v2309
      %v2326 = vadd.f32 %v264, %v2310
      %v2327 = vadd.f32 %v265, %v2311
      %v2328 = vadd.f32 %v266, %v2312
      %v2329 = vadd.f32 %v267, %v2313
      %v2330 = vadd.f32 %v268, %v2314
      %v2331 = vadd.f32 %v269, %v2315
      %v2332 = vadd.f32 %v270, %v2316
      %v2333 = vadd.f32 %v271, %v2317
      %v2334 = vsel %vm323, %v2318, 0.0
      %2335 = vadd.xlane.f32.xlu0 %v2334
      %v2336 = vpop.xlane.xlu0 %2335
      %v2337 = vsel %vm323, %v2319, 0.0
      %2338 = vadd.xlane.f32.xlu0 %v2337
      %v2339 = vpop.xlane.xlu0 %2338
      %v2340 = vsel %vm323, %v2320, 0.0
      %2341 = vadd.xlane.f32.xlu0 %v2340
      %v2342 = vpop.xlane.xlu0 %2341
      %v2343 = vsel %vm323, %v2321, 0.0
      %2344 = vadd.xlane.f32.xlu0 %v2343
      %v2345 = vpop.xlane.xlu0 %2344
      %v2346 = vsel %vm323, %v2322, 0.0
      %2347 = vadd.xlane.f32.xlu0 %v2346
      %v2348 = vpop.xlane.xlu0 %2347
      %v2349 = vsel %vm323, %v2323, 0.0
      %2350 = vadd.xlane.f32.xlu0 %v2349
      %v2351 = vpop.xlane.xlu0 %2350
      %v2352 = vsel %vm323, %v2324, 0.0
      %2353 = vadd.xlane.f32.xlu0 %v2352
      %v2354 = vpop.xlane.xlu0 %2353
      %v2355 = vsel %vm323, %v2325, 0.0
      %2356 = vadd.xlane.f32.xlu0 %v2355
      %v2357 = vpop.xlane.xlu0 %2356
      %v2358 = vsel %vm323, %v2326, 0.0
      %2359 = vadd.xlane.f32.xlu0 %v2358
      %v2360 = vpop.xlane.xlu0 %2359
      %v2361 = vsel %vm323, %v2327, 0.0
      %2362 = vadd.xlane.f32.xlu0 %v2361
      %v2363 = vpop.xlane.xlu0 %2362
      %v2364 = vsel %vm323, %v2328, 0.0
      %2365 = vadd.xlane.f32.xlu0 %v2364
      %v2366 = vpop.xlane.xlu0 %2365
      %v2367 = vsel %vm323, %v2329, 0.0
      %2368 = vadd.xlane.f32.xlu0 %v2367
      %v2369 = vpop.xlane.xlu0 %2368
      %v2370 = vsel %vm323, %v2330, 0.0
      %2371 = vadd.xlane.f32.xlu0 %v2370
      %v2372 = vpop.xlane.xlu0 %2371
      %v2373 = vsel %vm323, %v2331, 0.0
      %2374 = vadd.xlane.f32.xlu0 %v2373
      %v2375 = vpop.xlane.xlu0 %2374
      %v2376 = vsel %vm323, %v2332, 0.0
      %2377 = vadd.xlane.f32.xlu0 %v2376
      %v2378 = vpop.xlane.xlu0 %2377
      %v2379 = vsel %vm323, %v2333, 0.0
      %2380 = vadd.xlane.f32.xlu0 %v2379
      %v2381 = vpop.xlane.xlu0 %2380
      %v2382 = vrcp.pop 32.0
      %v2383 = vmul.f32 %v2336, %v2382
      %v2384 = vmul.f32 %v2339, %v2382
      %v2385 = vmul.f32 %v2342, %v2382
      %v2386 = vmul.f32 %v2345, %v2382
      %v2387 = vmul.f32 %v2348, %v2382
      %v2388 = vmul.f32 %v2351, %v2382
      %v2389 = vmul.f32 %v2354, %v2382
      %v2390 = vmul.f32 %v2357, %v2382
      %v2391 = vmul.f32 %v2360, %v2382
      %v2392 = vmul.f32 %v2363, %v2382
      %v2393 = vmul.f32 %v2366, %v2382
      %v2394 = vmul.f32 %v2369, %v2382
      %v2395 = vmul.f32 %v2372, %v2382
      %v2396 = vmul.f32 %v2375, %v2382
      %v2397 = vmul.f32 %v2378, %v2382
      %v2398 = vmul.f32 %v2381, %v2382
      %v2399 = vsub.f32 %v2318, %v2383
      %v2400 = vsub.f32 %v2319, %v2384
      %v2401 = vsub.f32 %v2320, %v2385
      %v2402 = vsub.f32 %v2321, %v2386
      %v2403 = vsub.f32 %v2322, %v2387
      %v2404 = vsub.f32 %v2323, %v2388
      %v2405 = vsub.f32 %v2324, %v2389
      %v2406 = vsub.f32 %v2325, %v2390
      %v2407 = vsub.f32 %v2326, %v2391
      %v2408 = vsub.f32 %v2327, %v2392
      %v2409 = vsub.f32 %v2328, %v2393
      %v2410 = vsub.f32 %v2329, %v2394
      %v2411 = vsub.f32 %v2330, %v2395
      %v2412 = vsub.f32 %v2331, %v2396
      %v2413 = vsub.f32 %v2332, %v2397
      %v2414 = vsub.f32 %v2333, %v2398
      %v2415 = vmul.f32 %v2399, %v2399
      %v2416 = vmul.f32 %v2400, %v2400
      %v2417 = vmul.f32 %v2401, %v2401
      %v2418 = vmul.f32 %v2402, %v2402
      %v2419 = vmul.f32 %v2403, %v2403
      %v2420 = vmul.f32 %v2404, %v2404
      %v2421 = vmul.f32 %v2405, %v2405
      %v2422 = vmul.f32 %v2406, %v2406
      %v2423 = vmul.f32 %v2407, %v2407
      %v2424 = vmul.f32 %v2408, %v2408
      %v2425 = vmul.f32 %v2409, %v2409
      %v2426 = vmul.f32 %v2410, %v2410
      %v2427 = vmul.f32 %v2411, %v2411
      %v2428 = vmul.f32 %v2412, %v2412
      %v2429 = vmul.f32 %v2413, %v2413
      %v2430 = vmul.f32 %v2414, %v2414
      %v2431 = vsel %vm323, %v2415, 0.0
      %2432 = vadd.xlane.f32.xlu0 %v2431
      %v2433 = vpop.xlane.xlu0 %2432
      %v2434 = vsel %vm323, %v2416, 0.0
      %2435 = vadd.xlane.f32.xlu0 %v2434
      %v2436 = vpop.xlane.xlu0 %2435
      %v2437 = vsel %vm323, %v2417, 0.0
      %2438 = vadd.xlane.f32.xlu0 %v2437
      %v2439 = vpop.xlane.xlu0 %2438
      %v2440 = vsel %vm323, %v2418, 0.0
      %2441 = vadd.xlane.f32.xlu0 %v2440
      %v2442 = vpop.xlane.xlu0 %2441
      %v2443 = vsel %vm323, %v2419, 0.0
      %2444 = vadd.xlane.f32.xlu0 %v2443
      %v2445 = vpop.xlane.xlu0 %2444
      %v2446 = vsel %vm323, %v2420, 0.0
      %2447 = vadd.xlane.f32.xlu0 %v2446
      %v2448 = vpop.xlane.xlu0 %2447
      %v2449 = vsel %vm323, %v2421, 0.0
      %2450 = vadd.xlane.f32.xlu0 %v2449
      %v2451 = vpop.xlane.xlu0 %2450
      %v2452 = vsel %vm323, %v2422, 0.0
      %2453 = vadd.xlane.f32.xlu0 %v2452
      %v2454 = vpop.xlane.xlu0 %2453
      %v2455 = vsel %vm323, %v2423, 0.0
      %2456 = vadd.xlane.f32.xlu0 %v2455
      %v2457 = vpop.xlane.xlu0 %2456
      %v2458 = vsel %vm323, %v2424, 0.0
      %2459 = vadd.xlane.f32.xlu0 %v2458
      %v2460 = vpop.xlane.xlu0 %2459
      %v2461 = vsel %vm323, %v2425, 0.0
      %2462 = vadd.xlane.f32.xlu0 %v2461
      %v2463 = vpop.xlane.xlu0 %2462
      %v2464 = vsel %vm323, %v2426, 0.0
      %2465 = vadd.xlane.f32.xlu0 %v2464
      %v2466 = vpop.xlane.xlu0 %2465
      %v2467 = vsel %vm323, %v2427, 0.0
      %2468 = vadd.xlane.f32.xlu0 %v2467
      %v2469 = vpop.xlane.xlu0 %2468
      %v2470 = vsel %vm323, %v2428, 0.0
      %2471 = vadd.xlane.f32.xlu0 %v2470
      %v2472 = vpop.xlane.xlu0 %2471
      %v2473 = vsel %vm323, %v2429, 0.0
      %2474 = vadd.xlane.f32.xlu0 %v2473
      %v2475 = vpop.xlane.xlu0 %2474
      %v2476 = vsel %vm323, %v2430, 0.0
      %2477 = vadd.xlane.f32.xlu0 %v2476
      %v2478 = vpop.xlane.xlu0 %2477
      %v2479 = vmul.f32 %v2433, %v2382
      %v2480 = vmul.f32 %v2436, %v2382
      %v2481 = vmul.f32 %v2439, %v2382
      %v2482 = vmul.f32 %v2442, %v2382
      %v2483 = vmul.f32 %v2445, %v2382
      %v2484 = vmul.f32 %v2448, %v2382
      %v2485 = vmul.f32 %v2451, %v2382
      %v2486 = vmul.f32 %v2454, %v2382
      %v2487 = vmul.f32 %v2457, %v2382
      %v2488 = vmul.f32 %v2460, %v2382
      %v2489 = vmul.f32 %v2463, %v2382
      %v2490 = vmul.f32 %v2466, %v2382
      %v2491 = vmul.f32 %v2469, %v2382
      %v2492 = vmul.f32 %v2472, %v2382
      %v2493 = vmul.f32 %v2475, %v2382
      %v2494 = vmul.f32 %v2478, %v2382
      %v2495 = vadd.f32 %v2479, 1e-05
      %v2496 = vadd.f32 %v2480, 1e-05
      %v2497 = vadd.f32 %v2481, 1e-05
      %v2498 = vadd.f32 %v2482, 1e-05
      %v2499 = vadd.f32 %v2483, 1e-05
      %v2500 = vadd.f32 %v2484, 1e-05
      %v2501 = vadd.f32 %v2485, 1e-05
      %v2502 = vadd.f32 %v2486, 1e-05
      %v2503 = vadd.f32 %v2487, 1e-05
      %v2504 = vadd.f32 %v2488, 1e-05
      %v2505 = vadd.f32 %v2489, 1e-05
      %v2506 = vadd.f32 %v2490, 1e-05
      %v2507 = vadd.f32 %v2491, 1e-05
      %v2508 = vadd.f32 %v2492, 1e-05
      %v2509 = vadd.f32 %v2493, 1e-05
      %v2510 = vadd.f32 %v2494, 1e-05
      %v2511 = vrsqrt.pop %v2495
      %v2512 = vrsqrt.pop %v2496
      %v2513 = vrsqrt.pop %v2497
      %v2514 = vrsqrt.pop %v2498
      %v2515 = vrsqrt.pop %v2499
      %v2516 = vrsqrt.pop %v2500
      %v2517 = vrsqrt.pop %v2501
      %v2518 = vrsqrt.pop %v2502
      %v2519 = vrsqrt.pop %v2503
      %v2520 = vrsqrt.pop %v2504
      %v2521 = vrsqrt.pop %v2505
      %v2522 = vrsqrt.pop %v2506
      %v2523 = vrsqrt.pop %v2507
      %v2524 = vrsqrt.pop %v2508
      %v2525 = vrsqrt.pop %v2509
      %v2526 = vrsqrt.pop %v2510
      %v2527 = vmul.f32 %v2399, %v2511
      %v2528 = vmul.f32 %v2400, %v2512
      %v2529 = vmul.f32 %v2401, %v2513
      %v2530 = vmul.f32 %v2402, %v2514
      %v2531 = vmul.f32 %v2403, %v2515
      %v2532 = vmul.f32 %v2404, %v2516
      %v2533 = vmul.f32 %v2405, %v2517
      %v2534 = vmul.f32 %v2406, %v2518
      %v2535 = vmul.f32 %v2407, %v2519
      %v2536 = vmul.f32 %v2408, %v2520
      %v2537 = vmul.f32 %v2409, %v2521
      %v2538 = vmul.f32 %v2410, %v2522
      %v2539 = vmul.f32 %v2411, %v2523
      %v2540 = vmul.f32 %v2412, %v2524
      %v2541 = vmul.f32 %v2413, %v2525
      %v2542 = vmul.f32 %v2414, %v2526
      %v2543 = vmul.f32 %v2527, %v282
      %v2544 = vmul.f32 %v2528, %v282
      %v2545 = vmul.f32 %v2529, %v282
      %v2546 = vmul.f32 %v2530, %v282
      %v2547 = vmul.f32 %v2531, %v282
      %v2548 = vmul.f32 %v2532, %v282
      %v2549 = vmul.f32 %v2533, %v282
      %v2550 = vmul.f32 %v2534, %v282
      %v2551 = vmul.f32 %v2535, %v282
      %v2552 = vmul.f32 %v2536, %v282
      %v2553 = vmul.f32 %v2537, %v282
      %v2554 = vmul.f32 %v2538, %v282
      %v2555 = vmul.f32 %v2539, %v282
      %v2556 = vmul.f32 %v2540, %v282
      %v2557 = vmul.f32 %v2541, %v282
      %v2558 = vmul.f32 %v2542, %v282
      %v2559 = vadd.f32 %v2543, %v283
      %v2560 = vadd.f32 %v2544, %v283
      %v2561 = vadd.f32 %v2545, %v283
      %v2562 = vadd.f32 %v2546, %v283
      %v2563 = vadd.f32 %v2547, %v283
      %v2564 = vadd.f32 %v2548, %v283
      %v2565 = vadd.f32 %v2549, %v283
      %v2566 = vadd.f32 %v2550, %v283
      %v2567 = vadd.f32 %v2551, %v283
      %v2568 = vadd.f32 %v2552, %v283
      %v2569 = vadd.f32 %v2553, %v283
      %v2570 = vadd.f32 %v2554, %v283
      %v2571 = vadd.f32 %v2555, %v283
      %v2572 = vadd.f32 %v2556, %v283
      %v2573 = vadd.f32 %v2557, %v283
      %v2574 = vadd.f32 %v2558, %v283
      %v2575 = vpack.c.bf16 %v2560, %v2559
      %v2576 = vpack.c.bf16 %v2562, %v2561
      %v2577 = vpack.c.bf16 %v2564, %v2563
      %v2578 = vpack.c.bf16 %v2566, %v2565
      %v2579 = vpack.c.bf16 %v2568, %v2567
      %v2580 = vpack.c.bf16 %v2570, %v2569
      %v2581 = vpack.c.bf16 %v2572, %v2571
      %v2582 = vpack.c.bf16 %v2574, %v2573
      %v2583 = vld [vmem:[%s2] sm:$0xf]
      %v2584 = vld [vmem:[%s2 + $0x4] sm:$0xf]
      %v2585 = vld [vmem:[%s2 + $0x8] sm:$0xf]
      %v2586 = vld [vmem:[%s2 + $0xc] sm:$0xf]
      %v2591 = vunpack.c.l.b16 %v2583
      %v2592 = vunpack.c.l.b16 %v2584
      %v2593 = vunpack.c.l.b16 %v2585
      %v2594 = vunpack.c.l.b16 %v2586
      %v2595 = vpack.c.b16 %v2592, %v2591
      %v2596 = vpack.c.b16 %v2594, %v2593
      %v2600 = vsel %vm323, %v2575, 0
      %v2603 = vsel %vm323, %v2576, 0
      %v2606 = vsel %vm323, %v2577, 0
      %v2609 = vsel %vm323, %v2578, 0
      %v2612 = vsel %vm323, %v2579, 0
      %v2615 = vsel %vm323, %v2580, 0
      %v2618 = vsel %vm323, %v2581, 0
      %v2621 = vsel %vm323, %v2582, 0
      %2623 = vmatprep.subr.bf16.mxu0 0
      %2624 = vmatpush1.bf16.msra.mxu0 0
      %2625 = vmatprep.subr.bf16.mxu0 0
      %2626 = vmatpush1.bf16.msra.mxu0 0
      %2627 = vmatprep.subr.bf16.mxu0 0
      %2628 = vmatpush1.bf16.msra.mxu0 0
      %2629 = vmatprep.subr.bf16.mxu0 0
      %2630 = vmatpush1.bf16.msra.mxu0 0
      %2631 = vmatprep.subr.bf16.mxu0 0
      %2632 = vmatpush1.bf16.msra.mxu0 0
      %2633 = vmatprep.subr.bf16.mxu0 0
      %2634 = vmatpush1.bf16.msra.mxu0 0
      %2635 = vmatprep.subr.bf16.mxu0 0
      %2636 = vmatpush1.bf16.msra.mxu0 %v2596
      %2637 = vmatprep.subr.bf16.mxu0 0
      %2638 = vmatpush1.bf16.msra.mxu0 %v2595
      %2639 = vmatprep.subr.bf16.mxu0 0
      %2640 = vmatpush2.bf16.msra.mxu0 0
      %2641 = vmatprep.subr.bf16.mxu0 0
      %2642 = vmatpush2.bf16.msra.mxu0 0
      %2643 = vmatprep.subr.bf16.mxu0 0
      %2644 = vmatpush2.bf16.msra.mxu0 0
      %2645 = vmatprep.subr.bf16.mxu0 0
      %2646 = vmatpush2.bf16.msra.mxu0 0
      %2647 = vmatprep.subr.bf16.mxu0 0
      %2648 = vmatpush2.bf16.msra.mxu0 0
      %2649 = vmatprep.subr.bf16.mxu0 0
      %2650 = vmatpush2.bf16.msra.mxu0 0
      %2651 = vmatprep.subr.bf16.mxu0 0
      %2652 = vmatpush2.bf16.msra.mxu0 0
      %2653 = vmatprep.subr.bf16.mxu0 0
      %2654 = vmatpush2.bf16.msra.mxu0 0
      %2655 = vmatprep.mubr.bf16.mxu0 0
      %2656 = vmatmul.mubr.bf16.gmra.mxu0 %v2600
      %v2657 = vpop.f32.mrf.mxu0
      %v2658 = vadd.f32 %v284, %v2657
      %v2659 = vpop.f32.mrf.mxu0
      %v2660 = vpop.f32.mrf.mxu0
      %v2661 = vadd.f32 %v284, %v2660
      %v2662 = vpop.f32.mrf.mxu0
      %2663 = vmatprep.mubr.bf16.mxu0 0
      %2664 = vmatmul.mubr.bf16.gmra.mxu0 %v2603
      %v2665 = vpop.f32.mrf.mxu0
      %v2666 = vadd.f32 %v284, %v2665
      %v2667 = vpop.f32.mrf.mxu0
      %v2668 = vpop.f32.mrf.mxu0
      %v2669 = vadd.f32 %v284, %v2668
      %v2670 = vpop.f32.mrf.mxu0
      %2671 = vmatprep.mubr.bf16.mxu0 0
      %2672 = vmatmul.mubr.bf16.gmra.mxu0 %v2606
      %v2673 = vpop.f32.mrf.mxu0
      %v2674 = vadd.f32 %v284, %v2673
      %v2675 = vpop.f32.mrf.mxu0
      %v2676 = vpop.f32.mrf.mxu0
      %v2677 = vadd.f32 %v284, %v2676
      %v2678 = vpop.f32.mrf.mxu0
      %2679 = vmatprep.mubr.bf16.mxu0 0
      %2680 = vmatmul.mubr.bf16.gmra.mxu0 %v2609
      %v2681 = vpop.f32.mrf.mxu0
      %v2682 = vadd.f32 %v284, %v2681
      %v2683 = vpop.f32.mrf.mxu0
      %v2684 = vpop.f32.mrf.mxu0
      %v2685 = vadd.f32 %v284, %v2684
      %v2686 = vpop.f32.mrf.mxu0
      %2687 = vmatprep.mubr.bf16.mxu0 0
      %2688 = vmatmul.mubr.bf16.gmra.mxu0 %v2612
      %v2689 = vpop.f32.mrf.mxu0
      %v2690 = vadd.f32 %v284, %v2689
      %v2691 = vpop.f32.mrf.mxu0
      %v2692 = vpop.f32.mrf.mxu0
      %v2693 = vadd.f32 %v284, %v2692
      %v2694 = vpop.f32.mrf.mxu0
      %2695 = vmatprep.mubr.bf16.mxu0 0
      %2696 = vmatmul.mubr.bf16.gmra.mxu0 %v2615
      %v2697 = vpop.f32.mrf.mxu0
      %v2698 = vadd.f32 %v284, %v2697
      %v2699 = vpop.f32.mrf.mxu0
      %v2700 = vpop.f32.mrf.mxu0
      %v2701 = vadd.f32 %v284, %v2700
      %v2702 = vpop.f32.mrf.mxu0
      %2703 = vmatprep.mubr.bf16.mxu0 0
      %2704 = vmatmul.mubr.bf16.gmra.mxu0 %v2618
      %v2705 = vpop.f32.mrf.mxu0
      %v2706 = vadd.f32 %v284, %v2705
      %v2707 = vpop.f32.mrf.mxu0
      %v2708 = vpop.f32.mrf.mxu0
      %v2709 = vadd.f32 %v284, %v2708
      %v2710 = vpop.f32.mrf.mxu0
      %2711 = vmatprep.mubr.bf16.mxu0 0
      %2712 = vmatmul.mubr.bf16.gmra.mxu0 %v2621
      %v2713 = vpop.f32.mrf.mxu0
      %v2714 = vadd.f32 %v284, %v2713
      %v2715 = vpop.f32.mrf.mxu0
      %v2716 = vpop.f32.mrf.mxu0
      %v2717 = vadd.f32 %v284, %v2716
      %v2718 = vpop.f32.mrf.mxu0
      %2719 = vdwg.mxu0
      %v2720 = vmul.f32 %v2658, %v2658
      %v2721 = vmul.f32 %v2661, %v2661
      %v2722 = vmul.f32 %v2666, %v2666
      %v2723 = vmul.f32 %v2669, %v2669
      %v2724 = vmul.f32 %v2674, %v2674
      %v2725 = vmul.f32 %v2677, %v2677
      %v2726 = vmul.f32 %v2682, %v2682
      %v2727 = vmul.f32 %v2685, %v2685
      %v2728 = vmul.f32 %v2690, %v2690
      %v2729 = vmul.f32 %v2693, %v2693
      %v2730 = vmul.f32 %v2698, %v2698
      %v2731 = vmul.f32 %v2701, %v2701
      %v2732 = vmul.f32 %v2706, %v2706
      %v2733 = vmul.f32 %v2709, %v2709
      %v2734 = vmul.f32 %v2714, %v2714
      %v2735 = vmul.f32 %v2717, %v2717
      %v2736 = vmul.f32 %v2658, %v2720
      %v2737 = vmul.f32 %v2661, %v2721
      %v2738 = vmul.f32 %v2666, %v2722
      %v2739 = vmul.f32 %v2669, %v2723
      %v2740 = vmul.f32 %v2674, %v2724
      %v2741 = vmul.f32 %v2677, %v2725
      %v2742 = vmul.f32 %v2682, %v2726
      %v2743 = vmul.f32 %v2685, %v2727
      %v2744 = vmul.f32 %v2690, %v2728
      %v2745 = vmul.f32 %v2693, %v2729
      %v2746 = vmul.f32 %v2698, %v2730
      %v2747 = vmul.f32 %v2701, %v2731
      %v2748 = vmul.f32 %v2706, %v2732
      %v2749 = vmul.f32 %v2709, %v2733
      %v2750 = vmul.f32 %v2714, %v2734
      %v2751 = vmul.f32 %v2717, %v2735
      %v2752 = vmul.f32 %v2736, 0.044715
      %v2753 = vmul.f32 %v2737, 0.044715
      %v2754 = vmul.f32 %v2738, 0.044715
      %v2755 = vmul.f32 %v2739, 0.044715
      %v2756 = vmul.f32 %v2740, 0.044715
      %v2757 = vmul.f32 %v2741, 0.044715
      %v2758 = vmul.f32 %v2742, 0.044715
      %v2759 = vmul.f32 %v2743, 0.044715
      %v2760 = vmul.f32 %v2744, 0.044715
      %v2761 = vmul.f32 %v2745, 0.044715
      %v2762 = vmul.f32 %v2746, 0.044715
      %v2763 = vmul.f32 %v2747, 0.044715
      %v2764 = vmul.f32 %v2748, 0.044715
      %v2765 = vmul.f32 %v2749, 0.044715
      %v2766 = vmul.f32 %v2750, 0.044715
      %v2767 = vmul.f32 %v2751, 0.044715
      %v2768 = vadd.f32 %v2658, %v2752
      %v2769 = vadd.f32 %v2661, %v2753
      %v2770 = vadd.f32 %v2666, %v2754
      %v2771 = vadd.f32 %v2669, %v2755
      %v2772 = vadd.f32 %v2674, %v2756
      %v2773 = vadd.f32 %v2677, %v2757
      %v2774 = vadd.f32 %v2682, %v2758
      %v2775 = vadd.f32 %v2685, %v2759
      %v2776 = vadd.f32 %v2690, %v2760
      %v2777 = vadd.f32 %v2693, %v2761
      %v2778 = vadd.f32 %v2698, %v2762
      %v2779 = vadd.f32 %v2701, %v2763
      %v2780 = vadd.f32 %v2706, %v2764
      %v2781 = vadd.f32 %v2709, %v2765
      %v2782 = vadd.f32 %v2714, %v2766
      %v2783 = vadd.f32 %v2717, %v2767
      %v2784 = vmul.f32 %v2768, 0.7978846
      %v2785 = vmul.f32 %v2769, 0.7978846
      %v2786 = vmul.f32 %v2770, 0.7978846
      %v2787 = vmul.f32 %v2771, 0.7978846
      %v2788 = vmul.f32 %v2772, 0.7978846
      %v2789 = vmul.f32 %v2773, 0.7978846
      %v2790 = vmul.f32 %v2774, 0.7978846
      %v2791 = vmul.f32 %v2775, 0.7978846
      %v2792 = vmul.f32 %v2776, 0.7978846
      %v2793 = vmul.f32 %v2777, 0.7978846
      %v2794 = vmul.f32 %v2778, 0.7978846
      %v2795 = vmul.f32 %v2779, 0.7978846
      %v2796 = vmul.f32 %v2780, 0.7978846
      %v2797 = vmul.f32 %v2781, 0.7978846
      %v2798 = vmul.f32 %v2782, 0.7978846
      %v2799 = vmul.f32 %v2783, 0.7978846
      %v2800 = vtanh.pop %v2784
      %v2801 = vtanh.pop %v2785
      %v2802 = vtanh.pop %v2786
      %v2803 = vtanh.pop %v2787
      %v2804 = vtanh.pop %v2788
      %v2805 = vtanh.pop %v2789
      %v2806 = vtanh.pop %v2790
      %v2807 = vtanh.pop %v2791
      %v2808 = vtanh.pop %v2792
      %v2809 = vtanh.pop %v2793
      %v2810 = vtanh.pop %v2794
      %v2811 = vtanh.pop %v2795
      %v2812 = vtanh.pop %v2796
      %v2813 = vtanh.pop %v2797
      %v2814 = vtanh.pop %v2798
      %v2815 = vtanh.pop %v2799
      %v2816 = vadd.f32 %v2800, 1.0
      %v2817 = vadd.f32 %v2801, 1.0
      %v2818 = vadd.f32 %v2802, 1.0
      %v2819 = vadd.f32 %v2803, 1.0
      %v2820 = vadd.f32 %v2804, 1.0
      %v2821 = vadd.f32 %v2805, 1.0
      %v2822 = vadd.f32 %v2806, 1.0
      %v2823 = vadd.f32 %v2807, 1.0
      %v2824 = vadd.f32 %v2808, 1.0
      %v2825 = vadd.f32 %v2809, 1.0
      %v2826 = vadd.f32 %v2810, 1.0
      %v2827 = vadd.f32 %v2811, 1.0
      %v2828 = vadd.f32 %v2812, 1.0
      %v2829 = vadd.f32 %v2813, 1.0
      %v2830 = vadd.f32 %v2814, 1.0
      %v2831 = vadd.f32 %v2815, 1.0
      %v2832 = vmul.f32 %v2816, 0.5
      %v2833 = vmul.f32 %v2817, 0.5
      %v2834 = vmul.f32 %v2818, 0.5
      %v2835 = vmul.f32 %v2819, 0.5
      %v2836 = vmul.f32 %v2820, 0.5
      %v2837 = vmul.f32 %v2821, 0.5
      %v2838 = vmul.f32 %v2822, 0.5
      %v2839 = vmul.f32 %v2823, 0.5
      %v2840 = vmul.f32 %v2824, 0.5
      %v2841 = vmul.f32 %v2825, 0.5
      %v2842 = vmul.f32 %v2826, 0.5
      %v2843 = vmul.f32 %v2827, 0.5
      %v2844 = vmul.f32 %v2828, 0.5
      %v2845 = vmul.f32 %v2829, 0.5
      %v2846 = vmul.f32 %v2830, 0.5
      %v2847 = vmul.f32 %v2831, 0.5
      %v2848 = vmul.f32 %v2658, %v2832
      %v2849 = vmul.f32 %v2661, %v2833
      %v2850 = vmul.f32 %v2666, %v2834
      %v2851 = vmul.f32 %v2669, %v2835
      %v2852 = vmul.f32 %v2674, %v2836
      %v2853 = vmul.f32 %v2677, %v2837
      %v2854 = vmul.f32 %v2682, %v2838
      %v2855 = vmul.f32 %v2685, %v2839
      %v2856 = vmul.f32 %v2690, %v2840
      %v2857 = vmul.f32 %v2693, %v2841
      %v2858 = vmul.f32 %v2698, %v2842
      %v2859 = vmul.f32 %v2701, %v2843
      %v2860 = vmul.f32 %v2706, %v2844
      %v2861 = vmul.f32 %v2709, %v2845
      %v2862 = vmul.f32 %v2714, %v2846
      %v2863 = vmul.f32 %v2717, %v2847
      %v2864 = vld [vmem:[%s3] sm:$0xf]
      %v2865 = vld [vmem:[%s3 + $0x4] sm:$0xf]
      %v2866 = vld [vmem:[%s3 + $0x8] sm:$0xf]
      %v2867 = vld [vmem:[%s3 + $0xc] sm:$0xf]
      %v2868 = vld [vmem:[%s3 + $0x10] sm:$0xf]
      %v2869 = vld [vmem:[%s3 + $0x14] sm:$0xf]
      %v2870 = vld [vmem:[%s3 + $0x18] sm:$0xf]
      %v2871 = vld [vmem:[%s3 + $0x1c] sm:$0xf]
      %v2872 = vand.u32 2147483647, %v2658
      %vm2873 = vcmp.le.f32.partialorder %v2872, 0.7853982
      %vm2874 = vcmp.lt.s32.totalorder %v2658, 0
      %v2875 = vand.u32 %v2658, 2139095040
      %v2876 = vshrl.u32 %v2875, 23
      %v2877 = vsub.s32 %v2876, 127
      %v2878 = vand.u32 2147483647, %v2658
      %v2879 = vand.u32 %v2878, 8388607
      %v2880 = vor.u32 %v2879, 8388608
      %v2881 = vsub.s32 0, %v2880
      %v2882 = vadd.s32 %v2877, 1
      %vm2883 = vcmp.gt.s32.totalorder %v2882, 0
      %v2884 = vsel %vm2883, %v2882, 0
      %v2885 = vshrl.u32 %v2884, 5
      %v2886 = vand.u32 %v2884, 31
      %v2887 = vsub.s32 32, %v2886
      %v2888 = vshrl.u32 683565275, %v2887
      %v2889 = vshll.u32 683565275, %v2886
      %v2890 = vshrl.u32 2475754826, %v2887
      %v2891 = vor.u32 %v2889, %v2890
      %v2892 = vshll.u32 2475754826, %v2886
      %v2893 = vshrl.u32 2131351028, %v2887
      %v2894 = vor.u32 %v2892, %v2893
      %v2895 = vshll.u32 2131351028, %v2886
      %v2896 = vshrl.u32 2102212464, %v2887
      %v2897 = vor.u32 %v2895, %v2896
      %v2898 = vshll.u32 2102212464, %v2886
      %v2899 = vshrl.u32 920167782, %v2887
      %v2900 = vor.u32 %v2898, %v2899
      %v2901 = vshll.u32 920167782, %v2886
      %v2902 = vshrl.u32 1326507024, %v2887
      %v2903 = vor.u32 %v2901, %v2902
      %vm2904 = vcmp.lt.s32.totalorder %v2885, 1
      %vm2905 = vcmp.lt.s32.totalorder %v2885, 2
      %vm2906 = vcmp.lt.s32.totalorder %v2885, 3
      %vm2907 = vcmp.lt.s32.totalorder %v2885, 4
      %v2908 = vsel %vm2904, %v2888, %v2891
      %v2909 = vsel %vm2907, %v2897, 2102212464
      %v2910 = vsel %vm2906, %v2894, %v2909
      %v2911 = vsel %vm2905, %v2908, %v2910
      %v2912 = vsel %vm2904, %v2891, %v2894
      %v2913 = vsel %vm2907, %v2900, 920167782
      %v2914 = vsel %vm2906, %v2897, %v2913
      %v2915 = vsel %vm2905, %v2912, %v2914
      %v2916 = vsel %vm2904, %v2894, %v2897
      %v2917 = vsel %vm2907, %v2903, 1326507024
      %v2918 = vsel %vm2906, %v2900, %v2917
      %v2919 = vsel %vm2905, %v2916, %v2918
      %v2920 = vshll.u32 %v2880, 8
      %v2921 = vmul.u32.u64.compose %v2920, %v2919
      %v2922 = vextract.low.u32 %v2921
      %v2923 = vextract.high.u32 %v2921
      %v2924 = vmul.u32.u64.compose %v2920, %v2915
      %v2925 = vextract.low.u32 %v2924
      %v2926 = vextract.high.u32 %v2924
      %v2927 = vmul.u32 %v2920, %v2911
      %v2928 = vadd.s32 %v2923, %v2925
      %vm2929 = vc.u32 %v2923, %v2925
      %v2930 = vadd.s32 %v2926, 1
      %v2931 = vsel %vm2929, %v2930, %v2926
      %v2932 = vadd.s32 %v2927, %v2931
      %v2933 = vadd.s32 %v2932, 536870912
      %v2934 = vshrl.u32 %v2933, 30
      %v2935 = vshll.u32 %v2934, 30
      %v2936 = vsub.s32 %v2932, %v2935
      %vm2937 = vcmp.lt.s32.totalorder %v2936, 0
      %v2938 = vsub.s32 0, %v2936
      %v2939 = vsel %vm2937, %v2938, %v2936
      %v2940 = vclz %v2939
      %v2941 = vsub.s32 %v2940, 2
      %vm2942 = vcmp.gt.s32.totalorder 0, %v2941
      %v2943 = vsel %vm2942, 0, %v2941
      %v2944 = vsub.s32 32, %v2943
      %v2945 = vshll.u32 %v2936, %v2943
      %v2946 = vshrl.u32 %v2928, %v2944
      %v2947 = vor.u32 %v2945, %v2946
      %v2948 = vsub.s32 4294967266, %v2943
      %v2949 = vadd.s32 %v2948, 127
      %v2950 = vshll.u32 %v2949, 23
      %v2951 = vor.u32 4788187, %v2950
      %v2952 = vand.u32 2147483647, %v2951
      %v2954 = vcvt.s32.f32 %v2947
      %v2955 = vmul.f32 %v2954, %v2952
      %v2956 = vxor.u32 %v2955, 2147483648
      %v2957 = vsel %vm2874, %v2956, %v2955
      %v2958 = vsub.s32 4, %v2934
      %v2959 = vsel %vm2874, %v2958, %v2934
      %v2960 = vsel %vm2873, %v2658, %v2957
      %v2961 = vsel %vm2873, 0, %v2959
      %v2962 = vcosq.f32.pop %v2960
      %v2963 = vsinq.f32.pop %v2960
      %vm2964 = vweird.f32 %v2658
      %v2965 = vand.u32 %v2961, 3
      %vm2966 = vcmp.lt.s32.totalorder %v2965, 2
      %vm2967 = vcmp.eq.s32.totalorder %v2965, 0
      %v2968 = vxor.u32 %v2963, 2147483648
      %v2969 = vsel %vm2967, %v2962, %v2968
      %vm2970 = vcmp.eq.s32.totalorder %v2965, 2
      %v2971 = vxor.u32 %v2962, 2147483648
      %v2972 = vsel %vm2970, %v2971, %v2963
      %v2973 = vsel %vm2966, %v2969, %v2972
      %v2974 = vsel %vm2964, nan, %v2973
      %v2975 = vand.u32 2147483647, %v2661
      %vm2976 = vcmp.le.f32.partialorder %v2975, 0.7853982
      %vm2977 = vcmp.lt.s32.totalorder %v2661, 0
      %v2978 = vand.u32 %v2661, 2139095040
      %v2979 = vshrl.u32 %v2978, 23
      %v2980 = vsub.s32 %v2979, 127
      %v2981 = vand.u32 2147483647, %v2661
      %v2982 = vand.u32 %v2981, 8388607
      %v2983 = vor.u32 %v2982, 8388608
      %v2984 = vsub.s32 0, %v2983
      %v2985 = vadd.s32 %v2980, 1
      %vm2986 = vcmp.gt.s32.totalorder %v2985, 0
      %v2987 = vsel %vm2986, %v2985, 0
      %v2988 = vshrl.u32 %v2987, 5
      %v2989 = vand.u32 %v2987, 31
      %v2990 = vsub.s32 32, %v2989
      %v2991 = vshrl.u32 683565275, %v2990
      %v2992 = vshll.u32 683565275, %v2989
      %v2993 = vshrl.u32 2475754826, %v2990
      %v2994 = vor.u32 %v2992, %v2993
      %v2995 = vshll.u32 2475754826, %v2989
      %v2996 = vshrl.u32 2131351028, %v2990
      %v2997 = vor.u32 %v2995, %v2996
      %v2998 = vshll.u32 2131351028, %v2989
      %v2999 = vshrl.u32 2102212464, %v2990
      %v3000 = vor.u32 %v2998, %v2999
      %v3001 = vshll.u32 2102212464, %v2989
      %v3002 = vshrl.u32 920167782, %v2990
      %v3003 = vor.u32 %v3001, %v3002
      %v3004 = vshll.u32 920167782, %v2989
      %v3005 = vshrl.u32 1326507024, %v2990
      %v3006 = vor.u32 %v3004, %v3005
      %vm3007 = vcmp.lt.s32.totalorder %v2988, 1
      %vm3008 = vcmp.lt.s32.totalorder %v2988, 2
      %vm3009 = vcmp.lt.s32.totalorder %v2988, 3
      %vm3010 = vcmp.lt.s32.totalorder %v2988, 4
      %v3011 = vsel %vm3007, %v2991, %v2994
      %v3012 = vsel %vm3010, %v3000, 2102212464
      %v3013 = vsel %vm3009, %v2997, %v3012
      %v3014 = vsel %vm3008, %v3011, %v3013
      %v3015 = vsel %vm3007, %v2994, %v2997
      %v3016 = vsel %vm3010, %v3003, 920167782
      %v3017 = vsel %vm3009, %v3000, %v3016
      %v3018 = vsel %vm3008, %v3015, %v3017
      %v3019 = vsel %vm3007, %v2997, %v3000
      %v3020 = vsel %vm3010, %v3006, 1326507024
      %v3021 = vsel %vm3009, %v3003, %v3020
      %v3022 = vsel %vm3008, %v3019, %v3021
      %v3023 = vshll.u32 %v2983, 8
      %v3024 = vmul.u32.u64.compose %v3023, %v3022
      %v3025 = vextract.low.u32 %v3024
      %v3026 = vextract.high.u32 %v3024
      %v3027 = vmul.u32.u64.compose %v3023, %v3018
      %v3028 = vextract.low.u32 %v3027
      %v3029 = vextract.high.u32 %v3027
      %v3030 = vmul.u32 %v3023, %v3014
      %v3031 = vadd.s32 %v3026, %v3028
      %vm3032 = vc.u32 %v3026, %v3028
      %v3033 = vadd.s32 %v3029, 1
      %v3034 = vsel %vm3032, %v3033, %v3029
      %v3035 = vadd.s32 %v3030, %v3034
      %v3036 = vadd.s32 %v3035, 536870912
      %v3037 = vshrl.u32 %v3036, 30
      %v3038 = vshll.u32 %v3037, 30
      %v3039 = vsub.s32 %v3035, %v3038
      %vm3040 = vcmp.lt.s32.totalorder %v3039, 0
      %v3041 = vsub.s32 0, %v3039
      %v3042 = vsel %vm3040, %v3041, %v3039
      %v3043 = vclz %v3042
      %v3044 = vsub.s32 %v3043, 2
      %vm3045 = vcmp.gt.s32.totalorder 0, %v3044
      %v3046 = vsel %vm3045, 0, %v3044
      %v3047 = vsub.s32 32, %v3046
      %v3048 = vshll.u32 %v3039, %v3046
      %v3049 = vshrl.u32 %v3031, %v3047
      %v3050 = vor.u32 %v3048, %v3049
      %v3051 = vsub.s32 4294967266, %v3046
      %v3052 = vadd.s32 %v3051, 127
      %v3053 = vshll.u32 %v3052, 23
      %v3054 = vor.u32 4788187, %v3053
      %v3055 = vand.u32 2147483647, %v3054
      %v3057 = vcvt.s32.f32 %v3050
      %v3058 = vmul.f32 %v3057, %v3055
      %v3059 = vxor.u32 %v3058, 2147483648
      %v3060 = vsel %vm2977, %v3059, %v3058
      %v3061 = vsub.s32 4, %v3037
      %v3062 = vsel %vm2977, %v3061, %v3037
      %v3063 = vsel %vm2976, %v2661, %v3060
      %v3064 = vsel %vm2976, 0, %v3062
      %v3065 = vcosq.f32.pop %v3063
      %v3066 = vsinq.f32.pop %v3063
      %vm3067 = vweird.f32 %v2661
      %v3068 = vand.u32 %v3064, 3
      %vm3069 = vcmp.lt.s32.totalorder %v3068, 2
      %vm3070 = vcmp.eq.s32.totalorder %v3068, 0
      %v3071 = vxor.u32 %v3066, 2147483648
      %v3072 = vsel %vm3070, %v3065, %v3071
      %vm3073 = vcmp.eq.s32.totalorder %v3068, 2
      %v3074 = vxor.u32 %v3065, 2147483648
      %v3075 = vsel %vm3073, %v3074, %v3066
      %v3076 = vsel %vm3069, %v3072, %v3075
      %v3077 = vsel %vm3067, nan, %v3076
      %v3078 = vand.u32 2147483647, %v2666
      %vm3079 = vcmp.le.f32.partialorder %v3078, 0.7853982
      %vm3080 = vcmp.lt.s32.totalorder %v2666, 0
      %v3081 = vand.u32 %v2666, 2139095040
      %v3082 = vshrl.u32 %v3081, 23
      %v3083 = vsub.s32 %v3082, 127
      %v3084 = vand.u32 2147483647, %v2666
      %v3085 = vand.u32 %v3084, 8388607
      %v3086 = vor.u32 %v3085, 8388608
      %v3087 = vsub.s32 0, %v3086
      %v3088 = vadd.s32 %v3083, 1
      %vm3089 = vcmp.gt.s32.totalorder %v3088, 0
      %v3090 = vsel %vm3089, %v3088, 0
      %v3091 = vshrl.u32 %v3090, 5
      %v3092 = vand.u32 %v3090, 31
      %v3093 = vsub.s32 32, %v3092
      %v3094 = vshrl.u32 683565275, %v3093
      %v3095 = vshll.u32 683565275, %v3092
      %v3096 = vshrl.u32 2475754826, %v3093
      %v3097 = vor.u32 %v3095, %v3096
      %v3098 = vshll.u32 2475754826, %v3092
      %v3099 = vshrl.u32 2131351028, %v3093
      %v3100 = vor.u32 %v3098, %v3099
      %v3101 = vshll.u32 2131351028, %v3092
      %v3102 = vshrl.u32 2102212464, %v3093
      %v3103 = vor.u32 %v3101, %v3102
      %v3104 = vshll.u32 2102212464, %v3092
      %v3105 = vshrl.u32 920167782, %v3093
      %v3106 = vor.u32 %v3104, %v3105
      %v3107 = vshll.u32 920167782, %v3092
      %v3108 = vshrl.u32 1326507024, %v3093
      %v3109 = vor.u32 %v3107, %v3108
      %vm3110 = vcmp.lt.s32.totalorder %v3091, 1
      %vm3111 = vcmp.lt.s32.totalorder %v3091, 2
      %vm3112 = vcmp.lt.s32.totalorder %v3091, 3
      %vm3113 = vcmp.lt.s32.totalorder %v3091, 4
      %v3114 = vsel %vm3110, %v3094, %v3097
      %v3115 = vsel %vm3113, %v3103, 2102212464
      %v3116 = vsel %vm3112, %v3100, %v3115
      %v3117 = vsel %vm3111, %v3114, %v3116
      %v3118 = vsel %vm3110, %v3097, %v3100
      %v3119 = vsel %vm3113, %v3106, 920167782
      %v3120 = vsel %vm3112, %v3103, %v3119
      %v3121 = vsel %vm3111, %v3118, %v3120
      %v3122 = vsel %vm3110, %v3100, %v3103
      %v3123 = vsel %vm3113, %v3109, 1326507024
      %v3124 = vsel %vm3112, %v3106, %v3123
      %v3125 = vsel %vm3111, %v3122, %v3124
      %v3126 = vshll.u32 %v3086, 8
      %v3127 = vmul.u32.u64.compose %v3126, %v3125
      %v3128 = vextract.low.u32 %v3127
      %v3129 = vextract.high.u32 %v3127
      %v3130 = vmul.u32.u64.compose %v3126, %v3121
      %v3131 = vextract.low.u32 %v3130
      %v3132 = vextract.high.u32 %v3130
      %v3133 = vmul.u32 %v3126, %v3117
      %v3134 = vadd.s32 %v3129, %v3131
      %vm3135 = vc.u32 %v3129, %v3131
      %v3136 = vadd.s32 %v3132, 1
      %v3137 = vsel %vm3135, %v3136, %v3132
      %v3138 = vadd.s32 %v3133, %v3137
      %v3139 = vadd.s32 %v3138, 536870912
      %v3140 = vshrl.u32 %v3139, 30
      %v3141 = vshll.u32 %v3140, 30
      %v3142 = vsub.s32 %v3138, %v3141
      %vm3143 = vcmp.lt.s32.totalorder %v3142, 0
      %v3144 = vsub.s32 0, %v3142
      %v3145 = vsel %vm3143, %v3144, %v3142
      %v3146 = vclz %v3145
      %v3147 = vsub.s32 %v3146, 2
      %vm3148 = vcmp.gt.s32.totalorder 0, %v3147
      %v3149 = vsel %vm3148, 0, %v3147
      %v3150 = vsub.s32 32, %v3149
      %v3151 = vshll.u32 %v3142, %v3149
      %v3152 = vshrl.u32 %v3134, %v3150
      %v3153 = vor.u32 %v3151, %v3152
      %v3154 = vsub.s32 4294967266, %v3149
      %v3155 = vadd.s32 %v3154, 127
      %v3156 = vshll.u32 %v3155, 23
      %v3157 = vor.u32 4788187, %v3156
      %v3158 = vand.u32 2147483647, %v3157
      %v3160 = vcvt.s32.f32 %v3153
      %v3161 = vmul.f32 %v3160, %v3158
      %v3162 = vxor.u32 %v3161, 2147483648
      %v3163 = vsel %vm3080, %v3162, %v3161
      %v3164 = vsub.s32 4, %v3140
      %v3165 = vsel %vm3080, %v3164, %v3140
      %v3166 = vsel %vm3079, %v2666, %v3163
      %v3167 = vsel %vm3079, 0, %v3165
      %v3168 = vcosq.f32.pop %v3166
      %v3169 = vsinq.f32.pop %v3166
      %vm3170 = vweird.f32 %v2666
      %v3171 = vand.u32 %v3167, 3
      %vm3172 = vcmp.lt.s32.totalorder %v3171, 2
      %vm3173 = vcmp.eq.s32.totalorder %v3171, 0
      %v3174 = vxor.u32 %v3169, 2147483648
      %v3175 = vsel %vm3173, %v3168, %v3174
      %vm3176 = vcmp.eq.s32.totalorder %v3171, 2
      %v3177 = vxor.u32 %v3168, 2147483648
      %v3178 = vsel %vm3176, %v3177, %v3169
      %v3179 = vsel %vm3172, %v3175, %v3178
      %v3180 = vsel %vm3170, nan, %v3179
      %v3181 = vand.u32 2147483647, %v2669
      %vm3182 = vcmp.le.f32.partialorder %v3181, 0.7853982
      %vm3183 = vcmp.lt.s32.totalorder %v2669, 0
      %v3184 = vand.u32 %v2669, 2139095040
      %v3185 = vshrl.u32 %v3184, 23
      %v3186 = vsub.s32 %v3185, 127
      %v3187 = vand.u32 2147483647, %v2669
      %v3188 = vand.u32 %v3187, 8388607
      %v3189 = vor.u32 %v3188, 8388608
      %v3190 = vsub.s32 0, %v3189
      %v3191 = vadd.s32 %v3186, 1
      %vm3192 = vcmp.gt.s32.totalorder %v3191, 0
      %v3193 = vsel %vm3192, %v3191, 0
      %v3194 = vshrl.u32 %v3193, 5
      %v3195 = vand.u32 %v3193, 31
      %v3196 = vsub.s32 32, %v3195
      %v3197 = vshrl.u32 683565275, %v3196
      %v3198 = vshll.u32 683565275, %v3195
      %v3199 = vshrl.u32 2475754826, %v3196
      %v3200 = vor.u32 %v3198, %v3199
      %v3201 = vshll.u32 2475754826, %v3195
      %v3202 = vshrl.u32 2131351028, %v3196
      %v3203 = vor.u32 %v3201, %v3202
      %v3204 = vshll.u32 2131351028, %v3195
      %v3205 = vshrl.u32 2102212464, %v3196
      %v3206 = vor.u32 %v3204, %v3205
      %v3207 = vshll.u32 2102212464, %v3195
      %v3208 = vshrl.u32 920167782, %v3196
      %v3209 = vor.u32 %v3207, %v3208
      %v3210 = vshll.u32 920167782, %v3195
      %v3211 = vshrl.u32 1326507024, %v3196
      %v3212 = vor.u32 %v3210, %v3211
      %vm3213 = vcmp.lt.s32.totalorder %v3194, 1
      %vm3214 = vcmp.lt.s32.totalorder %v3194, 2
      %vm3215 = vcmp.lt.s32.totalorder %v3194, 3
      %vm3216 = vcmp.lt.s32.totalorder %v3194, 4
      %v3217 = vsel %vm3213, %v3197, %v3200
      %v3218 = vsel %vm3216, %v3206, 2102212464
      %v3219 = vsel %vm3215, %v3203, %v3218
      %v3220 = vsel %vm3214, %v3217, %v3219
      %v3221 = vsel %vm3213, %v3200, %v3203
      %v3222 = vsel %vm3216, %v3209, 920167782
      %v3223 = vsel %vm3215, %v3206, %v3222
      %v3224 = vsel %vm3214, %v3221, %v3223
      %v3225 = vsel %vm3213, %v3203, %v3206
      %v3226 = vsel %vm3216, %v3212, 1326507024
      %v3227 = vsel %vm3215, %v3209, %v3226
      %v3228 = vsel %vm3214, %v3225, %v3227
      %v3229 = vshll.u32 %v3189, 8
      %v3230 = vmul.u32.u64.compose %v3229, %v3228
      %v3231 = vextract.low.u32 %v3230
      %v3232 = vextract.high.u32 %v3230
      %v3233 = vmul.u32.u64.compose %v3229, %v3224
      %v3234 = vextract.low.u32 %v3233
      %v3235 = vextract.high.u32 %v3233
      %v3236 = vmul.u32 %v3229, %v3220
      %v3237 = vadd.s32 %v3232, %v3234
      %vm3238 = vc.u32 %v3232, %v3234
      %v3239 = vadd.s32 %v3235, 1
      %v3240 = vsel %vm3238, %v3239, %v3235
      %v3241 = vadd.s32 %v3236, %v3240
      %v3242 = vadd.s32 %v3241, 536870912
      %v3243 = vshrl.u32 %v3242, 30
      %v3244 = vshll.u32 %v3243, 30
      %v3245 = vsub.s32 %v3241, %v3244
      %vm3246 = vcmp.lt.s32.totalorder %v3245, 0
      %v3247 = vsub.s32 0, %v3245
      %v3248 = vsel %vm3246, %v3247, %v3245
      %v3249 = vclz %v3248
      %v3250 = vsub.s32 %v3249, 2
      %vm3251 = vcmp.gt.s32.totalorder 0, %v3250
      %v3252 = vsel %vm3251, 0, %v3250
      %v3253 = vsub.s32 32, %v3252
      %v3254 = vshll.u32 %v3245, %v3252
      %v3255 = vshrl.u32 %v3237, %v3253
      %v3256 = vor.u32 %v3254, %v3255
      %v3257 = vsub.s32 4294967266, %v3252
      %v3258 = vadd.s32 %v3257, 127
      %v3259 = vshll.u32 %v3258, 23
      %v3260 = vor.u32 4788187, %v3259
      %v3261 = vand.u32 2147483647, %v3260
      %v3263 = vcvt.s32.f32 %v3256
      %v3264 = vmul.f32 %v3263, %v3261
      %v3265 = vxor.u32 %v3264, 2147483648
      %v3266 = vsel %vm3183, %v3265, %v3264
      %v3267 = vsub.s32 4, %v3243
      %v3268 = vsel %vm3183, %v3267, %v3243
      %v3269 = vsel %vm3182, %v2669, %v3266
      %v3270 = vsel %vm3182, 0, %v3268
      %v3271 = vcosq.f32.pop %v3269
      %v3272 = vsinq.f32.pop %v3269
      %vm3273 = vweird.f32 %v2669
      %v3274 = vand.u32 %v3270, 3
      %vm3275 = vcmp.lt.s32.totalorder %v3274, 2
      %vm3276 = vcmp.eq.s32.totalorder %v3274, 0
      %v3277 = vxor.u32 %v3272, 2147483648
      %v3278 = vsel %vm3276, %v3271, %v3277
      %vm3279 = vcmp.eq.s32.totalorder %v3274, 2
      %v3280 = vxor.u32 %v3271, 2147483648
      %v3281 = vsel %vm3279, %v3280, %v3272
      %v3282 = vsel %vm3275, %v3278, %v3281
      %v3283 = vsel %vm3273, nan, %v3282
      %v3284 = vand.u32 2147483647, %v2674
      %vm3285 = vcmp.le.f32.partialorder %v3284, 0.7853982
      %vm3286 = vcmp.lt.s32.totalorder %v2674, 0
      %v3287 = vand.u32 %v2674, 2139095040
      %v3288 = vshrl.u32 %v3287, 23
      %v3289 = vsub.s32 %v3288, 127
      %v3290 = vand.u32 2147483647, %v2674
      %v3291 = vand.u32 %v3290, 8388607
      %v3292 = vor.u32 %v3291, 8388608
      %v3293 = vsub.s32 0, %v3292
      %v3294 = vadd.s32 %v3289, 1
      %vm3295 = vcmp.gt.s32.totalorder %v3294, 0
      %v3296 = vsel %vm3295, %v3294, 0
      %v3297 = vshrl.u32 %v3296, 5
      %v3298 = vand.u32 %v3296, 31
      %v3299 = vsub.s32 32, %v3298
      %v3300 = vshrl.u32 683565275, %v3299
      %v3301 = vshll.u32 683565275, %v3298
      %v3302 = vshrl.u32 2475754826, %v3299
      %v3303 = vor.u32 %v3301, %v3302
      %v3304 = vshll.u32 2475754826, %v3298
      %v3305 = vshrl.u32 2131351028, %v3299
      %v3306 = vor.u32 %v3304, %v3305
      %v3307 = vshll.u32 2131351028, %v3298
      %v3308 = vshrl.u32 2102212464, %v3299
      %v3309 = vor.u32 %v3307, %v3308
      %v3310 = vshll.u32 2102212464, %v3298
      %v3311 = vshrl.u32 920167782, %v3299
      %v3312 = vor.u32 %v3310, %v3311
      %v3313 = vshll.u32 920167782, %v3298
      %v3314 = vshrl.u32 1326507024, %v3299
      %v3315 = vor.u32 %v3313, %v3314
      %vm3316 = vcmp.lt.s32.totalorder %v3297, 1
      %vm3317 = vcmp.lt.s32.totalorder %v3297, 2
      %vm3318 = vcmp.lt.s32.totalorder %v3297, 3
      %vm3319 = vcmp.lt.s32.totalorder %v3297, 4
      %v3320 = vsel %vm3316, %v3300, %v3303
      %v3321 = vsel %vm3319, %v3309, 2102212464
      %v3322 = vsel %vm3318, %v3306, %v3321
      %v3323 = vsel %vm3317, %v3320, %v3322
      %v3324 = vsel %vm3316, %v3303, %v3306
      %v3325 = vsel %vm3319, %v3312, 920167782
      %v3326 = vsel %vm3318, %v3309, %v3325
      %v3327 = vsel %vm3317, %v3324, %v3326
      %v3328 = vsel %vm3316, %v3306, %v3309
      %v3329 = vsel %vm3319, %v3315, 1326507024
      %v3330 = vsel %vm3318, %v3312, %v3329
      %v3331 = vsel %vm3317, %v3328, %v3330
      %v3332 = vshll.u32 %v3292, 8
      %v3333 = vmul.u32.u64.compose %v3332, %v3331
      %v3334 = vextract.low.u32 %v3333
      %v3335 = vextract.high.u32 %v3333
      %v3336 = vmul.u32.u64.compose %v3332, %v3327
      %v3337 = vextract.low.u32 %v3336
      %v3338 = vextract.high.u32 %v3336
      %v3339 = vmul.u32 %v3332, %v3323
      %v3340 = vadd.s32 %v3335, %v3337
      %vm3341 = vc.u32 %v3335, %v3337
      %v3342 = vadd.s32 %v3338, 1
      %v3343 = vsel %vm3341, %v3342, %v3338
      %v3344 = vadd.s32 %v3339, %v3343
      %v3345 = vadd.s32 %v3344, 536870912
      %v3346 = vshrl.u32 %v3345, 30
      %v3347 = vshll.u32 %v3346, 30
      %v3348 = vsub.s32 %v3344, %v3347
      %vm3349 = vcmp.lt.s32.totalorder %v3348, 0
      %v3350 = vsub.s32 0, %v3348
      %v3351 = vsel %vm3349, %v3350, %v3348
      %v3352 = vclz %v3351
      %v3353 = vsub.s32 %v3352, 2
      %vm3354 = vcmp.gt.s32.totalorder 0, %v3353
      %v3355 = vsel %vm3354, 0, %v3353
      %v3356 = vsub.s32 32, %v3355
      %v3357 = vshll.u32 %v3348, %v3355
      %v3358 = vshrl.u32 %v3340, %v3356
      %v3359 = vor.u32 %v3357, %v3358
      %v3360 = vsub.s32 4294967266, %v3355
      %v3361 = vadd.s32 %v3360, 127
      %v3362 = vshll.u32 %v3361, 23
      %v3363 = vor.u32 4788187, %v3362
      %v3364 = vand.u32 2147483647, %v3363
      %v3366 = vcvt.s32.f32 %v3359
      %v3367 = vmul.f32 %v3366, %v3364
      %v3368 = vxor.u32 %v3367, 2147483648
      %v3369 = vsel %vm3286, %v3368, %v3367
      %v3370 = vsub.s32 4, %v3346
      %v3371 = vsel %vm3286, %v3370, %v3346
      %v3372 = vsel %vm3285, %v2674, %v3369
      %v3373 = vsel %vm3285, 0, %v3371
      %v3374 = vcosq.f32.pop %v3372
      %v3375 = vsinq.f32.pop %v3372
      %vm3376 = vweird.f32 %v2674
      %v3377 = vand.u32 %v3373, 3
      %vm3378 = vcmp.lt.s32.totalorder %v3377, 2
      %vm3379 = vcmp.eq.s32.totalorder %v3377, 0
      %v3380 = vxor.u32 %v3375, 2147483648
      %v3381 = vsel %vm3379, %v3374, %v3380
      %vm3382 = vcmp.eq.s32.totalorder %v3377, 2
      %v3383 = vxor.u32 %v3374, 2147483648
      %v3384 = vsel %vm3382, %v3383, %v3375
      %v3385 = vsel %vm3378, %v3381, %v3384
      %v3386 = vsel %vm3376, nan, %v3385
      %v3387 = vand.u32 2147483647, %v2677
      %vm3388 = vcmp.le.f32.partialorder %v3387, 0.7853982
      %vm3389 = vcmp.lt.s32.totalorder %v2677, 0
      %v3390 = vand.u32 %v2677, 2139095040
      %v3391 = vshrl.u32 %v3390, 23
      %v3392 = vsub.s32 %v3391, 127
      %v3393 = vand.u32 2147483647, %v2677
      %v3394 = vand.u32 %v3393, 8388607
      %v3395 = vor.u32 %v3394, 8388608
      %v3396 = vsub.s32 0, %v3395
      %v3397 = vadd.s32 %v3392, 1
      %vm3398 = vcmp.gt.s32.totalorder %v3397, 0
      %v3399 = vsel %vm3398, %v3397, 0
      %v3400 = vshrl.u32 %v3399, 5
      %v3401 = vand.u32 %v3399, 31
      %v3402 = vsub.s32 32, %v3401
      %v3403 = vshrl.u32 683565275, %v3402
      %v3404 = vshll.u32 683565275, %v3401
      %v3405 = vshrl.u32 2475754826, %v3402
      %v3406 = vor.u32 %v3404, %v3405
      %v3407 = vshll.u32 2475754826, %v3401
      %v3408 = vshrl.u32 2131351028, %v3402
      %v3409 = vor.u32 %v3407, %v3408
      %v3410 = vshll.u32 2131351028, %v3401
      %v3411 = vshrl.u32 2102212464, %v3402
      %v3412 = vor.u32 %v3410, %v3411
      %v3413 = vshll.u32 2102212464, %v3401
      %v3414 = vshrl.u32 920167782, %v3402
      %v3415 = vor.u32 %v3413, %v3414
      %v3416 = vshll.u32 920167782, %v3401
      %v3417 = vshrl.u32 1326507024, %v3402
      %v3418 = vor.u32 %v3416, %v3417
      %vm3419 = vcmp.lt.s32.totalorder %v3400, 1
      %vm3420 = vcmp.lt.s32.totalorder %v3400, 2
      %vm3421 = vcmp.lt.s32.totalorder %v3400, 3
      %vm3422 = vcmp.lt.s32.totalorder %v3400, 4
      %v3423 = vsel %vm3419, %v3403, %v3406
      %v3424 = vsel %vm3422, %v3412, 2102212464
      %v3425 = vsel %vm3421, %v3409, %v3424
      %v3426 = vsel %vm3420, %v3423, %v3425
      %v3427 = vsel %vm3419, %v3406, %v3409
      %v3428 = vsel %vm3422, %v3415, 920167782
      %v3429 = vsel %vm3421, %v3412, %v3428
      %v3430 = vsel %vm3420, %v3427, %v3429
      %v3431 = vsel %vm3419, %v3409, %v3412
      %v3432 = vsel %vm3422, %v3418, 1326507024
      %v3433 = vsel %vm3421, %v3415, %v3432
      %v3434 = vsel %vm3420, %v3431, %v3433
      %v3435 = vshll.u32 %v3395, 8
      %v3436 = vmul.u32.u64.compose %v3435, %v3434
      %v3437 = vextract.low.u32 %v3436
      %v3438 = vextract.high.u32 %v3436
      %v3439 = vmul.u32.u64.compose %v3435, %v3430
      %v3440 = vextract.low.u32 %v3439
      %v3441 = vextract.high.u32 %v3439
      %v3442 = vmul.u32 %v3435, %v3426
      %v3443 = vadd.s32 %v3438, %v3440
      %vm3444 = vc.u32 %v3438, %v3440
      %v3445 = vadd.s32 %v3441, 1
      %v3446 = vsel %vm3444, %v3445, %v3441
      %v3447 = vadd.s32 %v3442, %v3446
      %v3448 = vadd.s32 %v3447, 536870912
      %v3449 = vshrl.u32 %v3448, 30
      %v3450 = vshll.u32 %v3449, 30
      %v3451 = vsub.s32 %v3447, %v3450
      %vm3452 = vcmp.lt.s32.totalorder %v3451, 0
      %v3453 = vsub.s32 0, %v3451
      %v3454 = vsel %vm3452, %v3453, %v3451
      %v3455 = vclz %v3454
      %v3456 = vsub.s32 %v3455, 2
      %vm3457 = vcmp.gt.s32.totalorder 0, %v3456
      %v3458 = vsel %vm3457, 0, %v3456
      %v3459 = vsub.s32 32, %v3458
      %v3460 = vshll.u32 %v3451, %v3458
      %v3461 = vshrl.u32 %v3443, %v3459
      %v3462 = vor.u32 %v3460, %v3461
      %v3463 = vsub.s32 4294967266, %v3458
      %v3464 = vadd.s32 %v3463, 127
      %v3465 = vshll.u32 %v3464, 23
      %v3466 = vor.u32 4788187, %v3465
      %v3467 = vand.u32 2147483647, %v3466
      %v3469 = vcvt.s32.f32 %v3462
      %v3470 = vmul.f32 %v3469, %v3467
      %v3471 = vxor.u32 %v3470, 2147483648
      %v3472 = vsel %vm3389, %v3471, %v3470
      %v3473 = vsub.s32 4, %v3449
      %v3474 = vsel %vm3389, %v3473, %v3449
      %v3475 = vsel %vm3388, %v2677, %v3472
      %v3476 = vsel %vm3388, 0, %v3474
      %v3477 = vcosq.f32.pop %v3475
      %v3478 = vsinq.f32.pop %v3475
      %vm3479 = vweird.f32 %v2677
      %v3480 = vand.u32 %v3476, 3
      %vm3481 = vcmp.lt.s32.totalorder %v3480, 2
      %vm3482 = vcmp.eq.s32.totalorder %v3480, 0
      %v3483 = vxor.u32 %v3478, 2147483648
      %v3484 = vsel %vm3482, %v3477, %v3483
      %vm3485 = vcmp.eq.s32.totalorder %v3480, 2
      %v3486 = vxor.u32 %v3477, 2147483648
      %v3487 = vsel %vm3485, %v3486, %v3478
      %v3488 = vsel %vm3481, %v3484, %v3487
      %v3489 = vsel %vm3479, nan, %v3488
      %v3490 = vand.u32 2147483647, %v2682
      %vm3491 = vcmp.le.f32.partialorder %v3490, 0.7853982
      %vm3492 = vcmp.lt.s32.totalorder %v2682, 0
      %v3493 = vand.u32 %v2682, 2139095040
      %v3494 = vshrl.u32 %v3493, 23
      %v3495 = vsub.s32 %v3494, 127
      %v3496 = vand.u32 2147483647, %v2682
      %v3497 = vand.u32 %v3496, 8388607
      %v3498 = vor.u32 %v3497, 8388608
      %v3499 = vsub.s32 0, %v3498
      %v3500 = vadd.s32 %v3495, 1
      %vm3501 = vcmp.gt.s32.totalorder %v3500, 0
      %v3502 = vsel %vm3501, %v3500, 0
      %v3503 = vshrl.u32 %v3502, 5
      %v3504 = vand.u32 %v3502, 31
      %v3505 = vsub.s32 32, %v3504
      %v3506 = vshrl.u32 683565275, %v3505
      %v3507 = vshll.u32 683565275, %v3504
      %v3508 = vshrl.u32 2475754826, %v3505
      %v3509 = vor.u32 %v3507, %v3508
      %v3510 = vshll.u32 2475754826, %v3504
      %v3511 = vshrl.u32 2131351028, %v3505
      %v3512 = vor.u32 %v3510, %v3511
      %v3513 = vshll.u32 2131351028, %v3504
      %v3514 = vshrl.u32 2102212464, %v3505
      %v3515 = vor.u32 %v3513, %v3514
      %v3516 = vshll.u32 2102212464, %v3504
      %v3517 = vshrl.u32 920167782, %v3505
      %v3518 = vor.u32 %v3516, %v3517
      %v3519 = vshll.u32 920167782, %v3504
      %v3520 = vshrl.u32 1326507024, %v3505
      %v3521 = vor.u32 %v3519, %v3520
      %vm3522 = vcmp.lt.s32.totalorder %v3503, 1
      %vm3523 = vcmp.lt.s32.totalorder %v3503, 2
      %vm3524 = vcmp.lt.s32.totalorder %v3503, 3
      %vm3525 = vcmp.lt.s32.totalorder %v3503, 4
      %v3526 = vsel %vm3522, %v3506, %v3509
      %v3527 = vsel %vm3525, %v3515, 2102212464
      %v3528 = vsel %vm3524, %v3512, %v3527
      %v3529 = vsel %vm3523, %v3526, %v3528
      %v3530 = vsel %vm3522, %v3509, %v3512
      %v3531 = vsel %vm3525, %v3518, 920167782
      %v3532 = vsel %vm3524, %v3515, %v3531
      %v3533 = vsel %vm3523, %v3530, %v3532
      %v3534 = vsel %vm3522, %v3512, %v3515
      %v3535 = vsel %vm3525, %v3521, 1326507024
      %v3536 = vsel %vm3524, %v3518, %v3535
      %v3537 = vsel %vm3523, %v3534, %v3536
      %v3538 = vshll.u32 %v3498, 8
      %v3539 = vmul.u32.u64.compose %v3538, %v3537
      %v3540 = vextract.low.u32 %v3539
      %v3541 = vextract.high.u32 %v3539
      %v3542 = vmul.u32.u64.compose %v3538, %v3533
      %v3543 = vextract.low.u32 %v3542
      %v3544 = vextract.high.u32 %v3542
      %v3545 = vmul.u32 %v3538, %v3529
      %v3546 = vadd.s32 %v3541, %v3543
      %vm3547 = vc.u32 %v3541, %v3543
      %v3548 = vadd.s32 %v3544, 1
      %v3549 = vsel %vm3547, %v3548, %v3544
      %v3550 = vadd.s32 %v3545, %v3549
      %v3551 = vadd.s32 %v3550, 536870912
      %v3552 = vshrl.u32 %v3551, 30
      %v3553 = vshll.u32 %v3552, 30
      %v3554 = vsub.s32 %v3550, %v3553
      %vm3555 = vcmp.lt.s32.totalorder %v3554, 0
      %v3556 = vsub.s32 0, %v3554
      %v3557 = vsel %vm3555, %v3556, %v3554
      %v3558 = vclz %v3557
      %v3559 = vsub.s32 %v3558, 2
      %vm3560 = vcmp.gt.s32.totalorder 0, %v3559
      %v3561 = vsel %vm3560, 0, %v3559
      %v3562 = vsub.s32 32, %v3561
      %v3563 = vshll.u32 %v3554, %v3561
      %v3564 = vshrl.u32 %v3546, %v3562
      %v3565 = vor.u32 %v3563, %v3564
      %v3566 = vsub.s32 4294967266, %v3561
      %v3567 = vadd.s32 %v3566, 127
      %v3568 = vshll.u32 %v3567, 23
      %v3569 = vor.u32 4788187, %v3568
      %v3570 = vand.u32 2147483647, %v3569
      %v3572 = vcvt.s32.f32 %v3565
      %v3573 = vmul.f32 %v3572, %v3570
      %v3574 = vxor.u32 %v3573, 2147483648
      %v3575 = vsel %vm3492, %v3574, %v3573
      %v3576 = vsub.s32 4, %v3552
      %v3577 = vsel %vm3492, %v3576, %v3552
      %v3578 = vsel %vm3491, %v2682, %v3575
      %v3579 = vsel %vm3491, 0, %v3577
      %v3580 = vcosq.f32.pop %v3578
      %v3581 = vsinq.f32.pop %v3578
      %vm3582 = vweird.f32 %v2682
      %v3583 = vand.u32 %v3579, 3
      %vm3584 = vcmp.lt.s32.totalorder %v3583, 2
      %vm3585 = vcmp.eq.s32.totalorder %v3583, 0
      %v3586 = vxor.u32 %v3581, 2147483648
      %v3587 = vsel %vm3585, %v3580, %v3586
      %vm3588 = vcmp.eq.s32.totalorder %v3583, 2
      %v3589 = vxor.u32 %v3580, 2147483648
      %v3590 = vsel %vm3588, %v3589, %v3581
      %v3591 = vsel %vm3584, %v3587, %v3590
      %v3592 = vsel %vm3582, nan, %v3591
      %v3593 = vand.u32 2147483647, %v2685
      %vm3594 = vcmp.le.f32.partialorder %v3593, 0.7853982
      %vm3595 = vcmp.lt.s32.totalorder %v2685, 0
      %v3596 = vand.u32 %v2685, 2139095040
      %v3597 = vshrl.u32 %v3596, 23
      %v3598 = vsub.s32 %v3597, 127
      %v3599 = vand.u32 2147483647, %v2685
      %v3600 = vand.u32 %v3599, 8388607
      %v3601 = vor.u32 %v3600, 8388608
      %v3602 = vsub.s32 0, %v3601
      %v3603 = vadd.s32 %v3598, 1
      %vm3604 = vcmp.gt.s32.totalorder %v3603, 0
      %v3605 = vsel %vm3604, %v3603, 0
      %v3606 = vshrl.u32 %v3605, 5
      %v3607 = vand.u32 %v3605, 31
      %v3608 = vsub.s32 32, %v3607
      %v3609 = vshrl.u32 683565275, %v3608
      %v3610 = vshll.u32 683565275, %v3607
      %v3611 = vshrl.u32 2475754826, %v3608
      %v3612 = vor.u32 %v3610, %v3611
      %v3613 = vshll.u32 2475754826, %v3607
      %v3614 = vshrl.u32 2131351028, %v3608
      %v3615 = vor.u32 %v3613, %v3614
      %v3616 = vshll.u32 2131351028, %v3607
      %v3617 = vshrl.u32 2102212464, %v3608
      %v3618 = vor.u32 %v3616, %v3617
      %v3619 = vshll.u32 2102212464, %v3607
      %v3620 = vshrl.u32 920167782, %v3608
      %v3621 = vor.u32 %v3619, %v3620
      %v3622 = vshll.u32 920167782, %v3607
      %v3623 = vshrl.u32 1326507024, %v3608
      %v3624 = vor.u32 %v3622, %v3623
      %vm3625 = vcmp.lt.s32.totalorder %v3606, 1
      %vm3626 = vcmp.lt.s32.totalorder %v3606, 2
      %vm3627 = vcmp.lt.s32.totalorder %v3606, 3
      %vm3628 = vcmp.lt.s32.totalorder %v3606, 4
      %v3629 = vsel %vm3625, %v3609, %v3612
      %v3630 = vsel %vm3628, %v3618, 2102212464
      %v3631 = vsel %vm3627, %v3615, %v3630
      %v3632 = vsel %vm3626, %v3629, %v3631
      %v3633 = vsel %vm3625, %v3612, %v3615
      %v3634 = vsel %vm3628, %v3621, 920167782
      %v3635 = vsel %vm3627, %v3618, %v3634
      %v3636 = vsel %vm3626, %v3633, %v3635
      %v3637 = vsel %vm3625, %v3615, %v3618
      %v3638 = vsel %vm3628, %v3624, 1326507024
      %v3639 = vsel %vm3627, %v3621, %v3638
      %v3640 = vsel %vm3626, %v3637, %v3639
      %v3641 = vshll.u32 %v3601, 8
      %v3642 = vmul.u32.u64.compose %v3641, %v3640
      %v3643 = vextract.low.u32 %v3642
      %v3644 = vextract.high.u32 %v3642
      %v3645 = vmul.u32.u64.compose %v3641, %v3636
      %v3646 = vextract.low.u32 %v3645
      %v3647 = vextract.high.u32 %v3645
      %v3648 = vmul.u32 %v3641, %v3632
      %v3649 = vadd.s32 %v3644, %v3646
      %vm3650 = vc.u32 %v3644, %v3646
      %v3651 = vadd.s32 %v3647, 1
      %v3652 = vsel %vm3650, %v3651, %v3647
      %v3653 = vadd.s32 %v3648, %v3652
      %v3654 = vadd.s32 %v3653, 536870912
      %v3655 = vshrl.u32 %v3654, 30
      %v3656 = vshll.u32 %v3655, 30
      %v3657 = vsub.s32 %v3653, %v3656
      %vm3658 = vcmp.lt.s32.totalorder %v3657, 0
      %v3659 = vsub.s32 0, %v3657
      %v3660 = vsel %vm3658, %v3659, %v3657
      %v3661 = vclz %v3660
      %v3662 = vsub.s32 %v3661, 2
      %vm3663 = vcmp.gt.s32.totalorder 0, %v3662
      %v3664 = vsel %vm3663, 0, %v3662
      %v3665 = vsub.s32 32, %v3664
      %v3666 = vshll.u32 %v3657, %v3664
      %v3667 = vshrl.u32 %v3649, %v3665
      %v3668 = vor.u32 %v3666, %v3667
      %v3669 = vsub.s32 4294967266, %v3664
      %v3670 = vadd.s32 %v3669, 127
      %v3671 = vshll.u32 %v3670, 23
      %v3672 = vor.u32 4788187, %v3671
      %v3673 = vand.u32 2147483647, %v3672
      %v3675 = vcvt.s32.f32 %v3668
      %v3676 = vmul.f32 %v3675, %v3673
      %v3677 = vxor.u32 %v3676, 2147483648
      %v3678 = vsel %vm3595, %v3677, %v3676
      %v3679 = vsub.s32 4, %v3655
      %v3680 = vsel %vm3595, %v3679, %v3655
      %v3681 = vsel %vm3594, %v2685, %v3678
      %v3682 = vsel %vm3594, 0, %v3680
      %v3683 = vcosq.f32.pop %v3681
      %v3684 = vsinq.f32.pop %v3681
      %vm3685 = vweird.f32 %v2685
      %v3686 = vand.u32 %v3682, 3
      %vm3687 = vcmp.lt.s32.totalorder %v3686, 2
      %vm3688 = vcmp.eq.s32.totalorder %v3686, 0
      %v3689 = vxor.u32 %v3684, 2147483648
      %v3690 = vsel %vm3688, %v3683, %v3689
      %vm3691 = vcmp.eq.s32.totalorder %v3686, 2
      %v3692 = vxor.u32 %v3683, 2147483648
      %v3693 = vsel %vm3691, %v3692, %v3684
      %v3694 = vsel %vm3687, %v3690, %v3693
      %v3695 = vsel %vm3685, nan, %v3694
      %v3696 = vand.u32 2147483647, %v2690
      %vm3697 = vcmp.le.f32.partialorder %v3696, 0.7853982
      %vm3698 = vcmp.lt.s32.totalorder %v2690, 0
      %v3699 = vand.u32 %v2690, 2139095040
      %v3700 = vshrl.u32 %v3699, 23
      %v3701 = vsub.s32 %v3700, 127
      %v3702 = vand.u32 2147483647, %v2690
      %v3703 = vand.u32 %v3702, 8388607
      %v3704 = vor.u32 %v3703, 8388608
      %v3705 = vsub.s32 0, %v3704
      %v3706 = vadd.s32 %v3701, 1
      %vm3707 = vcmp.gt.s32.totalorder %v3706, 0
      %v3708 = vsel %vm3707, %v3706, 0
      %v3709 = vshrl.u32 %v3708, 5
      %v3710 = vand.u32 %v3708, 31
      %v3711 = vsub.s32 32, %v3710
      %v3712 = vshrl.u32 683565275, %v3711
      %v3713 = vshll.u32 683565275, %v3710
      %v3714 = vshrl.u32 2475754826, %v3711
      %v3715 = vor.u32 %v3713, %v3714
      %v3716 = vshll.u32 2475754826, %v3710
      %v3717 = vshrl.u32 2131351028, %v3711
      %v3718 = vor.u32 %v3716, %v3717
      %v3719 = vshll.u32 2131351028, %v3710
      %v3720 = vshrl.u32 2102212464, %v3711
      %v3721 = vor.u32 %v3719, %v3720
      %v3722 = vshll.u32 2102212464, %v3710
      %v3723 = vshrl.u32 920167782, %v3711
      %v3724 = vor.u32 %v3722, %v3723
      %v3725 = vshll.u32 920167782, %v3710
      %v3726 = vshrl.u32 1326507024, %v3711
      %v3727 = vor.u32 %v3725, %v3726
      %vm3728 = vcmp.lt.s32.totalorder %v3709, 1
      %vm3729 = vcmp.lt.s32.totalorder %v3709, 2
      %vm3730 = vcmp.lt.s32.totalorder %v3709, 3
      %vm3731 = vcmp.lt.s32.totalorder %v3709, 4
      %v3732 = vsel %vm3728, %v3712, %v3715
      %v3733 = vsel %vm3731, %v3721, 2102212464
      %v3734 = vsel %vm3730, %v3718, %v3733
      %v3735 = vsel %vm3729, %v3732, %v3734
      %v3736 = vsel %vm3728, %v3715, %v3718
      %v3737 = vsel %vm3731, %v3724, 920167782
      %v3738 = vsel %vm3730, %v3721, %v3737
      %v3739 = vsel %vm3729, %v3736, %v3738
      %v3740 = vsel %vm3728, %v3718, %v3721
      %v3741 = vsel %vm3731, %v3727, 1326507024
      %v3742 = vsel %vm3730, %v3724, %v3741
      %v3743 = vsel %vm3729, %v3740, %v3742
      %v3744 = vshll.u32 %v3704, 8
      %v3745 = vmul.u32.u64.compose %v3744, %v3743
      %v3746 = vextract.low.u32 %v3745
      %v3747 = vextract.high.u32 %v3745
      %v3748 = vmul.u32.u64.compose %v3744, %v3739
      %v3749 = vextract.low.u32 %v3748
      %v3750 = vextract.high.u32 %v3748
      %v3751 = vmul.u32 %v3744, %v3735
      %v3752 = vadd.s32 %v3747, %v3749
      %vm3753 = vc.u32 %v3747, %v3749
      %v3754 = vadd.s32 %v3750, 1
      %v3755 = vsel %vm3753, %v3754, %v3750
      %v3756 = vadd.s32 %v3751, %v3755
      %v3757 = vadd.s32 %v3756, 536870912
      %v3758 = vshrl.u32 %v3757, 30
      %v3759 = vshll.u32 %v3758, 30
      %v3760 = vsub.s32 %v3756, %v3759
      %vm3761 = vcmp.lt.s32.totalorder %v3760, 0
      %v3762 = vsub.s32 0, %v3760
      %v3763 = vsel %vm3761, %v3762, %v3760
      %v3764 = vclz %v3763
      %v3765 = vsub.s32 %v3764, 2
      %vm3766 = vcmp.gt.s32.totalorder 0, %v3765
      %v3767 = vsel %vm3766, 0, %v3765
      %v3768 = vsub.s32 32, %v3767
      %v3769 = vshll.u32 %v3760, %v3767
      %v3770 = vshrl.u32 %v3752, %v3768
      %v3771 = vor.u32 %v3769, %v3770
      %v3772 = vsub.s32 4294967266, %v3767
      %v3773 = vadd.s32 %v3772, 127
      %v3774 = vshll.u32 %v3773, 23
      %v3775 = vor.u32 4788187, %v3774
      %v3776 = vand.u32 2147483647, %v3775
      %v3778 = vcvt.s32.f32 %v3771
      %v3779 = vmul.f32 %v3778, %v3776
      %v3780 = vxor.u32 %v3779, 2147483648
      %v3781 = vsel %vm3698, %v3780, %v3779
      %v3782 = vsub.s32 4, %v3758
      %v3783 = vsel %vm3698, %v3782, %v3758
      %v3784 = vsel %vm3697, %v2690, %v3781
      %v3785 = vsel %vm3697, 0, %v3783
      %v3786 = vcosq.f32.pop %v3784
      %v3787 = vsinq.f32.pop %v3784
      %vm3788 = vweird.f32 %v2690
      %v3789 = vand.u32 %v3785, 3
      %vm3790 = vcmp.lt.s32.totalorder %v3789, 2
      %vm3791 = vcmp.eq.s32.totalorder %v3789, 0
      %v3792 = vxor.u32 %v3787, 2147483648
      %v3793 = vsel %vm3791, %v3786, %v3792
      %vm3794 = vcmp.eq.s32.totalorder %v3789, 2
      %v3795 = vxor.u32 %v3786, 2147483648
      %v3796 = vsel %vm3794, %v3795, %v3787
      %v3797 = vsel %vm3790, %v3793, %v3796
      %v3798 = vsel %vm3788, nan, %v3797
      %v3799 = vand.u32 2147483647, %v2693
      %vm3800 = vcmp.le.f32.partialorder %v3799, 0.7853982
      %vm3801 = vcmp.lt.s32.totalorder %v2693, 0
      %v3802 = vand.u32 %v2693, 2139095040
      %v3803 = vshrl.u32 %v3802, 23
      %v3804 = vsub.s32 %v3803, 127
      %v3805 = vand.u32 2147483647, %v2693
      %v3806 = vand.u32 %v3805, 8388607
      %v3807 = vor.u32 %v3806, 8388608
      %v3808 = vsub.s32 0, %v3807
      %v3809 = vadd.s32 %v3804, 1
      %vm3810 = vcmp.gt.s32.totalorder %v3809, 0
      %v3811 = vsel %vm3810, %v3809, 0
      %v3812 = vshrl.u32 %v3811, 5
      %v3813 = vand.u32 %v3811, 31
      %v3814 = vsub.s32 32, %v3813
      %v3815 = vshrl.u32 683565275, %v3814
      %v3816 = vshll.u32 683565275, %v3813
      %v3817 = vshrl.u32 2475754826, %v3814
      %v3818 = vor.u32 %v3816, %v3817
      %v3819 = vshll.u32 2475754826, %v3813
      %v3820 = vshrl.u32 2131351028, %v3814
      %v3821 = vor.u32 %v3819, %v3820
      %v3822 = vshll.u32 2131351028, %v3813
      %v3823 = vshrl.u32 2102212464, %v3814
      %v3824 = vor.u32 %v3822, %v3823
      %v3825 = vshll.u32 2102212464, %v3813
      %v3826 = vshrl.u32 920167782, %v3814
      %v3827 = vor.u32 %v3825, %v3826
      %v3828 = vshll.u32 920167782, %v3813
      %v3829 = vshrl.u32 1326507024, %v3814
      %v3830 = vor.u32 %v3828, %v3829
      %vm3831 = vcmp.lt.s32.totalorder %v3812, 1
      %vm3832 = vcmp.lt.s32.totalorder %v3812, 2
      %vm3833 = vcmp.lt.s32.totalorder %v3812, 3
      %vm3834 = vcmp.lt.s32.totalorder %v3812, 4
      %v3835 = vsel %vm3831, %v3815, %v3818
      %v3836 = vsel %vm3834, %v3824, 2102212464
      %v3837 = vsel %vm3833, %v3821, %v3836
      %v3838 = vsel %vm3832, %v3835, %v3837
      %v3839 = vsel %vm3831, %v3818, %v3821
      %v3840 = vsel %vm3834, %v3827, 920167782
      %v3841 = vsel %vm3833, %v3824, %v3840
      %v3842 = vsel %vm3832, %v3839, %v3841
      %v3843 = vsel %vm3831, %v3821, %v3824
      %v3844 = vsel %vm3834, %v3830, 1326507024
      %v3845 = vsel %vm3833, %v3827, %v3844
      %v3846 = vsel %vm3832, %v3843, %v3845
      %v3847 = vshll.u32 %v3807, 8
      %v3848 = vmul.u32.u64.compose %v3847, %v3846
      %v3849 = vextract.low.u32 %v3848
      %v3850 = vextract.high.u32 %v3848
      %v3851 = vmul.u32.u64.compose %v3847, %v3842
      %v3852 = vextract.low.u32 %v3851
      %v3853 = vextract.high.u32 %v3851
      %v3854 = vmul.u32 %v3847, %v3838
      %v3855 = vadd.s32 %v3850, %v3852
      %vm3856 = vc.u32 %v3850, %v3852
      %v3857 = vadd.s32 %v3853, 1
      %v3858 = vsel %vm3856, %v3857, %v3853
      %v3859 = vadd.s32 %v3854, %v3858
      %v3860 = vadd.s32 %v3859, 536870912
      %v3861 = vshrl.u32 %v3860, 30
      %v3862 = vshll.u32 %v3861, 30
      %v3863 = vsub.s32 %v3859, %v3862
      %vm3864 = vcmp.lt.s32.totalorder %v3863, 0
      %v3865 = vsub.s32 0, %v3863
      %v3866 = vsel %vm3864, %v3865, %v3863
      %v3867 = vclz %v3866
      %v3868 = vsub.s32 %v3867, 2
      %vm3869 = vcmp.gt.s32.totalorder 0, %v3868
      %v3870 = vsel %vm3869, 0, %v3868
      %v3871 = vsub.s32 32, %v3870
      %v3872 = vshll.u32 %v3863, %v3870
      %v3873 = vshrl.u32 %v3855, %v3871
      %v3874 = vor.u32 %v3872, %v3873
      %v3875 = vsub.s32 4294967266, %v3870
      %v3876 = vadd.s32 %v3875, 127
      %v3877 = vshll.u32 %v3876, 23
      %v3878 = vor.u32 4788187, %v3877
      %v3879 = vand.u32 2147483647, %v3878
      %v3881 = vcvt.s32.f32 %v3874
      %v3882 = vmul.f32 %v3881, %v3879
      %v3883 = vxor.u32 %v3882, 2147483648
      %v3884 = vsel %vm3801, %v3883, %v3882
      %v3885 = vsub.s32 4, %v3861
      %v3886 = vsel %vm3801, %v3885, %v3861
      %v3887 = vsel %vm3800, %v2693, %v3884
      %v3888 = vsel %vm3800, 0, %v3886
      %v3889 = vcosq.f32.pop %v3887
      %v3890 = vsinq.f32.pop %v3887
      %vm3891 = vweird.f32 %v2693
      %v3892 = vand.u32 %v3888, 3
      %vm3893 = vcmp.lt.s32.totalorder %v3892, 2
      %vm3894 = vcmp.eq.s32.totalorder %v3892, 0
      %v3895 = vxor.u32 %v3890, 2147483648
      %v3896 = vsel %vm3894, %v3889, %v3895
      %vm3897 = vcmp.eq.s32.totalorder %v3892, 2
      %v3898 = vxor.u32 %v3889, 2147483648
      %v3899 = vsel %vm3897, %v3898, %v3890
      %v3900 = vsel %vm3893, %v3896, %v3899
      %v3901 = vsel %vm3891, nan, %v3900
      %v3902 = vand.u32 2147483647, %v2698
      %vm3903 = vcmp.le.f32.partialorder %v3902, 0.7853982
      %vm3904 = vcmp.lt.s32.totalorder %v2698, 0
      %v3905 = vand.u32 %v2698, 2139095040
      %v3906 = vshrl.u32 %v3905, 23
      %v3907 = vsub.s32 %v3906, 127
      %v3908 = vand.u32 2147483647, %v2698
      %v3909 = vand.u32 %v3908, 8388607
      %v3910 = vor.u32 %v3909, 8388608
      %v3911 = vsub.s32 0, %v3910
      %v3912 = vadd.s32 %v3907, 1
      %vm3913 = vcmp.gt.s32.totalorder %v3912, 0
      %v3914 = vsel %vm3913, %v3912, 0
      %v3915 = vshrl.u32 %v3914, 5
      %v3916 = vand.u32 %v3914, 31
      %v3917 = vsub.s32 32, %v3916
      %v3918 = vshrl.u32 683565275, %v3917
      %v3919 = vshll.u32 683565275, %v3916
      %v3920 = vshrl.u32 2475754826, %v3917
      %v3921 = vor.u32 %v3919, %v3920
      %v3922 = vshll.u32 2475754826, %v3916
      %v3923 = vshrl.u32 2131351028, %v3917
      %v3924 = vor.u32 %v3922, %v3923
      %v3925 = vshll.u32 2131351028, %v3916
      %v3926 = vshrl.u32 2102212464, %v3917
      %v3927 = vor.u32 %v3925, %v3926
      %v3928 = vshll.u32 2102212464, %v3916
      %v3929 = vshrl.u32 920167782, %v3917
      %v3930 = vor.u32 %v3928, %v3929
      %v3931 = vshll.u32 920167782, %v3916
      %v3932 = vshrl.u32 1326507024, %v3917
      %v3933 = vor.u32 %v3931, %v3932
      %vm3934 = vcmp.lt.s32.totalorder %v3915, 1
      %vm3935 = vcmp.lt.s32.totalorder %v3915, 2
      %vm3936 = vcmp.lt.s32.totalorder %v3915, 3
      %vm3937 = vcmp.lt.s32.totalorder %v3915, 4
      %v3938 = vsel %vm3934, %v3918, %v3921
      %v3939 = vsel %vm3937, %v3927, 2102212464
      %v3940 = vsel %vm3936, %v3924, %v3939
      %v3941 = vsel %vm3935, %v3938, %v3940
      %v3942 = vsel %vm3934, %v3921, %v3924
      %v3943 = vsel %vm3937, %v3930, 920167782
      %v3944 = vsel %vm3936, %v3927, %v3943
      %v3945 = vsel %vm3935, %v3942, %v3944
      %v3946 = vsel %vm3934, %v3924, %v3927
      %v3947 = vsel %vm3937, %v3933, 1326507024
      %v3948 = vsel %vm3936, %v3930, %v3947
      %v3949 = vsel %vm3935, %v3946, %v3948
      %v3950 = vshll.u32 %v3910, 8
      %v3951 = vmul.u32.u64.compose %v3950, %v3949
      %v3952 = vextract.low.u32 %v3951
      %v3953 = vextract.high.u32 %v3951
      %v3954 = vmul.u32.u64.compose %v3950, %v3945
      %v3955 = vextract.low.u32 %v3954
      %v3956 = vextract.high.u32 %v3954
      %v3957 = vmul.u32 %v3950, %v3941
      %v3958 = vadd.s32 %v3953, %v3955
      %vm3959 = vc.u32 %v3953, %v3955
      %v3960 = vadd.s32 %v3956, 1
      %v3961 = vsel %vm3959, %v3960, %v3956
      %v3962 = vadd.s32 %v3957, %v3961
      %v3963 = vadd.s32 %v3962, 536870912
      %v3964 = vshrl.u32 %v3963, 30
      %v3965 = vshll.u32 %v3964, 30
      %v3966 = vsub.s32 %v3962, %v3965
      %vm3967 = vcmp.lt.s32.totalorder %v3966, 0
      %v3968 = vsub.s32 0, %v3966
      %v3969 = vsel %vm3967, %v3968, %v3966
      %v3970 = vclz %v3969
      %v3971 = vsub.s32 %v3970, 2
      %vm3972 = vcmp.gt.s32.totalorder 0, %v3971
      %v3973 = vsel %vm3972, 0, %v3971
      %v3974 = vsub.s32 32, %v3973
      %v3975 = vshll.u32 %v3966, %v3973
      %v3976 = vshrl.u32 %v3958, %v3974
      %v3977 = vor.u32 %v3975, %v3976
      %v3978 = vsub.s32 4294967266, %v3973
      %v3979 = vadd.s32 %v3978, 127
      %v3980 = vshll.u32 %v3979, 23
      %v3981 = vor.u32 4788187, %v3980
      %v3982 = vand.u32 2147483647, %v3981
      %v3984 = vcvt.s32.f32 %v3977
      %v3985 = vmul.f32 %v3984, %v3982
      %v3986 = vxor.u32 %v3985, 2147483648
      %v3987 = vsel %vm3904, %v3986, %v3985
      %v3988 = vsub.s32 4, %v3964
      %v3989 = vsel %vm3904, %v3988, %v3964
      %v3990 = vsel %vm3903, %v2698, %v3987
      %v3991 = vsel %vm3903, 0, %v3989
      %v3992 = vcosq.f32.pop %v3990
      %v3993 = vsinq.f32.pop %v3990
      %vm3994 = vweird.f32 %v2698
      %v3995 = vand.u32 %v3991, 3
      %vm3996 = vcmp.lt.s32.totalorder %v3995, 2
      %vm3997 = vcmp.eq.s32.totalorder %v3995, 0
      %v3998 = vxor.u32 %v3993, 2147483648
      %v3999 = vsel %vm3997, %v3992, %v3998
      %vm4000 = vcmp.eq.s32.totalorder %v3995, 2
      %v4001 = vxor.u32 %v3992, 2147483648
      %v4002 = vsel %vm4000, %v4001, %v3993
      %v4003 = vsel %vm3996, %v3999, %v4002
      %v4004 = vsel %vm3994, nan, %v4003
      %v4005 = vand.u32 2147483647, %v2701
      %vm4006 = vcmp.le.f32.partialorder %v4005, 0.7853982
      %vm4007 = vcmp.lt.s32.totalorder %v2701, 0
      %v4008 = vand.u32 %v2701, 2139095040
      %v4009 = vshrl.u32 %v4008, 23
      %v4010 = vsub.s32 %v4009, 127
      %v4011 = vand.u32 2147483647, %v2701
      %v4012 = vand.u32 %v4011, 8388607
      %v4013 = vor.u32 %v4012, 8388608
      %v4014 = vsub.s32 0, %v4013
      %v4015 = vadd.s32 %v4010, 1
      %vm4016 = vcmp.gt.s32.totalorder %v4015, 0
      %v4017 = vsel %vm4016, %v4015, 0
      %v4018 = vshrl.u32 %v4017, 5
      %v4019 = vand.u32 %v4017, 31
      %v4020 = vsub.s32 32, %v4019
      %v4021 = vshrl.u32 683565275, %v4020
      %v4022 = vshll.u32 683565275, %v4019
      %v4023 = vshrl.u32 2475754826, %v4020
      %v4024 = vor.u32 %v4022, %v4023
      %v4025 = vshll.u32 2475754826, %v4019
      %v4026 = vshrl.u32 2131351028, %v4020
      %v4027 = vor.u32 %v4025, %v4026
      %v4028 = vshll.u32 2131351028, %v4019
      %v4029 = vshrl.u32 2102212464, %v4020
      %v4030 = vor.u32 %v4028, %v4029
      %v4031 = vshll.u32 2102212464, %v4019
      %v4032 = vshrl.u32 920167782, %v4020
      %v4033 = vor.u32 %v4031, %v4032
      %v4034 = vshll.u32 920167782, %v4019
      %v4035 = vshrl.u32 1326507024, %v4020
      %v4036 = vor.u32 %v4034, %v4035
      %vm4037 = vcmp.lt.s32.totalorder %v4018, 1
      %vm4038 = vcmp.lt.s32.totalorder %v4018, 2
      %vm4039 = vcmp.lt.s32.totalorder %v4018, 3
      %vm4040 = vcmp.lt.s32.totalorder %v4018, 4
      %v4041 = vsel %vm4037, %v4021, %v4024
      %v4042 = vsel %vm4040, %v4030, 2102212464
      %v4043 = vsel %vm4039, %v4027, %v4042
      %v4044 = vsel %vm4038, %v4041, %v4043
      %v4045 = vsel %vm4037, %v4024, %v4027
      %v4046 = vsel %vm4040, %v4033, 920167782
      %v4047 = vsel %vm4039, %v4030, %v4046
      %v4048 = vsel %vm4038, %v4045, %v4047
      %v4049 = vsel %vm4037, %v4027, %v4030
      %v4050 = vsel %vm4040, %v4036, 1326507024
      %v4051 = vsel %vm4039, %v4033, %v4050
      %v4052 = vsel %vm4038, %v4049, %v4051
      %v4053 = vshll.u32 %v4013, 8
      %v4054 = vmul.u32.u64.compose %v4053, %v4052
      %v4055 = vextract.low.u32 %v4054
      %v4056 = vextract.high.u32 %v4054
      %v4057 = vmul.u32.u64.compose %v4053, %v4048
      %v4058 = vextract.low.u32 %v4057
      %v4059 = vextract.high.u32 %v4057
      %v4060 = vmul.u32 %v4053, %v4044
      %v4061 = vadd.s32 %v4056, %v4058
      %vm4062 = vc.u32 %v4056, %v4058
      %v4063 = vadd.s32 %v4059, 1
      %v4064 = vsel %vm4062, %v4063, %v4059
      %v4065 = vadd.s32 %v4060, %v4064
      %v4066 = vadd.s32 %v4065, 536870912
      %v4067 = vshrl.u32 %v4066, 30
      %v4068 = vshll.u32 %v4067, 30
      %v4069 = vsub.s32 %v4065, %v4068
      %vm4070 = vcmp.lt.s32.totalorder %v4069, 0
      %v4071 = vsub.s32 0, %v4069
      %v4072 = vsel %vm4070, %v4071, %v4069
      %v4073 = vclz %v4072
      %v4074 = vsub.s32 %v4073, 2
      %vm4075 = vcmp.gt.s32.totalorder 0, %v4074
      %v4076 = vsel %vm4075, 0, %v4074
      %v4077 = vsub.s32 32, %v4076
      %v4078 = vshll.u32 %v4069, %v4076
      %v4079 = vshrl.u32 %v4061, %v4077
      %v4080 = vor.u32 %v4078, %v4079
      %v4081 = vsub.s32 4294967266, %v4076
      %v4082 = vadd.s32 %v4081, 127
      %v4083 = vshll.u32 %v4082, 23
      %v4084 = vor.u32 4788187, %v4083
      %v4085 = vand.u32 2147483647, %v4084
      %v4087 = vcvt.s32.f32 %v4080
      %v4088 = vmul.f32 %v4087, %v4085
      %v4089 = vxor.u32 %v4088, 2147483648
      %v4090 = vsel %vm4007, %v4089, %v4088
      %v4091 = vsub.s32 4, %v4067
      %v4092 = vsel %vm4007, %v4091, %v4067
      %v4093 = vsel %vm4006, %v2701, %v4090
      %v4094 = vsel %vm4006, 0, %v4092
      %v4095 = vcosq.f32.pop %v4093
      %v4096 = vsinq.f32.pop %v4093
      %vm4097 = vweird.f32 %v2701
      %v4098 = vand.u32 %v4094, 3
      %vm4099 = vcmp.lt.s32.totalorder %v4098, 2
      %vm4100 = vcmp.eq.s32.totalorder %v4098, 0
      %v4101 = vxor.u32 %v4096, 2147483648
      %v4102 = vsel %vm4100, %v4095, %v4101
      %vm4103 = vcmp.eq.s32.totalorder %v4098, 2
      %v4104 = vxor.u32 %v4095, 2147483648
      %v4105 = vsel %vm4103, %v4104, %v4096
      %v4106 = vsel %vm4099, %v4102, %v4105
      %v4107 = vsel %vm4097, nan, %v4106
      %v4108 = vand.u32 2147483647, %v2706
      %vm4109 = vcmp.le.f32.partialorder %v4108, 0.7853982
      %vm4110 = vcmp.lt.s32.totalorder %v2706, 0
      %v4111 = vand.u32 %v2706, 2139095040
      %v4112 = vshrl.u32 %v4111, 23
      %v4113 = vsub.s32 %v4112, 127
      %v4114 = vand.u32 2147483647, %v2706
      %v4115 = vand.u32 %v4114, 8388607
      %v4116 = vor.u32 %v4115, 8388608
      %v4117 = vsub.s32 0, %v4116
      %v4118 = vadd.s32 %v4113, 1
      %vm4119 = vcmp.gt.s32.totalorder %v4118, 0
      %v4120 = vsel %vm4119, %v4118, 0
      %v4121 = vshrl.u32 %v4120, 5
      %v4122 = vand.u32 %v4120, 31
      %v4123 = vsub.s32 32, %v4122
      %v4124 = vshrl.u32 683565275, %v4123
      %v4125 = vshll.u32 683565275, %v4122
      %v4126 = vshrl.u32 2475754826, %v4123
      %v4127 = vor.u32 %v4125, %v4126
      %v4128 = vshll.u32 2475754826, %v4122
      %v4129 = vshrl.u32 2131351028, %v4123
      %v4130 = vor.u32 %v4128, %v4129
      %v4131 = vshll.u32 2131351028, %v4122
      %v4132 = vshrl.u32 2102212464, %v4123
      %v4133 = vor.u32 %v4131, %v4132
      %v4134 = vshll.u32 2102212464, %v4122
      %v4135 = vshrl.u32 920167782, %v4123
      %v4136 = vor.u32 %v4134, %v4135
      %v4137 = vshll.u32 920167782, %v4122
      %v4138 = vshrl.u32 1326507024, %v4123
      %v4139 = vor.u32 %v4137, %v4138
      %vm4140 = vcmp.lt.s32.totalorder %v4121, 1
      %vm4141 = vcmp.lt.s32.totalorder %v4121, 2
      %vm4142 = vcmp.lt.s32.totalorder %v4121, 3
      %vm4143 = vcmp.lt.s32.totalorder %v4121, 4
      %v4144 = vsel %vm4140, %v4124, %v4127
      %v4145 = vsel %vm4143, %v4133, 2102212464
      %v4146 = vsel %vm4142, %v4130, %v4145
      %v4147 = vsel %vm4141, %v4144, %v4146
      %v4148 = vsel %vm4140, %v4127, %v4130
      %v4149 = vsel %vm4143, %v4136, 920167782
      %v4150 = vsel %vm4142, %v4133, %v4149
      %v4151 = vsel %vm4141, %v4148, %v4150
      %v4152 = vsel %vm4140, %v4130, %v4133
      %v4153 = vsel %vm4143, %v4139, 1326507024
      %v4154 = vsel %vm4142, %v4136, %v4153
      %v4155 = vsel %vm4141, %v4152, %v4154
      %v4156 = vshll.u32 %v4116, 8
      %v4157 = vmul.u32.u64.compose %v4156, %v4155
      %v4158 = vextract.low.u32 %v4157
      %v4159 = vextract.high.u32 %v4157
      %v4160 = vmul.u32.u64.compose %v4156, %v4151
      %v4161 = vextract.low.u32 %v4160
      %v4162 = vextract.high.u32 %v4160
      %v4163 = vmul.u32 %v4156, %v4147
      %v4164 = vadd.s32 %v4159, %v4161
      %vm4165 = vc.u32 %v4159, %v4161
      %v4166 = vadd.s32 %v4162, 1
      %v4167 = vsel %vm4165, %v4166, %v4162
      %v4168 = vadd.s32 %v4163, %v4167
      %v4169 = vadd.s32 %v4168, 536870912
      %v4170 = vshrl.u32 %v4169, 30
      %v4171 = vshll.u32 %v4170, 30
      %v4172 = vsub.s32 %v4168, %v4171
      %vm4173 = vcmp.lt.s32.totalorder %v4172, 0
      %v4174 = vsub.s32 0, %v4172
      %v4175 = vsel %vm4173, %v4174, %v4172
      %v4176 = vclz %v4175
      %v4177 = vsub.s32 %v4176, 2
      %vm4178 = vcmp.gt.s32.totalorder 0, %v4177
      %v4179 = vsel %vm4178, 0, %v4177
      %v4180 = vsub.s32 32, %v4179
      %v4181 = vshll.u32 %v4172, %v4179
      %v4182 = vshrl.u32 %v4164, %v4180
      %v4183 = vor.u32 %v4181, %v4182
      %v4184 = vsub.s32 4294967266, %v4179
      %v4185 = vadd.s32 %v4184, 127
      %v4186 = vshll.u32 %v4185, 23
      %v4187 = vor.u32 4788187, %v4186
      %v4188 = vand.u32 2147483647, %v4187
      %v4190 = vcvt.s32.f32 %v4183
      %v4191 = vmul.f32 %v4190, %v4188
      %v4192 = vxor.u32 %v4191, 2147483648
      %v4193 = vsel %vm4110, %v4192, %v4191
      %v4194 = vsub.s32 4, %v4170
      %v4195 = vsel %vm4110, %v4194, %v4170
      %v4196 = vsel %vm4109, %v2706, %v4193
      %v4197 = vsel %vm4109, 0, %v4195
      %v4198 = vcosq.f32.pop %v4196
      %v4199 = vsinq.f32.pop %v4196
      %vm4200 = vweird.f32 %v2706
      %v4201 = vand.u32 %v4197, 3
      %vm4202 = vcmp.lt.s32.totalorder %v4201, 2
      %vm4203 = vcmp.eq.s32.totalorder %v4201, 0
      %v4204 = vxor.u32 %v4199, 2147483648
      %v4205 = vsel %vm4203, %v4198, %v4204
      %vm4206 = vcmp.eq.s32.totalorder %v4201, 2
      %v4207 = vxor.u32 %v4198, 2147483648
      %v4208 = vsel %vm4206, %v4207, %v4199
      %v4209 = vsel %vm4202, %v4205, %v4208
      %v4210 = vsel %vm4200, nan, %v4209
      %v4211 = vand.u32 2147483647, %v2709
      %vm4212 = vcmp.le.f32.partialorder %v4211, 0.7853982
      %vm4213 = vcmp.lt.s32.totalorder %v2709, 0
      %v4214 = vand.u32 %v2709, 2139095040
      %v4215 = vshrl.u32 %v4214, 23
      %v4216 = vsub.s32 %v4215, 127
      %v4217 = vand.u32 2147483647, %v2709
      %v4218 = vand.u32 %v4217, 8388607
      %v4219 = vor.u32 %v4218, 8388608
      %v4220 = vsub.s32 0, %v4219
      %v4221 = vadd.s32 %v4216, 1
      %vm4222 = vcmp.gt.s32.totalorder %v4221, 0
      %v4223 = vsel %vm4222, %v4221, 0
      %v4224 = vshrl.u32 %v4223, 5
      %v4225 = vand.u32 %v4223, 31
      %v4226 = vsub.s32 32, %v4225
      %v4227 = vshrl.u32 683565275, %v4226
      %v4228 = vshll.u32 683565275, %v4225
      %v4229 = vshrl.u32 2475754826, %v4226
      %v4230 = vor.u32 %v4228, %v4229
      %v4231 = vshll.u32 2475754826, %v4225
      %v4232 = vshrl.u32 2131351028, %v4226
      %v4233 = vor.u32 %v4231, %v4232
      %v4234 = vshll.u32 2131351028, %v4225
      %v4235 = vshrl.u32 2102212464, %v4226
      %v4236 = vor.u32 %v4234, %v4235
      %v4237 = vshll.u32 2102212464, %v4225
      %v4238 = vshrl.u32 920167782, %v4226
      %v4239 = vor.u32 %v4237, %v4238
      %v4240 = vshll.u32 920167782, %v4225
      %v4241 = vshrl.u32 1326507024, %v4226
      %v4242 = vor.u32 %v4240, %v4241
      %vm4243 = vcmp.lt.s32.totalorder %v4224, 1
      %vm4244 = vcmp.lt.s32.totalorder %v4224, 2
      %vm4245 = vcmp.lt.s32.totalorder %v4224, 3
      %vm4246 = vcmp.lt.s32.totalorder %v4224, 4
      %v4247 = vsel %vm4243, %v4227, %v4230
      %v4248 = vsel %vm4246, %v4236, 2102212464
      %v4249 = vsel %vm4245, %v4233, %v4248
      %v4250 = vsel %vm4244, %v4247, %v4249
      %v4251 = vsel %vm4243, %v4230, %v4233
      %v4252 = vsel %vm4246, %v4239, 920167782
      %v4253 = vsel %vm4245, %v4236, %v4252
      %v4254 = vsel %vm4244, %v4251, %v4253
      %v4255 = vsel %vm4243, %v4233, %v4236
      %v4256 = vsel %vm4246, %v4242, 1326507024
      %v4257 = vsel %vm4245, %v4239, %v4256
      %v4258 = vsel %vm4244, %v4255, %v4257
      %v4259 = vshll.u32 %v4219, 8
      %v4260 = vmul.u32.u64.compose %v4259, %v4258
      %v4261 = vextract.low.u32 %v4260
      %v4262 = vextract.high.u32 %v4260
      %v4263 = vmul.u32.u64.compose %v4259, %v4254
      %v4264 = vextract.low.u32 %v4263
      %v4265 = vextract.high.u32 %v4263
      %v4266 = vmul.u32 %v4259, %v4250
      %v4267 = vadd.s32 %v4262, %v4264
      %vm4268 = vc.u32 %v4262, %v4264
      %v4269 = vadd.s32 %v4265, 1
      %v4270 = vsel %vm4268, %v4269, %v4265
      %v4271 = vadd.s32 %v4266, %v4270
      %v4272 = vadd.s32 %v4271, 536870912
      %v4273 = vshrl.u32 %v4272, 30
      %v4274 = vshll.u32 %v4273, 30
      %v4275 = vsub.s32 %v4271, %v4274
      %vm4276 = vcmp.lt.s32.totalorder %v4275, 0
      %v4277 = vsub.s32 0, %v4275
      %v4278 = vsel %vm4276, %v4277, %v4275
      %v4279 = vclz %v4278
      %v4280 = vsub.s32 %v4279, 2
      %vm4281 = vcmp.gt.s32.totalorder 0, %v4280
      %v4282 = vsel %vm4281, 0, %v4280
      %v4283 = vsub.s32 32, %v4282
      %v4284 = vshll.u32 %v4275, %v4282
      %v4285 = vshrl.u32 %v4267, %v4283
      %v4286 = vor.u32 %v4284, %v4285
      %v4287 = vsub.s32 4294967266, %v4282
      %v4288 = vadd.s32 %v4287, 127
      %v4289 = vshll.u32 %v4288, 23
      %v4290 = vor.u32 4788187, %v4289
      %v4291 = vand.u32 2147483647, %v4290
      %v4293 = vcvt.s32.f32 %v4286
      %v4294 = vmul.f32 %v4293, %v4291
      %v4295 = vxor.u32 %v4294, 2147483648
      %v4296 = vsel %vm4213, %v4295, %v4294
      %v4297 = vsub.s32 4, %v4273
      %v4298 = vsel %vm4213, %v4297, %v4273
      %v4299 = vsel %vm4212, %v2709, %v4296
      %v4300 = vsel %vm4212, 0, %v4298
      %v4301 = vcosq.f32.pop %v4299
      %v4302 = vsinq.f32.pop %v4299
      %vm4303 = vweird.f32 %v2709
      %v4304 = vand.u32 %v4300, 3
      %vm4305 = vcmp.lt.s32.totalorder %v4304, 2
      %vm4306 = vcmp.eq.s32.totalorder %v4304, 0
      %v4307 = vxor.u32 %v4302, 2147483648
      %v4308 = vsel %vm4306, %v4301, %v4307
      %vm4309 = vcmp.eq.s32.totalorder %v4304, 2
      %v4310 = vxor.u32 %v4301, 2147483648
      %v4311 = vsel %vm4309, %v4310, %v4302
      %v4312 = vsel %vm4305, %v4308, %v4311
      %v4313 = vsel %vm4303, nan, %v4312
      %v4314 = vand.u32 2147483647, %v2714
      %vm4315 = vcmp.le.f32.partialorder %v4314, 0.7853982
      %vm4316 = vcmp.lt.s32.totalorder %v2714, 0
      %v4317 = vand.u32 %v2714, 2139095040
      %v4318 = vshrl.u32 %v4317, 23
      %v4319 = vsub.s32 %v4318, 127
      %v4320 = vand.u32 2147483647, %v2714
      %v4321 = vand.u32 %v4320, 8388607
      %v4322 = vor.u32 %v4321, 8388608
      %v4323 = vsub.s32 0, %v4322
      %v4324 = vadd.s32 %v4319, 1
      %vm4325 = vcmp.gt.s32.totalorder %v4324, 0
      %v4326 = vsel %vm4325, %v4324, 0
      %v4327 = vshrl.u32 %v4326, 5
      %v4328 = vand.u32 %v4326, 31
      %v4329 = vsub.s32 32, %v4328
      %v4330 = vshrl.u32 683565275, %v4329
      %v4331 = vshll.u32 683565275, %v4328
      %v4332 = vshrl.u32 2475754826, %v4329
      %v4333 = vor.u32 %v4331, %v4332
      %v4334 = vshll.u32 2475754826, %v4328
      %v4335 = vshrl.u32 2131351028, %v4329
      %v4336 = vor.u32 %v4334, %v4335
      %v4337 = vshll.u32 2131351028, %v4328
      %v4338 = vshrl.u32 2102212464, %v4329
      %v4339 = vor.u32 %v4337, %v4338
      %v4340 = vshll.u32 2102212464, %v4328
      %v4341 = vshrl.u32 920167782, %v4329
      %v4342 = vor.u32 %v4340, %v4341
      %v4343 = vshll.u32 920167782, %v4328
      %v4344 = vshrl.u32 1326507024, %v4329
      %v4345 = vor.u32 %v4343, %v4344
      %vm4346 = vcmp.lt.s32.totalorder %v4327, 1
      %vm4347 = vcmp.lt.s32.totalorder %v4327, 2
      %vm4348 = vcmp.lt.s32.totalorder %v4327, 3
      %vm4349 = vcmp.lt.s32.totalorder %v4327, 4
      %v4350 = vsel %vm4346, %v4330, %v4333
      %v4351 = vsel %vm4349, %v4339, 2102212464
      %v4352 = vsel %vm4348, %v4336, %v4351
      %v4353 = vsel %vm4347, %v4350, %v4352
      %v4354 = vsel %vm4346, %v4333, %v4336
      %v4355 = vsel %vm4349, %v4342, 920167782
      %v4356 = vsel %vm4348, %v4339, %v4355
      %v4357 = vsel %vm4347, %v4354, %v4356
      %v4358 = vsel %vm4346, %v4336, %v4339
      %v4359 = vsel %vm4349, %v4345, 1326507024
      %v4360 = vsel %vm4348, %v4342, %v4359
      %v4361 = vsel %vm4347, %v4358, %v4360
      %v4362 = vshll.u32 %v4322, 8
      %v4363 = vmul.u32.u64.compose %v4362, %v4361
      %v4364 = vextract.low.u32 %v4363
      %v4365 = vextract.high.u32 %v4363
      %v4366 = vmul.u32.u64.compose %v4362, %v4357
      %v4367 = vextract.low.u32 %v4366
      %v4368 = vextract.high.u32 %v4366
      %v4369 = vmul.u32 %v4362, %v4353
      %v4370 = vadd.s32 %v4365, %v4367
      %vm4371 = vc.u32 %v4365, %v4367
      %v4372 = vadd.s32 %v4368, 1
      %v4373 = vsel %vm4371, %v4372, %v4368
      %v4374 = vadd.s32 %v4369, %v4373
      %v4375 = vadd.s32 %v4374, 536870912
      %v4376 = vshrl.u32 %v4375, 30
      %v4377 = vshll.u32 %v4376, 30
      %v4378 = vsub.s32 %v4374, %v4377
      %vm4379 = vcmp.lt.s32.totalorder %v4378, 0
      %v4380 = vsub.s32 0, %v4378
      %v4381 = vsel %vm4379, %v4380, %v4378
      %v4382 = vclz %v4381
      %v4383 = vsub.s32 %v4382, 2
      %vm4384 = vcmp.gt.s32.totalorder 0, %v4383
      %v4385 = vsel %vm4384, 0, %v4383
      %v4386 = vsub.s32 32, %v4385
      %v4387 = vshll.u32 %v4378, %v4385
      %v4388 = vshrl.u32 %v4370, %v4386
      %v4389 = vor.u32 %v4387, %v4388
      %v4390 = vsub.s32 4294967266, %v4385
      %v4391 = vadd.s32 %v4390, 127
      %v4392 = vshll.u32 %v4391, 23
      %v4393 = vor.u32 4788187, %v4392
      %v4394 = vand.u32 2147483647, %v4393
      %v4396 = vcvt.s32.f32 %v4389
      %v4397 = vmul.f32 %v4396, %v4394
      %v4398 = vxor.u32 %v4397, 2147483648
      %v4399 = vsel %vm4316, %v4398, %v4397
      %v4400 = vsub.s32 4, %v4376
      %v4401 = vsel %vm4316, %v4400, %v4376
      %v4402 = vsel %vm4315, %v2714, %v4399
      %v4403 = vsel %vm4315, 0, %v4401
      %v4404 = vcosq.f32.pop %v4402
      %v4405 = vsinq.f32.pop %v4402
      %vm4406 = vweird.f32 %v2714
      %v4407 = vand.u32 %v4403, 3
      %vm4408 = vcmp.lt.s32.totalorder %v4407, 2
      %vm4409 = vcmp.eq.s32.totalorder %v4407, 0
      %v4410 = vxor.u32 %v4405, 2147483648
      %v4411 = vsel %vm4409, %v4404, %v4410
      %vm4412 = vcmp.eq.s32.totalorder %v4407, 2
      %v4413 = vxor.u32 %v4404, 2147483648
      %v4414 = vsel %vm4412, %v4413, %v4405
      %v4415 = vsel %vm4408, %v4411, %v4414
      %v4416 = vsel %vm4406, nan, %v4415
      %v4417 = vand.u32 2147483647, %v2717
      %vm4418 = vcmp.le.f32.partialorder %v4417, 0.7853982
      %vm4419 = vcmp.lt.s32.totalorder %v2717, 0
      %v4420 = vand.u32 %v2717, 2139095040
      %v4421 = vshrl.u32 %v4420, 23
      %v4422 = vsub.s32 %v4421, 127
      %v4423 = vand.u32 2147483647, %v2717
      %v4424 = vand.u32 %v4423, 8388607
      %v4425 = vor.u32 %v4424, 8388608
      %v4426 = vsub.s32 0, %v4425
      %v4427 = vadd.s32 %v4422, 1
      %vm4428 = vcmp.gt.s32.totalorder %v4427, 0
      %v4429 = vsel %vm4428, %v4427, 0
      %v4430 = vshrl.u32 %v4429, 5
      %v4431 = vand.u32 %v4429, 31
      %v4432 = vsub.s32 32, %v4431
      %v4433 = vshrl.u32 683565275, %v4432
      %v4434 = vshll.u32 683565275, %v4431
      %v4435 = vshrl.u32 2475754826, %v4432
      %v4436 = vor.u32 %v4434, %v4435
      %v4437 = vshll.u32 2475754826, %v4431
      %v4438 = vshrl.u32 2131351028, %v4432
      %v4439 = vor.u32 %v4437, %v4438
      %v4440 = vshll.u32 2131351028, %v4431
      %v4441 = vshrl.u32 2102212464, %v4432
      %v4442 = vor.u32 %v4440, %v4441
      %v4443 = vshll.u32 2102212464, %v4431
      %v4444 = vshrl.u32 920167782, %v4432
      %v4445 = vor.u32 %v4443, %v4444
      %v4446 = vshll.u32 920167782, %v4431
      %v4447 = vshrl.u32 1326507024, %v4432
      %v4448 = vor.u32 %v4446, %v4447
      %vm4449 = vcmp.lt.s32.totalorder %v4430, 1
      %vm4450 = vcmp.lt.s32.totalorder %v4430, 2
      %vm4451 = vcmp.lt.s32.totalorder %v4430, 3
      %vm4452 = vcmp.lt.s32.totalorder %v4430, 4
      %v4453 = vsel %vm4449, %v4433, %v4436
      %v4454 = vsel %vm4452, %v4442, 2102212464
      %v4455 = vsel %vm4451, %v4439, %v4454
      %v4456 = vsel %vm4450, %v4453, %v4455
      %v4457 = vsel %vm4449, %v4436, %v4439
      %v4458 = vsel %vm4452, %v4445, 920167782
      %v4459 = vsel %vm4451, %v4442, %v4458
      %v4460 = vsel %vm4450, %v4457, %v4459
      %v4461 = vsel %vm4449, %v4439, %v4442
      %v4462 = vsel %vm4452, %v4448, 1326507024
      %v4463 = vsel %vm4451, %v4445, %v4462
      %v4464 = vsel %vm4450, %v4461, %v4463
      %v4465 = vshll.u32 %v4425, 8
      %v4466 = vmul.u32.u64.compose %v4465, %v4464
      %v4467 = vextract.low.u32 %v4466
      %v4468 = vextract.high.u32 %v4466
      %v4469 = vmul.u32.u64.compose %v4465, %v4460
      %v4470 = vextract.low.u32 %v4469
      %v4471 = vextract.high.u32 %v4469
      %v4472 = vmul.u32 %v4465, %v4456
      %v4473 = vadd.s32 %v4468, %v4470
      %vm4474 = vc.u32 %v4468, %v4470
      %v4475 = vadd.s32 %v4471, 1
      %v4476 = vsel %vm4474, %v4475, %v4471
      %v4477 = vadd.s32 %v4472, %v4476
      %v4478 = vadd.s32 %v4477, 536870912
      %v4479 = vshrl.u32 %v4478, 30
      %v4480 = vshll.u32 %v4479, 30
      %v4481 = vsub.s32 %v4477, %v4480
      %vm4482 = vcmp.lt.s32.totalorder %v4481, 0
      %v4483 = vsub.s32 0, %v4481
      %v4484 = vsel %vm4482, %v4483, %v4481
      %v4485 = vclz %v4484
      %v4486 = vsub.s32 %v4485, 2
      %vm4487 = vcmp.gt.s32.totalorder 0, %v4486
      %v4488 = vsel %vm4487, 0, %v4486
      %v4489 = vsub.s32 32, %v4488
      %v4490 = vshll.u32 %v4481, %v4488
      %v4491 = vshrl.u32 %v4473, %v4489
      %v4492 = vor.u32 %v4490, %v4491
      %v4493 = vsub.s32 4294967266, %v4488
      %v4494 = vadd.s32 %v4493, 127
      %v4495 = vshll.u32 %v4494, 23
      %v4496 = vor.u32 4788187, %v4495
      %v4497 = vand.u32 2147483647, %v4496
      %v4499 = vcvt.s32.f32 %v4492
      %v4500 = vmul.f32 %v4499, %v4497
      %v4501 = vxor.u32 %v4500, 2147483648
      %v4502 = vsel %vm4419, %v4501, %v4500
      %v4503 = vsub.s32 4, %v4479
      %v4504 = vsel %vm4419, %v4503, %v4479
      %v4505 = vsel %vm4418, %v2717, %v4502
      %v4506 = vsel %vm4418, 0, %v4504
      %v4507 = vcosq.f32.pop %v4505
      %v4508 = vsinq.f32.pop %v4505
      %vm4509 = vweird.f32 %v2717
      %v4510 = vand.u32 %v4506, 3
      %vm4511 = vcmp.lt.s32.totalorder %v4510, 2
      %vm4512 = vcmp.eq.s32.totalorder %v4510, 0
      %v4513 = vxor.u32 %v4508, 2147483648
      %v4514 = vsel %vm4512, %v4507, %v4513
      %vm4515 = vcmp.eq.s32.totalorder %v4510, 2
      %v4516 = vxor.u32 %v4507, 2147483648
      %v4517 = vsel %vm4515, %v4516, %v4508
      %v4518 = vsel %vm4511, %v4514, %v4517
      %v4519 = vsel %vm4509, nan, %v4518
      %v4520 = vpack.c.bf16 %v3077, %v2974
      %v4521 = vpack.c.bf16 %v3283, %v3180
      %v4522 = vpack.c.bf16 %v3489, %v3386
      %v4523 = vpack.c.bf16 %v3695, %v3592
      %v4524 = vpack.c.bf16 %v3901, %v3798
      %v4525 = vpack.c.bf16 %v4107, %v4004
      %v4526 = vpack.c.bf16 %v4313, %v4210
      %v4527 = vpack.c.bf16 %v4519, %v4416
      %v4528 = vand.u32 2147483647, %v2658
      %vm4529 = vcmp.le.f32.partialorder %v4528, 0.7853982
      %vm4530 = vcmp.lt.s32.totalorder %v2658, 0
      %v4531 = vand.u32 %v2658, 2139095040
      %v4532 = vshrl.u32 %v4531, 23
      %v4533 = vsub.s32 %v4532, 127
      %v4534 = vand.u32 2147483647, %v2658
      %v4535 = vand.u32 %v4534, 8388607
      %v4536 = vor.u32 %v4535, 8388608
      %v4537 = vsub.s32 0, %v4536
      %v4538 = vadd.s32 %v4533, 1
      %vm4539 = vcmp.gt.s32.totalorder %v4538, 0
      %v4540 = vsel %vm4539, %v4538, 0
      %v4541 = vshrl.u32 %v4540, 5
      %v4542 = vand.u32 %v4540, 31
      %v4543 = vsub.s32 32, %v4542
      %v4544 = vshrl.u32 683565275, %v4543
      %v4545 = vshll.u32 683565275, %v4542
      %v4546 = vshrl.u32 2475754826, %v4543
      %v4547 = vor.u32 %v4545, %v4546
      %v4548 = vshll.u32 2475754826, %v4542
      %v4549 = vshrl.u32 2131351028, %v4543
      %v4550 = vor.u32 %v4548, %v4549
      %v4551 = vshll.u32 2131351028, %v4542
      %v4552 = vshrl.u32 2102212464, %v4543
      %v4553 = vor.u32 %v4551, %v4552
      %v4554 = vshll.u32 2102212464, %v4542
      %v4555 = vshrl.u32 920167782, %v4543
      %v4556 = vor.u32 %v4554, %v4555
      %v4557 = vshll.u32 920167782, %v4542
      %v4558 = vshrl.u32 1326507024, %v4543
      %v4559 = vor.u32 %v4557, %v4558
      %vm4560 = vcmp.lt.s32.totalorder %v4541, 1
      %vm4561 = vcmp.lt.s32.totalorder %v4541, 2
      %vm4562 = vcmp.lt.s32.totalorder %v4541, 3
      %vm4563 = vcmp.lt.s32.totalorder %v4541, 4
      %v4564 = vsel %vm4560, %v4544, %v4547
      %v4565 = vsel %vm4563, %v4553, 2102212464
      %v4566 = vsel %vm4562, %v4550, %v4565
      %v4567 = vsel %vm4561, %v4564, %v4566
      %v4568 = vsel %vm4560, %v4547, %v4550
      %v4569 = vsel %vm4563, %v4556, 920167782
      %v4570 = vsel %vm4562, %v4553, %v4569
      %v4571 = vsel %vm4561, %v4568, %v4570
      %v4572 = vsel %vm4560, %v4550, %v4553
      %v4573 = vsel %vm4563, %v4559, 1326507024
      %v4574 = vsel %vm4562, %v4556, %v4573
      %v4575 = vsel %vm4561, %v4572, %v4574
      %v4576 = vshll.u32 %v4536, 8
      %v4577 = vmul.u32.u64.compose %v4576, %v4575
      %v4578 = vextract.low.u32 %v4577
      %v4579 = vextract.high.u32 %v4577
      %v4580 = vmul.u32.u64.compose %v4576, %v4571
      %v4581 = vextract.low.u32 %v4580
      %v4582 = vextract.high.u32 %v4580
      %v4583 = vmul.u32 %v4576, %v4567
      %v4584 = vadd.s32 %v4579, %v4581
      %vm4585 = vc.u32 %v4579, %v4581
      %v4586 = vadd.s32 %v4582, 1
      %v4587 = vsel %vm4585, %v4586, %v4582
      %v4588 = vadd.s32 %v4583, %v4587
      %v4589 = vadd.s32 %v4588, 536870912
      %v4590 = vshrl.u32 %v4589, 30
      %v4591 = vshll.u32 %v4590, 30
      %v4592 = vsub.s32 %v4588, %v4591
      %vm4593 = vcmp.lt.s32.totalorder %v4592, 0
      %v4594 = vsub.s32 0, %v4592
      %v4595 = vsel %vm4593, %v4594, %v4592
      %v4596 = vclz %v4595
      %v4597 = vsub.s32 %v4596, 2
      %vm4598 = vcmp.gt.s32.totalorder 0, %v4597
      %v4599 = vsel %vm4598, 0, %v4597
      %v4600 = vsub.s32 32, %v4599
      %v4601 = vshll.u32 %v4592, %v4599
      %v4602 = vshrl.u32 %v4584, %v4600
      %v4603 = vor.u32 %v4601, %v4602
      %v4604 = vsub.s32 4294967266, %v4599
      %v4605 = vadd.s32 %v4604, 127
      %v4606 = vshll.u32 %v4605, 23
      %v4607 = vor.u32 4788187, %v4606
      %v4608 = vand.u32 2147483647, %v4607
      %v4610 = vcvt.s32.f32 %v4603
      %v4611 = vmul.f32 %v4610, %v4608
      %v4612 = vxor.u32 %v4611, 2147483648
      %v4613 = vsel %vm4530, %v4612, %v4611
      %v4614 = vsub.s32 4, %v4590
      %v4615 = vsel %vm4530, %v4614, %v4590
      %v4616 = vsel %vm4529, %v2658, %v4613
      %v4617 = vsel %vm4529, 0, %v4615
      %v4618 = vcosq.f32.pop %v4616
      %v4619 = vsinq.f32.pop %v4616
      %vm4620 = vweird.f32 %v2658
      %v4621 = vadd.s32 %v4617, 3
      %v4622 = vand.u32 %v4621, 3
      %vm4623 = vcmp.lt.s32.totalorder %v4622, 2
      %vm4624 = vcmp.eq.s32.totalorder %v4622, 0
      %v4625 = vxor.u32 %v4619, 2147483648
      %v4626 = vsel %vm4624, %v4618, %v4625
      %vm4627 = vcmp.eq.s32.totalorder %v4622, 2
      %v4628 = vxor.u32 %v4618, 2147483648
      %v4629 = vsel %vm4627, %v4628, %v4619
      %v4630 = vsel %vm4623, %v4626, %v4629
      %v4631 = vsel %vm4620, nan, %v4630
      %v4632 = vand.u32 2147483647, %v2661
      %vm4633 = vcmp.le.f32.partialorder %v4632, 0.7853982
      %vm4634 = vcmp.lt.s32.totalorder %v2661, 0
      %v4635 = vand.u32 %v2661, 2139095040
      %v4636 = vshrl.u32 %v4635, 23
      %v4637 = vsub.s32 %v4636, 127
      %v4638 = vand.u32 2147483647, %v2661
      %v4639 = vand.u32 %v4638, 8388607
      %v4640 = vor.u32 %v4639, 8388608
      %v4641 = vsub.s32 0, %v4640
      %v4642 = vadd.s32 %v4637, 1
      %vm4643 = vcmp.gt.s32.totalorder %v4642, 0
      %v4644 = vsel %vm4643, %v4642, 0
      %v4645 = vshrl.u32 %v4644, 5
      %v4646 = vand.u32 %v4644, 31
      %v4647 = vsub.s32 32, %v4646
      %v4648 = vshrl.u32 683565275, %v4647
      %v4649 = vshll.u32 683565275, %v4646
      %v4650 = vshrl.u32 2475754826, %v4647
      %v4651 = vor.u32 %v4649, %v4650
      %v4652 = vshll.u32 2475754826, %v4646
      %v4653 = vshrl.u32 2131351028, %v4647
      %v4654 = vor.u32 %v4652, %v4653
      %v4655 = vshll.u32 2131351028, %v4646
      %v4656 = vshrl.u32 2102212464, %v4647
      %v4657 = vor.u32 %v4655, %v4656
      %v4658 = vshll.u32 2102212464, %v4646
      %v4659 = vshrl.u32 920167782, %v4647
      %v4660 = vor.u32 %v4658, %v4659
      %v4661 = vshll.u32 920167782, %v4646
      %v4662 = vshrl.u32 1326507024, %v4647
      %v4663 = vor.u32 %v4661, %v4662
      %vm4664 = vcmp.lt.s32.totalorder %v4645, 1
      %vm4665 = vcmp.lt.s32.totalorder %v4645, 2
      %vm4666 = vcmp.lt.s32.totalorder %v4645, 3
      %vm4667 = vcmp.lt.s32.totalorder %v4645, 4
      %v4668 = vsel %vm4664, %v4648, %v4651
      %v4669 = vsel %vm4667, %v4657, 2102212464
      %v4670 = vsel %vm4666, %v4654, %v4669
      %v4671 = vsel %vm4665, %v4668, %v4670
      %v4672 = vsel %vm4664, %v4651, %v4654
      %v4673 = vsel %vm4667, %v4660, 920167782
      %v4674 = vsel %vm4666, %v4657, %v4673
      %v4675 = vsel %vm4665, %v4672, %v4674
      %v4676 = vsel %vm4664, %v4654, %v4657
      %v4677 = vsel %vm4667, %v4663, 1326507024
      %v4678 = vsel %vm4666, %v4660, %v4677
      %v4679 = vsel %vm4665, %v4676, %v4678
      %v4680 = vshll.u32 %v4640, 8
      %v4681 = vmul.u32.u64.compose %v4680, %v4679
      %v4682 = vextract.low.u32 %v4681
      %v4683 = vextract.high.u32 %v4681
      %v4684 = vmul.u32.u64.compose %v4680, %v4675
      %v4685 = vextract.low.u32 %v4684
      %v4686 = vextract.high.u32 %v4684
      %v4687 = vmul.u32 %v4680, %v4671
      %v4688 = vadd.s32 %v4683, %v4685
      %vm4689 = vc.u32 %v4683, %v4685
      %v4690 = vadd.s32 %v4686, 1
      %v4691 = vsel %vm4689, %v4690, %v4686
      %v4692 = vadd.s32 %v4687, %v4691
      %v4693 = vadd.s32 %v4692, 536870912
      %v4694 = vshrl.u32 %v4693, 30
      %v4695 = vshll.u32 %v4694, 30
      %v4696 = vsub.s32 %v4692, %v4695
      %vm4697 = vcmp.lt.s32.totalorder %v4696, 0
      %v4698 = vsub.s32 0, %v4696
      %v4699 = vsel %vm4697, %v4698, %v4696
      %v4700 = vclz %v4699
      %v4701 = vsub.s32 %v4700, 2
      %vm4702 = vcmp.gt.s32.totalorder 0, %v4701
      %v4703 = vsel %vm4702, 0, %v4701
      %v4704 = vsub.s32 32, %v4703
      %v4705 = vshll.u32 %v4696, %v4703
      %v4706 = vshrl.u32 %v4688, %v4704
      %v4707 = vor.u32 %v4705, %v4706
      %v4708 = vsub.s32 4294967266, %v4703
      %v4709 = vadd.s32 %v4708, 127
      %v4710 = vshll.u32 %v4709, 23
      %v4711 = vor.u32 4788187, %v4710
      %v4712 = vand.u32 2147483647, %v4711
      %v4714 = vcvt.s32.f32 %v4707
      %v4715 = vmul.f32 %v4714, %v4712
      %v4716 = vxor.u32 %v4715, 2147483648
      %v4717 = vsel %vm4634, %v4716, %v4715
      %v4718 = vsub.s32 4, %v4694
      %v4719 = vsel %vm4634, %v4718, %v4694
      %v4720 = vsel %vm4633, %v2661, %v4717
      %v4721 = vsel %vm4633, 0, %v4719
      %v4722 = vcosq.f32.pop %v4720
      %v4723 = vsinq.f32.pop %v4720
      %vm4724 = vweird.f32 %v2661
      %v4725 = vadd.s32 %v4721, 3
      %v4726 = vand.u32 %v4725, 3
      %vm4727 = vcmp.lt.s32.totalorder %v4726, 2
      %vm4728 = vcmp.eq.s32.totalorder %v4726, 0
      %v4729 = vxor.u32 %v4723, 2147483648
      %v4730 = vsel %vm4728, %v4722, %v4729
      %vm4731 = vcmp.eq.s32.totalorder %v4726, 2
      %v4732 = vxor.u32 %v4722, 2147483648
      %v4733 = vsel %vm4731, %v4732, %v4723
      %v4734 = vsel %vm4727, %v4730, %v4733
      %v4735 = vsel %vm4724, nan, %v4734
      %v4736 = vand.u32 2147483647, %v2666
      %vm4737 = vcmp.le.f32.partialorder %v4736, 0.7853982
      %vm4738 = vcmp.lt.s32.totalorder %v2666, 0
      %v4739 = vand.u32 %v2666, 2139095040
      %v4740 = vshrl.u32 %v4739, 23
      %v4741 = vsub.s32 %v4740, 127
      %v4742 = vand.u32 2147483647, %v2666
      %v4743 = vand.u32 %v4742, 8388607
      %v4744 = vor.u32 %v4743, 8388608
      %v4745 = vsub.s32 0, %v4744
      %v4746 = vadd.s32 %v4741, 1
      %vm4747 = vcmp.gt.s32.totalorder %v4746, 0
      %v4748 = vsel %vm4747, %v4746, 0
      %v4749 = vshrl.u32 %v4748, 5
      %v4750 = vand.u32 %v4748, 31
      %v4751 = vsub.s32 32, %v4750
      %v4752 = vshrl.u32 683565275, %v4751
      %v4753 = vshll.u32 683565275, %v4750
      %v4754 = vshrl.u32 2475754826, %v4751
      %v4755 = vor.u32 %v4753, %v4754
      %v4756 = vshll.u32 2475754826, %v4750
      %v4757 = vshrl.u32 2131351028, %v4751
      %v4758 = vor.u32 %v4756, %v4757
      %v4759 = vshll.u32 2131351028, %v4750
      %v4760 = vshrl.u32 2102212464, %v4751
      %v4761 = vor.u32 %v4759, %v4760
      %v4762 = vshll.u32 2102212464, %v4750
      %v4763 = vshrl.u32 920167782, %v4751
      %v4764 = vor.u32 %v4762, %v4763
      %v4765 = vshll.u32 920167782, %v4750
      %v4766 = vshrl.u32 1326507024, %v4751
      %v4767 = vor.u32 %v4765, %v4766
      %vm4768 = vcmp.lt.s32.totalorder %v4749, 1
      %vm4769 = vcmp.lt.s32.totalorder %v4749, 2
      %vm4770 = vcmp.lt.s32.totalorder %v4749, 3
      %vm4771 = vcmp.lt.s32.totalorder %v4749, 4
      %v4772 = vsel %vm4768, %v4752, %v4755
      %v4773 = vsel %vm4771, %v4761, 2102212464
      %v4774 = vsel %vm4770, %v4758, %v4773
      %v4775 = vsel %vm4769, %v4772, %v4774
      %v4776 = vsel %vm4768, %v4755, %v4758
      %v4777 = vsel %vm4771, %v4764, 920167782
      %v4778 = vsel %vm4770, %v4761, %v4777
      %v4779 = vsel %vm4769, %v4776, %v4778
      %v4780 = vsel %vm4768, %v4758, %v4761
      %v4781 = vsel %vm4771, %v4767, 1326507024
      %v4782 = vsel %vm4770, %v4764, %v4781
      %v4783 = vsel %vm4769, %v4780, %v4782
      %v4784 = vshll.u32 %v4744, 8
      %v4785 = vmul.u32.u64.compose %v4784, %v4783
      %v4786 = vextract.low.u32 %v4785
      %v4787 = vextract.high.u32 %v4785
      %v4788 = vmul.u32.u64.compose %v4784, %v4779
      %v4789 = vextract.low.u32 %v4788
      %v4790 = vextract.high.u32 %v4788
      %v4791 = vmul.u32 %v4784, %v4775
      %v4792 = vadd.s32 %v4787, %v4789
      %vm4793 = vc.u32 %v4787, %v4789
      %v4794 = vadd.s32 %v4790, 1
      %v4795 = vsel %vm4793, %v4794, %v4790
      %v4796 = vadd.s32 %v4791, %v4795
      %v4797 = vadd.s32 %v4796, 536870912
      %v4798 = vshrl.u32 %v4797, 30
      %v4799 = vshll.u32 %v4798, 30
      %v4800 = vsub.s32 %v4796, %v4799
      %vm4801 = vcmp.lt.s32.totalorder %v4800, 0
      %v4802 = vsub.s32 0, %v4800
      %v4803 = vsel %vm4801, %v4802, %v4800
      %v4804 = vclz %v4803
      %v4805 = vsub.s32 %v4804, 2
      %vm4806 = vcmp.gt.s32.totalorder 0, %v4805
      %v4807 = vsel %vm4806, 0, %v4805
      %v4808 = vsub.s32 32, %v4807
      %v4809 = vshll.u32 %v4800, %v4807
      %v4810 = vshrl.u32 %v4792, %v4808
      %v4811 = vor.u32 %v4809, %v4810
      %v4812 = vsub.s32 4294967266, %v4807
      %v4813 = vadd.s32 %v4812, 127
      %v4814 = vshll.u32 %v4813, 23
      %v4815 = vor.u32 4788187, %v4814
      %v4816 = vand.u32 2147483647, %v4815
      %v4818 = vcvt.s32.f32 %v4811
      %v4819 = vmul.f32 %v4818, %v4816
      %v4820 = vxor.u32 %v4819, 2147483648
      %v4821 = vsel %vm4738, %v4820, %v4819
      %v4822 = vsub.s32 4, %v4798
      %v4823 = vsel %vm4738, %v4822, %v4798
      %v4824 = vsel %vm4737, %v2666, %v4821
      %v4825 = vsel %vm4737, 0, %v4823
      %v4826 = vcosq.f32.pop %v4824
      %v4827 = vsinq.f32.pop %v4824
      %vm4828 = vweird.f32 %v2666
      %v4829 = vadd.s32 %v4825, 3
      %v4830 = vand.u32 %v4829, 3
      %vm4831 = vcmp.lt.s32.totalorder %v4830, 2
      %vm4832 = vcmp.eq.s32.totalorder %v4830, 0
      %v4833 = vxor.u32 %v4827, 2147483648
      %v4834 = vsel %vm4832, %v4826, %v4833
      %vm4835 = vcmp.eq.s32.totalorder %v4830, 2
      %v4836 = vxor.u32 %v4826, 2147483648
      %v4837 = vsel %vm4835, %v4836, %v4827
      %v4838 = vsel %vm4831, %v4834, %v4837
      %v4839 = vsel %vm4828, nan, %v4838
      %v4840 = vand.u32 2147483647, %v2669
      %vm4841 = vcmp.le.f32.partialorder %v4840, 0.7853982
      %vm4842 = vcmp.lt.s32.totalorder %v2669, 0
      %v4843 = vand.u32 %v2669, 2139095040
      %v4844 = vshrl.u32 %v4843, 23
      %v4845 = vsub.s32 %v4844, 127
      %v4846 = vand.u32 2147483647, %v2669
      %v4847 = vand.u32 %v4846, 8388607
      %v4848 = vor.u32 %v4847, 8388608
      %v4849 = vsub.s32 0, %v4848
      %v4850 = vadd.s32 %v4845, 1
      %vm4851 = vcmp.gt.s32.totalorder %v4850, 0
      %v4852 = vsel %vm4851, %v4850, 0
      %v4853 = vshrl.u32 %v4852, 5
      %v4854 = vand.u32 %v4852, 31
      %v4855 = vsub.s32 32, %v4854
      %v4856 = vshrl.u32 683565275, %v4855
      %v4857 = vshll.u32 683565275, %v4854
      %v4858 = vshrl.u32 2475754826, %v4855
      %v4859 = vor.u32 %v4857, %v4858
      %v4860 = vshll.u32 2475754826, %v4854
      %v4861 = vshrl.u32 2131351028, %v4855
      %v4862 = vor.u32 %v4860, %v4861
      %v4863 = vshll.u32 2131351028, %v4854
      %v4864 = vshrl.u32 2102212464, %v4855
      %v4865 = vor.u32 %v4863, %v4864
      %v4866 = vshll.u32 2102212464, %v4854
      %v4867 = vshrl.u32 920167782, %v4855
      %v4868 = vor.u32 %v4866, %v4867
      %v4869 = vshll.u32 920167782, %v4854
      %v4870 = vshrl.u32 1326507024, %v4855
      %v4871 = vor.u32 %v4869, %v4870
      %vm4872 = vcmp.lt.s32.totalorder %v4853, 1
      %vm4873 = vcmp.lt.s32.totalorder %v4853, 2
      %vm4874 = vcmp.lt.s32.totalorder %v4853, 3
      %vm4875 = vcmp.lt.s32.totalorder %v4853, 4
      %v4876 = vsel %vm4872, %v4856, %v4859
      %v4877 = vsel %vm4875, %v4865, 2102212464
      %v4878 = vsel %vm4874, %v4862, %v4877
      %v4879 = vsel %vm4873, %v4876, %v4878
      %v4880 = vsel %vm4872, %v4859, %v4862
      %v4881 = vsel %vm4875, %v4868, 920167782
      %v4882 = vsel %vm4874, %v4865, %v4881
      %v4883 = vsel %vm4873, %v4880, %v4882
      %v4884 = vsel %vm4872, %v4862, %v4865
      %v4885 = vsel %vm4875, %v4871, 1326507024
      %v4886 = vsel %vm4874, %v4868, %v4885
      %v4887 = vsel %vm4873, %v4884, %v4886
      %v4888 = vshll.u32 %v4848, 8
      %v4889 = vmul.u32.u64.compose %v4888, %v4887
      %v4890 = vextract.low.u32 %v4889
      %v4891 = vextract.high.u32 %v4889
      %v4892 = vmul.u32.u64.compose %v4888, %v4883
      %v4893 = vextract.low.u32 %v4892
      %v4894 = vextract.high.u32 %v4892
      %v4895 = vmul.u32 %v4888, %v4879
      %v4896 = vadd.s32 %v4891, %v4893
      %vm4897 = vc.u32 %v4891, %v4893
      %v4898 = vadd.s32 %v4894, 1
      %v4899 = vsel %vm4897, %v4898, %v4894
      %v4900 = vadd.s32 %v4895, %v4899
      %v4901 = vadd.s32 %v4900, 536870912
      %v4902 = vshrl.u32 %v4901, 30
      %v4903 = vshll.u32 %v4902, 30
      %v4904 = vsub.s32 %v4900, %v4903
      %vm4905 = vcmp.lt.s32.totalorder %v4904, 0
      %v4906 = vsub.s32 0, %v4904
      %v4907 = vsel %vm4905, %v4906, %v4904
      %v4908 = vclz %v4907
      %v4909 = vsub.s32 %v4908, 2
      %vm4910 = vcmp.gt.s32.totalorder 0, %v4909
      %v4911 = vsel %vm4910, 0, %v4909
      %v4912 = vsub.s32 32, %v4911
      %v4913 = vshll.u32 %v4904, %v4911
      %v4914 = vshrl.u32 %v4896, %v4912
      %v4915 = vor.u32 %v4913, %v4914
      %v4916 = vsub.s32 4294967266, %v4911
      %v4917 = vadd.s32 %v4916, 127
      %v4918 = vshll.u32 %v4917, 23
      %v4919 = vor.u32 4788187, %v4918
      %v4920 = vand.u32 2147483647, %v4919
      %v4922 = vcvt.s32.f32 %v4915
      %v4923 = vmul.f32 %v4922, %v4920
      %v4924 = vxor.u32 %v4923, 2147483648
      %v4925 = vsel %vm4842, %v4924, %v4923
      %v4926 = vsub.s32 4, %v4902
      %v4927 = vsel %vm4842, %v4926, %v4902
      %v4928 = vsel %vm4841, %v2669, %v4925
      %v4929 = vsel %vm4841, 0, %v4927
      %v4930 = vcosq.f32.pop %v4928
      %v4931 = vsinq.f32.pop %v4928
      %vm4932 = vweird.f32 %v2669
      %v4933 = vadd.s32 %v4929, 3
      %v4934 = vand.u32 %v4933, 3
      %vm4935 = vcmp.lt.s32.totalorder %v4934, 2
      %vm4936 = vcmp.eq.s32.totalorder %v4934, 0
      %v4937 = vxor.u32 %v4931, 2147483648
      %v4938 = vsel %vm4936, %v4930, %v4937
      %vm4939 = vcmp.eq.s32.totalorder %v4934, 2
      %v4940 = vxor.u32 %v4930, 2147483648
      %v4941 = vsel %vm4939, %v4940, %v4931
      %v4942 = vsel %vm4935, %v4938, %v4941
      %v4943 = vsel %vm4932, nan, %v4942
      %v4944 = vand.u32 2147483647, %v2674
      %vm4945 = vcmp.le.f32.partialorder %v4944, 0.7853982
      %vm4946 = vcmp.lt.s32.totalorder %v2674, 0
      %v4947 = vand.u32 %v2674, 2139095040
      %v4948 = vshrl.u32 %v4947, 23
      %v4949 = vsub.s32 %v4948, 127
      %v4950 = vand.u32 2147483647, %v2674
      %v4951 = vand.u32 %v4950, 8388607
      %v4952 = vor.u32 %v4951, 8388608
      %v4953 = vsub.s32 0, %v4952
      %v4954 = vadd.s32 %v4949, 1
      %vm4955 = vcmp.gt.s32.totalorder %v4954, 0
      %v4956 = vsel %vm4955, %v4954, 0
      %v4957 = vshrl.u32 %v4956, 5
      %v4958 = vand.u32 %v4956, 31
      %v4959 = vsub.s32 32, %v4958
      %v4960 = vshrl.u32 683565275, %v4959
      %v4961 = vshll.u32 683565275, %v4958
      %v4962 = vshrl.u32 2475754826, %v4959
      %v4963 = vor.u32 %v4961, %v4962
      %v4964 = vshll.u32 2475754826, %v4958
      %v4965 = vshrl.u32 2131351028, %v4959
      %v4966 = vor.u32 %v4964, %v4965
      %v4967 = vshll.u32 2131351028, %v4958
      %v4968 = vshrl.u32 2102212464, %v4959
      %v4969 = vor.u32 %v4967, %v4968
      %v4970 = vshll.u32 2102212464, %v4958
      %v4971 = vshrl.u32 920167782, %v4959
      %v4972 = vor.u32 %v4970, %v4971
      %v4973 = vshll.u32 920167782, %v4958
      %v4974 = vshrl.u32 1326507024, %v4959
      %v4975 = vor.u32 %v4973, %v4974
      %vm4976 = vcmp.lt.s32.totalorder %v4957, 1
      %vm4977 = vcmp.lt.s32.totalorder %v4957, 2
      %vm4978 = vcmp.lt.s32.totalorder %v4957, 3
      %vm4979 = vcmp.lt.s32.totalorder %v4957, 4
      %v4980 = vsel %vm4976, %v4960, %v4963
      %v4981 = vsel %vm4979, %v4969, 2102212464
      %v4982 = vsel %vm4978, %v4966, %v4981
      %v4983 = vsel %vm4977, %v4980, %v4982
      %v4984 = vsel %vm4976, %v4963, %v4966
      %v4985 = vsel %vm4979, %v4972, 920167782
      %v4986 = vsel %vm4978, %v4969, %v4985
      %v4987 = vsel %vm4977, %v4984, %v4986
      %v4988 = vsel %vm4976, %v4966, %v4969
      %v4989 = vsel %vm4979, %v4975, 1326507024
      %v4990 = vsel %vm4978, %v4972, %v4989
      %v4991 = vsel %vm4977, %v4988, %v4990
      %v4992 = vshll.u32 %v4952, 8
      %v4993 = vmul.u32.u64.compose %v4992, %v4991
      %v4994 = vextract.low.u32 %v4993
      %v4995 = vextract.high.u32 %v4993
      %v4996 = vmul.u32.u64.compose %v4992, %v4987
      %v4997 = vextract.low.u32 %v4996
      %v4998 = vextract.high.u32 %v4996
      %v4999 = vmul.u32 %v4992, %v4983
      %v5000 = vadd.s32 %v4995, %v4997
      %vm5001 = vc.u32 %v4995, %v4997
      %v5002 = vadd.s32 %v4998, 1
      %v5003 = vsel %vm5001, %v5002, %v4998
      %v5004 = vadd.s32 %v4999, %v5003
      %v5005 = vadd.s32 %v5004, 536870912
      %v5006 = vshrl.u32 %v5005, 30
      %v5007 = vshll.u32 %v5006, 30
      %v5008 = vsub.s32 %v5004, %v5007
      %vm5009 = vcmp.lt.s32.totalorder %v5008, 0
      %v5010 = vsub.s32 0, %v5008
      %v5011 = vsel %vm5009, %v5010, %v5008
      %v5012 = vclz %v5011
      %v5013 = vsub.s32 %v5012, 2
      %vm5014 = vcmp.gt.s32.totalorder 0, %v5013
      %v5015 = vsel %vm5014, 0, %v5013
      %v5016 = vsub.s32 32, %v5015
      %v5017 = vshll.u32 %v5008, %v5015
      %v5018 = vshrl.u32 %v5000, %v5016
      %v5019 = vor.u32 %v5017, %v5018
      %v5020 = vsub.s32 4294967266, %v5015
      %v5021 = vadd.s32 %v5020, 127
      %v5022 = vshll.u32 %v5021, 23
      %v5023 = vor.u32 4788187, %v5022
      %v5024 = vand.u32 2147483647, %v5023
      %v5026 = vcvt.s32.f32 %v5019
      %v5027 = vmul.f32 %v5026, %v5024
      %v5028 = vxor.u32 %v5027, 2147483648
      %v5029 = vsel %vm4946, %v5028, %v5027
      %v5030 = vsub.s32 4, %v5006
      %v5031 = vsel %vm4946, %v5030, %v5006
      %v5032 = vsel %vm4945, %v2674, %v5029
      %v5033 = vsel %vm4945, 0, %v5031
      %v5034 = vcosq.f32.pop %v5032
      %v5035 = vsinq.f32.pop %v5032
      %vm5036 = vweird.f32 %v2674
      %v5037 = vadd.s32 %v5033, 3
      %v5038 = vand.u32 %v5037, 3
      %vm5039 = vcmp.lt.s32.totalorder %v5038, 2
      %vm5040 = vcmp.eq.s32.totalorder %v5038, 0
      %v5041 = vxor.u32 %v5035, 2147483648
      %v5042 = vsel %vm5040, %v5034, %v5041
      %vm5043 = vcmp.eq.s32.totalorder %v5038, 2
      %v5044 = vxor.u32 %v5034, 2147483648
      %v5045 = vsel %vm5043, %v5044, %v5035
      %v5046 = vsel %vm5039, %v5042, %v5045
      %v5047 = vsel %vm5036, nan, %v5046
      %v5048 = vand.u32 2147483647, %v2677
      %vm5049 = vcmp.le.f32.partialorder %v5048, 0.7853982
      %vm5050 = vcmp.lt.s32.totalorder %v2677, 0
      %v5051 = vand.u32 %v2677, 2139095040
      %v5052 = vshrl.u32 %v5051, 23
      %v5053 = vsub.s32 %v5052, 127
      %v5054 = vand.u32 2147483647, %v2677
      %v5055 = vand.u32 %v5054, 8388607
      %v5056 = vor.u32 %v5055, 8388608
      %v5057 = vsub.s32 0, %v5056
      %v5058 = vadd.s32 %v5053, 1
      %vm5059 = vcmp.gt.s32.totalorder %v5058, 0
      %v5060 = vsel %vm5059, %v5058, 0
      %v5061 = vshrl.u32 %v5060, 5
      %v5062 = vand.u32 %v5060, 31
      %v5063 = vsub.s32 32, %v5062
      %v5064 = vshrl.u32 683565275, %v5063
      %v5065 = vshll.u32 683565275, %v5062
      %v5066 = vshrl.u32 2475754826, %v5063
      %v5067 = vor.u32 %v5065, %v5066
      %v5068 = vshll.u32 2475754826, %v5062
      %v5069 = vshrl.u32 2131351028, %v5063
      %v5070 = vor.u32 %v5068, %v5069
      %v5071 = vshll.u32 2131351028, %v5062
      %v5072 = vshrl.u32 2102212464, %v5063
      %v5073 = vor.u32 %v5071, %v5072
      %v5074 = vshll.u32 2102212464, %v5062
      %v5075 = vshrl.u32 920167782, %v5063
      %v5076 = vor.u32 %v5074, %v5075
      %v5077 = vshll.u32 920167782, %v5062
      %v5078 = vshrl.u32 1326507024, %v5063
      %v5079 = vor.u32 %v5077, %v5078
      %vm5080 = vcmp.lt.s32.totalorder %v5061, 1
      %vm5081 = vcmp.lt.s32.totalorder %v5061, 2
      %vm5082 = vcmp.lt.s32.totalorder %v5061, 3
      %vm5083 = vcmp.lt.s32.totalorder %v5061, 4
      %v5084 = vsel %vm5080, %v5064, %v5067
      %v5085 = vsel %vm5083, %v5073, 2102212464
      %v5086 = vsel %vm5082, %v5070, %v5085
      %v5087 = vsel %vm5081, %v5084, %v5086
      %v5088 = vsel %vm5080, %v5067, %v5070
      %v5089 = vsel %vm5083, %v5076, 920167782
      %v5090 = vsel %vm5082, %v5073, %v5089
      %v5091 = vsel %vm5081, %v5088, %v5090
      %v5092 = vsel %vm5080, %v5070, %v5073
      %v5093 = vsel %vm5083, %v5079, 1326507024
      %v5094 = vsel %vm5082, %v5076, %v5093
      %v5095 = vsel %vm5081, %v5092, %v5094
      %v5096 = vshll.u32 %v5056, 8
      %v5097 = vmul.u32.u64.compose %v5096, %v5095
      %v5098 = vextract.low.u32 %v5097
      %v5099 = vextract.high.u32 %v5097
      %v5100 = vmul.u32.u64.compose %v5096, %v5091
      %v5101 = vextract.low.u32 %v5100
      %v5102 = vextract.high.u32 %v5100
      %v5103 = vmul.u32 %v5096, %v5087
      %v5104 = vadd.s32 %v5099, %v5101
      %vm5105 = vc.u32 %v5099, %v5101
      %v5106 = vadd.s32 %v5102, 1
      %v5107 = vsel %vm5105, %v5106, %v5102
      %v5108 = vadd.s32 %v5103, %v5107
      %v5109 = vadd.s32 %v5108, 536870912
      %v5110 = vshrl.u32 %v5109, 30
      %v5111 = vshll.u32 %v5110, 30
      %v5112 = vsub.s32 %v5108, %v5111
      %vm5113 = vcmp.lt.s32.totalorder %v5112, 0
      %v5114 = vsub.s32 0, %v5112
      %v5115 = vsel %vm5113, %v5114, %v5112
      %v5116 = vclz %v5115
      %v5117 = vsub.s32 %v5116, 2
      %vm5118 = vcmp.gt.s32.totalorder 0, %v5117
      %v5119 = vsel %vm5118, 0, %v5117
      %v5120 = vsub.s32 32, %v5119
      %v5121 = vshll.u32 %v5112, %v5119
      %v5122 = vshrl.u32 %v5104, %v5120
      %v5123 = vor.u32 %v5121, %v5122
      %v5124 = vsub.s32 4294967266, %v5119
      %v5125 = vadd.s32 %v5124, 127
      %v5126 = vshll.u32 %v5125, 23
      %v5127 = vor.u32 4788187, %v5126
      %v5128 = vand.u32 2147483647, %v5127
      %v5130 = vcvt.s32.f32 %v5123
      %v5131 = vmul.f32 %v5130, %v5128
      %v5132 = vxor.u32 %v5131, 2147483648
      %v5133 = vsel %vm5050, %v5132, %v5131
      %v5134 = vsub.s32 4, %v5110
      %v5135 = vsel %vm5050, %v5134, %v5110
      %v5136 = vsel %vm5049, %v2677, %v5133
      %v5137 = vsel %vm5049, 0, %v5135
      %v5138 = vcosq.f32.pop %v5136
      %v5139 = vsinq.f32.pop %v5136
      %vm5140 = vweird.f32 %v2677
      %v5141 = vadd.s32 %v5137, 3
      %v5142 = vand.u32 %v5141, 3
      %vm5143 = vcmp.lt.s32.totalorder %v5142, 2
      %vm5144 = vcmp.eq.s32.totalorder %v5142, 0
      %v5145 = vxor.u32 %v5139, 2147483648
      %v5146 = vsel %vm5144, %v5138, %v5145
      %vm5147 = vcmp.eq.s32.totalorder %v5142, 2
      %v5148 = vxor.u32 %v5138, 2147483648
      %v5149 = vsel %vm5147, %v5148, %v5139
      %v5150 = vsel %vm5143, %v5146, %v5149
      %v5151 = vsel %vm5140, nan, %v5150
      %v5152 = vand.u32 2147483647, %v2682
      %vm5153 = vcmp.le.f32.partialorder %v5152, 0.7853982
      %vm5154 = vcmp.lt.s32.totalorder %v2682, 0
      %v5155 = vand.u32 %v2682, 2139095040
      %v5156 = vshrl.u32 %v5155, 23
      %v5157 = vsub.s32 %v5156, 127
      %v5158 = vand.u32 2147483647, %v2682
      %v5159 = vand.u32 %v5158, 8388607
      %v5160 = vor.u32 %v5159, 8388608
      %v5161 = vsub.s32 0, %v5160
      %v5162 = vadd.s32 %v5157, 1
      %vm5163 = vcmp.gt.s32.totalorder %v5162, 0
      %v5164 = vsel %vm5163, %v5162, 0
      %v5165 = vshrl.u32 %v5164, 5
      %v5166 = vand.u32 %v5164, 31
      %v5167 = vsub.s32 32, %v5166
      %v5168 = vshrl.u32 683565275, %v5167
      %v5169 = vshll.u32 683565275, %v5166
      %v5170 = vshrl.u32 2475754826, %v5167
      %v5171 = vor.u32 %v5169, %v5170
      %v5172 = vshll.u32 2475754826, %v5166
      %v5173 = vshrl.u32 2131351028, %v5167
      %v5174 = vor.u32 %v5172, %v5173
      %v5175 = vshll.u32 2131351028, %v5166
      %v5176 = vshrl.u32 2102212464, %v5167
      %v5177 = vor.u32 %v5175, %v5176
      %v5178 = vshll.u32 2102212464, %v5166
      %v5179 = vshrl.u32 920167782, %v5167
      %v5180 = vor.u32 %v5178, %v5179
      %v5181 = vshll.u32 920167782, %v5166
      %v5182 = vshrl.u32 1326507024, %v5167
      %v5183 = vor.u32 %v5181, %v5182
      %vm5184 = vcmp.lt.s32.totalorder %v5165, 1
      %vm5185 = vcmp.lt.s32.totalorder %v5165, 2
      %vm5186 = vcmp.lt.s32.totalorder %v5165, 3
      %vm5187 = vcmp.lt.s32.totalorder %v5165, 4
      %v5188 = vsel %vm5184, %v5168, %v5171
      %v5189 = vsel %vm5187, %v5177, 2102212464
      %v5190 = vsel %vm5186, %v5174, %v5189
      %v5191 = vsel %vm5185, %v5188, %v5190
      %v5192 = vsel %vm5184, %v5171, %v5174
      %v5193 = vsel %vm5187, %v5180, 920167782
      %v5194 = vsel %vm5186, %v5177, %v5193
      %v5195 = vsel %vm5185, %v5192, %v5194
      %v5196 = vsel %vm5184, %v5174, %v5177
      %v5197 = vsel %vm5187, %v5183, 1326507024
      %v5198 = vsel %vm5186, %v5180, %v5197
      %v5199 = vsel %vm5185, %v5196, %v5198
      %v5200 = vshll.u32 %v5160, 8
      %v5201 = vmul.u32.u64.compose %v5200, %v5199
      %v5202 = vextract.low.u32 %v5201
      %v5203 = vextract.high.u32 %v5201
      %v5204 = vmul.u32.u64.compose %v5200, %v5195
      %v5205 = vextract.low.u32 %v5204
      %v5206 = vextract.high.u32 %v5204
      %v5207 = vmul.u32 %v5200, %v5191
      %v5208 = vadd.s32 %v5203, %v5205
      %vm5209 = vc.u32 %v5203, %v5205
      %v5210 = vadd.s32 %v5206, 1
      %v5211 = vsel %vm5209, %v5210, %v5206
      %v5212 = vadd.s32 %v5207, %v5211
      %v5213 = vadd.s32 %v5212, 536870912
      %v5214 = vshrl.u32 %v5213, 30
      %v5215 = vshll.u32 %v5214, 30
      %v5216 = vsub.s32 %v5212, %v5215
      %vm5217 = vcmp.lt.s32.totalorder %v5216, 0
      %v5218 = vsub.s32 0, %v5216
      %v5219 = vsel %vm5217, %v5218, %v5216
      %v5220 = vclz %v5219
      %v5221 = vsub.s32 %v5220, 2
      %vm5222 = vcmp.gt.s32.totalorder 0, %v5221
      %v5223 = vsel %vm5222, 0, %v5221
      %v5224 = vsub.s32 32, %v5223
      %v5225 = vshll.u32 %v5216, %v5223
      %v5226 = vshrl.u32 %v5208, %v5224
      %v5227 = vor.u32 %v5225, %v5226
      %v5228 = vsub.s32 4294967266, %v5223
      %v5229 = vadd.s32 %v5228, 127
      %v5230 = vshll.u32 %v5229, 23
      %v5231 = vor.u32 4788187, %v5230
      %v5232 = vand.u32 2147483647, %v5231
      %v5234 = vcvt.s32.f32 %v5227
      %v5235 = vmul.f32 %v5234, %v5232
      %v5236 = vxor.u32 %v5235, 2147483648
      %v5237 = vsel %vm5154, %v5236, %v5235
      %v5238 = vsub.s32 4, %v5214
      %v5239 = vsel %vm5154, %v5238, %v5214
      %v5240 = vsel %vm5153, %v2682, %v5237
      %v5241 = vsel %vm5153, 0, %v5239
      %v5242 = vcosq.f32.pop %v5240
      %v5243 = vsinq.f32.pop %v5240
      %vm5244 = vweird.f32 %v2682
      %v5245 = vadd.s32 %v5241, 3
      %v5246 = vand.u32 %v5245, 3
      %vm5247 = vcmp.lt.s32.totalorder %v5246, 2
      %vm5248 = vcmp.eq.s32.totalorder %v5246, 0
      %v5249 = vxor.u32 %v5243, 2147483648
      %v5250 = vsel %vm5248, %v5242, %v5249
      %vm5251 = vcmp.eq.s32.totalorder %v5246, 2
      %v5252 = vxor.u32 %v5242, 2147483648
      %v5253 = vsel %vm5251, %v5252, %v5243
      %v5254 = vsel %vm5247, %v5250, %v5253
      %v5255 = vsel %vm5244, nan, %v5254
      %v5256 = vand.u32 2147483647, %v2685
      %vm5257 = vcmp.le.f32.partialorder %v5256, 0.7853982
      %vm5258 = vcmp.lt.s32.totalorder %v2685, 0
      %v5259 = vand.u32 %v2685, 2139095040
      %v5260 = vshrl.u32 %v5259, 23
      %v5261 = vsub.s32 %v5260, 127
      %v5262 = vand.u32 2147483647, %v2685
      %v5263 = vand.u32 %v5262, 8388607
      %v5264 = vor.u32 %v5263, 8388608
      %v5265 = vsub.s32 0, %v5264
      %v5266 = vadd.s32 %v5261, 1
      %vm5267 = vcmp.gt.s32.totalorder %v5266, 0
      %v5268 = vsel %vm5267, %v5266, 0
      %v5269 = vshrl.u32 %v5268, 5
      %v5270 = vand.u32 %v5268, 31
      %v5271 = vsub.s32 32, %v5270
      %v5272 = vshrl.u32 683565275, %v5271
      %v5273 = vshll.u32 683565275, %v5270
      %v5274 = vshrl.u32 2475754826, %v5271
      %v5275 = vor.u32 %v5273, %v5274
      %v5276 = vshll.u32 2475754826, %v5270
      %v5277 = vshrl.u32 2131351028, %v5271
      %v5278 = vor.u32 %v5276, %v5277
      %v5279 = vshll.u32 2131351028, %v5270
      %v5280 = vshrl.u32 2102212464, %v5271
      %v5281 = vor.u32 %v5279, %v5280
      %v5282 = vshll.u32 2102212464, %v5270
      %v5283 = vshrl.u32 920167782, %v5271
      %v5284 = vor.u32 %v5282, %v5283
      %v5285 = vshll.u32 920167782, %v5270
      %v5286 = vshrl.u32 1326507024, %v5271
      %v5287 = vor.u32 %v5285, %v5286
      %vm5288 = vcmp.lt.s32.totalorder %v5269, 1
      %vm5289 = vcmp.lt.s32.totalorder %v5269, 2
      %vm5290 = vcmp.lt.s32.totalorder %v5269, 3
      %vm5291 = vcmp.lt.s32.totalorder %v5269, 4
      %v5292 = vsel %vm5288, %v5272, %v5275
      %v5293 = vsel %vm5291, %v5281, 2102212464
      %v5294 = vsel %vm5290, %v5278, %v5293
      %v5295 = vsel %vm5289, %v5292, %v5294
      %v5296 = vsel %vm5288, %v5275, %v5278
      %v5297 = vsel %vm5291, %v5284, 920167782
      %v5298 = vsel %vm5290, %v5281, %v5297
      %v5299 = vsel %vm5289, %v5296, %v5298
      %v5300 = vsel %vm5288, %v5278, %v5281
      %v5301 = vsel %vm5291, %v5287, 1326507024
      %v5302 = vsel %vm5290, %v5284, %v5301
      %v5303 = vsel %vm5289, %v5300, %v5302
      %v5304 = vshll.u32 %v5264, 8
      %v5305 = vmul.u32.u64.compose %v5304, %v5303
      %v5306 = vextract.low.u32 %v5305
      %v5307 = vextract.high.u32 %v5305
      %v5308 = vmul.u32.u64.compose %v5304, %v5299
      %v5309 = vextract.low.u32 %v5308
      %v5310 = vextract.high.u32 %v5308
      %v5311 = vmul.u32 %v5304, %v5295
      %v5312 = vadd.s32 %v5307, %v5309
      %vm5313 = vc.u32 %v5307, %v5309
      %v5314 = vadd.s32 %v5310, 1
      %v5315 = vsel %vm5313, %v5314, %v5310
      %v5316 = vadd.s32 %v5311, %v5315
      %v5317 = vadd.s32 %v5316, 536870912
      %v5318 = vshrl.u32 %v5317, 30
      %v5319 = vshll.u32 %v5318, 30
      %v5320 = vsub.s32 %v5316, %v5319
      %vm5321 = vcmp.lt.s32.totalorder %v5320, 0
      %v5322 = vsub.s32 0, %v5320
      %v5323 = vsel %vm5321, %v5322, %v5320
      %v5324 = vclz %v5323
      %v5325 = vsub.s32 %v5324, 2
      %vm5326 = vcmp.gt.s32.totalorder 0, %v5325
      %v5327 = vsel %vm5326, 0, %v5325
      %v5328 = vsub.s32 32, %v5327
      %v5329 = vshll.u32 %v5320, %v5327
      %v5330 = vshrl.u32 %v5312, %v5328
      %v5331 = vor.u32 %v5329, %v5330
      %v5332 = vsub.s32 4294967266, %v5327
      %v5333 = vadd.s32 %v5332, 127
      %v5334 = vshll.u32 %v5333, 23
      %v5335 = vor.u32 4788187, %v5334
      %v5336 = vand.u32 2147483647, %v5335
      %v5338 = vcvt.s32.f32 %v5331
      %v5339 = vmul.f32 %v5338, %v5336
      %v5340 = vxor.u32 %v5339, 2147483648
      %v5341 = vsel %vm5258, %v5340, %v5339
      %v5342 = vsub.s32 4, %v5318
      %v5343 = vsel %vm5258, %v5342, %v5318
      %v5344 = vsel %vm5257, %v2685, %v5341
      %v5345 = vsel %vm5257, 0, %v5343
      %v5346 = vcosq.f32.pop %v5344
      %v5347 = vsinq.f32.pop %v5344
      %vm5348 = vweird.f32 %v2685
      %v5349 = vadd.s32 %v5345, 3
      %v5350 = vand.u32 %v5349, 3
      %vm5351 = vcmp.lt.s32.totalorder %v5350, 2
      %vm5352 = vcmp.eq.s32.totalorder %v5350, 0
      %v5353 = vxor.u32 %v5347, 2147483648
      %v5354 = vsel %vm5352, %v5346, %v5353
      %vm5355 = vcmp.eq.s32.totalorder %v5350, 2
      %v5356 = vxor.u32 %v5346, 2147483648
      %v5357 = vsel %vm5355, %v5356, %v5347
      %v5358 = vsel %vm5351, %v5354, %v5357
      %v5359 = vsel %vm5348, nan, %v5358
      %v5360 = vand.u32 2147483647, %v2690
      %vm5361 = vcmp.le.f32.partialorder %v5360, 0.7853982
      %vm5362 = vcmp.lt.s32.totalorder %v2690, 0
      %v5363 = vand.u32 %v2690, 2139095040
      %v5364 = vshrl.u32 %v5363, 23
      %v5365 = vsub.s32 %v5364, 127
      %v5366 = vand.u32 2147483647, %v2690
      %v5367 = vand.u32 %v5366, 8388607
      %v5368 = vor.u32 %v5367, 8388608
      %v5369 = vsub.s32 0, %v5368
      %v5370 = vadd.s32 %v5365, 1
      %vm5371 = vcmp.gt.s32.totalorder %v5370, 0
      %v5372 = vsel %vm5371, %v5370, 0
      %v5373 = vshrl.u32 %v5372, 5
      %v5374 = vand.u32 %v5372, 31
      %v5375 = vsub.s32 32, %v5374
      %v5376 = vshrl.u32 683565275, %v5375
      %v5377 = vshll.u32 683565275, %v5374
      %v5378 = vshrl.u32 2475754826, %v5375
      %v5379 = vor.u32 %v5377, %v5378
      %v5380 = vshll.u32 2475754826, %v5374
      %v5381 = vshrl.u32 2131351028, %v5375
      %v5382 = vor.u32 %v5380, %v5381
      %v5383 = vshll.u32 2131351028, %v5374
      %v5384 = vshrl.u32 2102212464, %v5375
      %v5385 = vor.u32 %v5383, %v5384
      %v5386 = vshll.u32 2102212464, %v5374
      %v5387 = vshrl.u32 920167782, %v5375
      %v5388 = vor.u32 %v5386, %v5387
      %v5389 = vshll.u32 920167782, %v5374
      %v5390 = vshrl.u32 1326507024, %v5375
      %v5391 = vor.u32 %v5389, %v5390
      %vm5392 = vcmp.lt.s32.totalorder %v5373, 1
      %vm5393 = vcmp.lt.s32.totalorder %v5373, 2
      %vm5394 = vcmp.lt.s32.totalorder %v5373, 3
      %vm5395 = vcmp.lt.s32.totalorder %v5373, 4
      %v5396 = vsel %vm5392, %v5376, %v5379
      %v5397 = vsel %vm5395, %v5385, 2102212464
      %v5398 = vsel %vm5394, %v5382, %v5397
      %v5399 = vsel %vm5393, %v5396, %v5398
      %v5400 = vsel %vm5392, %v5379, %v5382
      %v5401 = vsel %vm5395, %v5388, 920167782
      %v5402 = vsel %vm5394, %v5385, %v5401
      %v5403 = vsel %vm5393, %v5400, %v5402
      %v5404 = vsel %vm5392, %v5382, %v5385
      %v5405 = vsel %vm5395, %v5391, 1326507024
      %v5406 = vsel %vm5394, %v5388, %v5405
      %v5407 = vsel %vm5393, %v5404, %v5406
      %v5408 = vshll.u32 %v5368, 8
      %v5409 = vmul.u32.u64.compose %v5408, %v5407
      %v5410 = vextract.low.u32 %v5409
      %v5411 = vextract.high.u32 %v5409
      %v5412 = vmul.u32.u64.compose %v5408, %v5403
      %v5413 = vextract.low.u32 %v5412
      %v5414 = vextract.high.u32 %v5412
      %v5415 = vmul.u32 %v5408, %v5399
      %v5416 = vadd.s32 %v5411, %v5413
      %vm5417 = vc.u32 %v5411, %v5413
      %v5418 = vadd.s32 %v5414, 1
      %v5419 = vsel %vm5417, %v5418, %v5414
      %v5420 = vadd.s32 %v5415, %v5419
      %v5421 = vadd.s32 %v5420, 536870912
      %v5422 = vshrl.u32 %v5421, 30
      %v5423 = vshll.u32 %v5422, 30
      %v5424 = vsub.s32 %v5420, %v5423
      %vm5425 = vcmp.lt.s32.totalorder %v5424, 0
      %v5426 = vsub.s32 0, %v5424
      %v5427 = vsel %vm5425, %v5426, %v5424
      %v5428 = vclz %v5427
      %v5429 = vsub.s32 %v5428, 2
      %vm5430 = vcmp.gt.s32.totalorder 0, %v5429
      %v5431 = vsel %vm5430, 0, %v5429
      %v5432 = vsub.s32 32, %v5431
      %v5433 = vshll.u32 %v5424, %v5431
      %v5434 = vshrl.u32 %v5416, %v5432
      %v5435 = vor.u32 %v5433, %v5434
      %v5436 = vsub.s32 4294967266, %v5431
      %v5437 = vadd.s32 %v5436, 127
      %v5438 = vshll.u32 %v5437, 23
      %v5439 = vor.u32 4788187, %v5438
      %v5440 = vand.u32 2147483647, %v5439
      %v5442 = vcvt.s32.f32 %v5435
      %v5443 = vmul.f32 %v5442, %v5440
      %v5444 = vxor.u32 %v5443, 2147483648
      %v5445 = vsel %vm5362, %v5444, %v5443
      %v5446 = vsub.s32 4, %v5422
      %v5447 = vsel %vm5362, %v5446, %v5422
      %v5448 = vsel %vm5361, %v2690, %v5445
      %v5449 = vsel %vm5361, 0, %v5447
      %v5450 = vcosq.f32.pop %v5448
      %v5451 = vsinq.f32.pop %v5448
      %vm5452 = vweird.f32 %v2690
      %v5453 = vadd.s32 %v5449, 3
      %v5454 = vand.u32 %v5453, 3
      %vm5455 = vcmp.lt.s32.totalorder %v5454, 2
      %vm5456 = vcmp.eq.s32.totalorder %v5454, 0
      %v5457 = vxor.u32 %v5451, 2147483648
      %v5458 = vsel %vm5456, %v5450, %v5457
      %vm5459 = vcmp.eq.s32.totalorder %v5454, 2
      %v5460 = vxor.u32 %v5450, 2147483648
      %v5461 = vsel %vm5459, %v5460, %v5451
      %v5462 = vsel %vm5455, %v5458, %v5461
      %v5463 = vsel %vm5452, nan, %v5462
      %v5464 = vand.u32 2147483647, %v2693
      %vm5465 = vcmp.le.f32.partialorder %v5464, 0.7853982
      %vm5466 = vcmp.lt.s32.totalorder %v2693, 0
      %v5467 = vand.u32 %v2693, 2139095040
      %v5468 = vshrl.u32 %v5467, 23
      %v5469 = vsub.s32 %v5468, 127
      %v5470 = vand.u32 2147483647, %v2693
      %v5471 = vand.u32 %v5470, 8388607
      %v5472 = vor.u32 %v5471, 8388608
      %v5473 = vsub.s32 0, %v5472
      %v5474 = vadd.s32 %v5469, 1
      %vm5475 = vcmp.gt.s32.totalorder %v5474, 0
      %v5476 = vsel %vm5475, %v5474, 0
      %v5477 = vshrl.u32 %v5476, 5
      %v5478 = vand.u32 %v5476, 31
      %v5479 = vsub.s32 32, %v5478
      %v5480 = vshrl.u32 683565275, %v5479
      %v5481 = vshll.u32 683565275, %v5478
      %v5482 = vshrl.u32 2475754826, %v5479
      %v5483 = vor.u32 %v5481, %v5482
      %v5484 = vshll.u32 2475754826, %v5478
      %v5485 = vshrl.u32 2131351028, %v5479
      %v5486 = vor.u32 %v5484, %v5485
      %v5487 = vshll.u32 2131351028, %v5478
      %v5488 = vshrl.u32 2102212464, %v5479
      %v5489 = vor.u32 %v5487, %v5488
      %v5490 = vshll.u32 2102212464, %v5478
      %v5491 = vshrl.u32 920167782, %v5479
      %v5492 = vor.u32 %v5490, %v5491
      %v5493 = vshll.u32 920167782, %v5478
      %v5494 = vshrl.u32 1326507024, %v5479
      %v5495 = vor.u32 %v5493, %v5494
      %vm5496 = vcmp.lt.s32.totalorder %v5477, 1
      %vm5497 = vcmp.lt.s32.totalorder %v5477, 2
      %vm5498 = vcmp.lt.s32.totalorder %v5477, 3
      %vm5499 = vcmp.lt.s32.totalorder %v5477, 4
      %v5500 = vsel %vm5496, %v5480, %v5483
      %v5501 = vsel %vm5499, %v5489, 2102212464
      %v5502 = vsel %vm5498, %v5486, %v5501
      %v5503 = vsel %vm5497, %v5500, %v5502
      %v5504 = vsel %vm5496, %v5483, %v5486
      %v5505 = vsel %vm5499, %v5492, 920167782
      %v5506 = vsel %vm5498, %v5489, %v5505
      %v5507 = vsel %vm5497, %v5504, %v5506
      %v5508 = vsel %vm5496, %v5486, %v5489
      %v5509 = vsel %vm5499, %v5495, 1326507024
      %v5510 = vsel %vm5498, %v5492, %v5509
      %v5511 = vsel %vm5497, %v5508, %v5510
      %v5512 = vshll.u32 %v5472, 8
      %v5513 = vmul.u32.u64.compose %v5512, %v5511
      %v5514 = vextract.low.u32 %v5513
      %v5515 = vextract.high.u32 %v5513
      %v5516 = vmul.u32.u64.compose %v5512, %v5507
      %v5517 = vextract.low.u32 %v5516
      %v5518 = vextract.high.u32 %v5516
      %v5519 = vmul.u32 %v5512, %v5503
      %v5520 = vadd.s32 %v5515, %v5517
      %vm5521 = vc.u32 %v5515, %v5517
      %v5522 = vadd.s32 %v5518, 1
      %v5523 = vsel %vm5521, %v5522, %v5518
      %v5524 = vadd.s32 %v5519, %v5523
      %v5525 = vadd.s32 %v5524, 536870912
      %v5526 = vshrl.u32 %v5525, 30
      %v5527 = vshll.u32 %v5526, 30
      %v5528 = vsub.s32 %v5524, %v5527
      %vm5529 = vcmp.lt.s32.totalorder %v5528, 0
      %v5530 = vsub.s32 0, %v5528
      %v5531 = vsel %vm5529, %v5530, %v5528
      %v5532 = vclz %v5531
      %v5533 = vsub.s32 %v5532, 2
      %vm5534 = vcmp.gt.s32.totalorder 0, %v5533
      %v5535 = vsel %vm5534, 0, %v5533
      %v5536 = vsub.s32 32, %v5535
      %v5537 = vshll.u32 %v5528, %v5535
      %v5538 = vshrl.u32 %v5520, %v5536
      %v5539 = vor.u32 %v5537, %v5538
      %v5540 = vsub.s32 4294967266, %v5535
      %v5541 = vadd.s32 %v5540, 127
      %v5542 = vshll.u32 %v5541, 23
      %v5543 = vor.u32 4788187, %v5542
      %v5544 = vand.u32 2147483647, %v5543
      %v5546 = vcvt.s32.f32 %v5539
      %v5547 = vmul.f32 %v5546, %v5544
      %v5548 = vxor.u32 %v5547, 2147483648
      %v5549 = vsel %vm5466, %v5548, %v5547
      %v5550 = vsub.s32 4, %v5526
      %v5551 = vsel %vm5466, %v5550, %v5526
      %v5552 = vsel %vm5465, %v2693, %v5549
      %v5553 = vsel %vm5465, 0, %v5551
      %v5554 = vcosq.f32.pop %v5552
      %v5555 = vsinq.f32.pop %v5552
      %vm5556 = vweird.f32 %v2693
      %v5557 = vadd.s32 %v5553, 3
      %v5558 = vand.u32 %v5557, 3
      %vm5559 = vcmp.lt.s32.totalorder %v5558, 2
      %vm5560 = vcmp.eq.s32.totalorder %v5558, 0
      %v5561 = vxor.u32 %v5555, 2147483648
      %v5562 = vsel %vm5560, %v5554, %v5561
      %vm5563 = vcmp.eq.s32.totalorder %v5558, 2
      %v5564 = vxor.u32 %v5554, 2147483648
      %v5565 = vsel %vm5563, %v5564, %v5555
      %v5566 = vsel %vm5559, %v5562, %v5565
      %v5567 = vsel %vm5556, nan, %v5566
      %v5568 = vand.u32 2147483647, %v2698
      %vm5569 = vcmp.le.f32.partialorder %v5568, 0.7853982
      %vm5570 = vcmp.lt.s32.totalorder %v2698, 0
      %v5571 = vand.u32 %v2698, 2139095040
      %v5572 = vshrl.u32 %v5571, 23
      %v5573 = vsub.s32 %v5572, 127
      %v5574 = vand.u32 2147483647, %v2698
      %v5575 = vand.u32 %v5574, 8388607
      %v5576 = vor.u32 %v5575, 8388608
      %v5577 = vsub.s32 0, %v5576
      %v5578 = vadd.s32 %v5573, 1
      %vm5579 = vcmp.gt.s32.totalorder %v5578, 0
      %v5580 = vsel %vm5579, %v5578, 0
      %v5581 = vshrl.u32 %v5580, 5
      %v5582 = vand.u32 %v5580, 31
      %v5583 = vsub.s32 32, %v5582
      %v5584 = vshrl.u32 683565275, %v5583
      %v5585 = vshll.u32 683565275, %v5582
      %v5586 = vshrl.u32 2475754826, %v5583
      %v5587 = vor.u32 %v5585, %v5586
      %v5588 = vshll.u32 2475754826, %v5582
      %v5589 = vshrl.u32 2131351028, %v5583
      %v5590 = vor.u32 %v5588, %v5589
      %v5591 = vshll.u32 2131351028, %v5582
      %v5592 = vshrl.u32 2102212464, %v5583
      %v5593 = vor.u32 %v5591, %v5592
      %v5594 = vshll.u32 2102212464, %v5582
      %v5595 = vshrl.u32 920167782, %v5583
      %v5596 = vor.u32 %v5594, %v5595
      %v5597 = vshll.u32 920167782, %v5582
      %v5598 = vshrl.u32 1326507024, %v5583
      %v5599 = vor.u32 %v5597, %v5598
      %vm5600 = vcmp.lt.s32.totalorder %v5581, 1
      %vm5601 = vcmp.lt.s32.totalorder %v5581, 2
      %vm5602 = vcmp.lt.s32.totalorder %v5581, 3
      %vm5603 = vcmp.lt.s32.totalorder %v5581, 4
      %v5604 = vsel %vm5600, %v5584, %v5587
      %v5605 = vsel %vm5603, %v5593, 2102212464
      %v5606 = vsel %vm5602, %v5590, %v5605
      %v5607 = vsel %vm5601, %v5604, %v5606
      %v5608 = vsel %vm5600, %v5587, %v5590
      %v5609 = vsel %vm5603, %v5596, 920167782
      %v5610 = vsel %vm5602, %v5593, %v5609
      %v5611 = vsel %vm5601, %v5608, %v5610
      %v5612 = vsel %vm5600, %v5590, %v5593
      %v5613 = vsel %vm5603, %v5599, 1326507024
      %v5614 = vsel %vm5602, %v5596, %v5613
      %v5615 = vsel %vm5601, %v5612, %v5614
      %v5616 = vshll.u32 %v5576, 8
      %v5617 = vmul.u32.u64.compose %v5616, %v5615
      %v5618 = vextract.low.u32 %v5617
      %v5619 = vextract.high.u32 %v5617
      %v5620 = vmul.u32.u64.compose %v5616, %v5611
      %v5621 = vextract.low.u32 %v5620
      %v5622 = vextract.high.u32 %v5620
      %v5623 = vmul.u32 %v5616, %v5607
      %v5624 = vadd.s32 %v5619, %v5621
      %vm5625 = vc.u32 %v5619, %v5621
      %v5626 = vadd.s32 %v5622, 1
      %v5627 = vsel %vm5625, %v5626, %v5622
      %v5628 = vadd.s32 %v5623, %v5627
      %v5629 = vadd.s32 %v5628, 536870912
      %v5630 = vshrl.u32 %v5629, 30
      %v5631 = vshll.u32 %v5630, 30
      %v5632 = vsub.s32 %v5628, %v5631
      %vm5633 = vcmp.lt.s32.totalorder %v5632, 0
      %v5634 = vsub.s32 0, %v5632
      %v5635 = vsel %vm5633, %v5634, %v5632
      %v5636 = vclz %v5635
      %v5637 = vsub.s32 %v5636, 2
      %vm5638 = vcmp.gt.s32.totalorder 0, %v5637
      %v5639 = vsel %vm5638, 0, %v5637
      %v5640 = vsub.s32 32, %v5639
      %v5641 = vshll.u32 %v5632, %v5639
      %v5642 = vshrl.u32 %v5624, %v5640
      %v5643 = vor.u32 %v5641, %v5642
      %v5644 = vsub.s32 4294967266, %v5639
      %v5645 = vadd.s32 %v5644, 127
      %v5646 = vshll.u32 %v5645, 23
      %v5647 = vor.u32 4788187, %v5646
      %v5648 = vand.u32 2147483647, %v5647
      %v5650 = vcvt.s32.f32 %v5643
      %v5651 = vmul.f32 %v5650, %v5648
      %v5652 = vxor.u32 %v5651, 2147483648
      %v5653 = vsel %vm5570, %v5652, %v5651
      %v5654 = vsub.s32 4, %v5630
      %v5655 = vsel %vm5570, %v5654, %v5630
      %v5656 = vsel %vm5569, %v2698, %v5653
      %v5657 = vsel %vm5569, 0, %v5655
      %v5658 = vcosq.f32.pop %v5656
      %v5659 = vsinq.f32.pop %v5656
      %vm5660 = vweird.f32 %v2698
      %v5661 = vadd.s32 %v5657, 3
      %v5662 = vand.u32 %v5661, 3
      %vm5663 = vcmp.lt.s32.totalorder %v5662, 2
      %vm5664 = vcmp.eq.s32.totalorder %v5662, 0
      %v5665 = vxor.u32 %v5659, 2147483648
      %v5666 = vsel %vm5664, %v5658, %v5665
      %vm5667 = vcmp.eq.s32.totalorder %v5662, 2
      %v5668 = vxor.u32 %v5658, 2147483648
      %v5669 = vsel %vm5667, %v5668, %v5659
      %v5670 = vsel %vm5663, %v5666, %v5669
      %v5671 = vsel %vm5660, nan, %v5670
      %v5672 = vand.u32 2147483647, %v2701
      %vm5673 = vcmp.le.f32.partialorder %v5672, 0.7853982
      %vm5674 = vcmp.lt.s32.totalorder %v2701, 0
      %v5675 = vand.u32 %v2701, 2139095040
      %v5676 = vshrl.u32 %v5675, 23
      %v5677 = vsub.s32 %v5676, 127
      %v5678 = vand.u32 2147483647, %v2701
      %v5679 = vand.u32 %v5678, 8388607
      %v5680 = vor.u32 %v5679, 8388608
      %v5681 = vsub.s32 0, %v5680
      %v5682 = vadd.s32 %v5677, 1
      %vm5683 = vcmp.gt.s32.totalorder %v5682, 0
      %v5684 = vsel %vm5683, %v5682, 0
      %v5685 = vshrl.u32 %v5684, 5
      %v5686 = vand.u32 %v5684, 31
      %v5687 = vsub.s32 32, %v5686
      %v5688 = vshrl.u32 683565275, %v5687
      %v5689 = vshll.u32 683565275, %v5686
      %v5690 = vshrl.u32 2475754826, %v5687
      %v5691 = vor.u32 %v5689, %v5690
      %v5692 = vshll.u32 2475754826, %v5686
      %v5693 = vshrl.u32 2131351028, %v5687
      %v5694 = vor.u32 %v5692, %v5693
      %v5695 = vshll.u32 2131351028, %v5686
      %v5696 = vshrl.u32 2102212464, %v5687
      %v5697 = vor.u32 %v5695, %v5696
      %v5698 = vshll.u32 2102212464, %v5686
      %v5699 = vshrl.u32 920167782, %v5687
      %v5700 = vor.u32 %v5698, %v5699
      %v5701 = vshll.u32 920167782, %v5686
      %v5702 = vshrl.u32 1326507024, %v5687
      %v5703 = vor.u32 %v5701, %v5702
      %vm5704 = vcmp.lt.s32.totalorder %v5685, 1
      %vm5705 = vcmp.lt.s32.totalorder %v5685, 2
      %vm5706 = vcmp.lt.s32.totalorder %v5685, 3
      %vm5707 = vcmp.lt.s32.totalorder %v5685, 4
      %v5708 = vsel %vm5704, %v5688, %v5691
      %v5709 = vsel %vm5707, %v5697, 2102212464
      %v5710 = vsel %vm5706, %v5694, %v5709
      %v5711 = vsel %vm5705, %v5708, %v5710
      %v5712 = vsel %vm5704, %v5691, %v5694
      %v5713 = vsel %vm5707, %v5700, 920167782
      %v5714 = vsel %vm5706, %v5697, %v5713
      %v5715 = vsel %vm5705, %v5712, %v5714
      %v5716 = vsel %vm5704, %v5694, %v5697
      %v5717 = vsel %vm5707, %v5703, 1326507024
      %v5718 = vsel %vm5706, %v5700, %v5717
      %v5719 = vsel %vm5705, %v5716, %v5718
      %v5720 = vshll.u32 %v5680, 8
      %v5721 = vmul.u32.u64.compose %v5720, %v5719
      %v5722 = vextract.low.u32 %v5721
      %v5723 = vextract.high.u32 %v5721
      %v5724 = vmul.u32.u64.compose %v5720, %v5715
      %v5725 = vextract.low.u32 %v5724
      %v5726 = vextract.high.u32 %v5724
      %v5727 = vmul.u32 %v5720, %v5711
      %v5728 = vadd.s32 %v5723, %v5725
      %vm5729 = vc.u32 %v5723, %v5725
      %v5730 = vadd.s32 %v5726, 1
      %v5731 = vsel %vm5729, %v5730, %v5726
      %v5732 = vadd.s32 %v5727, %v5731
      %v5733 = vadd.s32 %v5732, 536870912
      %v5734 = vshrl.u32 %v5733, 30
      %v5735 = vshll.u32 %v5734, 30
      %v5736 = vsub.s32 %v5732, %v5735
      %vm5737 = vcmp.lt.s32.totalorder %v5736, 0
      %v5738 = vsub.s32 0, %v5736
      %v5739 = vsel %vm5737, %v5738, %v5736
      %v5740 = vclz %v5739
      %v5741 = vsub.s32 %v5740, 2
      %vm5742 = vcmp.gt.s32.totalorder 0, %v5741
      %v5743 = vsel %vm5742, 0, %v5741
      %v5744 = vsub.s32 32, %v5743
      %v5745 = vshll.u32 %v5736, %v5743
      %v5746 = vshrl.u32 %v5728, %v5744
      %v5747 = vor.u32 %v5745, %v5746
      %v5748 = vsub.s32 4294967266, %v5743
      %v5749 = vadd.s32 %v5748, 127
      %v5750 = vshll.u32 %v5749, 23
      %v5751 = vor.u32 4788187, %v5750
      %v5752 = vand.u32 2147483647, %v5751
      %v5754 = vcvt.s32.f32 %v5747
      %v5755 = vmul.f32 %v5754, %v5752
      %v5756 = vxor.u32 %v5755, 2147483648
      %v5757 = vsel %vm5674, %v5756, %v5755
      %v5758 = vsub.s32 4, %v5734
      %v5759 = vsel %vm5674, %v5758, %v5734
      %v5760 = vsel %vm5673, %v2701, %v5757
      %v5761 = vsel %vm5673, 0, %v5759
      %v5762 = vcosq.f32.pop %v5760
      %v5763 = vsinq.f32.pop %v5760
      %vm5764 = vweird.f32 %v2701
      %v5765 = vadd.s32 %v5761, 3
      %v5766 = vand.u32 %v5765, 3
      %vm5767 = vcmp.lt.s32.totalorder %v5766, 2
      %vm5768 = vcmp.eq.s32.totalorder %v5766, 0
      %v5769 = vxor.u32 %v5763, 2147483648
      %v5770 = vsel %vm5768, %v5762, %v5769
      %vm5771 = vcmp.eq.s32.totalorder %v5766, 2
      %v5772 = vxor.u32 %v5762, 2147483648
      %v5773 = vsel %vm5771, %v5772, %v5763
      %v5774 = vsel %vm5767, %v5770, %v5773
      %v5775 = vsel %vm5764, nan, %v5774
      %v5776 = vand.u32 2147483647, %v2706
      %vm5777 = vcmp.le.f32.partialorder %v5776, 0.7853982
      %vm5778 = vcmp.lt.s32.totalorder %v2706, 0
      %v5779 = vand.u32 %v2706, 2139095040
      %v5780 = vshrl.u32 %v5779, 23
      %v5781 = vsub.s32 %v5780, 127
      %v5782 = vand.u32 2147483647, %v2706
      %v5783 = vand.u32 %v5782, 8388607
      %v5784 = vor.u32 %v5783, 8388608
      %v5785 = vsub.s32 0, %v5784
      %v5786 = vadd.s32 %v5781, 1
      %vm5787 = vcmp.gt.s32.totalorder %v5786, 0
      %v5788 = vsel %vm5787, %v5786, 0
      %v5789 = vshrl.u32 %v5788, 5
      %v5790 = vand.u32 %v5788, 31
      %v5791 = vsub.s32 32, %v5790
      %v5792 = vshrl.u32 683565275, %v5791
      %v5793 = vshll.u32 683565275, %v5790
      %v5794 = vshrl.u32 2475754826, %v5791
      %v5795 = vor.u32 %v5793, %v5794
      %v5796 = vshll.u32 2475754826, %v5790
      %v5797 = vshrl.u32 2131351028, %v5791
      %v5798 = vor.u32 %v5796, %v5797
      %v5799 = vshll.u32 2131351028, %v5790
      %v5800 = vshrl.u32 2102212464, %v5791
      %v5801 = vor.u32 %v5799, %v5800
      %v5802 = vshll.u32 2102212464, %v5790
      %v5803 = vshrl.u32 920167782, %v5791
      %v5804 = vor.u32 %v5802, %v5803
      %v5805 = vshll.u32 920167782, %v5790
      %v5806 = vshrl.u32 1326507024, %v5791
      %v5807 = vor.u32 %v5805, %v5806
      %vm5808 = vcmp.lt.s32.totalorder %v5789, 1
      %vm5809 = vcmp.lt.s32.totalorder %v5789, 2
      %vm5810 = vcmp.lt.s32.totalorder %v5789, 3
      %vm5811 = vcmp.lt.s32.totalorder %v5789, 4
      %v5812 = vsel %vm5808, %v5792, %v5795
      %v5813 = vsel %vm5811, %v5801, 2102212464
      %v5814 = vsel %vm5810, %v5798, %v5813
      %v5815 = vsel %vm5809, %v5812, %v5814
      %v5816 = vsel %vm5808, %v5795, %v5798
      %v5817 = vsel %vm5811, %v5804, 920167782
      %v5818 = vsel %vm5810, %v5801, %v5817
      %v5819 = vsel %vm5809, %v5816, %v5818
      %v5820 = vsel %vm5808, %v5798, %v5801
      %v5821 = vsel %vm5811, %v5807, 1326507024
      %v5822 = vsel %vm5810, %v5804, %v5821
      %v5823 = vsel %vm5809, %v5820, %v5822
      %v5824 = vshll.u32 %v5784, 8
      %v5825 = vmul.u32.u64.compose %v5824, %v5823
      %v5826 = vextract.low.u32 %v5825
      %v5827 = vextract.high.u32 %v5825
      %v5828 = vmul.u32.u64.compose %v5824, %v5819
      %v5829 = vextract.low.u32 %v5828
      %v5830 = vextract.high.u32 %v5828
      %v5831 = vmul.u32 %v5824, %v5815
      %v5832 = vadd.s32 %v5827, %v5829
      %vm5833 = vc.u32 %v5827, %v5829
      %v5834 = vadd.s32 %v5830, 1
      %v5835 = vsel %vm5833, %v5834, %v5830
      %v5836 = vadd.s32 %v5831, %v5835
      %v5837 = vadd.s32 %v5836, 536870912
      %v5838 = vshrl.u32 %v5837, 30
      %v5839 = vshll.u32 %v5838, 30
      %v5840 = vsub.s32 %v5836, %v5839
      %vm5841 = vcmp.lt.s32.totalorder %v5840, 0
      %v5842 = vsub.s32 0, %v5840
      %v5843 = vsel %vm5841, %v5842, %v5840
      %v5844 = vclz %v5843
      %v5845 = vsub.s32 %v5844, 2
      %vm5846 = vcmp.gt.s32.totalorder 0, %v5845
      %v5847 = vsel %vm5846, 0, %v5845
      %v5848 = vsub.s32 32, %v5847
      %v5849 = vshll.u32 %v5840, %v5847
      %v5850 = vshrl.u32 %v5832, %v5848
      %v5851 = vor.u32 %v5849, %v5850
      %v5852 = vsub.s32 4294967266, %v5847
      %v5853 = vadd.s32 %v5852, 127
      %v5854 = vshll.u32 %v5853, 23
      %v5855 = vor.u32 4788187, %v5854
      %v5856 = vand.u32 2147483647, %v5855
      %v5858 = vcvt.s32.f32 %v5851
      %v5859 = vmul.f32 %v5858, %v5856
      %v5860 = vxor.u32 %v5859, 2147483648
      %v5861 = vsel %vm5778, %v5860, %v5859
      %v5862 = vsub.s32 4, %v5838
      %v5863 = vsel %vm5778, %v5862, %v5838
      %v5864 = vsel %vm5777, %v2706, %v5861
      %v5865 = vsel %vm5777, 0, %v5863
      %v5866 = vcosq.f32.pop %v5864
      %v5867 = vsinq.f32.pop %v5864
      %vm5868 = vweird.f32 %v2706
      %v5869 = vadd.s32 %v5865, 3
      %v5870 = vand.u32 %v5869, 3
      %vm5871 = vcmp.lt.s32.totalorder %v5870, 2
      %vm5872 = vcmp.eq.s32.totalorder %v5870, 0
      %v5873 = vxor.u32 %v5867, 2147483648
      %v5874 = vsel %vm5872, %v5866, %v5873
      %vm5875 = vcmp.eq.s32.totalorder %v5870, 2
      %v5876 = vxor.u32 %v5866, 2147483648
      %v5877 = vsel %vm5875, %v5876, %v5867
      %v5878 = vsel %vm5871, %v5874, %v5877
      %v5879 = vsel %vm5868, nan, %v5878
      %v5880 = vand.u32 2147483647, %v2709
      %vm5881 = vcmp.le.f32.partialorder %v5880, 0.7853982
      %vm5882 = vcmp.lt.s32.totalorder %v2709, 0
      %v5883 = vand.u32 %v2709, 2139095040
      %v5884 = vshrl.u32 %v5883, 23
      %v5885 = vsub.s32 %v5884, 127
      %v5886 = vand.u32 2147483647, %v2709
      %v5887 = vand.u32 %v5886, 8388607
      %v5888 = vor.u32 %v5887, 8388608
      %v5889 = vsub.s32 0, %v5888
      %v5890 = vadd.s32 %v5885, 1
      %vm5891 = vcmp.gt.s32.totalorder %v5890, 0
      %v5892 = vsel %vm5891, %v5890, 0
      %v5893 = vshrl.u32 %v5892, 5
      %v5894 = vand.u32 %v5892, 31
      %v5895 = vsub.s32 32, %v5894
      %v5896 = vshrl.u32 683565275, %v5895
      %v5897 = vshll.u32 683565275, %v5894
      %v5898 = vshrl.u32 2475754826, %v5895
      %v5899 = vor.u32 %v5897, %v5898
      %v5900 = vshll.u32 2475754826, %v5894
      %v5901 = vshrl.u32 2131351028, %v5895
      %v5902 = vor.u32 %v5900, %v5901
      %v5903 = vshll.u32 2131351028, %v5894
      %v5904 = vshrl.u32 2102212464, %v5895
      %v5905 = vor.u32 %v5903, %v5904
      %v5906 = vshll.u32 2102212464, %v5894
      %v5907 = vshrl.u32 920167782, %v5895
      %v5908 = vor.u32 %v5906, %v5907
      %v5909 = vshll.u32 920167782, %v5894
      %v5910 = vshrl.u32 1326507024, %v5895
      %v5911 = vor.u32 %v5909, %v5910
      %vm5912 = vcmp.lt.s32.totalorder %v5893, 1
      %vm5913 = vcmp.lt.s32.totalorder %v5893, 2
      %vm5914 = vcmp.lt.s32.totalorder %v5893, 3
      %vm5915 = vcmp.lt.s32.totalorder %v5893, 4
      %v5916 = vsel %vm5912, %v5896, %v5899
      %v5917 = vsel %vm5915, %v5905, 2102212464
      %v5918 = vsel %vm5914, %v5902, %v5917
      %v5919 = vsel %vm5913, %v5916, %v5918
      %v5920 = vsel %vm5912, %v5899, %v5902
      %v5921 = vsel %vm5915, %v5908, 920167782
      %v5922 = vsel %vm5914, %v5905, %v5921
      %v5923 = vsel %vm5913, %v5920, %v5922
      %v5924 = vsel %vm5912, %v5902, %v5905
      %v5925 = vsel %vm5915, %v5911, 1326507024
      %v5926 = vsel %vm5914, %v5908, %v5925
      %v5927 = vsel %vm5913, %v5924, %v5926
      %v5928 = vshll.u32 %v5888, 8
      %v5929 = vmul.u32.u64.compose %v5928, %v5927
      %v5930 = vextract.low.u32 %v5929
      %v5931 = vextract.high.u32 %v5929
      %v5932 = vmul.u32.u64.compose %v5928, %v5923
      %v5933 = vextract.low.u32 %v5932
      %v5934 = vextract.high.u32 %v5932
      %v5935 = vmul.u32 %v5928, %v5919
      %v5936 = vadd.s32 %v5931, %v5933
      %vm5937 = vc.u32 %v5931, %v5933
      %v5938 = vadd.s32 %v5934, 1
      %v5939 = vsel %vm5937, %v5938, %v5934
      %v5940 = vadd.s32 %v5935, %v5939
      %v5941 = vadd.s32 %v5940, 536870912
      %v5942 = vshrl.u32 %v5941, 30
      %v5943 = vshll.u32 %v5942, 30
      %v5944 = vsub.s32 %v5940, %v5943
      %vm5945 = vcmp.lt.s32.totalorder %v5944, 0
      %v5946 = vsub.s32 0, %v5944
      %v5947 = vsel %vm5945, %v5946, %v5944
      %v5948 = vclz %v5947
      %v5949 = vsub.s32 %v5948, 2
      %vm5950 = vcmp.gt.s32.totalorder 0, %v5949
      %v5951 = vsel %vm5950, 0, %v5949
      %v5952 = vsub.s32 32, %v5951
      %v5953 = vshll.u32 %v5944, %v5951
      %v5954 = vshrl.u32 %v5936, %v5952
      %v5955 = vor.u32 %v5953, %v5954
      %v5956 = vsub.s32 4294967266, %v5951
      %v5957 = vadd.s32 %v5956, 127
      %v5958 = vshll.u32 %v5957, 23
      %v5959 = vor.u32 4788187, %v5958
      %v5960 = vand.u32 2147483647, %v5959
      %v5962 = vcvt.s32.f32 %v5955
      %v5963 = vmul.f32 %v5962, %v5960
      %v5964 = vxor.u32 %v5963, 2147483648
      %v5965 = vsel %vm5882, %v5964, %v5963
      %v5966 = vsub.s32 4, %v5942
      %v5967 = vsel %vm5882, %v5966, %v5942
      %v5968 = vsel %vm5881, %v2709, %v5965
      %v5969 = vsel %vm5881, 0, %v5967
      %v5970 = vcosq.f32.pop %v5968
      %v5971 = vsinq.f32.pop %v5968
      %vm5972 = vweird.f32 %v2709
      %v5973 = vadd.s32 %v5969, 3
      %v5974 = vand.u32 %v5973, 3
      %vm5975 = vcmp.lt.s32.totalorder %v5974, 2
      %vm5976 = vcmp.eq.s32.totalorder %v5974, 0
      %v5977 = vxor.u32 %v5971, 2147483648
      %v5978 = vsel %vm5976, %v5970, %v5977
      %vm5979 = vcmp.eq.s32.totalorder %v5974, 2
      %v5980 = vxor.u32 %v5970, 2147483648
      %v5981 = vsel %vm5979, %v5980, %v5971
      %v5982 = vsel %vm5975, %v5978, %v5981
      %v5983 = vsel %vm5972, nan, %v5982
      %v5984 = vand.u32 2147483647, %v2714
      %vm5985 = vcmp.le.f32.partialorder %v5984, 0.7853982
      %vm5986 = vcmp.lt.s32.totalorder %v2714, 0
      %v5987 = vand.u32 %v2714, 2139095040
      %v5988 = vshrl.u32 %v5987, 23
      %v5989 = vsub.s32 %v5988, 127
      %v5990 = vand.u32 2147483647, %v2714
      %v5991 = vand.u32 %v5990, 8388607
      %v5992 = vor.u32 %v5991, 8388608
      %v5993 = vsub.s32 0, %v5992
      %v5994 = vadd.s32 %v5989, 1
      %vm5995 = vcmp.gt.s32.totalorder %v5994, 0
      %v5996 = vsel %vm5995, %v5994, 0
      %v5997 = vshrl.u32 %v5996, 5
      %v5998 = vand.u32 %v5996, 31
      %v5999 = vsub.s32 32, %v5998
      %v6000 = vshrl.u32 683565275, %v5999
      %v6001 = vshll.u32 683565275, %v5998
      %v6002 = vshrl.u32 2475754826, %v5999
      %v6003 = vor.u32 %v6001, %v6002
      %v6004 = vshll.u32 2475754826, %v5998
      %v6005 = vshrl.u32 2131351028, %v5999
      %v6006 = vor.u32 %v6004, %v6005
      %v6007 = vshll.u32 2131351028, %v5998
      %v6008 = vshrl.u32 2102212464, %v5999
      %v6009 = vor.u32 %v6007, %v6008
      %v6010 = vshll.u32 2102212464, %v5998
      %v6011 = vshrl.u32 920167782, %v5999
      %v6012 = vor.u32 %v6010, %v6011
      %v6013 = vshll.u32 920167782, %v5998
      %v6014 = vshrl.u32 1326507024, %v5999
      %v6015 = vor.u32 %v6013, %v6014
      %vm6016 = vcmp.lt.s32.totalorder %v5997, 1
      %vm6017 = vcmp.lt.s32.totalorder %v5997, 2
      %vm6018 = vcmp.lt.s32.totalorder %v5997, 3
      %vm6019 = vcmp.lt.s32.totalorder %v5997, 4
      %v6020 = vsel %vm6016, %v6000, %v6003
      %v6021 = vsel %vm6019, %v6009, 2102212464
      %v6022 = vsel %vm6018, %v6006, %v6021
      %v6023 = vsel %vm6017, %v6020, %v6022
      %v6024 = vsel %vm6016, %v6003, %v6006
      %v6025 = vsel %vm6019, %v6012, 920167782
      %v6026 = vsel %vm6018, %v6009, %v6025
      %v6027 = vsel %vm6017, %v6024, %v6026
      %v6028 = vsel %vm6016, %v6006, %v6009
      %v6029 = vsel %vm6019, %v6015, 1326507024
      %v6030 = vsel %vm6018, %v6012, %v6029
      %v6031 = vsel %vm6017, %v6028, %v6030
      %v6032 = vshll.u32 %v5992, 8
      %v6033 = vmul.u32.u64.compose %v6032, %v6031
      %v6034 = vextract.low.u32 %v6033
      %v6035 = vextract.high.u32 %v6033
      %v6036 = vmul.u32.u64.compose %v6032, %v6027
      %v6037 = vextract.low.u32 %v6036
      %v6038 = vextract.high.u32 %v6036
      %v6039 = vmul.u32 %v6032, %v6023
      %v6040 = vadd.s32 %v6035, %v6037
      %vm6041 = vc.u32 %v6035, %v6037
      %v6042 = vadd.s32 %v6038, 1
      %v6043 = vsel %vm6041, %v6042, %v6038
      %v6044 = vadd.s32 %v6039, %v6043
      %v6045 = vadd.s32 %v6044, 536870912
      %v6046 = vshrl.u32 %v6045, 30
      %v6047 = vshll.u32 %v6046, 30
      %v6048 = vsub.s32 %v6044, %v6047
      %vm6049 = vcmp.lt.s32.totalorder %v6048, 0
      %v6050 = vsub.s32 0, %v6048
      %v6051 = vsel %vm6049, %v6050, %v6048
      %v6052 = vclz %v6051
      %v6053 = vsub.s32 %v6052, 2
      %vm6054 = vcmp.gt.s32.totalorder 0, %v6053
      %v6055 = vsel %vm6054, 0, %v6053
      %v6056 = vsub.s32 32, %v6055
      %v6057 = vshll.u32 %v6048, %v6055
      %v6058 = vshrl.u32 %v6040, %v6056
      %v6059 = vor.u32 %v6057, %v6058
      %v6060 = vsub.s32 4294967266, %v6055
      %v6061 = vadd.s32 %v6060, 127
      %v6062 = vshll.u32 %v6061, 23
      %v6063 = vor.u32 4788187, %v6062
      %v6064 = vand.u32 2147483647, %v6063
      %v6066 = vcvt.s32.f32 %v6059
      %v6067 = vmul.f32 %v6066, %v6064
      %v6068 = vxor.u32 %v6067, 2147483648
      %v6069 = vsel %vm5986, %v6068, %v6067
      %v6070 = vsub.s32 4, %v6046
      %v6071 = vsel %vm5986, %v6070, %v6046
      %v6072 = vsel %vm5985, %v2714, %v6069
      %v6073 = vsel %vm5985, 0, %v6071
      %v6074 = vcosq.f32.pop %v6072
      %v6075 = vsinq.f32.pop %v6072
      %vm6076 = vweird.f32 %v2714
      %v6077 = vadd.s32 %v6073, 3
      %v6078 = vand.u32 %v6077, 3
      %vm6079 = vcmp.lt.s32.totalorder %v6078, 2
      %vm6080 = vcmp.eq.s32.totalorder %v6078, 0
      %v6081 = vxor.u32 %v6075, 2147483648
      %v6082 = vsel %vm6080, %v6074, %v6081
      %vm6083 = vcmp.eq.s32.totalorder %v6078, 2
      %v6084 = vxor.u32 %v6074, 2147483648
      %v6085 = vsel %vm6083, %v6084, %v6075
      %v6086 = vsel %vm6079, %v6082, %v6085
      %v6087 = vsel %vm6076, nan, %v6086
      %v6088 = vand.u32 2147483647, %v2717
      %vm6089 = vcmp.le.f32.partialorder %v6088, 0.7853982
      %vm6090 = vcmp.lt.s32.totalorder %v2717, 0
      %v6091 = vand.u32 %v2717, 2139095040
      %v6092 = vshrl.u32 %v6091, 23
      %v6093 = vsub.s32 %v6092, 127
      %v6094 = vand.u32 2147483647, %v2717
      %v6095 = vand.u32 %v6094, 8388607
      %v6096 = vor.u32 %v6095, 8388608
      %v6097 = vsub.s32 0, %v6096
      %v6098 = vadd.s32 %v6093, 1
      %vm6099 = vcmp.gt.s32.totalorder %v6098, 0
      %v6100 = vsel %vm6099, %v6098, 0
      %v6101 = vshrl.u32 %v6100, 5
      %v6102 = vand.u32 %v6100, 31
      %v6103 = vsub.s32 32, %v6102
      %v6104 = vshrl.u32 683565275, %v6103
      %v6105 = vshll.u32 683565275, %v6102
      %v6106 = vshrl.u32 2475754826, %v6103
      %v6107 = vor.u32 %v6105, %v6106
      %v6108 = vshll.u32 2475754826, %v6102
      %v6109 = vshrl.u32 2131351028, %v6103
      %v6110 = vor.u32 %v6108, %v6109
      %v6111 = vshll.u32 2131351028, %v6102
      %v6112 = vshrl.u32 2102212464, %v6103
      %v6113 = vor.u32 %v6111, %v6112
      %v6114 = vshll.u32 2102212464, %v6102
      %v6115 = vshrl.u32 920167782, %v6103
      %v6116 = vor.u32 %v6114, %v6115
      %v6117 = vshll.u32 920167782, %v6102
      %v6118 = vshrl.u32 1326507024, %v6103
      %v6119 = vor.u32 %v6117, %v6118
      %vm6120 = vcmp.lt.s32.totalorder %v6101, 1
      %vm6121 = vcmp.lt.s32.totalorder %v6101, 2
      %vm6122 = vcmp.lt.s32.totalorder %v6101, 3
      %vm6123 = vcmp.lt.s32.totalorder %v6101, 4
      %v6124 = vsel %vm6120, %v6104, %v6107
      %v6125 = vsel %vm6123, %v6113, 2102212464
      %v6126 = vsel %vm6122, %v6110, %v6125
      %v6127 = vsel %vm6121, %v6124, %v6126
      %v6128 = vsel %vm6120, %v6107, %v6110
      %v6129 = vsel %vm6123, %v6116, 920167782
      %v6130 = vsel %vm6122, %v6113, %v6129
      %v6131 = vsel %vm6121, %v6128, %v6130
      %v6132 = vsel %vm6120, %v6110, %v6113
      %v6133 = vsel %vm6123, %v6119, 1326507024
      %v6134 = vsel %vm6122, %v6116, %v6133
      %v6135 = vsel %vm6121, %v6132, %v6134
      %v6136 = vshll.u32 %v6096, 8
      %v6137 = vmul.u32.u64.compose %v6136, %v6135
      %v6138 = vextract.low.u32 %v6137
      %v6139 = vextract.high.u32 %v6137
      %v6140 = vmul.u32.u64.compose %v6136, %v6131
      %v6141 = vextract.low.u32 %v6140
      %v6142 = vextract.high.u32 %v6140
      %v6143 = vmul.u32 %v6136, %v6127
      %v6144 = vadd.s32 %v6139, %v6141
      %vm6145 = vc.u32 %v6139, %v6141
      %v6146 = vadd.s32 %v6142, 1
      %v6147 = vsel %vm6145, %v6146, %v6142
      %v6148 = vadd.s32 %v6143, %v6147
      %v6149 = vadd.s32 %v6148, 536870912
      %v6150 = vshrl.u32 %v6149, 30
      %v6151 = vshll.u32 %v6150, 30
      %v6152 = vsub.s32 %v6148, %v6151
      %vm6153 = vcmp.lt.s32.totalorder %v6152, 0
      %v6154 = vsub.s32 0, %v6152
      %v6155 = vsel %vm6153, %v6154, %v6152
      %v6156 = vclz %v6155
      %v6157 = vsub.s32 %v6156, 2
      %vm6158 = vcmp.gt.s32.totalorder 0, %v6157
      %v6159 = vsel %vm6158, 0, %v6157
      %v6160 = vsub.s32 32, %v6159
      %v6161 = vshll.u32 %v6152, %v6159
      %v6162 = vshrl.u32 %v6144, %v6160
      %v6163 = vor.u32 %v6161, %v6162
      %v6164 = vsub.s32 4294967266, %v6159
      %v6165 = vadd.s32 %v6164, 127
      %v6166 = vshll.u32 %v6165, 23
      %v6167 = vor.u32 4788187, %v6166
      %v6168 = vand.u32 2147483647, %v6167
      %v6170 = vcvt.s32.f32 %v6163
      %v6171 = vmul.f32 %v6170, %v6168
      %v6172 = vxor.u32 %v6171, 2147483648
      %v6173 = vsel %vm6090, %v6172, %v6171
      %v6174 = vsub.s32 4, %v6150
      %v6175 = vsel %vm6090, %v6174, %v6150
      %v6176 = vsel %vm6089, %v2717, %v6173
      %v6177 = vsel %vm6089, 0, %v6175
      %v6178 = vcosq.f32.pop %v6176
      %v6179 = vsinq.f32.pop %v6176
      %vm6180 = vweird.f32 %v2717
      %v6181 = vadd.s32 %v6177, 3
      %v6182 = vand.u32 %v6181, 3
      %vm6183 = vcmp.lt.s32.totalorder %v6182, 2
      %vm6184 = vcmp.eq.s32.totalorder %v6182, 0
      %v6185 = vxor.u32 %v6179, 2147483648
      %v6186 = vsel %vm6184, %v6178, %v6185
      %vm6187 = vcmp.eq.s32.totalorder %v6182, 2
      %v6188 = vxor.u32 %v6178, 2147483648
      %v6189 = vsel %vm6187, %v6188, %v6179
      %v6190 = vsel %vm6183, %v6186, %v6189
      %v6191 = vsel %vm6180, nan, %v6190
      %v6192 = vpack.c.bf16 %v4735, %v4631
      %v6193 = vpack.c.bf16 %v4943, %v4839
      %v6194 = vpack.c.bf16 %v5151, %v5047
      %v6195 = vpack.c.bf16 %v5359, %v5255
      %v6196 = vpack.c.bf16 %v5567, %v5463
      %v6197 = vpack.c.bf16 %v5775, %v5671
      %v6198 = vpack.c.bf16 %v5983, %v5879
      %v6199 = vpack.c.bf16 %v6191, %v6087
      %v6202 = vunpack.c.l.b16 %v2866
      %v6203 = vunpack.c.l.b16 %v2867
      %v6204 = vpack.c.b16 %v6203, %v6202
      %vm6206 = vcmask 130048
      %v6208 = vsel %vm6206, %v6192, 0
      %v6211 = vsel %vm6206, %v6193, 0
      %v6214 = vsel %vm6206, %v6194, 0
      %v6217 = vsel %vm6206, %v6195, 0
      %v6220 = vsel %vm6206, %v6196, 0
      %v6223 = vsel %vm6206, %v6197, 0
      %v6226 = vsel %vm6206, %v6198, 0
      %v6229 = vsel %vm6206, %v6199, 0
      %6231 = vmatprep.subr.bf16.mxu0 0
      %6232 = vmatpush1.bf16.msra.mxu0 0
      %6233 = vmatprep.subr.bf16.mxu0 0
      %6234 = vmatpush1.bf16.msra.mxu0 0
      %6235 = vmatprep.subr.bf16.mxu0 0
      %6236 = vmatpush1.bf16.msra.mxu0 0
      %6237 = vmatprep.subr.bf16.mxu0 0
      %6238 = vmatpush1.bf16.msra.mxu0 0
      %6239 = vmatprep.subr.bf16.mxu0 0
      %6240 = vmatpush1.bf16.msra.mxu0 0
      %6241 = vmatprep.subr.bf16.mxu0 0
      %6242 = vmatpush1.bf16.msra.mxu0 0
      %6243 = vmatprep.subr.bf16.mxu0 0
      %6244 = vmatpush1.bf16.msra.mxu0 0
      %6245 = vmatprep.subr.bf16.mxu0 0
      %6246 = vmatpush1.bf16.msra.mxu0 %v6204
      %6247 = vmatprep.subr.bf16.mxu0 0
      %6248 = vmatpush2.bf16.msra.mxu0 0
      %6249 = vmatprep.subr.bf16.mxu0 0
      %6250 = vmatpush2.bf16.msra.mxu0 0
      %6251 = vmatprep.subr.bf16.mxu0 0
      %6252 = vmatpush2.bf16.msra.mxu0 0
      %6253 = vmatprep.subr.bf16.mxu0 0
      %6254 = vmatpush2.bf16.msra.mxu0 0
      %6255 = vmatprep.subr.bf16.mxu0 0
      %6256 = vmatpush2.bf16.msra.mxu0 0
      %6257 = vmatprep.subr.bf16.mxu0 0
      %6258 = vmatpush2.bf16.msra.mxu0 0
      %6259 = vmatprep.subr.bf16.mxu0 0
      %6260 = vmatpush2.bf16.msra.mxu0 0
      %6261 = vmatprep.subr.bf16.mxu0 0
      %6262 = vmatpush2.bf16.msra.mxu0 0
      %6263 = vmatprep.mubr.bf16.mxu0 0
      %6264 = vmatmul.mubr.bf16.gmra.mxu0 %v6208
      %v6265 = vpop.f32.mrf.mxu0
      %v6266 = vadd.f32 0.0, %v6265
      %v6267 = vpop.f32.mrf.mxu0
      %v6268 = vpop.f32.mrf.mxu0
      %v6269 = vadd.f32 0.0, %v6268
      %v6270 = vpop.f32.mrf.mxu0
      %6271 = vmatprep.mubr.bf16.mxu0 0
      %6272 = vmatmul.mubr.bf16.gmra.mxu0 %v6211
      %v6273 = vpop.f32.mrf.mxu0
      %v6274 = vadd.f32 0.0, %v6273
      %v6275 = vpop.f32.mrf.mxu0
      %v6276 = vpop.f32.mrf.mxu0
      %v6277 = vadd.f32 0.0, %v6276
      %v6278 = vpop.f32.mrf.mxu0
      %6279 = vmatprep.mubr.bf16.mxu0 0
      %6280 = vmatmul.mubr.bf16.gmra.mxu0 %v6214
      %v6281 = vpop.f32.mrf.mxu0
      %v6282 = vadd.f32 0.0, %v6281
      %v6283 = vpop.f32.mrf.mxu0
      %v6284 = vpop.f32.mrf.mxu0
      %v6285 = vadd.f32 0.0, %v6284
      %v6286 = vpop.f32.mrf.mxu0
      %6287 = vmatprep.mubr.bf16.mxu0 0
      %6288 = vmatmul.mubr.bf16.gmra.mxu0 %v6217
      %v6289 = vpop.f32.mrf.mxu0
      %v6290 = vadd.f32 0.0, %v6289
      %v6291 = vpop.f32.mrf.mxu0
      %v6292 = vpop.f32.mrf.mxu0
      %v6293 = vadd.f32 0.0, %v6292
      %v6294 = vpop.f32.mrf.mxu0
      %6295 = vmatprep.mubr.bf16.mxu0 0
      %6296 = vmatmul.mubr.bf16.gmra.mxu0 %v6220
      %v6297 = vpop.f32.mrf.mxu0
      %v6298 = vadd.f32 0.0, %v6297
      %v6299 = vpop.f32.mrf.mxu0
      %v6300 = vpop.f32.mrf.mxu0
      %v6301 = vadd.f32 0.0, %v6300
      %v6302 = vpop.f32.mrf.mxu0
      %6303 = vmatprep.mubr.bf16.mxu0 0
      %6304 = vmatmul.mubr.bf16.gmra.mxu0 %v6223
      %v6305 = vpop.f32.mrf.mxu0
      %v6306 = vadd.f32 0.0, %v6305
      %v6307 = vpop.f32.mrf.mxu0
      %v6308 = vpop.f32.mrf.mxu0
      %v6309 = vadd.f32 0.0, %v6308
      %v6310 = vpop.f32.mrf.mxu0
      %6311 = vmatprep.mubr.bf16.mxu0 0
      %6312 = vmatmul.mubr.bf16.gmra.mxu0 %v6226
      %v6313 = vpop.f32.mrf.mxu0
      %v6314 = vadd.f32 0.0, %v6313
      %v6315 = vpop.f32.mrf.mxu0
      %v6316 = vpop.f32.mrf.mxu0
      %v6317 = vadd.f32 0.0, %v6316
      %v6318 = vpop.f32.mrf.mxu0
      %6319 = vmatprep.mubr.bf16.mxu0 0
      %6320 = vmatmul.mubr.bf16.gmra.mxu0 %v6229
      %v6321 = vpop.f32.mrf.mxu0
      %v6322 = vadd.f32 0.0, %v6321
      %v6323 = vpop.f32.mrf.mxu0
      %v6324 = vpop.f32.mrf.mxu0
      %v6325 = vadd.f32 0.0, %v6324
      %v6326 = vpop.f32.mrf.mxu0
      %6327 = vdwg.mxu0
      %v6330 = vunpack.c.l.b16 %v2864
      %v6331 = vunpack.c.l.b16 %v2865
      %v6332 = vpack.c.b16 %v6331, %v6330
      %v6335 = vsel %vm6206, %v4520, 0
      %v6338 = vsel %vm6206, %v4521, 0
      %v6341 = vsel %vm6206, %v4522, 0
      %v6344 = vsel %vm6206, %v4523, 0
      %v6347 = vsel %vm6206, %v4524, 0
      %v6350 = vsel %vm6206, %v4525, 0
      %v6353 = vsel %vm6206, %v4526, 0
      %v6356 = vsel %vm6206, %v4527, 0
      %6358 = vmatprep.subr.bf16.mxu0 0
      %6359 = vmatpush1.bf16.msra.mxu0 0
      %6360 = vmatprep.subr.bf16.mxu0 0
      %6361 = vmatpush1.bf16.msra.mxu0 0
      %6362 = vmatprep.subr.bf16.mxu0 0
      %6363 = vmatpush1.bf16.msra.mxu0 0
      %6364 = vmatprep.subr.bf16.mxu0 0
      %6365 = vmatpush1.bf16.msra.mxu0 0
      %6366 = vmatprep.subr.bf16.mxu0 0
      %6367 = vmatpush1.bf16.msra.mxu0 0
      %6368 = vmatprep.subr.bf16.mxu0 0
      %6369 = vmatpush1.bf16.msra.mxu0 0
      %6370 = vmatprep.subr.bf16.mxu0 0
      %6371 = vmatpush1.bf16.msra.mxu0 0
      %6372 = vmatprep.subr.bf16.mxu0 0
      %6373 = vmatpush1.bf16.msra.mxu0 %v6332
      %6374 = vmatprep.subr.bf16.mxu0 0
      %6375 = vmatpush2.bf16.msra.mxu0 0
      %6376 = vmatprep.subr.bf16.mxu0 0
      %6377 = vmatpush2.bf16.msra.mxu0 0
      %6378 = vmatprep.subr.bf16.mxu0 0
      %6379 = vmatpush2.bf16.msra.mxu0 0
      %6380 = vmatprep.subr.bf16.mxu0 0
      %6381 = vmatpush2.bf16.msra.mxu0 0
      %6382 = vmatprep.subr.bf16.mxu0 0
      %6383 = vmatpush2.bf16.msra.mxu0 0
      %6384 = vmatprep.subr.bf16.mxu0 0
      %6385 = vmatpush2.bf16.msra.mxu0 0
      %6386 = vmatprep.subr.bf16.mxu0 0
      %6387 = vmatpush2.bf16.msra.mxu0 0
      %6388 = vmatprep.subr.bf16.mxu0 0
      %6389 = vmatpush2.bf16.msra.mxu0 0
      %6390 = vmatprep.mubr.bf16.mxu0 0
      %6391 = vmatmul.mubr.bf16.gmra.mxu0 %v6335
      %v6392 = vpop.f32.mrf.mxu0
      %v6393 = vadd.f32 %v6266, %v6392
      %v6394 = vpop.f32.mrf.mxu0
      %v6395 = vpop.f32.mrf.mxu0
      %v6396 = vadd.f32 %v6269, %v6395
      %v6397 = vpop.f32.mrf.mxu0
      %6398 = vmatprep.mubr.bf16.mxu0 0
      %6399 = vmatmul.mubr.bf16.gmra.mxu0 %v6338
      %v6400 = vpop.f32.mrf.mxu0
      %v6401 = vadd.f32 %v6274, %v6400
      %v6402 = vpop.f32.mrf.mxu0
      %v6403 = vpop.f32.mrf.mxu0
      %v6404 = vadd.f32 %v6277, %v6403
      %v6405 = vpop.f32.mrf.mxu0
      %6406 = vmatprep.mubr.bf16.mxu0 0
      %6407 = vmatmul.mubr.bf16.gmra.mxu0 %v6341
      %v6408 = vpop.f32.mrf.mxu0
      %v6409 = vadd.f32 %v6282, %v6408
      %v6410 = vpop.f32.mrf.mxu0
      %v6411 = vpop.f32.mrf.mxu0
      %v6412 = vadd.f32 %v6285, %v6411
      %v6413 = vpop.f32.mrf.mxu0
      %6414 = vmatprep.mubr.bf16.mxu0 0
      %6415 = vmatmul.mubr.bf16.gmra.mxu0 %v6344
      %v6416 = vpop.f32.mrf.mxu0
      %v6417 = vadd.f32 %v6290, %v6416
      %v6418 = vpop.f32.mrf.mxu0
      %v6419 = vpop.f32.mrf.mxu0
      %v6420 = vadd.f32 %v6293, %v6419
      %v6421 = vpop.f32.mrf.mxu0
      %6422 = vmatprep.mubr.bf16.mxu0 0
      %6423 = vmatmul.mubr.bf16.gmra.mxu0 %v6347
      %v6424 = vpop.f32.mrf.mxu0
      %v6425 = vadd.f32 %v6298, %v6424
      %v6426 = vpop.f32.mrf.mxu0
      %v6427 = vpop.f32.mrf.mxu0
      %v6428 = vadd.f32 %v6301, %v6427
      %v6429 = vpop.f32.mrf.mxu0
      %6430 = vmatprep.mubr.bf16.mxu0 0
      %6431 = vmatmul.mubr.bf16.gmra.mxu0 %v6350
      %v6432 = vpop.f32.mrf.mxu0
      %v6433 = vadd.f32 %v6306, %v6432
      %v6434 = vpop.f32.mrf.mxu0
      %v6435 = vpop.f32.mrf.mxu0
      %v6436 = vadd.f32 %v6309, %v6435
      %v6437 = vpop.f32.mrf.mxu0
      %6438 = vmatprep.mubr.bf16.mxu0 0
      %6439 = vmatmul.mubr.bf16.gmra.mxu0 %v6353
      %v6440 = vpop.f32.mrf.mxu0
      %v6441 = vadd.f32 %v6314, %v6440
      %v6442 = vpop.f32.mrf.mxu0
      %v6443 = vpop.f32.mrf.mxu0
      %v6444 = vadd.f32 %v6317, %v6443
      %v6445 = vpop.f32.mrf.mxu0
      %6446 = vmatprep.mubr.bf16.mxu0 0
      %6447 = vmatmul.mubr.bf16.gmra.mxu0 %v6356
      %v6448 = vpop.f32.mrf.mxu0
      %v6449 = vadd.f32 %v6322, %v6448
      %v6450 = vpop.f32.mrf.mxu0
      %v6451 = vpop.f32.mrf.mxu0
      %v6452 = vadd.f32 %v6325, %v6451
      %v6453 = vpop.f32.mrf.mxu0
      %6454 = vdwg.mxu0
      %v6455 = vpack.c.bf16 %v2849, %v2848
      %v6456 = vpack.c.bf16 %v2851, %v2850
      %v6457 = vpack.c.bf16 %v2853, %v2852
      %v6458 = vpack.c.bf16 %v2855, %v2854
      %v6459 = vpack.c.bf16 %v2857, %v2856
      %v6460 = vpack.c.bf16 %v2859, %v2858
      %v6461 = vpack.c.bf16 %v2861, %v2860
      %v6462 = vpack.c.bf16 %v2863, %v2862
      %6471 = vrot.lane.b32.xlu0 %v6455, 112
      %v6472 = vpop.permute.xlu0 %6471
      %6473 = vrot.lane.b32.xlu0 %v6456, 112
      %v6474 = vpop.permute.xlu0 %6473
      %6475 = vrot.lane.b32.xlu0 %v6457, 112
      %v6476 = vpop.permute.xlu0 %6475
      %6477 = vrot.lane.b32.xlu0 %v6458, 112
      %v6478 = vpop.permute.xlu0 %6477
      %6479 = vrot.lane.b32.xlu0 %v6459, 112
      %v6480 = vpop.permute.xlu0 %6479
      %6481 = vrot.lane.b32.xlu0 %v6460, 112
      %v6482 = vpop.permute.xlu0 %6481
      %6483 = vrot.lane.b32.xlu0 %v6461, 112
      %v6484 = vpop.permute.xlu0 %6483
      %6485 = vrot.lane.b32.xlu0 %v6462, 112
      %v6486 = vpop.permute.xlu0 %6485
      %v6491 = vunpack.c.l.b16 %v2868
      %v6492 = vunpack.c.l.b16 %v2869
      %v6493 = vunpack.c.l.b16 %v2870
      %v6494 = vunpack.c.l.b16 %v2871
      %v6495 = vpack.c.b16 %v6492, %v6491
      %v6496 = vpack.c.b16 %v6494, %v6493
      %v6500 = vsel %vm323, %v6472, 0
      %v6503 = vsel %vm323, %v6474, 0
      %v6506 = vsel %vm323, %v6476, 0
      %v6509 = vsel %vm323, %v6478, 0
      %v6512 = vsel %vm323, %v6480, 0
      %v6515 = vsel %vm323, %v6482, 0
      %v6518 = vsel %vm323, %v6484, 0
      %v6521 = vsel %vm323, %v6486, 0
      %6523 = vmatprep.subr.bf16.mxu0 0
      %6524 = vmatpush1.bf16.msra.mxu0 0
      %6525 = vmatprep.subr.bf16.mxu0 0
      %6526 = vmatpush1.bf16.msra.mxu0 0
      %6527 = vmatprep.subr.bf16.mxu0 0
      %6528 = vmatpush1.bf16.msra.mxu0 0
      %6529 = vmatprep.subr.bf16.mxu0 0
      %6530 = vmatpush1.bf16.msra.mxu0 0
      %6531 = vmatprep.subr.bf16.mxu0 0
      %6532 = vmatpush1.bf16.msra.mxu0 0
      %6533 = vmatprep.subr.bf16.mxu0 0
      %6534 = vmatpush1.bf16.msra.mxu0 0
      %6535 = vmatprep.subr.bf16.mxu0 0
      %6536 = vmatpush1.bf16.msra.mxu0 %v6496
      %6537 = vmatprep.subr.bf16.mxu0 0
      %6538 = vmatpush1.bf16.msra.mxu0 %v6495
      %6539 = vmatprep.subr.bf16.mxu0 0
      %6540 = vmatpush2.bf16.msra.mxu0 0
      %6541 = vmatprep.subr.bf16.mxu0 0
      %6542 = vmatpush2.bf16.msra.mxu0 0
      %6543 = vmatprep.subr.bf16.mxu0 0
      %6544 = vmatpush2.bf16.msra.mxu0 0
      %6545 = vmatprep.subr.bf16.mxu0 0
      %6546 = vmatpush2.bf16.msra.mxu0 0
      %6547 = vmatprep.subr.bf16.mxu0 0
      %6548 = vmatpush2.bf16.msra.mxu0 0
      %6549 = vmatprep.subr.bf16.mxu0 0
      %6550 = vmatpush2.bf16.msra.mxu0 0
      %6551 = vmatprep.subr.bf16.mxu0 0
      %6552 = vmatpush2.bf16.msra.mxu0 0
      %6553 = vmatprep.subr.bf16.mxu0 0
      %6554 = vmatpush2.bf16.msra.mxu0 0
      %6555 = vmatprep.mubr.bf16.mxu0 0
      %6556 = vmatmul.mubr.bf16.gmra.mxu0 %v6500
      %v6557 = vpop.f32.mrf.mxu0
      %v6558 = vadd.f32 0.0, %v6557
      %v6559 = vpop.f32.mrf.mxu0
      %v6560 = vpop.f32.mrf.mxu0
      %v6561 = vadd.f32 0.0, %v6560
      %v6562 = vpop.f32.mrf.mxu0
      %6563 = vmatprep.mubr.bf16.mxu0 0
      %6564 = vmatmul.mubr.bf16.gmra.mxu0 %v6503
      %v6565 = vpop.f32.mrf.mxu0
      %v6566 = vadd.f32 0.0, %v6565
      %v6567 = vpop.f32.mrf.mxu0
      %v6568 = vpop.f32.mrf.mxu0
      %v6569 = vadd.f32 0.0, %v6568
      %v6570 = vpop.f32.mrf.mxu0
      %6571 = vmatprep.mubr.bf16.mxu0 0
      %6572 = vmatmul.mubr.bf16.gmra.mxu0 %v6506
      %v6573 = vpop.f32.mrf.mxu0
      %v6574 = vadd.f32 0.0, %v6573
      %v6575 = vpop.f32.mrf.mxu0
      %v6576 = vpop.f32.mrf.mxu0
      %v6577 = vadd.f32 0.0, %v6576
      %v6578 = vpop.f32.mrf.mxu0
      %6579 = vmatprep.mubr.bf16.mxu0 0
      %6580 = vmatmul.mubr.bf16.gmra.mxu0 %v6509
      %v6581 = vpop.f32.mrf.mxu0
      %v6582 = vadd.f32 0.0, %v6581
      %v6583 = vpop.f32.mrf.mxu0
      %v6584 = vpop.f32.mrf.mxu0
      %v6585 = vadd.f32 0.0, %v6584
      %v6586 = vpop.f32.mrf.mxu0
      %6587 = vmatprep.mubr.bf16.mxu0 0
      %6588 = vmatmul.mubr.bf16.gmra.mxu0 %v6512
      %v6589 = vpop.f32.mrf.mxu0
      %v6590 = vadd.f32 0.0, %v6589
      %v6591 = vpop.f32.mrf.mxu0
      %v6592 = vpop.f32.mrf.mxu0
      %v6593 = vadd.f32 0.0, %v6592
      %v6594 = vpop.f32.mrf.mxu0
      %6595 = vmatprep.mubr.bf16.mxu0 0
      %6596 = vmatmul.mubr.bf16.gmra.mxu0 %v6515
      %v6597 = vpop.f32.mrf.mxu0
      %v6598 = vadd.f32 0.0, %v6597
      %v6599 = vpop.f32.mrf.mxu0
      %v6600 = vpop.f32.mrf.mxu0
      %v6601 = vadd.f32 0.0, %v6600
      %v6602 = vpop.f32.mrf.mxu0
      %6603 = vmatprep.mubr.bf16.mxu0 0
      %6604 = vmatmul.mubr.bf16.gmra.mxu0 %v6518
      %v6605 = vpop.f32.mrf.mxu0
      %v6606 = vadd.f32 0.0, %v6605
      %v6607 = vpop.f32.mrf.mxu0
      %v6608 = vpop.f32.mrf.mxu0
      %v6609 = vadd.f32 0.0, %v6608
      %v6610 = vpop.f32.mrf.mxu0
      %6611 = vmatprep.mubr.bf16.mxu0 0
      %6612 = vmatmul.mubr.bf16.gmra.mxu0 %v6521
      %v6613 = vpop.f32.mrf.mxu0
      %v6614 = vadd.f32 0.0, %v6613
      %v6615 = vpop.f32.mrf.mxu0
      %v6616 = vpop.f32.mrf.mxu0
      %v6617 = vadd.f32 0.0, %v6616
      %v6618 = vpop.f32.mrf.mxu0
      %6619 = vdwg.mxu0
      %v6620 = vadd.f32 %v6393, %v6558
      %v6621 = vadd.f32 %v6396, %v6561
      %v6622 = vadd.f32 %v6401, %v6566
      %v6623 = vadd.f32 %v6404, %v6569
      %v6624 = vadd.f32 %v6409, %v6574
      %v6625 = vadd.f32 %v6412, %v6577
      %v6626 = vadd.f32 %v6417, %v6582
      %v6627 = vadd.f32 %v6420, %v6585
      %v6628 = vadd.f32 %v6425, %v6590
      %v6629 = vadd.f32 %v6428, %v6593
      %v6630 = vadd.f32 %v6433, %v6598
      %v6631 = vadd.f32 %v6436, %v6601
      %v6632 = vadd.f32 %v6441, %v6606
      %v6633 = vadd.f32 %v6444, %v6609
      %v6634 = vadd.f32 %v6449, %v6614
      %v6635 = vadd.f32 %v6452, %v6617
      %v6636 = vadd.f32 %v6620, %v285
      %v6637 = vadd.f32 %v6621, %v285
      %v6638 = vadd.f32 %v6622, %v285
      %v6639 = vadd.f32 %v6623, %v285
      %v6640 = vadd.f32 %v6624, %v285
      %v6641 = vadd.f32 %v6625, %v285
      %v6642 = vadd.f32 %v6626, %v285
      %v6643 = vadd.f32 %v6627, %v285
      %v6644 = vadd.f32 %v6628, %v285
      %v6645 = vadd.f32 %v6629, %v285
      %v6646 = vadd.f32 %v6630, %v285
      %v6647 = vadd.f32 %v6631, %v285
      %v6648 = vadd.f32 %v6632, %v285
      %v6649 = vadd.f32 %v6633, %v285
      %v6650 = vadd.f32 %v6634, %v285
      %v6651 = vadd.f32 %v6635, %v285
      %v6652 = vadd.f32 %v2559, %v6636
      %v6653 = vadd.f32 %v2560, %v6637
      %v6654 = vadd.f32 %v2561, %v6638
      %v6655 = vadd.f32 %v2562, %v6639
      %v6656 = vadd.f32 %v2563, %v6640
      %v6657 = vadd.f32 %v2564, %v6641
      %v6658 = vadd.f32 %v2565, %v6642
      %v6659 = vadd.f32 %v2566, %v6643
      %v6660 = vadd.f32 %v2567, %v6644
      %v6661 = vadd.f32 %v2568, %v6645
      %v6662 = vadd.f32 %v2569, %v6646
      %v6663 = vadd.f32 %v2570, %v6647
      %v6664 = vadd.f32 %v2571, %v6648
      %v6665 = vadd.f32 %v2572, %v6649
      %v6666 = vadd.f32 %v2573, %v6650
      %v6667 = vadd.f32 %v2574, %v6651
      %v6668 = vsel %vm323, %v6652, 0.0
      %6669 = vadd.xlane.f32.xlu0 %v6668
      %v6670 = vpop.xlane.xlu0 %6669
      %v6671 = vsel %vm323, %v6653, 0.0
      %6672 = vadd.xlane.f32.xlu0 %v6671
      %v6673 = vpop.xlane.xlu0 %6672
      %v6674 = vsel %vm323, %v6654, 0.0
      %6675 = vadd.xlane.f32.xlu0 %v6674
      %v6676 = vpop.xlane.xlu0 %6675
      %v6677 = vsel %vm323, %v6655, 0.0
      %6678 = vadd.xlane.f32.xlu0 %v6677
      %v6679 = vpop.xlane.xlu0 %6678
      %v6680 = vsel %vm323, %v6656, 0.0
      %6681 = vadd.xlane.f32.xlu0 %v6680
      %v6682 = vpop.xlane.xlu0 %6681
      %v6683 = vsel %vm323, %v6657, 0.0
      %6684 = vadd.xlane.f32.xlu0 %v6683
      %v6685 = vpop.xlane.xlu0 %6684
      %v6686 = vsel %vm323, %v6658, 0.0
      %6687 = vadd.xlane.f32.xlu0 %v6686
      %v6688 = vpop.xlane.xlu0 %6687
      %v6689 = vsel %vm323, %v6659, 0.0
      %6690 = vadd.xlane.f32.xlu0 %v6689
      %v6691 = vpop.xlane.xlu0 %6690
      %v6692 = vsel %vm323, %v6660, 0.0
      %6693 = vadd.xlane.f32.xlu0 %v6692
      %v6694 = vpop.xlane.xlu0 %6693
      %v6695 = vsel %vm323, %v6661, 0.0
      %6696 = vadd.xlane.f32.xlu0 %v6695
      %v6697 = vpop.xlane.xlu0 %6696
      %v6698 = vsel %vm323, %v6662, 0.0
      %6699 = vadd.xlane.f32.xlu0 %v6698
      %v6700 = vpop.xlane.xlu0 %6699
      %v6701 = vsel %vm323, %v6663, 0.0
      %6702 = vadd.xlane.f32.xlu0 %v6701
      %v6703 = vpop.xlane.xlu0 %6702
      %v6704 = vsel %vm323, %v6664, 0.0
      %6705 = vadd.xlane.f32.xlu0 %v6704
      %v6706 = vpop.xlane.xlu0 %6705
      %v6707 = vsel %vm323, %v6665, 0.0
      %6708 = vadd.xlane.f32.xlu0 %v6707
      %v6709 = vpop.xlane.xlu0 %6708
      %v6710 = vsel %vm323, %v6666, 0.0
      %6711 = vadd.xlane.f32.xlu0 %v6710
      %v6712 = vpop.xlane.xlu0 %6711
      %v6713 = vsel %vm323, %v6667, 0.0
      %6714 = vadd.xlane.f32.xlu0 %v6713
      %v6715 = vpop.xlane.xlu0 %6714
      %v6716 = vmul.f32 %v6670, %v2382
      %v6717 = vmul.f32 %v6673, %v2382
      %v6718 = vmul.f32 %v6676, %v2382
      %v6719 = vmul.f32 %v6679, %v2382
      %v6720 = vmul.f32 %v6682, %v2382
      %v6721 = vmul.f32 %v6685, %v2382
      %v6722 = vmul.f32 %v6688, %v2382
      %v6723 = vmul.f32 %v6691, %v2382
      %v6724 = vmul.f32 %v6694, %v2382
      %v6725 = vmul.f32 %v6697, %v2382
      %v6726 = vmul.f32 %v6700, %v2382
      %v6727 = vmul.f32 %v6703, %v2382
      %v6728 = vmul.f32 %v6706, %v2382
      %v6729 = vmul.f32 %v6709, %v2382
      %v6730 = vmul.f32 %v6712, %v2382
      %v6731 = vmul.f32 %v6715, %v2382
      %v6732 = vsub.f32 %v6652, %v6716
      %v6733 = vsub.f32 %v6653, %v6717
      %v6734 = vsub.f32 %v6654, %v6718
      %v6735 = vsub.f32 %v6655, %v6719
      %v6736 = vsub.f32 %v6656, %v6720
      %v6737 = vsub.f32 %v6657, %v6721
      %v6738 = vsub.f32 %v6658, %v6722
      %v6739 = vsub.f32 %v6659, %v6723
      %v6740 = vsub.f32 %v6660, %v6724
      %v6741 = vsub.f32 %v6661, %v6725
      %v6742 = vsub.f32 %v6662, %v6726
      %v6743 = vsub.f32 %v6663, %v6727
      %v6744 = vsub.f32 %v6664, %v6728
      %v6745 = vsub.f32 %v6665, %v6729
      %v6746 = vsub.f32 %v6666, %v6730
      %v6747 = vsub.f32 %v6667, %v6731
      %v6748 = vmul.f32 %v6732, %v6732
      %v6749 = vmul.f32 %v6733, %v6733
      %v6750 = vmul.f32 %v6734, %v6734
      %v6751 = vmul.f32 %v6735, %v6735
      %v6752 = vmul.f32 %v6736, %v6736
      %v6753 = vmul.f32 %v6737, %v6737
      %v6754 = vmul.f32 %v6738, %v6738
      %v6755 = vmul.f32 %v6739, %v6739
      %v6756 = vmul.f32 %v6740, %v6740
      %v6757 = vmul.f32 %v6741, %v6741
      %v6758 = vmul.f32 %v6742, %v6742
      %v6759 = vmul.f32 %v6743, %v6743
      %v6760 = vmul.f32 %v6744, %v6744
      %v6761 = vmul.f32 %v6745, %v6745
      %v6762 = vmul.f32 %v6746, %v6746
      %v6763 = vmul.f32 %v6747, %v6747
      %v6764 = vsel %vm323, %v6748, 0.0
      %6765 = vadd.xlane.f32.xlu0 %v6764
      %v6766 = vpop.xlane.xlu0 %6765
      %v6767 = vsel %vm323, %v6749, 0.0
      %6768 = vadd.xlane.f32.xlu0 %v6767
      %v6769 = vpop.xlane.xlu0 %6768
      %v6770 = vsel %vm323, %v6750, 0.0
      %6771 = vadd.xlane.f32.xlu0 %v6770
      %v6772 = vpop.xlane.xlu0 %6771
      %v6773 = vsel %vm323, %v6751, 0.0
      %6774 = vadd.xlane.f32.xlu0 %v6773
      %v6775 = vpop.xlane.xlu0 %6774
      %v6776 = vsel %vm323, %v6752, 0.0
      %6777 = vadd.xlane.f32.xlu0 %v6776
      %v6778 = vpop.xlane.xlu0 %6777
      %v6779 = vsel %vm323, %v6753, 0.0
      %6780 = vadd.xlane.f32.xlu0 %v6779
      %v6781 = vpop.xlane.xlu0 %6780
      %v6782 = vsel %vm323, %v6754, 0.0
      %6783 = vadd.xlane.f32.xlu0 %v6782
      %v6784 = vpop.xlane.xlu0 %6783
      %v6785 = vsel %vm323, %v6755, 0.0
      %6786 = vadd.xlane.f32.xlu0 %v6785
      %v6787 = vpop.xlane.xlu0 %6786
      %v6788 = vsel %vm323, %v6756, 0.0
      %6789 = vadd.xlane.f32.xlu0 %v6788
      %v6790 = vpop.xlane.xlu0 %6789
      %v6791 = vsel %vm323, %v6757, 0.0
      %6792 = vadd.xlane.f32.xlu0 %v6791
      %v6793 = vpop.xlane.xlu0 %6792
      %v6794 = vsel %vm323, %v6758, 0.0
      %6795 = vadd.xlane.f32.xlu0 %v6794
      %v6796 = vpop.xlane.xlu0 %6795
      %v6797 = vsel %vm323, %v6759, 0.0
      %6798 = vadd.xlane.f32.xlu0 %v6797
      %v6799 = vpop.xlane.xlu0 %6798
      %v6800 = vsel %vm323, %v6760, 0.0
      %6801 = vadd.xlane.f32.xlu0 %v6800
      %v6802 = vpop.xlane.xlu0 %6801
      %v6803 = vsel %vm323, %v6761, 0.0
      %6804 = vadd.xlane.f32.xlu0 %v6803
      %v6805 = vpop.xlane.xlu0 %6804
      %v6806 = vsel %vm323, %v6762, 0.0
      %6807 = vadd.xlane.f32.xlu0 %v6806
      %v6808 = vpop.xlane.xlu0 %6807
      %v6809 = vsel %vm323, %v6763, 0.0
      %6810 = vadd.xlane.f32.xlu0 %v6809
      %v6811 = vpop.xlane.xlu0 %6810
      %v6812 = vmul.f32 %v6766, %v2382
      %v6813 = vmul.f32 %v6769, %v2382
      %v6814 = vmul.f32 %v6772, %v2382
      %v6815 = vmul.f32 %v6775, %v2382
      %v6816 = vmul.f32 %v6778, %v2382
      %v6817 = vmul.f32 %v6781, %v2382
      %v6818 = vmul.f32 %v6784, %v2382
      %v6819 = vmul.f32 %v6787, %v2382
      %v6820 = vmul.f32 %v6790, %v2382
      %v6821 = vmul.f32 %v6793, %v2382
      %v6822 = vmul.f32 %v6796, %v2382
      %v6823 = vmul.f32 %v6799, %v2382
      %v6824 = vmul.f32 %v6802, %v2382
      %v6825 = vmul.f32 %v6805, %v2382
      %v6826 = vmul.f32 %v6808, %v2382
      %v6827 = vmul.f32 %v6811, %v2382
      %v6828 = vadd.f32 %v6812, 1e-05
      %v6829 = vadd.f32 %v6813, 1e-05
      %v6830 = vadd.f32 %v6814, 1e-05
      %v6831 = vadd.f32 %v6815, 1e-05
      %v6832 = vadd.f32 %v6816, 1e-05
      %v6833 = vadd.f32 %v6817, 1e-05
      %v6834 = vadd.f32 %v6818, 1e-05
      %v6835 = vadd.f32 %v6819, 1e-05
      %v6836 = vadd.f32 %v6820, 1e-05
      %v6837 = vadd.f32 %v6821, 1e-05
      %v6838 = vadd.f32 %v6822, 1e-05
      %v6839 = vadd.f32 %v6823, 1e-05
      %v6840 = vadd.f32 %v6824, 1e-05
      %v6841 = vadd.f32 %v6825, 1e-05
      %v6842 = vadd.f32 %v6826, 1e-05
      %v6843 = vadd.f32 %v6827, 1e-05
      %v6844 = vrsqrt.pop %v6828
      %v6845 = vrsqrt.pop %v6829
      %v6846 = vrsqrt.pop %v6830
      %v6847 = vrsqrt.pop %v6831
      %v6848 = vrsqrt.pop %v6832
      %v6849 = vrsqrt.pop %v6833
      %v6850 = vrsqrt.pop %v6834
      %v6851 = vrsqrt.pop %v6835
      %v6852 = vrsqrt.pop %v6836
      %v6853 = vrsqrt.pop %v6837
      %v6854 = vrsqrt.pop %v6838
      %v6855 = vrsqrt.pop %v6839
      %v6856 = vrsqrt.pop %v6840
      %v6857 = vrsqrt.pop %v6841
      %v6858 = vrsqrt.pop %v6842
      %v6859 = vrsqrt.pop %v6843
      %v6860 = vmul.f32 %v6732, %v6844
      %v6861 = vmul.f32 %v6733, %v6845
      %v6862 = vmul.f32 %v6734, %v6846
      %v6863 = vmul.f32 %v6735, %v6847
      %v6864 = vmul.f32 %v6736, %v6848
      %v6865 = vmul.f32 %v6737, %v6849
      %v6866 = vmul.f32 %v6738, %v6850
      %v6867 = vmul.f32 %v6739, %v6851
      %v6868 = vmul.f32 %v6740, %v6852
      %v6869 = vmul.f32 %v6741, %v6853
      %v6870 = vmul.f32 %v6742, %v6854
      %v6871 = vmul.f32 %v6743, %v6855
      %v6872 = vmul.f32 %v6744, %v6856
      %v6873 = vmul.f32 %v6745, %v6857
      %v6874 = vmul.f32 %v6746, %v6858
      %v6875 = vmul.f32 %v6747, %v6859
      %v6876 = vmul.f32 %v6860, %v286
      %v6877 = vmul.f32 %v6861, %v286
      %v6878 = vmul.f32 %v6862, %v286
      %v6879 = vmul.f32 %v6863, %v286
      %v6880 = vmul.f32 %v6864, %v286
      %v6881 = vmul.f32 %v6865, %v286
      %v6882 = vmul.f32 %v6866, %v286
      %v6883 = vmul.f32 %v6867, %v286
      %v6884 = vmul.f32 %v6868, %v286
      %v6885 = vmul.f32 %v6869, %v286
      %v6886 = vmul.f32 %v6870, %v286
      %v6887 = vmul.f32 %v6871, %v286
      %v6888 = vmul.f32 %v6872, %v286
      %v6889 = vmul.f32 %v6873, %v286
      %v6890 = vmul.f32 %v6874, %v286
      %v6891 = vmul.f32 %v6875, %v286
      %v6892 = vadd.f32 %v6876, %v287
      %v6893 = vadd.f32 %v6877, %v287
      %v6894 = vadd.f32 %v6878, %v287
      %v6895 = vadd.f32 %v6879, %v287
      %v6896 = vadd.f32 %v6880, %v287
      %v6897 = vadd.f32 %v6881, %v287
      %v6898 = vadd.f32 %v6882, %v287
      %v6899 = vadd.f32 %v6883, %v287
      %v6900 = vadd.f32 %v6884, %v287
      %v6901 = vadd.f32 %v6885, %v287
      %v6902 = vadd.f32 %v6886, %v287
      %v6903 = vadd.f32 %v6887, %v287
      %v6904 = vadd.f32 %v6888, %v287
      %v6905 = vadd.f32 %v6889, %v287
      %v6906 = vadd.f32 %v6890, %v287
      %v6907 = vadd.f32 %v6891, %v287
      %6908 = vst.msk [vmem:[%s253] sm:$0xff] %vm323, %v6892
      %6909 = vst.msk [vmem:[%s253 + $0x8] sm:$0xff] %vm323, %v6893
      %6910 = vst.msk [vmem:[%s253 + $0x10] sm:$0xff] %vm323, %v6894
      %6911 = vst.msk [vmem:[%s253 + $0x18] sm:$0xff] %vm323, %v6895
      %6912 = vst.msk [vmem:[%s253 + $0x20] sm:$0xff] %vm323, %v6896
      %6913 = vst.msk [vmem:[%s253 + $0x28] sm:$0xff] %vm323, %v6897
      %6914 = vst.msk [vmem:[%s253 + $0x30] sm:$0xff] %vm323, %v6898
      %6915 = vst.msk [vmem:[%s253 + $0x38] sm:$0xff] %vm323, %v6899
      %6916 = vst.msk [vmem:[%s253 + $0x40] sm:$0xff] %vm323, %v6900
      %6917 = vst.msk [vmem:[%s253 + $0x48] sm:$0xff] %vm323, %v6901
      %6918 = vst.msk [vmem:[%s253 + $0x50] sm:$0xff] %vm323, %v6902
      %6919 = vst.msk [vmem:[%s253 + $0x58] sm:$0xff] %vm323, %v6903
      %6920 = vst.msk [vmem:[%s253 + $0x60] sm:$0xff] %vm323, %v6904
      %6921 = vst.msk [vmem:[%s253 + $0x68] sm:$0xff] %vm323, %v6905
      %6922 = vst.msk [vmem:[%s253 + $0x70] sm:$0xff] %vm323, %v6906
      %6923 = vst.msk [vmem:[%s253 + $0x78] sm:$0xff] %vm323, %v6907
      %s6924 = smul.u32 16, %s17
      %p6925 = scmp.lt.s32.totalorder %s6924, 31
      %s6926 = scalar_select %p6925, %s6924, 31
      %s6927 = smul.addr %s6926, 8
      %s6928 = scalar_lea.vmem %s6, %s6927
      // Predicated region
      $region45: #{tpu_custom_call.1} parent=43 // pred_check
        %p6929 = pneg %p166
      $region46: #{tpu_custom_call.1} parent=43 // pred_check_branch
        %6931 = sbr.rel (%p6929) target = $region48
      $region47: #{tpu_custom_call.1} parent=43 // pred_region
        %s6932 = smul.u32 16, %s17
      $region48: #{tpu_custom_call.1} parent=43 // pred_fallthru
        _
    $region44: #{tpu_custom_call.1} parent=5 // pred_fallthru
      _
    %p6933 = scmp.le.s32.totalorder 2, %s12
    // Predicated region
    $region49: #{tpu_custom_call.1} parent=5 // pred_check
      %p6934 = pneg %p6933
    $region50: #{tpu_custom_call.1} parent=5 // pred_check_branch
      %6936 = sbr.rel (%p6934) target = $region52
    $region51: #{tpu_custom_call.1} parent=5 // pred_region
      %s6937 = ssub.s32 %s12, 2
      // Predicated region
      $region53: #{tpu_custom_call.1} parent=51 // pred_check
        %p6938 = pneg %p172
      $region54: #{tpu_custom_call.1} parent=51 // pred_check_branch
        %6940 = sbr.rel (%p6938) target = $region56
      $region55: #{tpu_custom_call.1} parent=51 // pred_region
        %s6941 = smul.u32 16, %s18
        %p6942 = scmp.lt.s32.totalorder %s6941, 31
        %s6943 = scalar_select %p6942, %s6941, 31
        %s6944 = smul.addr %s6943, 8
        %s6945 = scalar_lea.vmem %s6, %s6944
      $region56: #{tpu_custom_call.1} parent=51 // pred_fallthru
        _
    $region52: #{tpu_custom_call.1} parent=5 // pred_fallthru
      _
  $region6: #{tpu_custom_call.1} parent=0 // loop_footer
    %s16 = sadd.s32 1, %s12
  $region7: #{tpu_custom_call.1} parent=0 // loop_footer_branch
    %11 = sbr.rel target = $region3
  $region8: #{tpu_custom_call.1} parent=0 // loop_exit
    _

</llo_original>
